<compile_context>
chip_gen: v5e
topology: v5e:2x2
jax: 0.10.0
libtpu: 0.0.40
codegen_flags: <defaults>
</compile_context>

<pallas_src>
import jax
import jax.numpy as jnp
import numpy as np
from jax.experimental import pallas as pl
from jax.experimental.pallas import tpu as pltpu

L_IN = 128            # embs in the PyTorch module
C1, C2 = 64, 128
K = 3
HID = 1024
N_OUT = 2
L2 = L_IN // 2        # 64
L4 = L_IN // 4        # 32
FEAT = C2 * L4        # 4096
NSPLIT = 2            # hidden-dim split (one program per v7x TensorCore)
TN = HID // NSPLIT    # 512


# --------------------------------------------------------------------------
# Fused kernel: conv1+relu+pool -> conv2+relu+pool -> flatten -> fc1+relu -> fc2
# Grid = (NSPLIT,), axis "parallel"; program j handles hidden units [j*TN, (j+1)*TN).
# --------------------------------------------------------------------------
def fused_kernel(x_ref, w1_ref, b1_ref, p1_ref, w2_ref, b2_ref, p2_ref,
                 wfc1_ref, bfc1_ref, wfc2_ref, out_ref, feat_sc):
    B = out_ref.shape[1]
    TNj = wfc1_ref.shape[2]

    # ---- layer1: Conv1d(1->64, k=3, pad=1) + ReLU, batch stacked on sublanes ----
    # x_ref[b*L_IN + t, k] = x_b[t + k - 1] (pre-shifted, zero padded)
    acc1 = jnp.zeros((B * L_IN, C1), jnp.float32)
    for k in range(K):
        acc1 = acc1 + x_ref[:, k:k + 1] * w1_ref[k:k + 1, :]      # (B*128,1)*(1,64)
    h1 = jnp.maximum(acc1 + b1_ref[...], 0.0)                     # (B*128, 64)

    # ---- AvgPool(2) + conv2 zero-pad shift folded into p1; Conv1d(64->128)+ReLU ----
    acc2 = jnp.zeros((B * L2, C2), jnp.float32)
    for k in range(K):
        s_k = jnp.dot(p1_ref[k], h1, preferred_element_type=jnp.float32)      # (B*64, 64)
        acc2 = acc2 + jnp.dot(s_k, w2_ref[k], preferred_element_type=jnp.float32)  # (B*64,128)
    h2 = jnp.maximum(acc2 + b2_ref[...], 0.0)                     # (B*64, 128)

    # ---- AvgPool(2) as matmul; feat_sc[l*B + b, o] = feat_b[o, l] ----
    feat_sc[...] = jnp.dot(p2_ref[...], h2, preferred_element_type=jnp.float32)  # (L4*B, 128)

    # ---- FC stage for this program's TN hidden units ----
    acc = jnp.zeros((B, TNj), jnp.float32)
    for l in range(L4):
        acc = acc + jnp.dot(feat_sc[l * B:(l + 1) * B, :], wfc1_ref[l],
                            preferred_element_type=jnp.float32)   # (B, TN)
    h = jnp.maximum(acc + bfc1_ref[...], 0.0)                     # (B, TN)
    out_ref[0] = jnp.dot(h, wfc2_ref[...], preferred_element_type=jnp.float32)  # (B, 2)


# --------------------------------------------------------------------------
# Wrapper: parameter re-layout, pooling matrices, single pallas_call, final sum
# (weight re-layouts would normally be done once at parameter-prep time)
# --------------------------------------------------------------------------
def pedal_keeper_forward(x, params):
    (w1_t, b1, w2_t, b2, wfc1_t, bfc1, wfc2_t, bfc2) = params
    B = x.shape[0]

    # pre-shifted conv1 taps, batch stacked on rows: X[b*L+t, k] = xpad_b[t+k]
    xp = jnp.pad(x[:, 0, :], ((0, 0), (1, 1)))                    # (B, 130)
    xsh = jnp.stack([xp[:, k:k + L_IN] for k in range(K)], axis=-1)   # (B, 128, 3)
    X = xsh.reshape(B * L_IN, K)

    w1r = w1_t[:, 0, :].T                                         # (3, 64): [k, c]
    b1r = b1.reshape(1, C1)
    w2t = jnp.transpose(w2_t, (2, 1, 0))                          # (3, 64, 128): [k, c, o]
    b2r = b2.reshape(1, C2)

    # pool1 (+ conv2 zero-padding shift), block-diagonal over the batch:
    # p1s[k][b*64+u, b'*128+t] = 0.5 * [b==b'] * [t//2 == u+k-1]
    bu = jnp.arange(B * L2)
    bt = jnp.arange(B * L_IN)
    b_row, u_row = bu[:, None] // L2, bu[:, None] % L2
    b_col, t_col = bt[None, :] // L_IN, bt[None, :] % L_IN
    p1s = jnp.stack([
        ((b_row == b_col) & ((t_col // 2) == (u_row + k - 1))).astype(jnp.float32) * 0.5
        for k in range(K)
    ])                                                            # (3, B*64, B*128)

    # pool2, interleaved output rows: p2il[l*B+b, b'*64+u] = 0.5*[b==b']*[u//2==l]
    lb = jnp.arange(L4 * B)
    l_row, b_row2 = lb[:, None] // B, lb[:, None] % B
    b_col2, u_col2 = bu[None, :] // L2, bu[None, :] % L2
    p2il = ((b_row2 == b_col2) & ((u_col2 // 2) == l_row)).astype(jnp.float32) * 0.5  # (L4*B, B*64)

    # FC weights re-laid-out to match the (l, o) feature ordering (torch flatten is o*32+l)
    wfc1_r = wfc1_t.T.reshape(C2, L4, HID).transpose(1, 0, 2)     # (32, 128, 1024): [l, o, n]
    bfc1_r = bfc1.reshape(1, HID)
    wfc2_r = wfc2_t.T                                             # (1024, 2)

    out_parts = pl.pallas_call(
        fused_kernel,
        out_shape=jax.ShapeDtypeStruct((NSPLIT, B, N_OUT), jnp.float32),
        grid=(NSPLIT,),
        in_specs=[
            pl.BlockSpec((B * L_IN, K), lambda j: (0, 0)),            # X
            pl.BlockSpec((K, C1), lambda j: (0, 0)),                  # w1r
            pl.BlockSpec((1, C1), lambda j: (0, 0)),                  # b1r
            pl.BlockSpec((K, B * L2, B * L_IN), lambda j: (0, 0, 0)), # p1s
            pl.BlockSpec((K, C1, C2), lambda j: (0, 0, 0)),           # w2t
            pl.BlockSpec((1, C2), lambda j: (0, 0)),                  # b2r
            pl.BlockSpec((L4 * B, B * L2), lambda j: (0, 0)),         # p2il
            pl.BlockSpec((L4, C2, TN), lambda j: (0, 0, j)),          # wfc1_r tile
            pl.BlockSpec((1, TN), lambda j: (0, j)),                  # bfc1 tile
            pl.BlockSpec((TN, N_OUT), lambda j: (j, 0)),              # wfc2 tile
        ],
        out_specs=pl.BlockSpec((1, B, N_OUT), lambda j: (j, 0, 0)),
        scratch_shapes=[pltpu.VMEM((L4 * B, C2), jnp.float32)],       # feat (never hits HBM)
        compiler_params=pltpu.CompilerParams(
            dimension_semantics=("parallel",),
            vmem_limit_bytes=32 * 1024 * 1024),
    )(X, w1r, b1r, p1s, w2t, b2r, p2il, wfc1_r, bfc1_r, wfc2_r)

    # sum the two hidden-half partials and add the fc2 bias (tiny fused XLA op)
    return out_parts.sum(axis=0) + bfc2[None, :]


# --------------------------------------------------------------------------
# Deterministic synthetic parameters (PyTorch weight layouts)
# --------------------------------------------------------------------------
def init_params(key):
    ks = jax.random.split(key, 8)

    def u(k, shape, bound):
        return jax.random.uniform(k, shape, jnp.float32, -bound, bound)

    w1_t = u(ks[0], (C1, 1, K), 1.0 / (1 * K) ** 0.5)
    b1 = u(ks[1], (C1,), 1.0 / (1 * K) ** 0.5)
    w2_t = u(ks[2], (C2, C1, K), 1.0 / (C1 * K) ** 0.5)
    b2 = u(ks[3], (C2,), 1.0 / (C1 * K) ** 0.5)
    # xavier_uniform_ as in the PyTorch module
    wfc1_t = u(ks[4], (HID, FEAT), (6.0 / (FEAT + HID)) ** 0.5)
    bfc1 = u(ks[5], (HID,), 1.0 / FEAT ** 0.5)
    wfc2_t = u(ks[6], (N_OUT, HID), (6.0 / (HID + N_OUT)) ** 0.5)
    bfc2 = u(ks[7], (N_OUT,), 1.0 / HID ** 0.5)
    return (w1_t, b1, w2_t, b2, wfc1_t, bfc1, wfc2_t, bfc2)


# --------------------------------------------------------------------------
# Pure-JAX reference (mirrors the PyTorch forward exactly)
# --------------------------------------------------------------------------
def ref_forward(x, params):
    w1_t, b1, w2_t, b2, wfc1_t, bfc1, wfc2_t, bfc2 = params
    B = x.shape[0]
    xp = jnp.pad(x, ((0, 0), (0, 0), (1, 1)))                # (B, 1, 130)
    h1 = b1[None, :, None]
    for k in range(K):
        h1 = h1 + xp[:, 0:1, k:k + L_IN] * w1_t[:, 0, k][None, :, None]
    h1 = jax.nn.relu(h1)                                     # (B, 64, 128)
    h1 = h1.reshape(B, C1, L2, 2).mean(-1)                   # (B, 64, 64)
    h1p = jnp.pad(h1, ((0, 0), (0, 0), (1, 1)))              # (B, 64, 66)
    h2 = b2[None, :, None]
    for k in range(K):
        h2 = h2 + jnp.einsum('oc,bct->bot', w2_t[:, :, k], h1p[:, :, k:k + L2])
    h2 = jax.nn.relu(h2)                                     # (B, 128, 64)
    h2 = h2.reshape(B, C2, L4, 2).mean(-1)                   # (B, 128, 32)
    f = h2.reshape(B, FEAT)
    h = jax.nn.relu(f @ wfc1_t.T + bfc1)
    return h @ wfc2_t.T + bfc2


if __name__ == "__main__":
    key = jax.random.PRNGKey(0)
    pkey, xkey = jax.random.split(key)
    params = init_params(pkey)
    x = jax.random.normal(xkey, (2, 1, L_IN), jnp.float32)   # NCL, like PyTorch

    out = pedal_keeper_forward(x, params)
    out = jax.block_until_ready(out)

    ref = ref_forward(x, params)
    assert out.shape == (2, N_OUT)
    np.testing.assert_allclose(np.asarray(out), np.asarray(ref),
                               atol=1e-3, rtol=1e-3)
    print("KERNEL_OK")
</pallas_src>

<mosaic_0001>
module attributes {stable_mosaic.version = 11 : i64} {
  func.func @fused_kernel(%arg0: i32, %arg1: memref<256x3xf32, #tpu.memory_space<vmem>>, %arg2: memref<3x64xf32, #tpu.memory_space<vmem>>, %arg3: memref<1x64xf32, #tpu.memory_space<vmem>>, %arg4: memref<3x128x256xf32, #tpu.memory_space<vmem>>, %arg5: memref<3x64x128xf32, #tpu.memory_space<vmem>>, %arg6: memref<1x128xf32, #tpu.memory_space<vmem>>, %arg7: memref<64x128xf32, #tpu.memory_space<vmem>>, %arg8: memref<32x128x512xf32, #tpu.memory_space<vmem>>, %arg9: memref<1x512xf32, #tpu.memory_space<vmem>>, %arg10: memref<512x2xf32, #tpu.memory_space<vmem>>, %arg11: memref<1x2x2xf32, #tpu.memory_space<vmem>>, %arg12: memref<64x128xf32, #tpu.memory_space<vmem>>) attributes {dimension_semantics = [#tpu.dimension_semantics<parallel>], iteration_bounds = array<i64: 2>, scalar_prefetch = 0 : i64, scratch_operands = 1 : i64, tpu.core_type = #tpu.core_type<tc>, window_params = [{pipeline_mode = #tpu.pipeline_mode<synchronous>, transform_indices = @transform_0, window_bounds = array<i64: 256, 3>}, {pipeline_mode = #tpu.pipeline_mode<synchronous>, transform_indices = @transform_1, window_bounds = array<i64: 3, 64>}, {pipeline_mode = #tpu.pipeline_mode<synchronous>, transform_indices = @transform_2, window_bounds = array<i64: 1, 64>}, {pipeline_mode = #tpu.pipeline_mode<synchronous>, transform_indices = @transform_3, window_bounds = array<i64: 3, 128, 256>}, {pipeline_mode = #tpu.pipeline_mode<synchronous>, transform_indices = @transform_4, window_bounds = array<i64: 3, 64, 128>}, {pipeline_mode = #tpu.pipeline_mode<synchronous>, transform_indices = @transform_5, window_bounds = array<i64: 1, 128>}, {pipeline_mode = #tpu.pipeline_mode<synchronous>, transform_indices = @transform_6, window_bounds = array<i64: 64, 128>}, {transform_indices = @transform_7, window_bounds = array<i64: 32, 128, 512>}, {transform_indices = @transform_8, window_bounds = array<i64: 1, 512>}, {transform_indices = @transform_9, window_bounds = array<i64: 512, 2>}, {transform_indices = @transform_10, window_bounds = array<i64: 1, 2, 2>}]} {
    %cst = arith.constant 0.000000e+00 : f32
    %0 = vector.broadcast %cst : f32 to vector<256x64xf32>
    %c0 = arith.constant 0 : index
    %c0_0 = arith.constant 0 : index
    %1 = vector.load %arg1[%c0, %c0_0] : memref<256x3xf32, #tpu.memory_space<vmem>>, vector<256x1xf32>
    %c0_1 = arith.constant 0 : index
    %c0_2 = arith.constant 0 : index
    %2 = vector.load %arg2[%c0_1, %c0_2] : memref<3x64xf32, #tpu.memory_space<vmem>>, vector<1x64xf32>
    %3 = vector.broadcast %1 : vector<256x1xf32> to vector<256x64xf32>
    %4 = vector.broadcast %2 : vector<1x64xf32> to vector<256x64xf32>
    %5 = arith.mulf %3, %4 : vector<256x64xf32>
    %6 = arith.addf %0, %5 : vector<256x64xf32>
    %c0_3 = arith.constant 0 : index
    %c1 = arith.constant 1 : index
    %7 = vector.load %arg1[%c0_3, %c1] : memref<256x3xf32, #tpu.memory_space<vmem>>, vector<256x1xf32>
    %c1_4 = arith.constant 1 : index
    %c0_5 = arith.constant 0 : index
    %8 = vector.load %arg2[%c1_4, %c0_5] : memref<3x64xf32, #tpu.memory_space<vmem>>, vector<1x64xf32>
    %9 = vector.broadcast %7 : vector<256x1xf32> to vector<256x64xf32>
    %10 = vector.broadcast %8 : vector<1x64xf32> to vector<256x64xf32>
    %11 = arith.mulf %9, %10 : vector<256x64xf32>
    %12 = arith.addf %6, %11 : vector<256x64xf32>
    %c0_6 = arith.constant 0 : index
    %c2 = arith.constant 2 : index
    %13 = vector.load %arg1[%c0_6, %c2] : memref<256x3xf32, #tpu.memory_space<vmem>>, vector<256x1xf32>
    %c2_7 = arith.constant 2 : index
    %c0_8 = arith.constant 0 : index
    %14 = vector.load %arg2[%c2_7, %c0_8] : memref<3x64xf32, #tpu.memory_space<vmem>>, vector<1x64xf32>
    %15 = vector.broadcast %13 : vector<256x1xf32> to vector<256x64xf32>
    %16 = vector.broadcast %14 : vector<1x64xf32> to vector<256x64xf32>
    %17 = arith.mulf %15, %16 : vector<256x64xf32>
    %18 = arith.addf %12, %17 : vector<256x64xf32>
    %c0_9 = arith.constant 0 : index
    %c0_10 = arith.constant 0 : index
    %19 = vector.load %arg3[%c0_9, %c0_10] : memref<1x64xf32, #tpu.memory_space<vmem>>, vector<1x64xf32>
    %20 = vector.broadcast %19 : vector<1x64xf32> to vector<256x64xf32>
    %21 = arith.addf %18, %20 : vector<256x64xf32>
    %cst_11 = arith.constant 0.000000e+00 : f32
    %22 = vector.broadcast %cst_11 : f32 to vector<256x64xf32>
    %23 = arith.maximumf %21, %22 : vector<256x64xf32>
    %cst_12 = arith.constant 0.000000e+00 : f32
    %24 = vector.broadcast %cst_12 : f32 to vector<128x128xf32>
    %c0_13 = arith.constant 0 : index
    %c0_14 = arith.constant 0 : index
    %c0_15 = arith.constant 0 : index
    %25 = vector.load %arg4[%c0_13, %c0_14, %c0_15] : memref<3x128x256xf32, #tpu.memory_space<vmem>>, vector<1x128x256xf32>
    %26 = vector.shape_cast %25 : vector<1x128x256xf32> to vector<128x256xf32>
    %cst_16 = arith.constant dense<0.000000e+00> : vector<128x64xf32>
    %27 = tpu.matmul %26, %23, %cst_16 {dimension_numbers = #tpu.dot_dimension_numbers<[1], [0], [0], [1], [0, 0, 1, 1], [], []>} : vector<128x256xf32>, vector<256x64xf32>, vector<128x64xf32> -> vector<128x64xf32>
    %c0_17 = arith.constant 0 : index
    %c0_18 = arith.constant 0 : index
    %c0_19 = arith.constant 0 : index
    %28 = vector.load %arg5[%c0_17, %c0_18, %c0_19] : memref<3x64x128xf32, #tpu.memory_space<vmem>>, vector<1x64x128xf32>
    %29 = vector.shape_cast %28 : vector<1x64x128xf32> to vector<64x128xf32>
    %cst_20 = arith.constant dense<0.000000e+00> : vector<128x128xf32>
    %30 = tpu.matmul %27, %29, %cst_20 {dimension_numbers = #tpu.dot_dimension_numbers<[1], [0], [0], [1], [0, 0, 1, 1], [], []>} : vector<128x64xf32>, vector<64x128xf32>, vector<128x128xf32> -> vector<128x128xf32>
    %31 = arith.addf %24, %30 : vector<128x128xf32>
    %c1_21 = arith.constant 1 : index
    %c0_22 = arith.constant 0 : index
    %c0_23 = arith.constant 0 : index
    %32 = vector.load %arg4[%c1_21, %c0_22, %c0_23] : memref<3x128x256xf32, #tpu.memory_space<vmem>>, vector<1x128x256xf32>
    %33 = vector.shape_cast %32 : vector<1x128x256xf32> to vector<128x256xf32>
    %cst_24 = arith.constant dense<0.000000e+00> : vector<128x64xf32>
    %34 = tpu.matmul %33, %23, %cst_24 {dimension_numbers = #tpu.dot_dimension_numbers<[1], [0], [0], [1], [0, 0, 1, 1], [], []>} : vector<128x256xf32>, vector<256x64xf32>, vector<128x64xf32> -> vector<128x64xf32>
    %c1_25 = arith.constant 1 : index
    %c0_26 = arith.constant 0 : index
    %c0_27 = arith.constant 0 : index
    %35 = vector.load %arg5[%c1_25, %c0_26, %c0_27] : memref<3x64x128xf32, #tpu.memory_space<vmem>>, vector<1x64x128xf32>
    %36 = vector.shape_cast %35 : vector<1x64x128xf32> to vector<64x128xf32>
    %cst_28 = arith.constant dense<0.000000e+00> : vector<128x128xf32>
    %37 = tpu.matmul %34, %36, %cst_28 {dimension_numbers = #tpu.dot_dimension_numbers<[1], [0], [0], [1], [0, 0, 1, 1], [], []>} : vector<128x64xf32>, vector<64x128xf32>, vector<128x128xf32> -> vector<128x128xf32>
    %38 = arith.addf %31, %37 : vector<128x128xf32>
    %c2_29 = arith.constant 2 : index
    %c0_30 = arith.constant 0 : index
    %c0_31 = arith.constant 0 : index
    %39 = vector.load %arg4[%c2_29, %c0_30, %c0_31] : memref<3x128x256xf32, #tpu.memory_space<vmem>>, vector<1x128x256xf32>
    %40 = vector.shape_cast %39 : vector<1x128x256xf32> to vector<128x256xf32>
    %cst_32 = arith.constant dense<0.000000e+00> : vector<128x64xf32>
    %41 = tpu.matmul %40, %23, %cst_32 {dimension_numbers = #tpu.dot_dimension_numbers<[1], [0], [0], [1], [0, 0, 1, 1], [], []>} : vector<128x256xf32>, vector<256x64xf32>, vector<128x64xf32> -> vector<128x64xf32>
    %c2_33 = arith.constant 2 : index
    %c0_34 = arith.constant 0 : index
    %c0_35 = arith.constant 0 : index
    %42 = vector.load %arg5[%c2_33, %c0_34, %c0_35] : memref<3x64x128xf32, #tpu.memory_space<vmem>>, vector<1x64x128xf32>
    %43 = vector.shape_cast %42 : vector<1x64x128xf32> to vector<64x128xf32>
    %cst_36 = arith.constant dense<0.000000e+00> : vector<128x128xf32>
    %44 = tpu.matmul %41, %43, %cst_36 {dimension_numbers = #tpu.dot_dimension_numbers<[1], [0], [0], [1], [0, 0, 1, 1], [], []>} : vector<128x64xf32>, vector<64x128xf32>, vector<128x128xf32> -> vector<128x128xf32>
    %45 = arith.addf %38, %44 : vector<128x128xf32>
    %c0_37 = arith.constant 0 : index
    %c0_38 = arith.constant 0 : index
    %46 = vector.load %arg6[%c0_37, %c0_38] : memref<1x128xf32, #tpu.memory_space<vmem>>, vector<1x128xf32>
    %47 = vector.broadcast %46 : vector<1x128xf32> to vector<128x128xf32>
    %48 = arith.addf %45, %47 : vector<128x128xf32>
    %cst_39 = arith.constant 0.000000e+00 : f32
    %49 = vector.broadcast %cst_39 : f32 to vector<128x128xf32>
    %50 = arith.maximumf %48, %49 : vector<128x128xf32>
    %c0_40 = arith.constant 0 : index
    %c0_41 = arith.constant 0 : index
    %51 = vector.load %arg7[%c0_40, %c0_41] : memref<64x128xf32, #tpu.memory_space<vmem>>, vector<64x128xf32>
    %cst_42 = arith.constant dense<0.000000e+00> : vector<64x128xf32>
    %52 = tpu.matmul %51, %50, %cst_42 {dimension_numbers = #tpu.dot_dimension_numbers<[1], [0], [0], [1], [0, 0, 1, 1], [], []>} : vector<64x128xf32>, vector<128x128xf32>, vector<64x128xf32> -> vector<64x128xf32>
    %c0_43 = arith.constant 0 : index
    %c0_44 = arith.constant 0 : index
    %53 = vector.load %arg12[%c0_43, %c0_44] : memref<64x128xf32, #tpu.memory_space<vmem>>, vector<64x128xf32>
    tpu.vector_store %arg12[%c0_43, %c0_44], %52 {strides = array<i32>} : memref<64x128xf32, #tpu.memory_space<vmem>>, vector<64x128xf32>,
    %cst_45 = arith.constant 0.000000e+00 : f32
    %54 = vector.broadcast %cst_45 : f32 to vector<2x512xf32>
    %c0_46 = arith.constant 0 : index
    %c0_47 = arith.constant 0 : index
    %55 = vector.load %arg12[%c0_46, %c0_47] : memref<64x128xf32, #tpu.memory_space<vmem>>, vector<2x128xf32>
    %c0_48 = arith.constant 0 : index
    %c0_49 = arith.constant 0 : index
    %c0_50 = arith.constant 0 : index
    %56 = vector.load %arg8[%c0_48, %c0_49, %c0_50] : memref<32x128x512xf32, #tpu.memory_space<vmem>>, vector<1x128x512xf32>
    %57 = vector.shape_cast %56 : vector<1x128x512xf32> to vector<128x512xf32>
    %cst_51 = arith.constant dense<0.000000e+00> : vector<2x512xf32>
    %58 = tpu.matmul %55, %57, %cst_51 {dimension_numbers = #tpu.dot_dimension_numbers<[1], [0], [0], [1], [0, 0, 1, 1], [], []>} : vector<2x128xf32>, vector<128x512xf32>, vector<2x512xf32> -> vector<2x512xf32>
    %59 = arith.addf %54, %58 : vector<2x512xf32>
    %c2_52 = arith.constant 2 : index
    %c0_53 = arith.constant 0 : index
    %60 = vector.load %arg12[%c2_52, %c0_53] : memref<64x128xf32, #tpu.memory_space<vmem>>, vector<2x128xf32>
    %c1_54 = arith.constant 1 : index
    %c0_55 = arith.constant 0 : index
    %c0_56 = arith.constant 0 : index
    %61 = vector.load %arg8[%c1_54, %c0_55, %c0_56] : memref<32x128x512xf32, #tpu.memory_space<vmem>>, vector<1x128x512xf32>
    %62 = vector.shape_cast %61 : vector<1x128x512xf32> to vector<128x512xf32>
    %cst_57 = arith.constant dense<0.000000e+00> : vector<2x512xf32>
    %63 = tpu.matmul %60, %62, %cst_57 {dimension_numbers = #tpu.dot_dimension_numbers<[1], [0], [0], [1], [0, 0, 1, 1], [], []>} : vector<2x128xf32>, vector<128x512xf32>, vector<2x512xf32> -> vector<2x512xf32>
    %64 = arith.addf %59, %63 : vector<2x512xf32>
    %c4 = arith.constant 4 : index
    %c0_58 = arith.constant 0 : index
    %65 = vector.load %arg12[%c4, %c0_58] : memref<64x128xf32, #tpu.memory_space<vmem>>, vector<2x128xf32>
    %c2_59 = arith.constant 2 : index
    %c0_60 = arith.constant 0 : index
    %c0_61 = arith.constant 0 : index
    %66 = vector.load %arg8[%c2_59, %c0_60, %c0_61] : memref<32x128x512xf32, #tpu.memory_space<vmem>>, vector<1x128x512xf32>
    %67 = vector.shape_cast %66 : vector<1x128x512xf32> to vector<128x512xf32>
    %cst_62 = arith.constant dense<0.000000e+00> : vector<2x512xf32>
    %68 = tpu.matmul %65, %67, %cst_62 {dimension_numbers = #tpu.dot_dimension_numbers<[1], [0], [0], [1], [0, 0, 1, 1], [], []>} : vector<2x128xf32>, vector<128x512xf32>, vector<2x512xf32> -> vector<2x512xf32>
    %69 = arith.addf %64, %68 : vector<2x512xf32>
    %c6 = arith.constant 6 : index
    %c0_63 = arith.constant 0 : index
    %70 = vector.load %arg12[%c6, %c0_63] : memref<64x128xf32, #tpu.memory_space<vmem>>, vector<2x128xf32>
    %c3 = arith.constant 3 : index
    %c0_64 = arith.constant 0 : index
    %c0_65 = arith.constant 0 : index
    %71 = vector.load %arg8[%c3, %c0_64, %c0_65] : memref<32x128x512xf32, #tpu.memory_space<vmem>>, vector<1x128x512xf32>
    %72 = vector.shape_cast %71 : vector<1x128x512xf32> to vector<128x512xf32>
    %cst_66 = arith.constant dense<0.000000e+00> : vector<2x512xf32>
    %73 = tpu.matmul %70, %72, %cst_66 {dimension_numbers = #tpu.dot_dimension_numbers<[1], [0], [0], [1], [0, 0, 1, 1], [], []>} : vector<2x128xf32>, vector<128x512xf32>, vector<2x512xf32> -> vector<2x512xf32>
    %74 = arith.addf %69, %73 : vector<2x512xf32>
    %c8 = arith.constant 8 : index
    %c0_67 = arith.constant 0 : index
    %75 = vector.load %arg12[%c8, %c0_67] : memref<64x128xf32, #tpu.memory_space<vmem>>, vector<2x128xf32>
    %c4_68 = arith.constant 4 : index
    %c0_69 = arith.constant 0 : index
    %c0_70 = arith.constant 0 : index
    %76 = vector.load %arg8[%c4_68, %c0_69, %c0_70] : memref<32x128x512xf32, #tpu.memory_space<vmem>>, vector<1x128x512xf32>
    %77 = vector.shape_cast %76 : vector<1x128x512xf32> to vector<128x512xf32>
    %cst_71 = arith.constant dense<0.000000e+00> : vector<2x512xf32>
    %78 = tpu.matmul %75, %77, %cst_71 {dimension_numbers = #tpu.dot_dimension_numbers<[1], [0], [0], [1], [0, 0, 1, 1], [], []>} : vector<2x128xf32>, vector<128x512xf32>, vector<2x512xf32> -> vector<2x512xf32>
    %79 = arith.addf %74, %78 : vector<2x512xf32>
    %c10 = arith.constant 10 : index
    %c0_72 = arith.constant 0 : index
    %80 = vector.load %arg12[%c10, %c0_72] : memref<64x128xf32, #tpu.memory_space<vmem>>, vector<2x128xf32>
    %c5 = arith.constant 5 : index
    %c0_73 = arith.constant 0 : index
    %c0_74 = arith.constant 0 : index
    %81 = vector.load %arg8[%c5, %c0_73, %c0_74] : memref<32x128x512xf32, #tpu.memory_space<vmem>>, vector<1x128x512xf32>
    %82 = vector.shape_cast %81 : vector<1x128x512xf32> to vector<128x512xf32>
    %cst_75 = arith.constant dense<0.000000e+00> : vector<2x512xf32>
    %83 = tpu.matmul %80, %82, %cst_75 {dimension_numbers = #tpu.dot_dimension_numbers<[1], [0], [0], [1], [0, 0, 1, 1], [], []>} : vector<2x128xf32>, vector<128x512xf32>, vector<2x512xf32> -> vector<2x512xf32>
    %84 = arith.addf %79, %83 : vector<2x512xf32>
    %c12 = arith.constant 12 : index
    %c0_76 = arith.constant 0 : index
    %85 = vector.load %arg12[%c12, %c0_76] : memref<64x128xf32, #tpu.memory_space<vmem>>, vector<2x128xf32>
    %c6_77 = arith.constant 6 : index
    %c0_78 = arith.constant 0 : index
    %c0_79 = arith.constant 0 : index
    %86 = vector.load %arg8[%c6_77, %c0_78, %c0_79] : memref<32x128x512xf32, #tpu.memory_space<vmem>>, vector<1x128x512xf32>
    %87 = vector.shape_cast %86 : vector<1x128x512xf32> to vector<128x512xf32>
    %cst_80 = arith.constant dense<0.000000e+00> : vector<2x512xf32>
    %88 = tpu.matmul %85, %87, %cst_80 {dimension_numbers = #tpu.dot_dimension_numbers<[1], [0], [0], [1], [0, 0, 1, 1], [], []>} : vector<2x128xf32>, vector<128x512xf32>, vector<2x512xf32> -> vector<2x512xf32>
    %89 = arith.addf %84, %88 : vector<2x512xf32>
    %c14 = arith.constant 14 : index
    %c0_81 = arith.constant 0 : index
    %90 = vector.load %arg12[%c14, %c0_81] : memref<64x128xf32, #tpu.memory_space<vmem>>, vector<2x128xf32>
    %c7 = arith.constant 7 : index
    %c0_82 = arith.constant 0 : index
    %c0_83 = arith.constant 0 : index
    %91 = vector.load %arg8[%c7, %c0_82, %c0_83] : memref<32x128x512xf32, #tpu.memory_space<vmem>>, vector<1x128x512xf32>
    %92 = vector.shape_cast %91 : vector<1x128x512xf32> to vector<128x512xf32>
    %cst_84 = arith.constant dense<0.000000e+00> : vector<2x512xf32>
    %93 = tpu.matmul %90, %92, %cst_84 {dimension_numbers = #tpu.dot_dimension_numbers<[1], [0], [0], [1], [0, 0, 1, 1], [], []>} : vector<2x128xf32>, vector<128x512xf32>, vector<2x512xf32> -> vector<2x512xf32>
    %94 = arith.addf %89, %93 : vector<2x512xf32>
    %c16 = arith.constant 16 : index
    %c0_85 = arith.constant 0 : index
    %95 = vector.load %arg12[%c16, %c0_85] : memref<64x128xf32, #tpu.memory_space<vmem>>, vector<2x128xf32>
    %c8_86 = arith.constant 8 : index
    %c0_87 = arith.constant 0 : index
    %c0_88 = arith.constant 0 : index
    %96 = vector.load %arg8[%c8_86, %c0_87, %c0_88] : memref<32x128x512xf32, #tpu.memory_space<vmem>>, vector<1x128x512xf32>
    %97 = vector.shape_cast %96 : vector<1x128x512xf32> to vector<128x512xf32>
    %cst_89 = arith.constant dense<0.000000e+00> : vector<2x512xf32>
    %98 = tpu.matmul %95, %97, %cst_89 {dimension_numbers = #tpu.dot_dimension_numbers<[1], [0], [0], [1], [0, 0, 1, 1], [], []>} : vector<2x128xf32>, vector<128x512xf32>, vector<2x512xf32> -> vector<2x512xf32>
    %99 = arith.addf %94, %98 : vector<2x512xf32>
    %c18 = arith.constant 18 : index
    %c0_90 = arith.constant 0 : index
    %100 = vector.load %arg12[%c18, %c0_90] : memref<64x128xf32, #tpu.memory_space<vmem>>, vector<2x128xf32>
    %c9 = arith.constant 9 : index
    %c0_91 = arith.constant 0 : index
    %c0_92 = arith.constant 0 : index
    %101 = vector.load %arg8[%c9, %c0_91, %c0_92] : memref<32x128x512xf32, #tpu.memory_space<vmem>>, vector<1x128x512xf32>
    %102 = vector.shape_cast %101 : vector<1x128x512xf32> to vector<128x512xf32>
    %cst_93 = arith.constant dense<0.000000e+00> : vector<2x512xf32>
    %103 = tpu.matmul %100, %102, %cst_93 {dimension_numbers = #tpu.dot_dimension_numbers<[1], [0], [0], [1], [0, 0, 1, 1], [], []>} : vector<2x128xf32>, vector<128x512xf32>, vector<2x512xf32> -> vector<2x512xf32>
    %104 = arith.addf %99, %103 : vector<2x512xf32>
    %c20 = arith.constant 20 : index
    %c0_94 = arith.constant 0 : index
    %105 = vector.load %arg12[%c20, %c0_94] : memref<64x128xf32, #tpu.memory_space<vmem>>, vector<2x128xf32>
    %c10_95 = arith.constant 10 : index
    %c0_96 = arith.constant 0 : index
    %c0_97 = arith.constant 0 : index
    %106 = vector.load %arg8[%c10_95, %c0_96, %c0_97] : memref<32x128x512xf32, #tpu.memory_space<vmem>>, vector<1x128x512xf32>
    %107 = vector.shape_cast %106 : vector<1x128x512xf32> to vector<128x512xf32>
    %cst_98 = arith.constant dense<0.000000e+00> : vector<2x512xf32>
    %108 = tpu.matmul %105, %107, %cst_98 {dimension_numbers = #tpu.dot_dimension_numbers<[1], [0], [0], [1], [0, 0, 1, 1], [], []>} : vector<2x128xf32>, vector<128x512xf32>, vector<2x512xf32> -> vector<2x512xf32>
    %109 = arith.addf %104, %108 : vector<2x512xf32>
    %c22 = arith.constant 22 : index
    %c0_99 = arith.constant 0 : index
    %110 = vector.load %arg12[%c22, %c0_99] : memref<64x128xf32, #tpu.memory_space<vmem>>, vector<2x128xf32>
    %c11 = arith.constant 11 : index
    %c0_100 = arith.constant 0 : index
    %c0_101 = arith.constant 0 : index
    %111 = vector.load %arg8[%c11, %c0_100, %c0_101] : memref<32x128x512xf32, #tpu.memory_space<vmem>>, vector<1x128x512xf32>
    %112 = vector.shape_cast %111 : vector<1x128x512xf32> to vector<128x512xf32>
    %cst_102 = arith.constant dense<0.000000e+00> : vector<2x512xf32>
    %113 = tpu.matmul %110, %112, %cst_102 {dimension_numbers = #tpu.dot_dimension_numbers<[1], [0], [0], [1], [0, 0, 1, 1], [], []>} : vector<2x128xf32>, vector<128x512xf32>, vector<2x512xf32> -> vector<2x512xf32>
    %114 = arith.addf %109, %113 : vector<2x512xf32>
    %c24 = arith.constant 24 : index
    %c0_103 = arith.constant 0 : index
    %115 = vector.load %arg12[%c24, %c0_103] : memref<64x128xf32, #tpu.memory_space<vmem>>, vector<2x128xf32>
    %c12_104 = arith.constant 12 : index
    %c0_105 = arith.constant 0 : index
    %c0_106 = arith.constant 0 : index
    %116 = vector.load %arg8[%c12_104, %c0_105, %c0_106] : memref<32x128x512xf32, #tpu.memory_space<vmem>>, vector<1x128x512xf32>
    %117 = vector.shape_cast %116 : vector<1x128x512xf32> to vector<128x512xf32>
    %cst_107 = arith.constant dense<0.000000e+00> : vector<2x512xf32>
    %118 = tpu.matmul %115, %117, %cst_107 {dimension_numbers = #tpu.dot_dimension_numbers<[1], [0], [0], [1], [0, 0, 1, 1], [], []>} : vector<2x128xf32>, vector<128x512xf32>, vector<2x512xf32> -> vector<2x512xf32>
    %119 = arith.addf %114, %118 : vector<2x512xf32>
    %c26 = arith.constant 26 : index
    %c0_108 = arith.constant 0 : index
    %120 = vector.load %arg12[%c26, %c0_108] : memref<64x128xf32, #tpu.memory_space<vmem>>, vector<2x128xf32>
    %c13 = arith.constant 13 : index
    %c0_109 = arith.constant 0 : index
    %c0_110 = arith.constant 0 : index
    %121 = vector.load %arg8[%c13, %c0_109, %c0_110] : memref<32x128x512xf32, #tpu.memory_space<vmem>>, vector<1x128x512xf32>
    %122 = vector.shape_cast %121 : vector<1x128x512xf32> to vector<128x512xf32>
    %cst_111 = arith.constant dense<0.000000e+00> : vector<2x512xf32>
    %123 = tpu.matmul %120, %122, %cst_111 {dimension_numbers = #tpu.dot_dimension_numbers<[1], [0], [0], [1], [0, 0, 1, 1], [], []>} : vector<2x128xf32>, vector<128x512xf32>, vector<2x512xf32> -> vector<2x512xf32>
    %124 = arith.addf %119, %123 : vector<2x512xf32>
    %c28 = arith.constant 28 : index
    %c0_112 = arith.constant 0 : index
    %125 = vector.load %arg12[%c28, %c0_112] : memref<64x128xf32, #tpu.memory_space<vmem>>, vector<2x128xf32>
    %c14_113 = arith.constant 14 : index
    %c0_114 = arith.constant 0 : index
    %c0_115 = arith.constant 0 : index
    %126 = vector.load %arg8[%c14_113, %c0_114, %c0_115] : memref<32x128x512xf32, #tpu.memory_space<vmem>>, vector<1x128x512xf32>
    %127 = vector.shape_cast %126 : vector<1x128x512xf32> to vector<128x512xf32>
    %cst_116 = arith.constant dense<0.000000e+00> : vector<2x512xf32>
    %128 = tpu.matmul %125, %127, %cst_116 {dimension_numbers = #tpu.dot_dimension_numbers<[1], [0], [0], [1], [0, 0, 1, 1], [], []>} : vector<2x128xf32>, vector<128x512xf32>, vector<2x512xf32> -> vector<2x512xf32>
    %129 = arith.addf %124, %128 : vector<2x512xf32>
    %c30 = arith.constant 30 : index
    %c0_117 = arith.constant 0 : index
    %130 = vector.load %arg12[%c30, %c0_117] : memref<64x128xf32, #tpu.memory_space<vmem>>, vector<2x128xf32>
    %c15 = arith.constant 15 : index
    %c0_118 = arith.constant 0 : index
    %c0_119 = arith.constant 0 : index
    %131 = vector.load %arg8[%c15, %c0_118, %c0_119] : memref<32x128x512xf32, #tpu.memory_space<vmem>>, vector<1x128x512xf32>
    %132 = vector.shape_cast %131 : vector<1x128x512xf32> to vector<128x512xf32>
    %cst_120 = arith.constant dense<0.000000e+00> : vector<2x512xf32>
    %133 = tpu.matmul %130, %132, %cst_120 {dimension_numbers = #tpu.dot_dimension_numbers<[1], [0], [0], [1], [0, 0, 1, 1], [], []>} : vector<2x128xf32>, vector<128x512xf32>, vector<2x512xf32> -> vector<2x512xf32>
    %134 = arith.addf %129, %133 : vector<2x512xf32>
    %c32 = arith.constant 32 : index
    %c0_121 = arith.constant 0 : index
    %135 = vector.load %arg12[%c32, %c0_121] : memref<64x128xf32, #tpu.memory_space<vmem>>, vector<2x128xf32>
    %c16_122 = arith.constant 16 : index
    %c0_123 = arith.constant 0 : index
    %c0_124 = arith.constant 0 : index
    %136 = vector.load %arg8[%c16_122, %c0_123, %c0_124] : memref<32x128x512xf32, #tpu.memory_space<vmem>>, vector<1x128x512xf32>
    %137 = vector.shape_cast %136 : vector<1x128x512xf32> to vector<128x512xf32>
    %cst_125 = arith.constant dense<0.000000e+00> : vector<2x512xf32>
    %138 = tpu.matmul %135, %137, %cst_125 {dimension_numbers = #tpu.dot_dimension_numbers<[1], [0], [0], [1], [0, 0, 1, 1], [], []>} : vector<2x128xf32>, vector<128x512xf32>, vector<2x512xf32> -> vector<2x512xf32>
    %139 = arith.addf %134, %138 : vector<2x512xf32>
    %c34 = arith.constant 34 : index
    %c0_126 = arith.constant 0 : index
    %140 = vector.load %arg12[%c34, %c0_126] : memref<64x128xf32, #tpu.memory_space<vmem>>, vector<2x128xf32>
    %c17 = arith.constant 17 : index
    %c0_127 = arith.constant 0 : index
    %c0_128 = arith.constant 0 : index
    %141 = vector.load %arg8[%c17, %c0_127, %c0_128] : memref<32x128x512xf32, #tpu.memory_space<vmem>>, vector<1x128x512xf32>
    %142 = vector.shape_cast %141 : vector<1x128x512xf32> to vector<128x512xf32>
    %cst_129 = arith.constant dense<0.000000e+00> : vector<2x512xf32>
    %143 = tpu.matmul %140, %142, %cst_129 {dimension_numbers = #tpu.dot_dimension_numbers<[1], [0], [0], [1], [0, 0, 1, 1], [], []>} : vector<2x128xf32>, vector<128x512xf32>, vector<2x512xf32> -> vector<2x512xf32>
    %144 = arith.addf %139, %143 : vector<2x512xf32>
    %c36 = arith.constant 36 : index
    %c0_130 = arith.constant 0 : index
    %145 = vector.load %arg12[%c36, %c0_130] : memref<64x128xf32, #tpu.memory_space<vmem>>, vector<2x128xf32>
    %c18_131 = arith.constant 18 : index
    %c0_132 = arith.constant 0 : index
    %c0_133 = arith.constant 0 : index
    %146 = vector.load %arg8[%c18_131, %c0_132, %c0_133] : memref<32x128x512xf32, #tpu.memory_space<vmem>>, vector<1x128x512xf32>
    %147 = vector.shape_cast %146 : vector<1x128x512xf32> to vector<128x512xf32>
    %cst_134 = arith.constant dense<0.000000e+00> : vector<2x512xf32>
    %148 = tpu.matmul %145, %147, %cst_134 {dimension_numbers = #tpu.dot_dimension_numbers<[1], [0], [0], [1], [0, 0, 1, 1], [], []>} : vector<2x128xf32>, vector<128x512xf32>, vector<2x512xf32> -> vector<2x512xf32>
    %149 = arith.addf %144, %148 : vector<2x512xf32>
    %c38 = arith.constant 38 : index
    %c0_135 = arith.constant 0 : index
    %150 = vector.load %arg12[%c38, %c0_135] : memref<64x128xf32, #tpu.memory_space<vmem>>, vector<2x128xf32>
    %c19 = arith.constant 19 : index
    %c0_136 = arith.constant 0 : index
    %c0_137 = arith.constant 0 : index
    %151 = vector.load %arg8[%c19, %c0_136, %c0_137] : memref<32x128x512xf32, #tpu.memory_space<vmem>>, vector<1x128x512xf32>
    %152 = vector.shape_cast %151 : vector<1x128x512xf32> to vector<128x512xf32>
    %cst_138 = arith.constant dense<0.000000e+00> : vector<2x512xf32>
    %153 = tpu.matmul %150, %152, %cst_138 {dimension_numbers = #tpu.dot_dimension_numbers<[1], [0], [0], [1], [0, 0, 1, 1], [], []>} : vector<2x128xf32>, vector<128x512xf32>, vector<2x512xf32> -> vector<2x512xf32>
    %154 = arith.addf %149, %153 : vector<2x512xf32>
    %c40 = arith.constant 40 : index
    %c0_139 = arith.constant 0 : index
    %155 = vector.load %arg12[%c40, %c0_139] : memref<64x128xf32, #tpu.memory_space<vmem>>, vector<2x128xf32>
    %c20_140 = arith.constant 20 : index
    %c0_141 = arith.constant 0 : index
    %c0_142 = arith.constant 0 : index
    %156 = vector.load %arg8[%c20_140, %c0_141, %c0_142] : memref<32x128x512xf32, #tpu.memory_space<vmem>>, vector<1x128x512xf32>
    %157 = vector.shape_cast %156 : vector<1x128x512xf32> to vector<128x512xf32>
    %cst_143 = arith.constant dense<0.000000e+00> : vector<2x512xf32>
    %158 = tpu.matmul %155, %157, %cst_143 {dimension_numbers = #tpu.dot_dimension_numbers<[1], [0], [0], [1], [0, 0, 1, 1], [], []>} : vector<2x128xf32>, vector<128x512xf32>, vector<2x512xf32> -> vector<2x512xf32>
    %159 = arith.addf %154, %158 : vector<2x512xf32>
    %c42 = arith.constant 42 : index
    %c0_144 = arith.constant 0 : index
    %160 = vector.load %arg12[%c42, %c0_144] : memref<64x128xf32, #tpu.memory_space<vmem>>, vector<2x128xf32>
    %c21 = arith.constant 21 : index
    %c0_145 = arith.constant 0 : index
    %c0_146 = arith.constant 0 : index
    %161 = vector.load %arg8[%c21, %c0_145, %c0_146] : memref<32x128x512xf32, #tpu.memory_space<vmem>>, vector<1x128x512xf32>
    %162 = vector.shape_cast %161 : vector<1x128x512xf32> to vector<128x512xf32>
    %cst_147 = arith.constant dense<0.000000e+00> : vector<2x512xf32>
    %163 = tpu.matmul %160, %162, %cst_147 {dimension_numbers = #tpu.dot_dimension_numbers<[1], [0], [0], [1], [0, 0, 1, 1], [], []>} : vector<2x128xf32>, vector<128x512xf32>, vector<2x512xf32> -> vector<2x512xf32>
    %164 = arith.addf %159, %163 : vector<2x512xf32>
    %c44 = arith.constant 44 : index
    %c0_148 = arith.constant 0 : index
    %165 = vector.load %arg12[%c44, %c0_148] : memref<64x128xf32, #tpu.memory_space<vmem>>, vector<2x128xf32>
    %c22_149 = arith.constant 22 : index
    %c0_150 = arith.constant 0 : index
    %c0_151 = arith.constant 0 : index
    %166 = vector.load %arg8[%c22_149, %c0_150, %c0_151] : memref<32x128x512xf32, #tpu.memory_space<vmem>>, vector<1x128x512xf32>
    %167 = vector.shape_cast %166 : vector<1x128x512xf32> to vector<128x512xf32>
    %cst_152 = arith.constant dense<0.000000e+00> : vector<2x512xf32>
    %168 = tpu.matmul %165, %167, %cst_152 {dimension_numbers = #tpu.dot_dimension_numbers<[1], [0], [0], [1], [0, 0, 1, 1], [], []>} : vector<2x128xf32>, vector<128x512xf32>, vector<2x512xf32> -> vector<2x512xf32>
    %169 = arith.addf %164, %168 : vector<2x512xf32>
    %c46 = arith.constant 46 : index
    %c0_153 = arith.constant 0 : index
    %170 = vector.load %arg12[%c46, %c0_153] : memref<64x128xf32, #tpu.memory_space<vmem>>, vector<2x128xf32>
    %c23 = arith.constant 23 : index
    %c0_154 = arith.constant 0 : index
    %c0_155 = arith.constant 0 : index
    %171 = vector.load %arg8[%c23, %c0_154, %c0_155] : memref<32x128x512xf32, #tpu.memory_space<vmem>>, vector<1x128x512xf32>
    %172 = vector.shape_cast %171 : vector<1x128x512xf32> to vector<128x512xf32>
    %cst_156 = arith.constant dense<0.000000e+00> : vector<2x512xf32>
    %173 = tpu.matmul %170, %172, %cst_156 {dimension_numbers = #tpu.dot_dimension_numbers<[1], [0], [0], [1], [0, 0, 1, 1], [], []>} : vector<2x128xf32>, vector<128x512xf32>, vector<2x512xf32> -> vector<2x512xf32>
    %174 = arith.addf %169, %173 : vector<2x512xf32>
    %c48 = arith.constant 48 : index
    %c0_157 = arith.constant 0 : index
    %175 = vector.load %arg12[%c48, %c0_157] : memref<64x128xf32, #tpu.memory_space<vmem>>, vector<2x128xf32>
    %c24_158 = arith.constant 24 : index
    %c0_159 = arith.constant 0 : index
    %c0_160 = arith.constant 0 : index
    %176 = vector.load %arg8[%c24_158, %c0_159, %c0_160] : memref<32x128x512xf32, #tpu.memory_space<vmem>>, vector<1x128x512xf32>
    %177 = vector.shape_cast %176 : vector<1x128x512xf32> to vector<128x512xf32>
    %cst_161 = arith.constant dense<0.000000e+00> : vector<2x512xf32>
    %178 = tpu.matmul %175, %177, %cst_161 {dimension_numbers = #tpu.dot_dimension_numbers<[1], [0], [0], [1], [0, 0, 1, 1], [], []>} : vector<2x128xf32>, vector<128x512xf32>, vector<2x512xf32> -> vector<2x512xf32>
    %179 = arith.addf %174, %178 : vector<2x512xf32>
    %c50 = arith.constant 50 : index
    %c0_162 = arith.constant 0 : index
    %180 = vector.load %arg12[%c50, %c0_162] : memref<64x128xf32, #tpu.memory_space<vmem>>, vector<2x128xf32>
    %c25 = arith.constant 25 : index
    %c0_163 = arith.constant 0 : index
    %c0_164 = arith.constant 0 : index
    %181 = vector.load %arg8[%c25, %c0_163, %c0_164] : memref<32x128x512xf32, #tpu.memory_space<vmem>>, vector<1x128x512xf32>
    %182 = vector.shape_cast %181 : vector<1x128x512xf32> to vector<128x512xf32>
    %cst_165 = arith.constant dense<0.000000e+00> : vector<2x512xf32>
    %183 = tpu.matmul %180, %182, %cst_165 {dimension_numbers = #tpu.dot_dimension_numbers<[1], [0], [0], [1], [0, 0, 1, 1], [], []>} : vector<2x128xf32>, vector<128x512xf32>, vector<2x512xf32> -> vector<2x512xf32>
    %184 = arith.addf %179, %183 : vector<2x512xf32>
    %c52 = arith.constant 52 : index
    %c0_166 = arith.constant 0 : index
    %185 = vector.load %arg12[%c52, %c0_166] : memref<64x128xf32, #tpu.memory_space<vmem>>, vector<2x128xf32>
    %c26_167 = arith.constant 26 : index
    %c0_168 = arith.constant 0 : index
    %c0_169 = arith.constant 0 : index
    %186 = vector.load %arg8[%c26_167, %c0_168, %c0_169] : memref<32x128x512xf32, #tpu.memory_space<vmem>>, vector<1x128x512xf32>
    %187 = vector.shape_cast %186 : vector<1x128x512xf32> to vector<128x512xf32>
    %cst_170 = arith.constant dense<0.000000e+00> : vector<2x512xf32>
    %188 = tpu.matmul %185, %187, %cst_170 {dimension_numbers = #tpu.dot_dimension_numbers<[1], [0], [0], [1], [0, 0, 1, 1], [], []>} : vector<2x128xf32>, vector<128x512xf32>, vector<2x512xf32> -> vector<2x512xf32>
    %189 = arith.addf %184, %188 : vector<2x512xf32>
    %c54 = arith.constant 54 : index
    %c0_171 = arith.constant 0 : index
    %190 = vector.load %arg12[%c54, %c0_171] : memref<64x128xf32, #tpu.memory_space<vmem>>, vector<2x128xf32>
    %c27 = arith.constant 27 : index
    %c0_172 = arith.constant 0 : index
    %c0_173 = arith.constant 0 : index
    %191 = vector.load %arg8[%c27, %c0_172, %c0_173] : memref<32x128x512xf32, #tpu.memory_space<vmem>>, vector<1x128x512xf32>
    %192 = vector.shape_cast %191 : vector<1x128x512xf32> to vector<128x512xf32>
    %cst_174 = arith.constant dense<0.000000e+00> : vector<2x512xf32>
    %193 = tpu.matmul %190, %192, %cst_174 {dimension_numbers = #tpu.dot_dimension_numbers<[1], [0], [0], [1], [0, 0, 1, 1], [], []>} : vector<2x128xf32>, vector<128x512xf32>, vector<2x512xf32> -> vector<2x512xf32>
    %194 = arith.addf %189, %193 : vector<2x512xf32>
    %c56 = arith.constant 56 : index
    %c0_175 = arith.constant 0 : index
    %195 = vector.load %arg12[%c56, %c0_175] : memref<64x128xf32, #tpu.memory_space<vmem>>, vector<2x128xf32>
    %c28_176 = arith.constant 28 : index
    %c0_177 = arith.constant 0 : index
    %c0_178 = arith.constant 0 : index
    %196 = vector.load %arg8[%c28_176, %c0_177, %c0_178] : memref<32x128x512xf32, #tpu.memory_space<vmem>>, vector<1x128x512xf32>
    %197 = vector.shape_cast %196 : vector<1x128x512xf32> to vector<128x512xf32>
    %cst_179 = arith.constant dense<0.000000e+00> : vector<2x512xf32>
    %198 = tpu.matmul %195, %197, %cst_179 {dimension_numbers = #tpu.dot_dimension_numbers<[1], [0], [0], [1], [0, 0, 1, 1], [], []>} : vector<2x128xf32>, vector<128x512xf32>, vector<2x512xf32> -> vector<2x512xf32>
    %199 = arith.addf %194, %198 : vector<2x512xf32>
    %c58 = arith.constant 58 : index
    %c0_180 = arith.constant 0 : index
    %200 = vector.load %arg12[%c58, %c0_180] : memref<64x128xf32, #tpu.memory_space<vmem>>, vector<2x128xf32>
    %c29 = arith.constant 29 : index
    %c0_181 = arith.constant 0 : index
    %c0_182 = arith.constant 0 : index
    %201 = vector.load %arg8[%c29, %c0_181, %c0_182] : memref<32x128x512xf32, #tpu.memory_space<vmem>>, vector<1x128x512xf32>
    %202 = vector.shape_cast %201 : vector<1x128x512xf32> to vector<128x512xf32>
    %cst_183 = arith.constant dense<0.000000e+00> : vector<2x512xf32>
    %203 = tpu.matmul %200, %202, %cst_183 {dimension_numbers = #tpu.dot_dimension_numbers<[1], [0], [0], [1], [0, 0, 1, 1], [], []>} : vector<2x128xf32>, vector<128x512xf32>, vector<2x512xf32> -> vector<2x512xf32>
    %204 = arith.addf %199, %203 : vector<2x512xf32>
    %c60 = arith.constant 60 : index
    %c0_184 = arith.constant 0 : index
    %205 = vector.load %arg12[%c60, %c0_184] : memref<64x128xf32, #tpu.memory_space<vmem>>, vector<2x128xf32>
    %c30_185 = arith.constant 30 : index
    %c0_186 = arith.constant 0 : index
    %c0_187 = arith.constant 0 : index
    %206 = vector.load %arg8[%c30_185, %c0_186, %c0_187] : memref<32x128x512xf32, #tpu.memory_space<vmem>>, vector<1x128x512xf32>
    %207 = vector.shape_cast %206 : vector<1x128x512xf32> to vector<128x512xf32>
    %cst_188 = arith.constant dense<0.000000e+00> : vector<2x512xf32>
    %208 = tpu.matmul %205, %207, %cst_188 {dimension_numbers = #tpu.dot_dimension_numbers<[1], [0], [0], [1], [0, 0, 1, 1], [], []>} : vector<2x128xf32>, vector<128x512xf32>, vector<2x512xf32> -> vector<2x512xf32>
    %209 = arith.addf %204, %208 : vector<2x512xf32>
    %c62 = arith.constant 62 : index
    %c0_189 = arith.constant 0 : index
    %210 = vector.load %arg12[%c62, %c0_189] : memref<64x128xf32, #tpu.memory_space<vmem>>, vector<2x128xf32>
    %c31 = arith.constant 31 : index
    %c0_190 = arith.constant 0 : index
    %c0_191 = arith.constant 0 : index
    %211 = vector.load %arg8[%c31, %c0_190, %c0_191] : memref<32x128x512xf32, #tpu.memory_space<vmem>>, vector<1x128x512xf32>
    %212 = vector.shape_cast %211 : vector<1x128x512xf32> to vector<128x512xf32>
    %cst_192 = arith.constant dense<0.000000e+00> : vector<2x512xf32>
    %213 = tpu.matmul %210, %212, %cst_192 {dimension_numbers = #tpu.dot_dimension_numbers<[1], [0], [0], [1], [0, 0, 1, 1], [], []>} : vector<2x128xf32>, vector<128x512xf32>, vector<2x512xf32> -> vector<2x512xf32>
    %214 = arith.addf %209, %213 : vector<2x512xf32>
    %c0_193 = arith.constant 0 : index
    %c0_194 = arith.constant 0 : index
    %215 = vector.load %arg9[%c0_193, %c0_194] : memref<1x512xf32, #tpu.memory_space<vmem>>, vector<1x512xf32>
    %216 = vector.broadcast %215 : vector<1x512xf32> to vector<2x512xf32>
    %217 = arith.addf %214, %216 : vector<2x512xf32>
    %cst_195 = arith.constant 0.000000e+00 : f32
    %218 = vector.broadcast %cst_195 : f32 to vector<2x512xf32>
    %219 = arith.maximumf %217, %218 : vector<2x512xf32>
    %c0_196 = arith.constant 0 : index
    %c0_197 = arith.constant 0 : index
    %220 = vector.load %arg10[%c0_196, %c0_197] : memref<512x2xf32, #tpu.memory_space<vmem>>, vector<512x2xf32>
    %cst_198 = arith.constant dense<0.000000e+00> : vector<2x2xf32>
    %221 = tpu.matmul %219, %220, %cst_198 {dimension_numbers = #tpu.dot_dimension_numbers<[1], [0], [0], [1], [0, 0, 1, 1], [], []>} : vector<2x512xf32>, vector<512x2xf32>, vector<2x2xf32> -> vector<2x2xf32>
    %c0_199 = arith.constant 0 : index
    %c0_200 = arith.constant 0 : index
    %c0_201 = arith.constant 0 : index
    %222 = vector.load %arg11[%c0_199, %c0_200, %c0_201] : memref<1x2x2xf32, #tpu.memory_space<vmem>>, vector<1x2x2xf32>
    %223 = vector.shape_cast %222 : vector<1x2x2xf32> to vector<2x2xf32>
    %224 = vector.shape_cast %221 : vector<2x2xf32> to vector<1x2x2xf32>
    tpu.vector_store %arg11[%c0_199, %c0_200, %c0_201], %224 {strides = array<i32>} : memref<1x2x2xf32, #tpu.memory_space<vmem>>, vector<1x2x2xf32>,
    return
  }
  func.func @transform_0(%arg0: i32) -> (i32, i32) {
    %c0_i32 = arith.constant 0 : i32
    %c0_i32_0 = arith.constant 0 : i32
    %c0_i32_1 = arith.constant 0 : i32
    return %c0_i32, %c0_i32_0 : i32, i32
  }
  func.func @transform_1(%arg0: i32) -> (i32, i32) {
    %c0_i32 = arith.constant 0 : i32
    %c0_i32_0 = arith.constant 0 : i32
    %c0_i32_1 = arith.constant 0 : i32
    return %c0_i32, %c0_i32_0 : i32, i32
  }
  func.func @transform_2(%arg0: i32) -> (i32, i32) {
    %c0_i32 = arith.constant 0 : i32
    %c0_i32_0 = arith.constant 0 : i32
    %c0_i32_1 = arith.constant 0 : i32
    return %c0_i32, %c0_i32_0 : i32, i32
  }
  func.func @transform_3(%arg0: i32) -> (i32, i32, i32) {
    %c0_i32 = arith.constant 0 : i32
    %c0_i32_0 = arith.constant 0 : i32
    %c0_i32_1 = arith.constant 0 : i32
    %c0_i32_2 = arith.constant 0 : i32
    return %c0_i32, %c0_i32_0, %c0_i32_1 : i32, i32, i32
  }
  func.func @transform_4(%arg0: i32) -> (i32, i32, i32) {
    %c0_i32 = arith.constant 0 : i32
    %c0_i32_0 = arith.constant 0 : i32
    %c0_i32_1 = arith.constant 0 : i32
    %c0_i32_2 = arith.constant 0 : i32
    return %c0_i32, %c0_i32_0, %c0_i32_1 : i32, i32, i32
  }
  func.func @transform_5(%arg0: i32) -> (i32, i32) {
    %c0_i32 = arith.constant 0 : i32
    %c0_i32_0 = arith.constant 0 : i32
    %c0_i32_1 = arith.constant 0 : i32
    return %c0_i32, %c0_i32_0 : i32, i32
  }
  func.func @transform_6(%arg0: i32) -> (i32, i32) {
    %c0_i32 = arith.constant 0 : i32
    %c0_i32_0 = arith.constant 0 : i32
    %c0_i32_1 = arith.constant 0 : i32
    return %c0_i32, %c0_i32_0 : i32, i32
  }
  func.func @transform_7(%arg0: i32) -> (i32, i32, i32) {
    %c0_i32 = arith.constant 0 : i32
    %c0_i32_0 = arith.constant 0 : i32
    %c0_i32_1 = arith.constant 0 : i32
    return %c0_i32, %c0_i32_0, %arg0 : i32, i32, i32
  }
  func.func @transform_8(%arg0: i32) -> (i32, i32) {
    %c0_i32 = arith.constant 0 : i32
    %c0_i32_0 = arith.constant 0 : i32
    return %c0_i32, %arg0 : i32, i32
  }
  func.func @transform_9(%arg0: i32) -> (i32, i32) {
    %c0_i32 = arith.constant 0 : i32
    %c0_i32_0 = arith.constant 0 : i32
    return %arg0, %c0_i32 : i32, i32
  }
  func.func @transform_10(%arg0: i32) -> (i32, i32, i32) {
    %c0_i32 = arith.constant 0 : i32
    %c0_i32_0 = arith.constant 0 : i32
    %c0_i32_1 = arith.constant 0 : i32
    return %arg0, %c0_i32, %c0_i32_0 : i32, i32, i32
  }
}

</mosaic_0001>

<llo_original>
// kernel: tpu_custom_call.1
$region0: #{tpu_custom_call.1}
  #allocation0 [shape = 'u32[]', space=smem, size = 0x4, offset = 0x4, fixed_abs, tag = 'smem constant byte address 0x4 - core index']
  #allocation1 [shape = 'u32[72,128]{1,0:T(1,128)}', space=vmem, size = 0x9000, scoped, tag = 'internal scratch']
  #allocation2 [shape = 'f32[64,128]{1,0:T(8,128)}', space=vmem, size = 0x8000, scoped, tag = 'scratch operand']
  %s0 = inlined_call_operand.vmem [shape: f32[256,3], index: 0, kind: input, shape index: {}]
  %s1 = inlined_call_operand.hbm [shape: f32[3,64], index: 1, kind: input, shape index: {}]
  %s2 = inlined_call_operand.hbm [shape: f32[1,64], index: 2, kind: input, shape index: {}]
  %s3 = inlined_call_operand.hbm [shape: f32[3,128,256], index: 3, kind: input, shape index: {}]
  %s4 = inlined_call_operand.hbm [shape: f32[3,64,128], index: 4, kind: input, shape index: {}]
  %s5 = inlined_call_operand.hbm [shape: f32[1,128], index: 5, kind: input, shape index: {}]
  %s6 = inlined_call_operand.hbm [shape: f32[64,128], index: 6, kind: input, shape index: {}]
  %s7 = inlined_call_operand.hbm [shape: f32[32,128,1024], index: 7, kind: input, shape index: {}]
  %s8 = inlined_call_operand.hbm [shape: f32[1,1024], index: 8, kind: input, shape index: {}]
  %s9 = inlined_call_operand.vmem [shape: f32[1024,2], index: 9, kind: input, shape index: {}]
  %s10 = inlined_call_operand.hbm [shape: f32[2,2,2], index: 10, kind: output, shape index: {}]
  %s11 = sld [smem:[#allocation0]]
  $region105: #{tpu_custom_call.1} parent=0
    _
  %s13 = ssub.s32 1, %s11
  %s14 = scalar_select 0, %s13, %s11
  $region1: #{tpu_custom_call.1} parent=0
    #allocation3 [shape = 'u8[2048]{0}', space=vmem, size = 0x800, scoped, tag = 'input window, operand 1, single buffered']
    #allocation4 [shape = 's32[2]{0}', space=sflag, size = 0x8, scoped, tag = 'scoped memory for tpu_custom_call.1']
    #allocation5 [shape = 's32[2]{0}', space=sflag, size = 0x8, scoped, tag = 'scoped memory for tpu_custom_call.1']
    #allocation6 [shape = 'u8[512]{0}', space=vmem, size = 0x400, scoped, tag = 'input window, operand 2, single buffered']
    #allocation7 [shape = 's32[1]{0}', space=sflag, size = 0x4, scoped, tag = 'scoped memory for tpu_custom_call.1']
    #allocation8 [shape = 'u8[393216]{0}', space=vmem, size = 0x60000, scoped, tag = 'input window, operand 3, single buffered']
    #allocation9 [shape = 'u8[98304]{0}', space=vmem, size = 0x18000, scoped, tag = 'input window, operand 4, single buffered']
    #allocation10 [shape = 's32[1]{0}', space=sflag, size = 0x4, scoped, tag = 'scoped memory for tpu_custom_call.1']
    #allocation11 [shape = 'u8[512]{0}', space=vmem, size = 0x400, scoped, tag = 'input window, operand 5, single buffered']
    #allocation12 [shape = 'u8[32768]{0}', space=vmem, size = 0x8000, scoped, tag = 'input window, operand 6, single buffered']
    #allocation13 [shape = 's32[1]{0}', space=sflag, size = 0x4, scoped, tag = 'scoped memory for tpu_custom_call.1']
    #allocation14 [shape = 'u8[16777216]{0}', space=vmem, size = 0x1000000, scoped, tag = 'input window, operand 7']
    #allocation15 [shape = 'u8[4096]{0}', space=vmem, size = 0x1000, scoped, tag = 'input window, operand 8']
    #allocation16 [shape = 'u8[2048]{0}', space=vmem, size = 0x800, scoped, tag = 'output window, operand 0']
    %15 = vsyncpa [#allocation4], 0
    %16 = vsyncpa [#allocation7], 0
    %17 = vsyncpa [#allocation10], 0
    %18 = vsyncpa [#allocation13], 0
    %19 = vsyncpa [#allocation5], 0
    %s20 = scalar_lea.sflag [#allocation5], 1
    %21 = vsyncpa %s20, 0
    loop: start=0, step=1, limit=4
    $region2: #{tpu_custom_call.1} parent=1 // loop_pre_header
      _
    $region3: #{tpu_custom_call.1} parent=1 // loop_header
      %s23 = sphi 0, %s27
      %p24 = scmp.ge.s32.totalorder %s23, 4
      %s31 = sphi 0, %s31
      %s33 = sphi 0, %s31
      %s34 = sphi 0, %s33
      %s48 = sphi 0, %s34
      %s52 = sphi 0, %s52
      %s54 = sphi 0, %s52
      %s55 = sphi 0, %s54
      %s69 = sphi 0, %s55
      %s73 = sphi 0, %s73
      %s75 = sphi 0, %s73
      %s76 = sphi 0, %s75
      %s90 = sphi 0, %s76
      %s94 = sphi 0, %s94
      %s96 = sphi 0, %s94
      %s97 = sphi 0, %s96
      %s111 = sphi 0, %s97
      %s115 = sphi 0, %s115
      %s117 = sphi 0, %s115
      %s118 = sphi 0, %s117
      %s132 = sphi 0, %s118
      %s136 = sphi 0, %s136
      %s138 = sphi 0, %s136
      %s139 = sphi 0, %s138
      %s153 = sphi 0, %s139
      %s157 = sphi 0, %s157
      %s159 = sphi 0, %s157
      %s160 = sphi 0, %s159
      %s174 = sphi 0, %s160
      %s180 = sphi 0, %s182
      %s183 = sphi 0, %s180
      %s184 = sphi 0, %s183
      %s200 = sphi 0, %s184
      %s206 = sphi 0, %s208
      %s209 = sphi 0, %s206
      %s210 = sphi 0, %s209
      %s226 = sphi 0, %s210
      %s232 = sphi 0, %s234
      %s235 = sphi 0, %s232
      %s236 = sphi 0, %s235
      %s252 = sphi 0, %s236
      %s258 = sphi 0, %s260
      %s261 = sphi 0, %s258
      %s262 = sphi 0, %s261
      %s278 = sphi 0, %s262
    $region4: #{tpu_custom_call.1} parent=1 // loop_header_branch
      %26 = sbr.rel (%p24) target = $region8
    $region5: #{tpu_custom_call.1} parent=1 // loop_body
      %s28 = ssub.s32 %s23, 1
      %s29 = ssub.s32 %s23, 2
      %s30 = sadd.s32 %s23, 1
      %s32 = sadd.s32 %s31, 1
      %p35 = scmp.eq.s32.totalorder %s23, 1
      %p36 = scmp.ne.s32.totalorder %s31, %s33
      %p37 = scmp.eq.s32.totalorder %s23, 0
      %p38 = por %p36, %p37
      %p39 = scmp.ne.s32.totalorder %s31, %s33
      %p40 = scmp.eq.s32.totalorder %s28, 1
      %p41 = por %p39, %p40
      %p42 = scmp.ne.s32.totalorder %s33, %s34
      %p43 = scmp.eq.s32.totalorder %s28, 0
      %p44 = por %p42, %p43
      %p45 = scmp.ne.s32.totalorder %s33, %s34
      %p46 = scmp.eq.s32.totalorder %s29, 1
      %p47 = por %p45, %p46
      %p49 = scmp.ne.s32.totalorder %s34, %s48
      %p50 = scmp.eq.s32.totalorder %s29, 0
      %p51 = por %p49, %p50
      %s53 = sadd.s32 %s52, 1
      %p56 = scmp.eq.s32.totalorder %s23, 1
      %p57 = scmp.ne.s32.totalorder %s52, %s54
      %p58 = scmp.eq.s32.totalorder %s23, 0
      %p59 = por %p57, %p58
      %p60 = scmp.ne.s32.totalorder %s52, %s54
      %p61 = scmp.eq.s32.totalorder %s28, 1
      %p62 = por %p60, %p61
      %p63 = scmp.ne.s32.totalorder %s54, %s55
      %p64 = scmp.eq.s32.totalorder %s28, 0
      %p65 = por %p63, %p64
      %p66 = scmp.ne.s32.totalorder %s54, %s55
      %p67 = scmp.eq.s32.totalorder %s29, 1
      %p68 = por %p66, %p67
      %p70 = scmp.ne.s32.totalorder %s55, %s69
      %p71 = scmp.eq.s32.totalorder %s29, 0
      %p72 = por %p70, %p71
      %s74 = sadd.s32 %s73, 1
      %p77 = scmp.eq.s32.totalorder %s23, 1
      %p78 = scmp.ne.s32.totalorder %s73, %s75
      %p79 = scmp.eq.s32.totalorder %s23, 0
      %p80 = por %p78, %p79
      %p81 = scmp.ne.s32.totalorder %s73, %s75
      %p82 = scmp.eq.s32.totalorder %s28, 1
      %p83 = por %p81, %p82
      %p84 = scmp.ne.s32.totalorder %s75, %s76
      %p85 = scmp.eq.s32.totalorder %s28, 0
      %p86 = por %p84, %p85
      %p87 = scmp.ne.s32.totalorder %s75, %s76
      %p88 = scmp.eq.s32.totalorder %s29, 1
      %p89 = por %p87, %p88
      %p91 = scmp.ne.s32.totalorder %s76, %s90
      %p92 = scmp.eq.s32.totalorder %s29, 0
      %p93 = por %p91, %p92
      %s95 = sadd.s32 %s94, 1
      %p98 = scmp.eq.s32.totalorder %s23, 1
      %p99 = scmp.ne.s32.totalorder %s94, %s96
      %p100 = scmp.eq.s32.totalorder %s23, 0
      %p101 = por %p99, %p100
      %p102 = scmp.ne.s32.totalorder %s94, %s96
      %p103 = scmp.eq.s32.totalorder %s28, 1
      %p104 = por %p102, %p103
      %p105 = scmp.ne.s32.totalorder %s96, %s97
      %p106 = scmp.eq.s32.totalorder %s28, 0
      %p107 = por %p105, %p106
      %p108 = scmp.ne.s32.totalorder %s96, %s97
      %p109 = scmp.eq.s32.totalorder %s29, 1
      %p110 = por %p108, %p109
      %p112 = scmp.ne.s32.totalorder %s97, %s111
      %p113 = scmp.eq.s32.totalorder %s29, 0
      %p114 = por %p112, %p113
      %s116 = sadd.s32 %s115, 1
      %p119 = scmp.eq.s32.totalorder %s23, 1
      %p120 = scmp.ne.s32.totalorder %s115, %s117
      %p121 = scmp.eq.s32.totalorder %s23, 0
      %p122 = por %p120, %p121
      %p123 = scmp.ne.s32.totalorder %s115, %s117
      %p124 = scmp.eq.s32.totalorder %s28, 1
      %p125 = por %p123, %p124
      %p126 = scmp.ne.s32.totalorder %s117, %s118
      %p127 = scmp.eq.s32.totalorder %s28, 0
      %p128 = por %p126, %p127
      %p129 = scmp.ne.s32.totalorder %s117, %s118
      %p130 = scmp.eq.s32.totalorder %s29, 1
      %p131 = por %p129, %p130
      %p133 = scmp.ne.s32.totalorder %s118, %s132
      %p134 = scmp.eq.s32.totalorder %s29, 0
      %p135 = por %p133, %p134
      %s137 = sadd.s32 %s136, 1
      %p140 = scmp.eq.s32.totalorder %s23, 1
      %p141 = scmp.ne.s32.totalorder %s136, %s138
      %p142 = scmp.eq.s32.totalorder %s23, 0
      %p143 = por %p141, %p142
      %p144 = scmp.ne.s32.totalorder %s136, %s138
      %p145 = scmp.eq.s32.totalorder %s28, 1
      %p146 = por %p144, %p145
      %p147 = scmp.ne.s32.totalorder %s138, %s139
      %p148 = scmp.eq.s32.totalorder %s28, 0
      %p149 = por %p147, %p148
      %p150 = scmp.ne.s32.totalorder %s138, %s139
      %p151 = scmp.eq.s32.totalorder %s29, 1
      %p152 = por %p150, %p151
      %p154 = scmp.ne.s32.totalorder %s139, %s153
      %p155 = scmp.eq.s32.totalorder %s29, 0
      %p156 = por %p154, %p155
      %s158 = sadd.s32 %s157, 1
      %p161 = scmp.eq.s32.totalorder %s23, 1
      %p162 = scmp.ne.s32.totalorder %s157, %s159
      %p163 = scmp.eq.s32.totalorder %s23, 0
      %p164 = por %p162, %p163
      %p165 = scmp.ne.s32.totalorder %s157, %s159
      %p166 = scmp.eq.s32.totalorder %s28, 1
      %p167 = por %p165, %p166
      %p168 = scmp.ne.s32.totalorder %s159, %s160
      %p169 = scmp.eq.s32.totalorder %s28, 0
      %p170 = por %p168, %p169
      %p171 = scmp.ne.s32.totalorder %s159, %s160
      %p172 = scmp.eq.s32.totalorder %s29, 1
      %p173 = por %p171, %p172
      %p175 = scmp.ne.s32.totalorder %s160, %s174
      %p176 = scmp.eq.s32.totalorder %s29, 0
      %p177 = por %p175, %p176
      %s178 = ssub.s32 %s23, %s30
      %p179 = scmp.eq.s32.totalorder %s178, 0
      %s181 = sadd.s32 %s180, 1
      %s182 = scalar_select %p179, %s180, %s181
      %p185 = pneg %p179
      %p186 = scmp.eq.s32.totalorder %s23, 1
      %p187 = por %p185, %p186
      %p188 = scmp.ne.s32.totalorder %s180, %s183
      %p189 = scmp.eq.s32.totalorder %s23, 0
      %p190 = por %p188, %p189
      %p191 = scmp.ne.s32.totalorder %s180, %s183
      %p192 = scmp.eq.s32.totalorder %s28, 1
      %p193 = por %p191, %p192
      %p194 = scmp.ne.s32.totalorder %s183, %s184
      %p195 = scmp.eq.s32.totalorder %s28, 0
      %p196 = por %p194, %p195
      %p197 = scmp.ne.s32.totalorder %s183, %s184
      %p198 = scmp.eq.s32.totalorder %s29, 1
      %p199 = por %p197, %p198
      %p201 = scmp.ne.s32.totalorder %s184, %s200
      %p202 = scmp.eq.s32.totalorder %s29, 0
      %p203 = por %p201, %p202
      %s204 = ssub.s32 %s23, %s30
      %p205 = scmp.eq.s32.totalorder %s204, 0
      %s207 = sadd.s32 %s206, 1
      %s208 = scalar_select %p205, %s206, %s207
      %p211 = pneg %p205
      %p212 = scmp.eq.s32.totalorder %s23, 1
      %p213 = por %p211, %p212
      %p214 = scmp.ne.s32.totalorder %s206, %s209
      %p215 = scmp.eq.s32.totalorder %s23, 0
      %p216 = por %p214, %p215
      %p217 = scmp.ne.s32.totalorder %s206, %s209
      %p218 = scmp.eq.s32.totalorder %s28, 1
      %p219 = por %p217, %p218
      %p220 = scmp.ne.s32.totalorder %s209, %s210
      %p221 = scmp.eq.s32.totalorder %s28, 0
      %p222 = por %p220, %p221
      %p223 = scmp.ne.s32.totalorder %s209, %s210
      %p224 = scmp.eq.s32.totalorder %s29, 1
      %p225 = por %p223, %p224
      %p227 = scmp.ne.s32.totalorder %s210, %s226
      %p228 = scmp.eq.s32.totalorder %s29, 0
      %p229 = por %p227, %p228
      %s230 = ssub.s32 %s23, %s30
      %p231 = scmp.eq.s32.totalorder %s230, 0
      %s233 = sadd.s32 %s232, 1
      %s234 = scalar_select %p231, %s232, %s233
      %p237 = pneg %p231
      %p238 = scmp.eq.s32.totalorder %s23, 1
      %p239 = por %p237, %p238
      %p240 = scmp.ne.s32.totalorder %s232, %s235
      %p241 = scmp.eq.s32.totalorder %s23, 0
      %p242 = por %p240, %p241
      %p243 = scmp.ne.s32.totalorder %s232, %s235
      %p244 = scmp.eq.s32.totalorder %s28, 1
      %p245 = por %p243, %p244
      %p246 = scmp.ne.s32.totalorder %s235, %s236
      %p247 = scmp.eq.s32.totalorder %s28, 0
      %p248 = por %p246, %p247
      %p249 = scmp.ne.s32.totalorder %s235, %s236
      %p250 = scmp.eq.s32.totalorder %s29, 1
      %p251 = por %p249, %p250
      %p253 = scmp.ne.s32.totalorder %s236, %s252
      %p254 = scmp.eq.s32.totalorder %s29, 0
      %p255 = por %p253, %p254
      %s256 = ssub.s32 %s23, %s30
      %p257 = scmp.eq.s32.totalorder %s256, 0
      %s259 = sadd.s32 %s258, 1
      %s260 = scalar_select %p257, %s258, %s259
      %p263 = pneg %p257
      %p264 = scmp.eq.s32.totalorder %s23, 1
      %p265 = por %p263, %p264
      %p266 = scmp.ne.s32.totalorder %s258, %s261
      %p267 = scmp.eq.s32.totalorder %s23, 0
      %p268 = por %p266, %p267
      %p269 = scmp.ne.s32.totalorder %s258, %s261
      %p270 = scmp.eq.s32.totalorder %s28, 1
      %p271 = por %p269, %p270
      %p272 = scmp.ne.s32.totalorder %s261, %s262
      %p273 = scmp.eq.s32.totalorder %s28, 0
      %p274 = por %p272, %p273
      %p275 = scmp.ne.s32.totalorder %s261, %s262
      %p276 = scmp.eq.s32.totalorder %s29, 1
      %p277 = por %p275, %p276
      %p279 = scmp.ne.s32.totalorder %s262, %s278
      %p280 = scmp.eq.s32.totalorder %s29, 0
      %p281 = por %p279, %p280
      %p282 = scmp.le.s32.totalorder 1, %s23
      %p283 = scmp.lt.s32.totalorder %s23, 3
      %p284 = pnand %p282, %p283
      %p285 = pneg %p284
      // Predicated region
      $region9: #{tpu_custom_call.1} parent=5 // pred_check
        _
      $region10: #{tpu_custom_call.1} parent=5 // pred_check_branch
        %287 = sbr.rel (%p284) target = $region12
      $region11: #{tpu_custom_call.1} parent=5 // pred_region
        %s288 = ssub.s32 %s23, 1
        // Predicated region
        $region13: #{tpu_custom_call.1} parent=11 // pred_check
          %p289 = pneg %p44
        $region14: #{tpu_custom_call.1} parent=11 // pred_check_branch
          %291 = sbr.rel (%p289) target = $region16
        $region15: #{tpu_custom_call.1} parent=11 // pred_region
          _
        $region16: #{tpu_custom_call.1} parent=11 // pred_fallthru
          _
        // Predicated region
        $region17: #{tpu_custom_call.1} parent=11 // pred_check
          %p292 = pneg %p65
        $region18: #{tpu_custom_call.1} parent=11 // pred_check_branch
          %294 = sbr.rel (%p292) target = $region20
        $region19: #{tpu_custom_call.1} parent=11 // pred_region
          %296 = vsyncadd [#allocation4], 0
          %s298 = sshll.u32 %s1, 4
          %s299 = int_to_ptr.hbm [resolvable:$true] %s298
          %s300 = sshll.u32 [#allocation3], 4
          %s301 = int_to_ptr.vmem [resolvable:$true] %s300
          %303 = dma.hbm_to_vmem [thread:$0]  %s299, 64, %s301, [#allocation4]
        $region20: #{tpu_custom_call.1} parent=11 // pred_fallthru
          _
        // Predicated region
        $region21: #{tpu_custom_call.1} parent=11 // pred_check
          %p304 = pneg %p86
        $region22: #{tpu_custom_call.1} parent=11 // pred_check_branch
          %306 = sbr.rel (%p304) target = $region24
        $region23: #{tpu_custom_call.1} parent=11 // pred_region
          %308 = vsyncadd [#allocation7], 0
          %s310 = sshll.u32 %s2, 4
          %s311 = int_to_ptr.hbm [resolvable:$true] %s310
          %s312 = sshll.u32 [#allocation6], 4
          %s313 = int_to_ptr.vmem [resolvable:$true] %s312
          %315 = dma.hbm_to_vmem [thread:$0]  %s311, 16, %s313, [#allocation7]
        $region24: #{tpu_custom_call.1} parent=11 // pred_fallthru
          _
        // Predicated region
        $region25: #{tpu_custom_call.1} parent=11 // pred_check
          %p316 = pneg %p107
        $region26: #{tpu_custom_call.1} parent=11 // pred_check_branch
          %318 = sbr.rel (%p316) target = $region28
        $region27: #{tpu_custom_call.1} parent=11 // pred_region
          %320 = vsyncadd [#allocation7], 0
          %s321 = sshll.u32 %s3, 4
          %s322 = int_to_ptr.hbm [resolvable:$true] %s321
          %s323 = sshll.u32 [#allocation8], 4
          %s324 = int_to_ptr.vmem [resolvable:$true] %s323
          %329 = dma.hbm_to_vmem [thread:$0]  %s322, 12288, %s324, [#allocation7], 256, 256, 16
        $region28: #{tpu_custom_call.1} parent=11 // pred_fallthru
          _
        // Predicated region
        $region29: #{tpu_custom_call.1} parent=11 // pred_check
          %p330 = pneg %p128
        $region30: #{tpu_custom_call.1} parent=11 // pred_check_branch
          %332 = sbr.rel (%p330) target = $region32
        $region31: #{tpu_custom_call.1} parent=11 // pred_region
          %334 = vsyncadd [#allocation10], 0
          %s335 = sshll.u32 %s4, 4
          %s336 = int_to_ptr.hbm [resolvable:$true] %s335
          %s337 = sshll.u32 [#allocation9], 4
          %s338 = int_to_ptr.vmem [resolvable:$true] %s337
          %343 = dma.hbm_to_vmem [thread:$0]  %s336, 3072, %s338, [#allocation10], 128, 128, 8
        $region32: #{tpu_custom_call.1} parent=11 // pred_fallthru
          _
        // Predicated region
        $region33: #{tpu_custom_call.1} parent=11 // pred_check
          %p344 = pneg %p149
        $region34: #{tpu_custom_call.1} parent=11 // pred_check_branch
          %346 = sbr.rel (%p344) target = $region36
        $region35: #{tpu_custom_call.1} parent=11 // pred_region
          %348 = vsyncadd [#allocation10], 0
          %s350 = sshll.u32 %s5, 4
          %s351 = int_to_ptr.hbm [resolvable:$true] %s350
          %s352 = sshll.u32 [#allocation11], 4
          %s353 = int_to_ptr.vmem [resolvable:$true] %s352
          %355 = dma.hbm_to_vmem [thread:$0]  %s351, 16, %s353, [#allocation10]
        $region36: #{tpu_custom_call.1} parent=11 // pred_fallthru
          _
        // Predicated region
        $region37: #{tpu_custom_call.1} parent=11 // pred_check
          %p356 = pneg %p170
        $region38: #{tpu_custom_call.1} parent=11 // pred_check_branch
          %358 = sbr.rel (%p356) target = $region40
        $region39: #{tpu_custom_call.1} parent=11 // pred_region
          %360 = vsyncadd [#allocation13], 0
          %s361 = sshll.u32 %s6, 4
          %s362 = int_to_ptr.hbm [resolvable:$true] %s361
          %s363 = sshll.u32 [#allocation12], 4
          %s364 = int_to_ptr.vmem [resolvable:$true] %s363
          %369 = dma.hbm_to_vmem [thread:$0]  %s362, 1024, %s364, [#allocation13], 128, 128, 8
        $region40: #{tpu_custom_call.1} parent=11 // pred_fallthru
          _
      $region12: #{tpu_custom_call.1} parent=5 // pred_fallthru
        _
      %p370 = scmp.lt.s32.totalorder %s23, 2
      // Predicated region
      $region41: #{tpu_custom_call.1} parent=5 // pred_check
        %p371 = pneg %p370
      $region42: #{tpu_custom_call.1} parent=5 // pred_check_branch
        %373 = sbr.rel (%p371) target = $region44
      $region43: #{tpu_custom_call.1} parent=5 // pred_region
        // Predicated region
        $region45: #{tpu_custom_call.1} parent=43 // pred_check
          %p374 = pneg %p190
        $region46: #{tpu_custom_call.1} parent=43 // pred_check_branch
          %376 = sbr.rel (%p374) target = $region48
        $region47: #{tpu_custom_call.1} parent=43 // pred_region
          %s377 = sand.u32 %s23, 1
          %s378 = scalar_lea.sflag [#allocation4], %s377
          %s379 = sand.u32 %s180, 1
          %s380 = smul.addr %s379, 16384
          %s381 = scalar_lea.vmem [#allocation14], %s380
          %s382 = smul.u32 4, %s23
          %384 = vsyncadd %s378, 0
          %s385 = smul.addr %s382, 8
          %s386 = scalar_lea.hbm %s7, %s385
          %s387 = sshll.u32 %s386, 4
          %s388 = int_to_ptr.hbm [resolvable:$true] %s387
          %s389 = sshll.u32 %s381, 4
          %s390 = int_to_ptr.vmem [resolvable:$true] %s389
          %395 = dma.hbm_to_vmem [thread:$0]  %s388, 262144, %s390, %s378, 1024, 512, 32
        $region48: #{tpu_custom_call.1} parent=43 // pred_fallthru
          _
        // Predicated region
        $region49: #{tpu_custom_call.1} parent=43 // pred_check
          %p396 = pneg %p216
        $region50: #{tpu_custom_call.1} parent=43 // pred_check_branch
          %398 = sbr.rel (%p396) target = $region52
        $region51: #{tpu_custom_call.1} parent=43 // pred_region
          %s399 = sand.u32 %s23, 1
          %s400 = scalar_lea.sflag [#allocation4], %s399
          %s401 = sand.u32 %s206, 1
          %s402 = smul.addr %s401, 4
          %s403 = scalar_lea.vmem [#allocation15], %s402
          %s404 = smul.u32 4, %s23
          %406 = vsyncadd %s400, 0
          %s407 = scalar_lea.hbm %s8, %s404
          %s409 = sshll.u32 %s407, 4
          %s410 = int_to_ptr.hbm [resolvable:$true] %s409
          %s411 = sshll.u32 %s403, 4
          %s412 = int_to_ptr.vmem [resolvable:$true] %s411
          %414 = dma.hbm_to_vmem [thread:$0]  %s410, 64, %s412, %s400
        $region52: #{tpu_custom_call.1} parent=43 // pred_fallthru
          _
        // Predicated region
        $region53: #{tpu_custom_call.1} parent=43 // pred_check
          %p415 = pneg %p242
        $region54: #{tpu_custom_call.1} parent=43 // pred_check_branch
          %417 = sbr.rel (%p415) target = $region56
        $region55: #{tpu_custom_call.1} parent=43 // pred_region
          %s418 = smul.u32 64, %s23
          %p419 = scmp.lt.s32.totalorder %s418, 127
          %s420 = scalar_select %p419, %s418, 127
          %s421 = smul.addr %s420, 8
          %s422 = scalar_lea.vmem %s9, %s421
          %s423 = smul.u32 64, %s23
        $region56: #{tpu_custom_call.1} parent=43 // pred_fallthru
          _
      $region44: #{tpu_custom_call.1} parent=5 // pred_fallthru
        _
      %p424 = scmp.le.s32.totalorder 1, %s23
      %p425 = scmp.lt.s32.totalorder %s23, 3
      %p426 = pnand %p424, %p425
      %p427 = pneg %p426
      // Predicated region
      $region57: #{tpu_custom_call.1} parent=5 // pred_check
        _
      $region58: #{tpu_custom_call.1} parent=5 // pred_check_branch
        %429 = sbr.rel (%p426) target = $region60
      $region59: #{tpu_custom_call.1} parent=5 // pred_region
        %s430 = ssub.s32 %s23, 1
        // Predicated region
        $region61: #{tpu_custom_call.1} parent=59 // pred_check
          %p431 = pneg %p65
        $region62: #{tpu_custom_call.1} parent=59 // pred_check_branch
          %433 = sbr.rel (%p431) target = $region64
        $region63: #{tpu_custom_call.1} parent=59 // pred_region
          %435 = dma.done [#allocation4], 64
        $region64: #{tpu_custom_call.1} parent=59 // pred_fallthru
          _
        // Predicated region
        $region65: #{tpu_custom_call.1} parent=59 // pred_check
          %p436 = pneg %p86
        $region66: #{tpu_custom_call.1} parent=59 // pred_check_branch
          %438 = sbr.rel (%p436) target = $region68
        $region67: #{tpu_custom_call.1} parent=59 // pred_region
          %440 = dma.done [#allocation7], 16
        $region68: #{tpu_custom_call.1} parent=59 // pred_fallthru
          _
        // Predicated region
        $region69: #{tpu_custom_call.1} parent=59 // pred_check
          %p441 = pneg %p107
        $region70: #{tpu_custom_call.1} parent=59 // pred_check_branch
          %443 = sbr.rel (%p441) target = $region72
        $region71: #{tpu_custom_call.1} parent=59 // pred_region
          %445 = dma.done [#allocation7], 12288
        $region72: #{tpu_custom_call.1} parent=59 // pred_fallthru
          _
        // Predicated region
        $region73: #{tpu_custom_call.1} parent=59 // pred_check
          %p446 = pneg %p128
        $region74: #{tpu_custom_call.1} parent=59 // pred_check_branch
          %448 = sbr.rel (%p446) target = $region76
        $region75: #{tpu_custom_call.1} parent=59 // pred_region
          %450 = dma.done [#allocation10], 3072
        $region76: #{tpu_custom_call.1} parent=59 // pred_fallthru
          _
        // Predicated region
        $region77: #{tpu_custom_call.1} parent=59 // pred_check
          %p451 = pneg %p149
        $region78: #{tpu_custom_call.1} parent=59 // pred_check_branch
          %453 = sbr.rel (%p451) target = $region80
        $region79: #{tpu_custom_call.1} parent=59 // pred_region
          %455 = dma.done [#allocation10], 16
        $region80: #{tpu_custom_call.1} parent=59 // pred_fallthru
          _
        // Predicated region
        $region81: #{tpu_custom_call.1} parent=59 // pred_check
          %p456 = pneg %p170
        $region82: #{tpu_custom_call.1} parent=59 // pred_check_branch
          %458 = sbr.rel (%p456) target = $region84
        $region83: #{tpu_custom_call.1} parent=59 // pred_region
          %460 = dma.done [#allocation13], 1024
        $region84: #{tpu_custom_call.1} parent=59 // pred_fallthru
          _
        %s461 = sand.u32 %s28, 1
        %s462 = scalar_lea.sflag [#allocation4], %s461
        %s463 = sand.u32 %s183, 1
        %s464 = smul.addr %s463, 16384
        %s465 = scalar_lea.vmem [#allocation14], %s464
        // Predicated region
        $region85: #{tpu_custom_call.1} parent=59 // pred_check
          %p466 = pneg %p196
        $region86: #{tpu_custom_call.1} parent=59 // pred_check_branch
          %468 = sbr.rel (%p466) target = $region88
        $region87: #{tpu_custom_call.1} parent=59 // pred_region
          %470 = dma.done %s462, 262144
        $region88: #{tpu_custom_call.1} parent=59 // pred_fallthru
          _
        %s471 = sand.u32 %s28, 1
        %s472 = scalar_lea.sflag [#allocation4], %s471
        %s473 = sand.u32 %s209, 1
        %s474 = smul.addr %s473, 4
        %s475 = scalar_lea.vmem [#allocation15], %s474
        // Predicated region
        $region89: #{tpu_custom_call.1} parent=59 // pred_check
          %p476 = pneg %p222
        $region90: #{tpu_custom_call.1} parent=59 // pred_check_branch
          %478 = sbr.rel (%p476) target = $region92
        $region91: #{tpu_custom_call.1} parent=59 // pred_region
          %480 = dma.done %s472, 64
        $region92: #{tpu_custom_call.1} parent=59 // pred_fallthru
          _
        %p481 = pneg %p44
        %p482 = pneg %p41
        %p483 = pneg %p65
        %p484 = pneg %p62
        %p485 = pneg %p86
        %p486 = pneg %p83
        %p487 = pneg %p107
        %p488 = pneg %p104
        %p489 = pneg %p128
        %p490 = pneg %p125
        %p491 = pneg %p149
        %p492 = pneg %p146
        %p493 = pneg %p170
        %p494 = pneg %p167
        %s495 = sand.u32 %s28, 1
        %s496 = scalar_lea.sflag [#allocation4], %s495
        %s497 = sand.u32 %s183, 1
        %s498 = smul.addr %s497, 16384
        %s499 = scalar_lea.vmem [#allocation14], %s498
        %p500 = pneg %p196
        %p501 = pneg %p193
        %s502 = sand.u32 %s28, 1
        %s503 = scalar_lea.sflag [#allocation4], %s502
        %s504 = sand.u32 %s209, 1
        %s505 = smul.addr %s504, 4
        %s506 = scalar_lea.vmem [#allocation15], %s505
        %p507 = pneg %p222
        %p508 = pneg %p219
        %s509 = smul.u32 64, %s28
        %p510 = scmp.lt.s32.totalorder %s509, 127
        %s511 = scalar_select %p510, %s509, 127
        %s512 = smul.addr %s511, 8
        %s513 = scalar_lea.vmem %s9, %s512
        %p514 = pneg %p248
        %p515 = pneg %p245
        %p516 = pneg %p274
        %p517 = pneg %p271
        %s518 = sand.u32 %s261, 1
        %s519 = scalar_lea.sflag [#allocation5], %s518
        %s520 = sand.u32 %s261, 1
        %s521 = smul.addr %s520, 2
        %s522 = scalar_lea.vmem [#allocation16], %s521
        %s523 = smul.u32 4, %s28
        %s524 = smul.u32 4, %s28
        %s525 = smul.u32 64, %s28
        %p526 = scmp.lt.s32.totalorder %s525, 127
        %s527 = scalar_select %p526, %s525, 127
        %s528 = smul.addr %s527, 8
        %s529 = scalar_lea.vmem %s9, %s528
        %s530 = smul.u32 64, %s28
        %v531 = vld [vmem:[%s0] sm:$0xff]
        %v532 = vld [vmem:[%s0 + $0x8] sm:$0xff]
        %v533 = vld [vmem:[%s0 + $0x10] sm:$0xff]
        %v534 = vld [vmem:[%s0 + $0x18] sm:$0xff]
        %v535 = vld [vmem:[%s0 + $0x20] sm:$0xff]
        %v536 = vld [vmem:[%s0 + $0x28] sm:$0xff]
        %v537 = vld [vmem:[%s0 + $0x30] sm:$0xff]
        %v538 = vld [vmem:[%s0 + $0x38] sm:$0xff]
        %v539 = vld [vmem:[%s0 + $0x40] sm:$0xff]
        %v540 = vld [vmem:[%s0 + $0x48] sm:$0xff]
        %v541 = vld [vmem:[%s0 + $0x50] sm:$0xff]
        %v542 = vld [vmem:[%s0 + $0x58] sm:$0xff]
        %v543 = vld [vmem:[%s0 + $0x60] sm:$0xff]
        %v544 = vld [vmem:[%s0 + $0x68] sm:$0xff]
        %v545 = vld [vmem:[%s0 + $0x70] sm:$0xff]
        %v546 = vld [vmem:[%s0 + $0x78] sm:$0xff]
        %v547 = vld [vmem:[%s0 + $0x80] sm:$0xff]
        %v548 = vld [vmem:[%s0 + $0x88] sm:$0xff]
        %v549 = vld [vmem:[%s0 + $0x90] sm:$0xff]
        %v550 = vld [vmem:[%s0 + $0x98] sm:$0xff]
        %v551 = vld [vmem:[%s0 + $0xa0] sm:$0xff]
        %v552 = vld [vmem:[%s0 + $0xa8] sm:$0xff]
        %v553 = vld [vmem:[%s0 + $0xb0] sm:$0xff]
        %v554 = vld [vmem:[%s0 + $0xb8] sm:$0xff]
        %v555 = vld [vmem:[%s0 + $0xc0] sm:$0xff]
        %v556 = vld [vmem:[%s0 + $0xc8] sm:$0xff]
        %v557 = vld [vmem:[%s0 + $0xd0] sm:$0xff]
        %v558 = vld [vmem:[%s0 + $0xd8] sm:$0xff]
        %v559 = vld [vmem:[%s0 + $0xe0] sm:$0xff]
        %v560 = vld [vmem:[%s0 + $0xe8] sm:$0xff]
        %v561 = vld [vmem:[%s0 + $0xf0] sm:$0xff]
        %v562 = vld [vmem:[%s0 + $0xf8] sm:$0xff]
        %v563 = vld [vmem:[#allocation3] sm:$0x1]
        %565 = vset.pattern.permute.xlu0 0
        %566 = vperm.xlu0 %565, %v531
        %v567 = vpop.permute.xlu0 %566
        %570 = vset.pattern.permute.xlu0 0
        %571 = vperm.xlu0 %570, %v532
        %v572 = vpop.permute.xlu0 %571
        %575 = vset.pattern.permute.xlu0 0
        %576 = vperm.xlu0 %575, %v533
        %v577 = vpop.permute.xlu0 %576
        %580 = vset.pattern.permute.xlu0 0
        %581 = vperm.xlu0 %580, %v534
        %v582 = vpop.permute.xlu0 %581
        %585 = vset.pattern.permute.xlu0 0
        %586 = vperm.xlu0 %585, %v535
        %v587 = vpop.permute.xlu0 %586
        %590 = vset.pattern.permute.xlu0 0
        %591 = vperm.xlu0 %590, %v536
        %v592 = vpop.permute.xlu0 %591
        %595 = vset.pattern.permute.xlu0 0
        %596 = vperm.xlu0 %595, %v537
        %v597 = vpop.permute.xlu0 %596
        %600 = vset.pattern.permute.xlu0 0
        %601 = vperm.xlu0 %600, %v538
        %v602 = vpop.permute.xlu0 %601
        %605 = vset.pattern.permute.xlu0 0
        %606 = vperm.xlu0 %605, %v539
        %v607 = vpop.permute.xlu0 %606
        %610 = vset.pattern.permute.xlu0 0
        %611 = vperm.xlu0 %610, %v540
        %v612 = vpop.permute.xlu0 %611
        %615 = vset.pattern.permute.xlu0 0
        %616 = vperm.xlu0 %615, %v541
        %v617 = vpop.permute.xlu0 %616
        %620 = vset.pattern.permute.xlu0 0
        %621 = vperm.xlu0 %620, %v542
        %v622 = vpop.permute.xlu0 %621
        %625 = vset.pattern.permute.xlu0 0
        %626 = vperm.xlu0 %625, %v543
        %v627 = vpop.permute.xlu0 %626
        %630 = vset.pattern.permute.xlu0 0
        %631 = vperm.xlu0 %630, %v544
        %v632 = vpop.permute.xlu0 %631
        %635 = vset.pattern.permute.xlu0 0
        %636 = vperm.xlu0 %635, %v545
        %v637 = vpop.permute.xlu0 %636
        %640 = vset.pattern.permute.xlu0 0
        %641 = vperm.xlu0 %640, %v546
        %v642 = vpop.permute.xlu0 %641
        %645 = vset.pattern.permute.xlu0 0
        %646 = vperm.xlu0 %645, %v547
        %v647 = vpop.permute.xlu0 %646
        %650 = vset.pattern.permute.xlu0 0
        %651 = vperm.xlu0 %650, %v548
        %v652 = vpop.permute.xlu0 %651
        %655 = vset.pattern.permute.xlu0 0
        %656 = vperm.xlu0 %655, %v549
        %v657 = vpop.permute.xlu0 %656
        %660 = vset.pattern.permute.xlu0 0
        %661 = vperm.xlu0 %660, %v550
        %v662 = vpop.permute.xlu0 %661
        %665 = vset.pattern.permute.xlu0 0
        %666 = vperm.xlu0 %665, %v551
        %v667 = vpop.permute.xlu0 %666
        %670 = vset.pattern.permute.xlu0 0
        %671 = vperm.xlu0 %670, %v552
        %v672 = vpop.permute.xlu0 %671
        %675 = vset.pattern.permute.xlu0 0
        %676 = vperm.xlu0 %675, %v553
        %v677 = vpop.permute.xlu0 %676
        %680 = vset.pattern.permute.xlu0 0
        %681 = vperm.xlu0 %680, %v554
        %v682 = vpop.permute.xlu0 %681
        %685 = vset.pattern.permute.xlu0 0
        %686 = vperm.xlu0 %685, %v555
        %v687 = vpop.permute.xlu0 %686
        %690 = vset.pattern.permute.xlu0 0
        %691 = vperm.xlu0 %690, %v556
        %v692 = vpop.permute.xlu0 %691
        %695 = vset.pattern.permute.xlu0 0
        %696 = vperm.xlu0 %695, %v557
        %v697 = vpop.permute.xlu0 %696
        %700 = vset.pattern.permute.xlu0 0
        %701 = vperm.xlu0 %700, %v558
        %v702 = vpop.permute.xlu0 %701
        %705 = vset.pattern.permute.xlu0 0
        %706 = vperm.xlu0 %705, %v559
        %v707 = vpop.permute.xlu0 %706
        %710 = vset.pattern.permute.xlu0 0
        %711 = vperm.xlu0 %710, %v560
        %v712 = vpop.permute.xlu0 %711
        %715 = vset.pattern.permute.xlu0 0
        %716 = vperm.xlu0 %715, %v561
        %v717 = vpop.permute.xlu0 %716
        %720 = vset.pattern.permute.xlu0 0
        %721 = vperm.xlu0 %720, %v562
        %v722 = vpop.permute.xlu0 %721
        %v724 = vperm.slane %v563, 0
        %v725 = vmul.f32 %v567, %v724
        %v726 = vmul.f32 %v572, %v724
        %v727 = vmul.f32 %v577, %v724
        %v728 = vmul.f32 %v582, %v724
        %v729 = vmul.f32 %v587, %v724
        %v730 = vmul.f32 %v592, %v724
        %v731 = vmul.f32 %v597, %v724
        %v732 = vmul.f32 %v602, %v724
        %v733 = vmul.f32 %v607, %v724
        %v734 = vmul.f32 %v612, %v724
        %v735 = vmul.f32 %v617, %v724
        %v736 = vmul.f32 %v622, %v724
        %v737 = vmul.f32 %v627, %v724
        %v738 = vmul.f32 %v632, %v724
        %v739 = vmul.f32 %v637, %v724
        %v740 = vmul.f32 %v642, %v724
        %v741 = vmul.f32 %v647, %v724
        %v742 = vmul.f32 %v652, %v724
        %v743 = vmul.f32 %v657, %v724
        %v744 = vmul.f32 %v662, %v724
        %v745 = vmul.f32 %v667, %v724
        %v746 = vmul.f32 %v672, %v724
        %v747 = vmul.f32 %v677, %v724
        %v748 = vmul.f32 %v682, %v724
        %v749 = vmul.f32 %v687, %v724
        %v750 = vmul.f32 %v692, %v724
        %v751 = vmul.f32 %v697, %v724
        %v752 = vmul.f32 %v702, %v724
        %v753 = vmul.f32 %v707, %v724
        %v754 = vmul.f32 %v712, %v724
        %v755 = vmul.f32 %v717, %v724
        %v756 = vmul.f32 %v722, %v724
        %v757 = vadd.f32 %v725, 0.0
        %v758 = vadd.f32 %v726, 0.0
        %v759 = vadd.f32 %v727, 0.0
        %v760 = vadd.f32 %v728, 0.0
        %v761 = vadd.f32 %v729, 0.0
        %v762 = vadd.f32 %v730, 0.0
        %v763 = vadd.f32 %v731, 0.0
        %v764 = vadd.f32 %v732, 0.0
        %v765 = vadd.f32 %v733, 0.0
        %v766 = vadd.f32 %v734, 0.0
        %v767 = vadd.f32 %v735, 0.0
        %v768 = vadd.f32 %v736, 0.0
        %v769 = vadd.f32 %v737, 0.0
        %v770 = vadd.f32 %v738, 0.0
        %v771 = vadd.f32 %v739, 0.0
        %v772 = vadd.f32 %v740, 0.0
        %v773 = vadd.f32 %v741, 0.0
        %v774 = vadd.f32 %v742, 0.0
        %v775 = vadd.f32 %v743, 0.0
        %v776 = vadd.f32 %v744, 0.0
        %v777 = vadd.f32 %v745, 0.0
        %v778 = vadd.f32 %v746, 0.0
        %v779 = vadd.f32 %v747, 0.0
        %v780 = vadd.f32 %v748, 0.0
        %v781 = vadd.f32 %v749, 0.0
        %v782 = vadd.f32 %v750, 0.0
        %v783 = vadd.f32 %v751, 0.0
        %v784 = vadd.f32 %v752, 0.0
        %v785 = vadd.f32 %v753, 0.0
        %v786 = vadd.f32 %v754, 0.0
        %v787 = vadd.f32 %v755, 0.0
        %v788 = vadd.f32 %v756, 0.0
        %v789 = vld [vmem:[#allocation3 + $0x1] sm:$0x1]
        %790 = vset.pattern.permute.xlu0 1
        %791 = vperm.xlu0 %790, %v531
        %v792 = vpop.permute.xlu0 %791
        %794 = vset.pattern.permute.xlu0 1
        %795 = vperm.xlu0 %794, %v532
        %v796 = vpop.permute.xlu0 %795
        %798 = vset.pattern.permute.xlu0 1
        %799 = vperm.xlu0 %798, %v533
        %v800 = vpop.permute.xlu0 %799
        %802 = vset.pattern.permute.xlu0 1
        %803 = vperm.xlu0 %802, %v534
        %v804 = vpop.permute.xlu0 %803
        %806 = vset.pattern.permute.xlu0 1
        %807 = vperm.xlu0 %806, %v535
        %v808 = vpop.permute.xlu0 %807
        %810 = vset.pattern.permute.xlu0 1
        %811 = vperm.xlu0 %810, %v536
        %v812 = vpop.permute.xlu0 %811
        %814 = vset.pattern.permute.xlu0 1
        %815 = vperm.xlu0 %814, %v537
        %v816 = vpop.permute.xlu0 %815
        %818 = vset.pattern.permute.xlu0 1
        %819 = vperm.xlu0 %818, %v538
        %v820 = vpop.permute.xlu0 %819
        %822 = vset.pattern.permute.xlu0 1
        %823 = vperm.xlu0 %822, %v539
        %v824 = vpop.permute.xlu0 %823
        %826 = vset.pattern.permute.xlu0 1
        %827 = vperm.xlu0 %826, %v540
        %v828 = vpop.permute.xlu0 %827
        %830 = vset.pattern.permute.xlu0 1
        %831 = vperm.xlu0 %830, %v541
        %v832 = vpop.permute.xlu0 %831
        %834 = vset.pattern.permute.xlu0 1
        %835 = vperm.xlu0 %834, %v542
        %v836 = vpop.permute.xlu0 %835
        %838 = vset.pattern.permute.xlu0 1
        %839 = vperm.xlu0 %838, %v543
        %v840 = vpop.permute.xlu0 %839
        %842 = vset.pattern.permute.xlu0 1
        %843 = vperm.xlu0 %842, %v544
        %v844 = vpop.permute.xlu0 %843
        %846 = vset.pattern.permute.xlu0 1
        %847 = vperm.xlu0 %846, %v545
        %v848 = vpop.permute.xlu0 %847
        %850 = vset.pattern.permute.xlu0 1
        %851 = vperm.xlu0 %850, %v546
        %v852 = vpop.permute.xlu0 %851
        %854 = vset.pattern.permute.xlu0 1
        %855 = vperm.xlu0 %854, %v547
        %v856 = vpop.permute.xlu0 %855
        %858 = vset.pattern.permute.xlu0 1
        %859 = vperm.xlu0 %858, %v548
        %v860 = vpop.permute.xlu0 %859
        %862 = vset.pattern.permute.xlu0 1
        %863 = vperm.xlu0 %862, %v549
        %v864 = vpop.permute.xlu0 %863
        %866 = vset.pattern.permute.xlu0 1
        %867 = vperm.xlu0 %866, %v550
        %v868 = vpop.permute.xlu0 %867
        %870 = vset.pattern.permute.xlu0 1
        %871 = vperm.xlu0 %870, %v551
        %v872 = vpop.permute.xlu0 %871
        %874 = vset.pattern.permute.xlu0 1
        %875 = vperm.xlu0 %874, %v552
        %v876 = vpop.permute.xlu0 %875
        %878 = vset.pattern.permute.xlu0 1
        %879 = vperm.xlu0 %878, %v553
        %v880 = vpop.permute.xlu0 %879
        %882 = vset.pattern.permute.xlu0 1
        %883 = vperm.xlu0 %882, %v554
        %v884 = vpop.permute.xlu0 %883
        %886 = vset.pattern.permute.xlu0 1
        %887 = vperm.xlu0 %886, %v555
        %v888 = vpop.permute.xlu0 %887
        %890 = vset.pattern.permute.xlu0 1
        %891 = vperm.xlu0 %890, %v556
        %v892 = vpop.permute.xlu0 %891
        %894 = vset.pattern.permute.xlu0 1
        %895 = vperm.xlu0 %894, %v557
        %v896 = vpop.permute.xlu0 %895
        %898 = vset.pattern.permute.xlu0 1
        %899 = vperm.xlu0 %898, %v558
        %v900 = vpop.permute.xlu0 %899
        %902 = vset.pattern.permute.xlu0 1
        %903 = vperm.xlu0 %902, %v559
        %v904 = vpop.permute.xlu0 %903
        %906 = vset.pattern.permute.xlu0 1
        %907 = vperm.xlu0 %906, %v560
        %v908 = vpop.permute.xlu0 %907
        %910 = vset.pattern.permute.xlu0 1
        %911 = vperm.xlu0 %910, %v561
        %v912 = vpop.permute.xlu0 %911
        %914 = vset.pattern.permute.xlu0 1
        %915 = vperm.xlu0 %914, %v562
        %v916 = vpop.permute.xlu0 %915
        %v918 = vperm.slane %v789, 0
        %v919 = vmul.f32 %v792, %v918
        %v920 = vmul.f32 %v796, %v918
        %v921 = vmul.f32 %v800, %v918
        %v922 = vmul.f32 %v804, %v918
        %v923 = vmul.f32 %v808, %v918
        %v924 = vmul.f32 %v812, %v918
        %v925 = vmul.f32 %v816, %v918
        %v926 = vmul.f32 %v820, %v918
        %v927 = vmul.f32 %v824, %v918
        %v928 = vmul.f32 %v828, %v918
        %v929 = vmul.f32 %v832, %v918
        %v930 = vmul.f32 %v836, %v918
        %v931 = vmul.f32 %v840, %v918
        %v932 = vmul.f32 %v844, %v918
        %v933 = vmul.f32 %v848, %v918
        %v934 = vmul.f32 %v852, %v918
        %v935 = vmul.f32 %v856, %v918
        %v936 = vmul.f32 %v860, %v918
        %v937 = vmul.f32 %v864, %v918
        %v938 = vmul.f32 %v868, %v918
        %v939 = vmul.f32 %v872, %v918
        %v940 = vmul.f32 %v876, %v918
        %v941 = vmul.f32 %v880, %v918
        %v942 = vmul.f32 %v884, %v918
        %v943 = vmul.f32 %v888, %v918
        %v944 = vmul.f32 %v892, %v918
        %v945 = vmul.f32 %v896, %v918
        %v946 = vmul.f32 %v900, %v918
        %v947 = vmul.f32 %v904, %v918
        %v948 = vmul.f32 %v908, %v918
        %v949 = vmul.f32 %v912, %v918
        %v950 = vmul.f32 %v916, %v918
        %v951 = vadd.f32 %v757, %v919
        %v952 = vadd.f32 %v758, %v920
        %v953 = vadd.f32 %v759, %v921
        %v954 = vadd.f32 %v760, %v922
        %v955 = vadd.f32 %v761, %v923
        %v956 = vadd.f32 %v762, %v924
        %v957 = vadd.f32 %v763, %v925
        %v958 = vadd.f32 %v764, %v926
        %v959 = vadd.f32 %v765, %v927
        %v960 = vadd.f32 %v766, %v928
        %v961 = vadd.f32 %v767, %v929
        %v962 = vadd.f32 %v768, %v930
        %v963 = vadd.f32 %v769, %v931
        %v964 = vadd.f32 %v770, %v932
        %v965 = vadd.f32 %v771, %v933
        %v966 = vadd.f32 %v772, %v934
        %v967 = vadd.f32 %v773, %v935
        %v968 = vadd.f32 %v774, %v936
        %v969 = vadd.f32 %v775, %v937
        %v970 = vadd.f32 %v776, %v938
        %v971 = vadd.f32 %v777, %v939
        %v972 = vadd.f32 %v778, %v940
        %v973 = vadd.f32 %v779, %v941
        %v974 = vadd.f32 %v780, %v942
        %v975 = vadd.f32 %v781, %v943
        %v976 = vadd.f32 %v782, %v944
        %v977 = vadd.f32 %v783, %v945
        %v978 = vadd.f32 %v784, %v946
        %v979 = vadd.f32 %v785, %v947
        %v980 = vadd.f32 %v786, %v948
        %v981 = vadd.f32 %v787, %v949
        %v982 = vadd.f32 %v788, %v950
        %v983 = vld [vmem:[#allocation3 + $0x2] sm:$0x1]
        %984 = vset.pattern.permute.xlu0 2
        %985 = vperm.xlu0 %984, %v531
        %v986 = vpop.permute.xlu0 %985
        %988 = vset.pattern.permute.xlu0 2
        %989 = vperm.xlu0 %988, %v532
        %v990 = vpop.permute.xlu0 %989
        %992 = vset.pattern.permute.xlu0 2
        %993 = vperm.xlu0 %992, %v533
        %v994 = vpop.permute.xlu0 %993
        %996 = vset.pattern.permute.xlu0 2
        %997 = vperm.xlu0 %996, %v534
        %v998 = vpop.permute.xlu0 %997
        %1000 = vset.pattern.permute.xlu0 2
        %1001 = vperm.xlu0 %1000, %v535
        %v1002 = vpop.permute.xlu0 %1001
        %1004 = vset.pattern.permute.xlu0 2
        %1005 = vperm.xlu0 %1004, %v536
        %v1006 = vpop.permute.xlu0 %1005
        %1008 = vset.pattern.permute.xlu0 2
        %1009 = vperm.xlu0 %1008, %v537
        %v1010 = vpop.permute.xlu0 %1009
        %1012 = vset.pattern.permute.xlu0 2
        %1013 = vperm.xlu0 %1012, %v538
        %v1014 = vpop.permute.xlu0 %1013
        %1016 = vset.pattern.permute.xlu0 2
        %1017 = vperm.xlu0 %1016, %v539
        %v1018 = vpop.permute.xlu0 %1017
        %1020 = vset.pattern.permute.xlu0 2
        %1021 = vperm.xlu0 %1020, %v540
        %v1022 = vpop.permute.xlu0 %1021
        %1024 = vset.pattern.permute.xlu0 2
        %1025 = vperm.xlu0 %1024, %v541
        %v1026 = vpop.permute.xlu0 %1025
        %1028 = vset.pattern.permute.xlu0 2
        %1029 = vperm.xlu0 %1028, %v542
        %v1030 = vpop.permute.xlu0 %1029
        %1032 = vset.pattern.permute.xlu0 2
        %1033 = vperm.xlu0 %1032, %v543
        %v1034 = vpop.permute.xlu0 %1033
        %1036 = vset.pattern.permute.xlu0 2
        %1037 = vperm.xlu0 %1036, %v544
        %v1038 = vpop.permute.xlu0 %1037
        %1040 = vset.pattern.permute.xlu0 2
        %1041 = vperm.xlu0 %1040, %v545
        %v1042 = vpop.permute.xlu0 %1041
        %1044 = vset.pattern.permute.xlu0 2
        %1045 = vperm.xlu0 %1044, %v546
        %v1046 = vpop.permute.xlu0 %1045
        %1048 = vset.pattern.permute.xlu0 2
        %1049 = vperm.xlu0 %1048, %v547
        %v1050 = vpop.permute.xlu0 %1049
        %1052 = vset.pattern.permute.xlu0 2
        %1053 = vperm.xlu0 %1052, %v548
        %v1054 = vpop.permute.xlu0 %1053
        %1056 = vset.pattern.permute.xlu0 2
        %1057 = vperm.xlu0 %1056, %v549
        %v1058 = vpop.permute.xlu0 %1057
        %1060 = vset.pattern.permute.xlu0 2
        %1061 = vperm.xlu0 %1060, %v550
        %v1062 = vpop.permute.xlu0 %1061
        %1064 = vset.pattern.permute.xlu0 2
        %1065 = vperm.xlu0 %1064, %v551
        %v1066 = vpop.permute.xlu0 %1065
        %1068 = vset.pattern.permute.xlu0 2
        %1069 = vperm.xlu0 %1068, %v552
        %v1070 = vpop.permute.xlu0 %1069
        %1072 = vset.pattern.permute.xlu0 2
        %1073 = vperm.xlu0 %1072, %v553
        %v1074 = vpop.permute.xlu0 %1073
        %1076 = vset.pattern.permute.xlu0 2
        %1077 = vperm.xlu0 %1076, %v554
        %v1078 = vpop.permute.xlu0 %1077
        %1080 = vset.pattern.permute.xlu0 2
        %1081 = vperm.xlu0 %1080, %v555
        %v1082 = vpop.permute.xlu0 %1081
        %1084 = vset.pattern.permute.xlu0 2
        %1085 = vperm.xlu0 %1084, %v556
        %v1086 = vpop.permute.xlu0 %1085
        %1088 = vset.pattern.permute.xlu0 2
        %1089 = vperm.xlu0 %1088, %v557
        %v1090 = vpop.permute.xlu0 %1089
        %1092 = vset.pattern.permute.xlu0 2
        %1093 = vperm.xlu0 %1092, %v558
        %v1094 = vpop.permute.xlu0 %1093
        %1096 = vset.pattern.permute.xlu0 2
        %1097 = vperm.xlu0 %1096, %v559
        %v1098 = vpop.permute.xlu0 %1097
        %1100 = vset.pattern.permute.xlu0 2
        %1101 = vperm.xlu0 %1100, %v560
        %v1102 = vpop.permute.xlu0 %1101
        %1104 = vset.pattern.permute.xlu0 2
        %1105 = vperm.xlu0 %1104, %v561
        %v1106 = vpop.permute.xlu0 %1105
        %1108 = vset.pattern.permute.xlu0 2
        %1109 = vperm.xlu0 %1108, %v562
        %v1110 = vpop.permute.xlu0 %1109
        %v1112 = vperm.slane %v983, 0
        %v1113 = vmul.f32 %v986, %v1112
        %v1114 = vmul.f32 %v990, %v1112
        %v1115 = vmul.f32 %v994, %v1112
        %v1116 = vmul.f32 %v998, %v1112
        %v1117 = vmul.f32 %v1002, %v1112
        %v1118 = vmul.f32 %v1006, %v1112
        %v1119 = vmul.f32 %v1010, %v1112
        %v1120 = vmul.f32 %v1014, %v1112
        %v1121 = vmul.f32 %v1018, %v1112
        %v1122 = vmul.f32 %v1022, %v1112
        %v1123 = vmul.f32 %v1026, %v1112
        %v1124 = vmul.f32 %v1030, %v1112
        %v1125 = vmul.f32 %v1034, %v1112
        %v1126 = vmul.f32 %v1038, %v1112
        %v1127 = vmul.f32 %v1042, %v1112
        %v1128 = vmul.f32 %v1046, %v1112
        %v1129 = vmul.f32 %v1050, %v1112
        %v1130 = vmul.f32 %v1054, %v1112
        %v1131 = vmul.f32 %v1058, %v1112
        %v1132 = vmul.f32 %v1062, %v1112
        %v1133 = vmul.f32 %v1066, %v1112
        %v1134 = vmul.f32 %v1070, %v1112
        %v1135 = vmul.f32 %v1074, %v1112
        %v1136 = vmul.f32 %v1078, %v1112
        %v1137 = vmul.f32 %v1082, %v1112
        %v1138 = vmul.f32 %v1086, %v1112
        %v1139 = vmul.f32 %v1090, %v1112
        %v1140 = vmul.f32 %v1094, %v1112
        %v1141 = vmul.f32 %v1098, %v1112
        %v1142 = vmul.f32 %v1102, %v1112
        %v1143 = vmul.f32 %v1106, %v1112
        %v1144 = vmul.f32 %v1110, %v1112
        %v1145 = vadd.f32 %v951, %v1113
        %v1146 = vadd.f32 %v952, %v1114
        %v1147 = vadd.f32 %v953, %v1115
        %v1148 = vadd.f32 %v954, %v1116
        %v1149 = vadd.f32 %v955, %v1117
        %v1150 = vadd.f32 %v956, %v1118
        %v1151 = vadd.f32 %v957, %v1119
        %v1152 = vadd.f32 %v958, %v1120
        %v1153 = vadd.f32 %v959, %v1121
        %v1154 = vadd.f32 %v960, %v1122
        %v1155 = vadd.f32 %v961, %v1123
        %v1156 = vadd.f32 %v962, %v1124
        %v1157 = vadd.f32 %v963, %v1125
        %v1158 = vadd.f32 %v964, %v1126
        %v1159 = vadd.f32 %v965, %v1127
        %v1160 = vadd.f32 %v966, %v1128
        %v1161 = vadd.f32 %v967, %v1129
        %v1162 = vadd.f32 %v968, %v1130
        %v1163 = vadd.f32 %v969, %v1131
        %v1164 = vadd.f32 %v970, %v1132
        %v1165 = vadd.f32 %v971, %v1133
        %v1166 = vadd.f32 %v972, %v1134
        %v1167 = vadd.f32 %v973, %v1135
        %v1168 = vadd.f32 %v974, %v1136
        %v1169 = vadd.f32 %v975, %v1137
        %v1170 = vadd.f32 %v976, %v1138
        %v1171 = vadd.f32 %v977, %v1139
        %v1172 = vadd.f32 %v978, %v1140
        %v1173 = vadd.f32 %v979, %v1141
        %v1174 = vadd.f32 %v980, %v1142
        %v1175 = vadd.f32 %v981, %v1143
        %v1176 = vadd.f32 %v982, %v1144
        %v1177 = vld [vmem:[#allocation6] sm:$0x1]
        %v1179 = vperm.slane %v1177, 0
        %v1181 = vadd.f32 %v1145, %v1179
        %v1182 = vadd.f32 %v1146, %v1179
        %v1183 = vadd.f32 %v1147, %v1179
        %v1184 = vadd.f32 %v1148, %v1179
        %v1185 = vadd.f32 %v1149, %v1179
        %v1186 = vadd.f32 %v1150, %v1179
        %v1187 = vadd.f32 %v1151, %v1179
        %v1188 = vadd.f32 %v1152, %v1179
        %v1189 = vadd.f32 %v1153, %v1179
        %v1190 = vadd.f32 %v1154, %v1179
        %v1191 = vadd.f32 %v1155, %v1179
        %v1192 = vadd.f32 %v1156, %v1179
        %v1193 = vadd.f32 %v1157, %v1179
        %v1194 = vadd.f32 %v1158, %v1179
        %v1195 = vadd.f32 %v1159, %v1179
        %v1196 = vadd.f32 %v1160, %v1179
        %v1197 = vadd.f32 %v1161, %v1179
        %v1198 = vadd.f32 %v1162, %v1179
        %v1199 = vadd.f32 %v1163, %v1179
        %v1200 = vadd.f32 %v1164, %v1179
        %v1201 = vadd.f32 %v1165, %v1179
        %v1202 = vadd.f32 %v1166, %v1179
        %v1203 = vadd.f32 %v1167, %v1179
        %v1204 = vadd.f32 %v1168, %v1179
        %v1205 = vadd.f32 %v1169, %v1179
        %v1206 = vadd.f32 %v1170, %v1179
        %v1207 = vadd.f32 %v1171, %v1179
        %v1208 = vadd.f32 %v1172, %v1179
        %v1209 = vadd.f32 %v1173, %v1179
        %v1210 = vadd.f32 %v1174, %v1179
        %v1211 = vadd.f32 %v1175, %v1179
        %v1212 = vadd.f32 %v1176, %v1179
        %v1213 = vmax.f32 %v1181, 0.0
        %v1214 = vmax.f32 %v1182, 0.0
        %v1215 = vmax.f32 %v1183, 0.0
        %v1216 = vmax.f32 %v1184, 0.0
        %v1217 = vmax.f32 %v1185, 0.0
        %v1218 = vmax.f32 %v1186, 0.0
        %v1219 = vmax.f32 %v1187, 0.0
        %v1220 = vmax.f32 %v1188, 0.0
        %v1221 = vmax.f32 %v1189, 0.0
        %v1222 = vmax.f32 %v1190, 0.0
        %v1223 = vmax.f32 %v1191, 0.0
        %v1224 = vmax.f32 %v1192, 0.0
        %v1225 = vmax.f32 %v1193, 0.0
        %v1226 = vmax.f32 %v1194, 0.0
        %v1227 = vmax.f32 %v1195, 0.0
        %v1228 = vmax.f32 %v1196, 0.0
        %v1229 = vmax.f32 %v1197, 0.0
        %v1230 = vmax.f32 %v1198, 0.0
        %v1231 = vmax.f32 %v1199, 0.0
        %v1232 = vmax.f32 %v1200, 0.0
        %v1233 = vmax.f32 %v1201, 0.0
        %v1234 = vmax.f32 %v1202, 0.0
        %v1235 = vmax.f32 %v1203, 0.0
        %v1236 = vmax.f32 %v1204, 0.0
        %v1237 = vmax.f32 %v1205, 0.0
        %v1238 = vmax.f32 %v1206, 0.0
        %v1239 = vmax.f32 %v1207, 0.0
        %v1240 = vmax.f32 %v1208, 0.0
        %v1241 = vmax.f32 %v1209, 0.0
        %v1242 = vmax.f32 %v1210, 0.0
        %v1243 = vmax.f32 %v1211, 0.0
        %v1244 = vmax.f32 %v1212, 0.0
        %v1245 = vld [vmem:[#allocation8] sm:$0xff]
        %v1246 = vld [vmem:[#allocation8 + $0x8] sm:$0xff]
        %v1247 = vld [vmem:[#allocation8 + $0x10] sm:$0xff]
        %v1248 = vld [vmem:[#allocation8 + $0x18] sm:$0xff]
        %v1249 = vld [vmem:[#allocation8 + $0x20] sm:$0xff]
        %v1250 = vld [vmem:[#allocation8 + $0x28] sm:$0xff]
        %v1251 = vld [vmem:[#allocation8 + $0x30] sm:$0xff]
        %v1252 = vld [vmem:[#allocation8 + $0x38] sm:$0xff]
        %v1253 = vld [vmem:[#allocation8 + $0x40] sm:$0xff]
        %v1254 = vld [vmem:[#allocation8 + $0x48] sm:$0xff]
        %v1255 = vld [vmem:[#allocation8 + $0x50] sm:$0xff]
        %v1256 = vld [vmem:[#allocation8 + $0x58] sm:$0xff]
        %v1257 = vld [vmem:[#allocation8 + $0x60] sm:$0xff]
        %v1258 = vld [vmem:[#allocation8 + $0x68] sm:$0xff]
        %v1259 = vld [vmem:[#allocation8 + $0x70] sm:$0xff]
        %v1260 = vld [vmem:[#allocation8 + $0x78] sm:$0xff]
        %v1261 = vld [vmem:[#allocation8 + $0x80] sm:$0xff]
        %v1262 = vld [vmem:[#allocation8 + $0x88] sm:$0xff]
        %v1263 = vld [vmem:[#allocation8 + $0x90] sm:$0xff]
        %v1264 = vld [vmem:[#allocation8 + $0x98] sm:$0xff]
        %v1265 = vld [vmem:[#allocation8 + $0xa0] sm:$0xff]
        %v1266 = vld [vmem:[#allocation8 + $0xa8] sm:$0xff]
        %v1267 = vld [vmem:[#allocation8 + $0xb0] sm:$0xff]
        %v1268 = vld [vmem:[#allocation8 + $0xb8] sm:$0xff]
        %v1269 = vld [vmem:[#allocation8 + $0xc0] sm:$0xff]
        %v1270 = vld [vmem:[#allocation8 + $0xc8] sm:$0xff]
        %v1271 = vld [vmem:[#allocation8 + $0xd0] sm:$0xff]
        %v1272 = vld [vmem:[#allocation8 + $0xd8] sm:$0xff]
        %v1273 = vld [vmem:[#allocation8 + $0xe0] sm:$0xff]
        %v1274 = vld [vmem:[#allocation8 + $0xe8] sm:$0xff]
        %v1275 = vld [vmem:[#allocation8 + $0xf0] sm:$0xff]
        %v1276 = vld [vmem:[#allocation8 + $0xf8] sm:$0xff]
        %1277 = vmatpush.msra.mxu0 %v1228
        %1278 = vmatpush.msra.mxu0 %v1227
        %1279 = vmatpush.msra.mxu0 %v1226
        %1280 = vmatpush.msra.mxu0 %v1225
        %1281 = vmatpush.msra.mxu0 %v1224
        %1282 = vmatpush.msra.mxu0 %v1223
        %1283 = vmatpush.msra.mxu0 %v1222
        %1284 = vmatpush.msra.mxu0 %v1221
        %1285 = vmatpush.msra.mxu0 %v1220
        %1286 = vmatpush.msra.mxu0 %v1219
        %1287 = vmatpush.msra.mxu0 %v1218
        %1288 = vmatpush.msra.mxu0 %v1217
        %1289 = vmatpush.msra.mxu0 %v1216
        %1290 = vmatpush.msra.mxu0 %v1215
        %1291 = vmatpush.msra.mxu0 %v1214
        %1292 = vmatpush.msra.mxu0 %v1213
        %1293 = vmatmul.f32.gmra.mxu0 %v1245
        %v1294 = vpop.f32.mrf.mxu0
        %v1295 = vadd.f32 0.0, %v1294
        %1296 = vmatmul.f32.gmra.mxu0 %v1247
        %v1297 = vpop.f32.mrf.mxu0
        %v1298 = vadd.f32 0.0, %v1297
        %1299 = vmatmul.f32.gmra.mxu0 %v1249
        %v1300 = vpop.f32.mrf.mxu0
        %v1301 = vadd.f32 0.0, %v1300
        %1302 = vmatmul.f32.gmra.mxu0 %v1251
        %v1303 = vpop.f32.mrf.mxu0
        %v1304 = vadd.f32 0.0, %v1303
        %1305 = vmatmul.f32.gmra.mxu0 %v1253
        %v1306 = vpop.f32.mrf.mxu0
        %v1307 = vadd.f32 0.0, %v1306
        %1308 = vmatmul.f32.gmra.mxu0 %v1255
        %v1309 = vpop.f32.mrf.mxu0
        %v1310 = vadd.f32 0.0, %v1309
        %1311 = vmatmul.f32.gmra.mxu0 %v1257
        %v1312 = vpop.f32.mrf.mxu0
        %v1313 = vadd.f32 0.0, %v1312
        %1314 = vmatmul.f32.gmra.mxu0 %v1259
        %v1315 = vpop.f32.mrf.mxu0
        %v1316 = vadd.f32 0.0, %v1315
        %1317 = vmatmul.f32.gmra.mxu0 %v1261
        %v1318 = vpop.f32.mrf.mxu0
        %v1319 = vadd.f32 0.0, %v1318
        %1320 = vmatmul.f32.gmra.mxu0 %v1263
        %v1321 = vpop.f32.mrf.mxu0
        %v1322 = vadd.f32 0.0, %v1321
        %1323 = vmatmul.f32.gmra.mxu0 %v1265
        %v1324 = vpop.f32.mrf.mxu0
        %v1325 = vadd.f32 0.0, %v1324
        %1326 = vmatmul.f32.gmra.mxu0 %v1267
        %v1327 = vpop.f32.mrf.mxu0
        %v1328 = vadd.f32 0.0, %v1327
        %1329 = vmatmul.f32.gmra.mxu0 %v1269
        %v1330 = vpop.f32.mrf.mxu0
        %v1331 = vadd.f32 0.0, %v1330
        %1332 = vmatmul.f32.gmra.mxu0 %v1271
        %v1333 = vpop.f32.mrf.mxu0
        %v1334 = vadd.f32 0.0, %v1333
        %1335 = vmatmul.f32.gmra.mxu0 %v1273
        %v1336 = vpop.f32.mrf.mxu0
        %v1337 = vadd.f32 0.0, %v1336
        %1338 = vmatmul.f32.gmra.mxu0 %v1275
        %v1339 = vpop.f32.mrf.mxu0
        %v1340 = vadd.f32 0.0, %v1339
        %1341 = vdwg.mxu0
        %1342 = vmatpush.msra.mxu0 %v1244
        %1343 = vmatpush.msra.mxu0 %v1243
        %1344 = vmatpush.msra.mxu0 %v1242
        %1345 = vmatpush.msra.mxu0 %v1241
        %1346 = vmatpush.msra.mxu0 %v1240
        %1347 = vmatpush.msra.mxu0 %v1239
        %1348 = vmatpush.msra.mxu0 %v1238
        %1349 = vmatpush.msra.mxu0 %v1237
        %1350 = vmatpush.msra.mxu0 %v1236
        %1351 = vmatpush.msra.mxu0 %v1235
        %1352 = vmatpush.msra.mxu0 %v1234
        %1353 = vmatpush.msra.mxu0 %v1233
        %1354 = vmatpush.msra.mxu0 %v1232
        %1355 = vmatpush.msra.mxu0 %v1231
        %1356 = vmatpush.msra.mxu0 %v1230
        %1357 = vmatpush.msra.mxu0 %v1229
        %1358 = vmatmul.f32.gmra.mxu0 %v1246
        %v1359 = vpop.f32.mrf.mxu0
        %v1360 = vadd.f32 %v1295, %v1359
        %1361 = vmatmul.f32.gmra.mxu0 %v1248
        %v1362 = vpop.f32.mrf.mxu0
        %v1363 = vadd.f32 %v1298, %v1362
        %1364 = vmatmul.f32.gmra.mxu0 %v1250
        %v1365 = vpop.f32.mrf.mxu0
        %v1366 = vadd.f32 %v1301, %v1365
        %1367 = vmatmul.f32.gmra.mxu0 %v1252
        %v1368 = vpop.f32.mrf.mxu0
        %v1369 = vadd.f32 %v1304, %v1368
        %1370 = vmatmul.f32.gmra.mxu0 %v1254
        %v1371 = vpop.f32.mrf.mxu0
        %v1372 = vadd.f32 %v1307, %v1371
        %1373 = vmatmul.f32.gmra.mxu0 %v1256
        %v1374 = vpop.f32.mrf.mxu0
        %v1375 = vadd.f32 %v1310, %v1374
        %1376 = vmatmul.f32.gmra.mxu0 %v1258
        %v1377 = vpop.f32.mrf.mxu0
        %v1378 = vadd.f32 %v1313, %v1377
        %1379 = vmatmul.f32.gmra.mxu0 %v1260
        %v1380 = vpop.f32.mrf.mxu0
        %v1381 = vadd.f32 %v1316, %v1380
        %1382 = vmatmul.f32.gmra.mxu0 %v1262
        %v1383 = vpop.f32.mrf.mxu0
        %v1384 = vadd.f32 %v1319, %v1383
        %1385 = vmatmul.f32.gmra.mxu0 %v1264
        %v1386 = vpop.f32.mrf.mxu0
        %v1387 = vadd.f32 %v1322, %v1386
        %1388 = vmatmul.f32.gmra.mxu0 %v1266
        %v1389 = vpop.f32.mrf.mxu0
        %v1390 = vadd.f32 %v1325, %v1389
        %1391 = vmatmul.f32.gmra.mxu0 %v1268
        %v1392 = vpop.f32.mrf.mxu0
        %v1393 = vadd.f32 %v1328, %v1392
        %1394 = vmatmul.f32.gmra.mxu0 %v1270
        %v1395 = vpop.f32.mrf.mxu0
        %v1396 = vadd.f32 %v1331, %v1395
        %1397 = vmatmul.f32.gmra.mxu0 %v1272
        %v1398 = vpop.f32.mrf.mxu0
        %v1399 = vadd.f32 %v1334, %v1398
        %1400 = vmatmul.f32.gmra.mxu0 %v1274
        %v1401 = vpop.f32.mrf.mxu0
        %v1402 = vadd.f32 %v1337, %v1401
        %1403 = vmatmul.f32.gmra.mxu0 %v1276
        %v1404 = vpop.f32.mrf.mxu0
        %v1405 = vadd.f32 %v1340, %v1404
        %1406 = vdwg.mxu0
        %v1407 = vld [vmem:[#allocation9] sm:$0xff]
        %v1408 = vld [vmem:[#allocation9 + $0x8] sm:$0xff]
        %v1409 = vld [vmem:[#allocation9 + $0x10] sm:$0xff]
        %v1410 = vld [vmem:[#allocation9 + $0x18] sm:$0xff]
        %v1411 = vld [vmem:[#allocation9 + $0x20] sm:$0xff]
        %v1412 = vld [vmem:[#allocation9 + $0x28] sm:$0xff]
        %v1413 = vld [vmem:[#allocation9 + $0x30] sm:$0xff]
        %v1414 = vld [vmem:[#allocation9 + $0x38] sm:$0xff]
        %s1415 = scalar_lea.vmem [#allocation8], 256
        %v1416 = vld [vmem:[%s1415] sm:$0xff]
        %v1417 = vld [vmem:[%s1415 + $0x8] sm:$0xff]
        %v1418 = vld [vmem:[%s1415 + $0x10] sm:$0xff]
        %v1419 = vld [vmem:[%s1415 + $0x18] sm:$0xff]
        %v1420 = vld [vmem:[%s1415 + $0x20] sm:$0xff]
        %v1421 = vld [vmem:[%s1415 + $0x28] sm:$0xff]
        %v1422 = vld [vmem:[%s1415 + $0x30] sm:$0xff]
        %v1423 = vld [vmem:[%s1415 + $0x38] sm:$0xff]
        %v1424 = vld [vmem:[%s1415 + $0x40] sm:$0xff]
        %v1425 = vld [vmem:[%s1415 + $0x48] sm:$0xff]
        %v1426 = vld [vmem:[%s1415 + $0x50] sm:$0xff]
        %v1427 = vld [vmem:[%s1415 + $0x58] sm:$0xff]
        %v1428 = vld [vmem:[%s1415 + $0x60] sm:$0xff]
        %v1429 = vld [vmem:[%s1415 + $0x68] sm:$0xff]
        %v1430 = vld [vmem:[%s1415 + $0x70] sm:$0xff]
        %v1431 = vld [vmem:[%s1415 + $0x78] sm:$0xff]
        %v1432 = vld [vmem:[%s1415 + $0x80] sm:$0xff]
        %v1433 = vld [vmem:[%s1415 + $0x88] sm:$0xff]
        %v1434 = vld [vmem:[%s1415 + $0x90] sm:$0xff]
        %v1435 = vld [vmem:[%s1415 + $0x98] sm:$0xff]
        %v1436 = vld [vmem:[%s1415 + $0xa0] sm:$0xff]
        %v1437 = vld [vmem:[%s1415 + $0xa8] sm:$0xff]
        %v1438 = vld [vmem:[%s1415 + $0xb0] sm:$0xff]
        %v1439 = vld [vmem:[%s1415 + $0xb8] sm:$0xff]
        %v1440 = vld [vmem:[%s1415 + $0xc0] sm:$0xff]
        %v1441 = vld [vmem:[%s1415 + $0xc8] sm:$0xff]
        %v1442 = vld [vmem:[%s1415 + $0xd0] sm:$0xff]
        %v1443 = vld [vmem:[%s1415 + $0xd8] sm:$0xff]
        %v1444 = vld [vmem:[%s1415 + $0xe0] sm:$0xff]
        %v1445 = vld [vmem:[%s1415 + $0xe8] sm:$0xff]
        %v1446 = vld [vmem:[%s1415 + $0xf0] sm:$0xff]
        %v1447 = vld [vmem:[%s1415 + $0xf8] sm:$0xff]
        %1448 = vmatpush.msra.mxu0 %v1228
        %1449 = vmatpush.msra.mxu0 %v1227
        %1450 = vmatpush.msra.mxu0 %v1226
        %1451 = vmatpush.msra.mxu0 %v1225
        %1452 = vmatpush.msra.mxu0 %v1224
        %1453 = vmatpush.msra.mxu0 %v1223
        %1454 = vmatpush.msra.mxu0 %v1222
        %1455 = vmatpush.msra.mxu0 %v1221
        %1456 = vmatpush.msra.mxu0 %v1220
        %1457 = vmatpush.msra.mxu0 %v1219
        %1458 = vmatpush.msra.mxu0 %v1218
        %1459 = vmatpush.msra.mxu0 %v1217
        %1460 = vmatpush.msra.mxu0 %v1216
        %1461 = vmatpush.msra.mxu0 %v1215
        %1462 = vmatpush.msra.mxu0 %v1214
        %1463 = vmatpush.msra.mxu0 %v1213
        %1464 = vmatmul.f32.gmra.mxu0 %v1416
        %v1465 = vpop.f32.mrf.mxu0
        %v1466 = vadd.f32 0.0, %v1465
        %1467 = vmatmul.f32.gmra.mxu0 %v1418
        %v1468 = vpop.f32.mrf.mxu0
        %v1469 = vadd.f32 0.0, %v1468
        %1470 = vmatmul.f32.gmra.mxu0 %v1420
        %v1471 = vpop.f32.mrf.mxu0
        %v1472 = vadd.f32 0.0, %v1471
        %1473 = vmatmul.f32.gmra.mxu0 %v1422
        %v1474 = vpop.f32.mrf.mxu0
        %v1475 = vadd.f32 0.0, %v1474
        %1476 = vmatmul.f32.gmra.mxu0 %v1424
        %v1477 = vpop.f32.mrf.mxu0
        %v1478 = vadd.f32 0.0, %v1477
        %1479 = vmatmul.f32.gmra.mxu0 %v1426
        %v1480 = vpop.f32.mrf.mxu0
        %v1481 = vadd.f32 0.0, %v1480
        %1482 = vmatmul.f32.gmra.mxu0 %v1428
        %v1483 = vpop.f32.mrf.mxu0
        %v1484 = vadd.f32 0.0, %v1483
        %1485 = vmatmul.f32.gmra.mxu0 %v1430
        %v1486 = vpop.f32.mrf.mxu0
        %v1487 = vadd.f32 0.0, %v1486
        %1488 = vmatmul.f32.gmra.mxu0 %v1432
        %v1489 = vpop.f32.mrf.mxu0
        %v1490 = vadd.f32 0.0, %v1489
        %1491 = vmatmul.f32.gmra.mxu0 %v1434
        %v1492 = vpop.f32.mrf.mxu0
        %v1493 = vadd.f32 0.0, %v1492
        %1494 = vmatmul.f32.gmra.mxu0 %v1436
        %v1495 = vpop.f32.mrf.mxu0
        %v1496 = vadd.f32 0.0, %v1495
        %1497 = vmatmul.f32.gmra.mxu0 %v1438
        %v1498 = vpop.f32.mrf.mxu0
        %v1499 = vadd.f32 0.0, %v1498
        %1500 = vmatmul.f32.gmra.mxu0 %v1440
        %v1501 = vpop.f32.mrf.mxu0
        %v1502 = vadd.f32 0.0, %v1501
        %1503 = vmatmul.f32.gmra.mxu0 %v1442
        %v1504 = vpop.f32.mrf.mxu0
        %v1505 = vadd.f32 0.0, %v1504
        %1506 = vmatmul.f32.gmra.mxu0 %v1444
        %v1507 = vpop.f32.mrf.mxu0
        %v1508 = vadd.f32 0.0, %v1507
        %1509 = vmatmul.f32.gmra.mxu0 %v1446
        %v1510 = vpop.f32.mrf.mxu0
        %v1511 = vadd.f32 0.0, %v1510
        %1512 = vdwg.mxu0
        %1513 = vmatpush.msra.mxu0 %v1244
        %1514 = vmatpush.msra.mxu0 %v1243
        %1515 = vmatpush.msra.mxu0 %v1242
        %1516 = vmatpush.msra.mxu0 %v1241
        %1517 = vmatpush.msra.mxu0 %v1240
        %1518 = vmatpush.msra.mxu0 %v1239
        %1519 = vmatpush.msra.mxu0 %v1238
        %1520 = vmatpush.msra.mxu0 %v1237
        %1521 = vmatpush.msra.mxu0 %v1236
        %1522 = vmatpush.msra.mxu0 %v1235
        %1523 = vmatpush.msra.mxu0 %v1234
        %1524 = vmatpush.msra.mxu0 %v1233
        %1525 = vmatpush.msra.mxu0 %v1232
        %1526 = vmatpush.msra.mxu0 %v1231
        %1527 = vmatpush.msra.mxu0 %v1230
        %1528 = vmatpush.msra.mxu0 %v1229
        %1529 = vmatmul.f32.gmra.mxu0 %v1417
        %v1530 = vpop.f32.mrf.mxu0
        %v1531 = vadd.f32 %v1466, %v1530
        %1532 = vmatmul.f32.gmra.mxu0 %v1419
        %v1533 = vpop.f32.mrf.mxu0
        %v1534 = vadd.f32 %v1469, %v1533
        %1535 = vmatmul.f32.gmra.mxu0 %v1421
        %v1536 = vpop.f32.mrf.mxu0
        %v1537 = vadd.f32 %v1472, %v1536
        %1538 = vmatmul.f32.gmra.mxu0 %v1423
        %v1539 = vpop.f32.mrf.mxu0
        %v1540 = vadd.f32 %v1475, %v1539
        %1541 = vmatmul.f32.gmra.mxu0 %v1425
        %v1542 = vpop.f32.mrf.mxu0
        %v1543 = vadd.f32 %v1478, %v1542
        %1544 = vmatmul.f32.gmra.mxu0 %v1427
        %v1545 = vpop.f32.mrf.mxu0
        %v1546 = vadd.f32 %v1481, %v1545
        %1547 = vmatmul.f32.gmra.mxu0 %v1429
        %v1548 = vpop.f32.mrf.mxu0
        %v1549 = vadd.f32 %v1484, %v1548
        %1550 = vmatmul.f32.gmra.mxu0 %v1431
        %v1551 = vpop.f32.mrf.mxu0
        %v1552 = vadd.f32 %v1487, %v1551
        %1553 = vmatmul.f32.gmra.mxu0 %v1433
        %v1554 = vpop.f32.mrf.mxu0
        %v1555 = vadd.f32 %v1490, %v1554
        %1556 = vmatmul.f32.gmra.mxu0 %v1435
        %v1557 = vpop.f32.mrf.mxu0
        %v1558 = vadd.f32 %v1493, %v1557
        %1559 = vmatmul.f32.gmra.mxu0 %v1437
        %v1560 = vpop.f32.mrf.mxu0
        %v1561 = vadd.f32 %v1496, %v1560
        %1562 = vmatmul.f32.gmra.mxu0 %v1439
        %v1563 = vpop.f32.mrf.mxu0
        %v1564 = vadd.f32 %v1499, %v1563
        %1565 = vmatmul.f32.gmra.mxu0 %v1441
        %v1566 = vpop.f32.mrf.mxu0
        %v1567 = vadd.f32 %v1502, %v1566
        %1568 = vmatmul.f32.gmra.mxu0 %v1443
        %v1569 = vpop.f32.mrf.mxu0
        %v1570 = vadd.f32 %v1505, %v1569
        %1571 = vmatmul.f32.gmra.mxu0 %v1445
        %v1572 = vpop.f32.mrf.mxu0
        %v1573 = vadd.f32 %v1508, %v1572
        %1574 = vmatmul.f32.gmra.mxu0 %v1447
        %v1575 = vpop.f32.mrf.mxu0
        %v1576 = vadd.f32 %v1511, %v1575
        %1577 = vdwg.mxu0
        %s1578 = scalar_lea.vmem [#allocation9], 64
        %v1579 = vld [vmem:[%s1578] sm:$0xff]
        %v1580 = vld [vmem:[%s1578 + $0x8] sm:$0xff]
        %v1581 = vld [vmem:[%s1578 + $0x10] sm:$0xff]
        %v1582 = vld [vmem:[%s1578 + $0x18] sm:$0xff]
        %v1583 = vld [vmem:[%s1578 + $0x20] sm:$0xff]
        %v1584 = vld [vmem:[%s1578 + $0x28] sm:$0xff]
        %v1585 = vld [vmem:[%s1578 + $0x30] sm:$0xff]
        %v1586 = vld [vmem:[%s1578 + $0x38] sm:$0xff]
        %vm1587 = vcmask 523264
        %v1589 = vsel %vm1587, %v1531, 0
        %v1592 = vsel %vm1587, %v1534, 0
        %v1595 = vsel %vm1587, %v1537, 0
        %v1598 = vsel %vm1587, %v1540, 0
        %v1601 = vsel %vm1587, %v1543, 0
        %v1604 = vsel %vm1587, %v1546, 0
        %v1607 = vsel %vm1587, %v1549, 0
        %v1610 = vsel %vm1587, %v1552, 0
        %v1613 = vsel %vm1587, %v1555, 0
        %v1616 = vsel %vm1587, %v1558, 0
        %v1619 = vsel %vm1587, %v1561, 0
        %v1622 = vsel %vm1587, %v1564, 0
        %v1625 = vsel %vm1587, %v1567, 0
        %v1628 = vsel %vm1587, %v1570, 0
        %v1631 = vsel %vm1587, %v1573, 0
        %v1634 = vsel %vm1587, %v1576, 0
        %1636 = vmatpush.msra.mxu0 0.0
        %1637 = vmatpush.msra.mxu0 0.0
        %1638 = vmatpush.msra.mxu0 0.0
        %1639 = vmatpush.msra.mxu0 0.0
        %1640 = vmatpush.msra.mxu0 0.0
        %1641 = vmatpush.msra.mxu0 0.0
        %1642 = vmatpush.msra.mxu0 0.0
        %1643 = vmatpush.msra.mxu0 0.0
        %1644 = vmatpush.msra.mxu0 %v1586
        %1645 = vmatpush.msra.mxu0 %v1585
        %1646 = vmatpush.msra.mxu0 %v1584
        %1647 = vmatpush.msra.mxu0 %v1583
        %1648 = vmatpush.msra.mxu0 %v1582
        %1649 = vmatpush.msra.mxu0 %v1581
        %1650 = vmatpush.msra.mxu0 %v1580
        %1651 = vmatpush.msra.mxu0 %v1579
        %1652 = vmatmul.f32.gmra.mxu0 %v1589
        %v1653 = vpop.f32.mrf.mxu0
        %v1654 = vadd.f32 0.0, %v1653
        %1655 = vmatmul.f32.gmra.mxu0 %v1592
        %v1656 = vpop.f32.mrf.mxu0
        %v1657 = vadd.f32 0.0, %v1656
        %1658 = vmatmul.f32.gmra.mxu0 %v1595
        %v1659 = vpop.f32.mrf.mxu0
        %v1660 = vadd.f32 0.0, %v1659
        %1661 = vmatmul.f32.gmra.mxu0 %v1598
        %v1662 = vpop.f32.mrf.mxu0
        %v1663 = vadd.f32 0.0, %v1662
        %1664 = vmatmul.f32.gmra.mxu0 %v1601
        %v1665 = vpop.f32.mrf.mxu0
        %v1666 = vadd.f32 0.0, %v1665
        %1667 = vmatmul.f32.gmra.mxu0 %v1604
        %v1668 = vpop.f32.mrf.mxu0
        %v1669 = vadd.f32 0.0, %v1668
        %1670 = vmatmul.f32.gmra.mxu0 %v1607
        %v1671 = vpop.f32.mrf.mxu0
        %v1672 = vadd.f32 0.0, %v1671
        %1673 = vmatmul.f32.gmra.mxu0 %v1610
        %v1674 = vpop.f32.mrf.mxu0
        %v1675 = vadd.f32 0.0, %v1674
        %1676 = vmatmul.f32.gmra.mxu0 %v1613
        %v1677 = vpop.f32.mrf.mxu0
        %v1678 = vadd.f32 0.0, %v1677
        %1679 = vmatmul.f32.gmra.mxu0 %v1616
        %v1680 = vpop.f32.mrf.mxu0
        %v1681 = vadd.f32 0.0, %v1680
        %1682 = vmatmul.f32.gmra.mxu0 %v1619
        %v1683 = vpop.f32.mrf.mxu0
        %v1684 = vadd.f32 0.0, %v1683
        %1685 = vmatmul.f32.gmra.mxu0 %v1622
        %v1686 = vpop.f32.mrf.mxu0
        %v1687 = vadd.f32 0.0, %v1686
        %1688 = vmatmul.f32.gmra.mxu0 %v1625
        %v1689 = vpop.f32.mrf.mxu0
        %v1690 = vadd.f32 0.0, %v1689
        %1691 = vmatmul.f32.gmra.mxu0 %v1628
        %v1692 = vpop.f32.mrf.mxu0
        %v1693 = vadd.f32 0.0, %v1692
        %1694 = vmatmul.f32.gmra.mxu0 %v1631
        %v1695 = vpop.f32.mrf.mxu0
        %v1696 = vadd.f32 0.0, %v1695
        %1697 = vmatmul.f32.gmra.mxu0 %v1634
        %v1698 = vpop.f32.mrf.mxu0
        %v1699 = vadd.f32 0.0, %v1698
        %1700 = vdwg.mxu0
        %v1702 = vsel %vm1587, %v1360, 0
        %v1705 = vsel %vm1587, %v1363, 0
        %v1708 = vsel %vm1587, %v1366, 0
        %v1711 = vsel %vm1587, %v1369, 0
        %v1714 = vsel %vm1587, %v1372, 0
        %v1717 = vsel %vm1587, %v1375, 0
        %v1720 = vsel %vm1587, %v1378, 0
        %v1723 = vsel %vm1587, %v1381, 0
        %v1726 = vsel %vm1587, %v1384, 0
        %v1729 = vsel %vm1587, %v1387, 0
        %v1732 = vsel %vm1587, %v1390, 0
        %v1735 = vsel %vm1587, %v1393, 0
        %v1738 = vsel %vm1587, %v1396, 0
        %v1741 = vsel %vm1587, %v1399, 0
        %v1744 = vsel %vm1587, %v1402, 0
        %v1747 = vsel %vm1587, %v1405, 0
        %1749 = vmatpush.msra.mxu0 0.0
        %1750 = vmatpush.msra.mxu0 0.0
        %1751 = vmatpush.msra.mxu0 0.0
        %1752 = vmatpush.msra.mxu0 0.0
        %1753 = vmatpush.msra.mxu0 0.0
        %1754 = vmatpush.msra.mxu0 0.0
        %1755 = vmatpush.msra.mxu0 0.0
        %1756 = vmatpush.msra.mxu0 0.0
        %1757 = vmatpush.msra.mxu0 %v1414
        %1758 = vmatpush.msra.mxu0 %v1413
        %1759 = vmatpush.msra.mxu0 %v1412
        %1760 = vmatpush.msra.mxu0 %v1411
        %1761 = vmatpush.msra.mxu0 %v1410
        %1762 = vmatpush.msra.mxu0 %v1409
        %1763 = vmatpush.msra.mxu0 %v1408
        %1764 = vmatpush.msra.mxu0 %v1407
        %1765 = vmatmul.f32.gmra.mxu0 %v1702
        %v1766 = vpop.f32.mrf.mxu0
        %v1767 = vadd.f32 %v1654, %v1766
        %1768 = vmatmul.f32.gmra.mxu0 %v1705
        %v1769 = vpop.f32.mrf.mxu0
        %v1770 = vadd.f32 %v1657, %v1769
        %1771 = vmatmul.f32.gmra.mxu0 %v1708
        %v1772 = vpop.f32.mrf.mxu0
        %v1773 = vadd.f32 %v1660, %v1772
        %1774 = vmatmul.f32.gmra.mxu0 %v1711
        %v1775 = vpop.f32.mrf.mxu0
        %v1776 = vadd.f32 %v1663, %v1775
        %1777 = vmatmul.f32.gmra.mxu0 %v1714
        %v1778 = vpop.f32.mrf.mxu0
        %v1779 = vadd.f32 %v1666, %v1778
        %1780 = vmatmul.f32.gmra.mxu0 %v1717
        %v1781 = vpop.f32.mrf.mxu0
        %v1782 = vadd.f32 %v1669, %v1781
        %1783 = vmatmul.f32.gmra.mxu0 %v1720
        %v1784 = vpop.f32.mrf.mxu0
        %v1785 = vadd.f32 %v1672, %v1784
        %1786 = vmatmul.f32.gmra.mxu0 %v1723
        %v1787 = vpop.f32.mrf.mxu0
        %v1788 = vadd.f32 %v1675, %v1787
        %1789 = vmatmul.f32.gmra.mxu0 %v1726
        %v1790 = vpop.f32.mrf.mxu0
        %v1791 = vadd.f32 %v1678, %v1790
        %1792 = vmatmul.f32.gmra.mxu0 %v1729
        %v1793 = vpop.f32.mrf.mxu0
        %v1794 = vadd.f32 %v1681, %v1793
        %1795 = vmatmul.f32.gmra.mxu0 %v1732
        %v1796 = vpop.f32.mrf.mxu0
        %v1797 = vadd.f32 %v1684, %v1796
        %1798 = vmatmul.f32.gmra.mxu0 %v1735
        %v1799 = vpop.f32.mrf.mxu0
        %v1800 = vadd.f32 %v1687, %v1799
        %1801 = vmatmul.f32.gmra.mxu0 %v1738
        %v1802 = vpop.f32.mrf.mxu0
        %v1803 = vadd.f32 %v1690, %v1802
        %1804 = vmatmul.f32.gmra.mxu0 %v1741
        %v1805 = vpop.f32.mrf.mxu0
        %v1806 = vadd.f32 %v1693, %v1805
        %1807 = vmatmul.f32.gmra.mxu0 %v1744
        %v1808 = vpop.f32.mrf.mxu0
        %v1809 = vadd.f32 %v1696, %v1808
        %1810 = vmatmul.f32.gmra.mxu0 %v1747
        %v1811 = vpop.f32.mrf.mxu0
        %v1812 = vadd.f32 %v1699, %v1811
        %1813 = vdwg.mxu0
        %s1814 = scalar_lea.vmem [#allocation8], 512
        %v1815 = vld [vmem:[%s1814] sm:$0xff]
        %v1816 = vld [vmem:[%s1814 + $0x8] sm:$0xff]
        %v1817 = vld [vmem:[%s1814 + $0x10] sm:$0xff]
        %v1818 = vld [vmem:[%s1814 + $0x18] sm:$0xff]
        %v1819 = vld [vmem:[%s1814 + $0x20] sm:$0xff]
        %v1820 = vld [vmem:[%s1814 + $0x28] sm:$0xff]
        %v1821 = vld [vmem:[%s1814 + $0x30] sm:$0xff]
        %v1822 = vld [vmem:[%s1814 + $0x38] sm:$0xff]
        %v1823 = vld [vmem:[%s1814 + $0x40] sm:$0xff]
        %v1824 = vld [vmem:[%s1814 + $0x48] sm:$0xff]
        %v1825 = vld [vmem:[%s1814 + $0x50] sm:$0xff]
        %v1826 = vld [vmem:[%s1814 + $0x58] sm:$0xff]
        %v1827 = vld [vmem:[%s1814 + $0x60] sm:$0xff]
        %v1828 = vld [vmem:[%s1814 + $0x68] sm:$0xff]
        %v1829 = vld [vmem:[%s1814 + $0x70] sm:$0xff]
        %v1830 = vld [vmem:[%s1814 + $0x78] sm:$0xff]
        %v1831 = vld [vmem:[%s1814 + $0x80] sm:$0xff]
        %v1832 = vld [vmem:[%s1814 + $0x88] sm:$0xff]
        %v1833 = vld [vmem:[%s1814 + $0x90] sm:$0xff]
        %v1834 = vld [vmem:[%s1814 + $0x98] sm:$0xff]
        %v1835 = vld [vmem:[%s1814 + $0xa0] sm:$0xff]
        %v1836 = vld [vmem:[%s1814 + $0xa8] sm:$0xff]
        %v1837 = vld [vmem:[%s1814 + $0xb0] sm:$0xff]
        %v1838 = vld [vmem:[%s1814 + $0xb8] sm:$0xff]
        %v1839 = vld [vmem:[%s1814 + $0xc0] sm:$0xff]
        %v1840 = vld [vmem:[%s1814 + $0xc8] sm:$0xff]
        %v1841 = vld [vmem:[%s1814 + $0xd0] sm:$0xff]
        %v1842 = vld [vmem:[%s1814 + $0xd8] sm:$0xff]
        %v1843 = vld [vmem:[%s1814 + $0xe0] sm:$0xff]
        %v1844 = vld [vmem:[%s1814 + $0xe8] sm:$0xff]
        %v1845 = vld [vmem:[%s1814 + $0xf0] sm:$0xff]
        %v1846 = vld [vmem:[%s1814 + $0xf8] sm:$0xff]
        %1847 = vmatpush.msra.mxu0 %v1228
        %1848 = vmatpush.msra.mxu0 %v1227
        %1849 = vmatpush.msra.mxu0 %v1226
        %1850 = vmatpush.msra.mxu0 %v1225
        %1851 = vmatpush.msra.mxu0 %v1224
        %1852 = vmatpush.msra.mxu0 %v1223
        %1853 = vmatpush.msra.mxu0 %v1222
        %1854 = vmatpush.msra.mxu0 %v1221
        %1855 = vmatpush.msra.mxu0 %v1220
        %1856 = vmatpush.msra.mxu0 %v1219
        %1857 = vmatpush.msra.mxu0 %v1218
        %1858 = vmatpush.msra.mxu0 %v1217
        %1859 = vmatpush.msra.mxu0 %v1216
        %1860 = vmatpush.msra.mxu0 %v1215
        %1861 = vmatpush.msra.mxu0 %v1214
        %1862 = vmatpush.msra.mxu0 %v1213
        %1863 = vmatmul.f32.gmra.mxu0 %v1815
        %v1864 = vpop.f32.mrf.mxu0
        %v1865 = vadd.f32 0.0, %v1864
        %1866 = vmatmul.f32.gmra.mxu0 %v1817
        %v1867 = vpop.f32.mrf.mxu0
        %v1868 = vadd.f32 0.0, %v1867
        %1869 = vmatmul.f32.gmra.mxu0 %v1819
        %v1870 = vpop.f32.mrf.mxu0
        %v1871 = vadd.f32 0.0, %v1870
        %1872 = vmatmul.f32.gmra.mxu0 %v1821
        %v1873 = vpop.f32.mrf.mxu0
        %v1874 = vadd.f32 0.0, %v1873
        %1875 = vmatmul.f32.gmra.mxu0 %v1823
        %v1876 = vpop.f32.mrf.mxu0
        %v1877 = vadd.f32 0.0, %v1876
        %1878 = vmatmul.f32.gmra.mxu0 %v1825
        %v1879 = vpop.f32.mrf.mxu0
        %v1880 = vadd.f32 0.0, %v1879
        %1881 = vmatmul.f32.gmra.mxu0 %v1827
        %v1882 = vpop.f32.mrf.mxu0
        %v1883 = vadd.f32 0.0, %v1882
        %1884 = vmatmul.f32.gmra.mxu0 %v1829
        %v1885 = vpop.f32.mrf.mxu0
        %v1886 = vadd.f32 0.0, %v1885
        %1887 = vmatmul.f32.gmra.mxu0 %v1831
        %v1888 = vpop.f32.mrf.mxu0
        %v1889 = vadd.f32 0.0, %v1888
        %1890 = vmatmul.f32.gmra.mxu0 %v1833
        %v1891 = vpop.f32.mrf.mxu0
        %v1892 = vadd.f32 0.0, %v1891
        %1893 = vmatmul.f32.gmra.mxu0 %v1835
        %v1894 = vpop.f32.mrf.mxu0
        %v1895 = vadd.f32 0.0, %v1894
        %1896 = vmatmul.f32.gmra.mxu0 %v1837
        %v1897 = vpop.f32.mrf.mxu0
        %v1898 = vadd.f32 0.0, %v1897
        %1899 = vmatmul.f32.gmra.mxu0 %v1839
        %v1900 = vpop.f32.mrf.mxu0
        %v1901 = vadd.f32 0.0, %v1900
        %1902 = vmatmul.f32.gmra.mxu0 %v1841
        %v1903 = vpop.f32.mrf.mxu0
        %v1904 = vadd.f32 0.0, %v1903
        %1905 = vmatmul.f32.gmra.mxu0 %v1843
        %v1906 = vpop.f32.mrf.mxu0
        %v1907 = vadd.f32 0.0, %v1906
        %1908 = vmatmul.f32.gmra.mxu0 %v1845
        %v1909 = vpop.f32.mrf.mxu0
        %v1910 = vadd.f32 0.0, %v1909
        %1911 = vdwg.mxu0
        %1912 = vmatpush.msra.mxu0 %v1244
        %1913 = vmatpush.msra.mxu0 %v1243
        %1914 = vmatpush.msra.mxu0 %v1242
        %1915 = vmatpush.msra.mxu0 %v1241
        %1916 = vmatpush.msra.mxu0 %v1240
        %1917 = vmatpush.msra.mxu0 %v1239
        %1918 = vmatpush.msra.mxu0 %v1238
        %1919 = vmatpush.msra.mxu0 %v1237
        %1920 = vmatpush.msra.mxu0 %v1236
        %1921 = vmatpush.msra.mxu0 %v1235
        %1922 = vmatpush.msra.mxu0 %v1234
        %1923 = vmatpush.msra.mxu0 %v1233
        %1924 = vmatpush.msra.mxu0 %v1232
        %1925 = vmatpush.msra.mxu0 %v1231
        %1926 = vmatpush.msra.mxu0 %v1230
        %1927 = vmatpush.msra.mxu0 %v1229
        %1928 = vmatmul.f32.gmra.mxu0 %v1816
        %v1929 = vpop.f32.mrf.mxu0
        %v1930 = vadd.f32 %v1865, %v1929
        %1931 = vmatmul.f32.gmra.mxu0 %v1818
        %v1932 = vpop.f32.mrf.mxu0
        %v1933 = vadd.f32 %v1868, %v1932
        %1934 = vmatmul.f32.gmra.mxu0 %v1820
        %v1935 = vpop.f32.mrf.mxu0
        %v1936 = vadd.f32 %v1871, %v1935
        %1937 = vmatmul.f32.gmra.mxu0 %v1822
        %v1938 = vpop.f32.mrf.mxu0
        %v1939 = vadd.f32 %v1874, %v1938
        %1940 = vmatmul.f32.gmra.mxu0 %v1824
        %v1941 = vpop.f32.mrf.mxu0
        %v1942 = vadd.f32 %v1877, %v1941
        %1943 = vmatmul.f32.gmra.mxu0 %v1826
        %v1944 = vpop.f32.mrf.mxu0
        %v1945 = vadd.f32 %v1880, %v1944
        %1946 = vmatmul.f32.gmra.mxu0 %v1828
        %v1947 = vpop.f32.mrf.mxu0
        %v1948 = vadd.f32 %v1883, %v1947
        %1949 = vmatmul.f32.gmra.mxu0 %v1830
        %v1950 = vpop.f32.mrf.mxu0
        %v1951 = vadd.f32 %v1886, %v1950
        %1952 = vmatmul.f32.gmra.mxu0 %v1832
        %v1953 = vpop.f32.mrf.mxu0
        %v1954 = vadd.f32 %v1889, %v1953
        %1955 = vmatmul.f32.gmra.mxu0 %v1834
        %v1956 = vpop.f32.mrf.mxu0
        %v1957 = vadd.f32 %v1892, %v1956
        %1958 = vmatmul.f32.gmra.mxu0 %v1836
        %v1959 = vpop.f32.mrf.mxu0
        %v1960 = vadd.f32 %v1895, %v1959
        %1961 = vmatmul.f32.gmra.mxu0 %v1838
        %v1962 = vpop.f32.mrf.mxu0
        %v1963 = vadd.f32 %v1898, %v1962
        %1964 = vmatmul.f32.gmra.mxu0 %v1840
        %v1965 = vpop.f32.mrf.mxu0
        %v1966 = vadd.f32 %v1901, %v1965
        %1967 = vmatmul.f32.gmra.mxu0 %v1842
        %v1968 = vpop.f32.mrf.mxu0
        %v1969 = vadd.f32 %v1904, %v1968
        %1970 = vmatmul.f32.gmra.mxu0 %v1844
        %v1971 = vpop.f32.mrf.mxu0
        %v1972 = vadd.f32 %v1907, %v1971
        %1973 = vmatmul.f32.gmra.mxu0 %v1846
        %v1974 = vpop.f32.mrf.mxu0
        %v1975 = vadd.f32 %v1910, %v1974
        %1976 = vdwg.mxu0
        %s1977 = scalar_lea.vmem [#allocation9], 128
        %v1978 = vld [vmem:[%s1977] sm:$0xff]
        %v1979 = vld [vmem:[%s1977 + $0x8] sm:$0xff]
        %v1980 = vld [vmem:[%s1977 + $0x10] sm:$0xff]
        %v1981 = vld [vmem:[%s1977 + $0x18] sm:$0xff]
        %v1982 = vld [vmem:[%s1977 + $0x20] sm:$0xff]
        %v1983 = vld [vmem:[%s1977 + $0x28] sm:$0xff]
        %v1984 = vld [vmem:[%s1977 + $0x30] sm:$0xff]
        %v1985 = vld [vmem:[%s1977 + $0x38] sm:$0xff]
        %v1987 = vsel %vm1587, %v1930, 0
        %v1990 = vsel %vm1587, %v1933, 0
        %v1993 = vsel %vm1587, %v1936, 0
        %v1996 = vsel %vm1587, %v1939, 0
        %v1999 = vsel %vm1587, %v1942, 0
        %v2002 = vsel %vm1587, %v1945, 0
        %v2005 = vsel %vm1587, %v1948, 0
        %v2008 = vsel %vm1587, %v1951, 0
        %v2011 = vsel %vm1587, %v1954, 0
        %v2014 = vsel %vm1587, %v1957, 0
        %v2017 = vsel %vm1587, %v1960, 0
        %v2020 = vsel %vm1587, %v1963, 0
        %v2023 = vsel %vm1587, %v1966, 0
        %v2026 = vsel %vm1587, %v1969, 0
        %v2029 = vsel %vm1587, %v1972, 0
        %v2032 = vsel %vm1587, %v1975, 0
        %2034 = vmatpush.msra.mxu0 0.0
        %2035 = vmatpush.msra.mxu0 0.0
        %2036 = vmatpush.msra.mxu0 0.0
        %2037 = vmatpush.msra.mxu0 0.0
        %2038 = vmatpush.msra.mxu0 0.0
        %2039 = vmatpush.msra.mxu0 0.0
        %2040 = vmatpush.msra.mxu0 0.0
        %2041 = vmatpush.msra.mxu0 0.0
        %2042 = vmatpush.msra.mxu0 %v1985
        %2043 = vmatpush.msra.mxu0 %v1984
        %2044 = vmatpush.msra.mxu0 %v1983
        %2045 = vmatpush.msra.mxu0 %v1982
        %2046 = vmatpush.msra.mxu0 %v1981
        %2047 = vmatpush.msra.mxu0 %v1980
        %2048 = vmatpush.msra.mxu0 %v1979
        %2049 = vmatpush.msra.mxu0 %v1978
        %2050 = vmatmul.f32.gmra.mxu0 %v1987
        %v2051 = vpop.f32.mrf.mxu0
        %v2052 = vadd.f32 0.0, %v2051
        %2053 = vmatmul.f32.gmra.mxu0 %v1990
        %v2054 = vpop.f32.mrf.mxu0
        %v2055 = vadd.f32 0.0, %v2054
        %2056 = vmatmul.f32.gmra.mxu0 %v1993
        %v2057 = vpop.f32.mrf.mxu0
        %v2058 = vadd.f32 0.0, %v2057
        %2059 = vmatmul.f32.gmra.mxu0 %v1996
        %v2060 = vpop.f32.mrf.mxu0
        %v2061 = vadd.f32 0.0, %v2060
        %2062 = vmatmul.f32.gmra.mxu0 %v1999
        %v2063 = vpop.f32.mrf.mxu0
        %v2064 = vadd.f32 0.0, %v2063
        %2065 = vmatmul.f32.gmra.mxu0 %v2002
        %v2066 = vpop.f32.mrf.mxu0
        %v2067 = vadd.f32 0.0, %v2066
        %2068 = vmatmul.f32.gmra.mxu0 %v2005
        %v2069 = vpop.f32.mrf.mxu0
        %v2070 = vadd.f32 0.0, %v2069
        %2071 = vmatmul.f32.gmra.mxu0 %v2008
        %v2072 = vpop.f32.mrf.mxu0
        %v2073 = vadd.f32 0.0, %v2072
        %2074 = vmatmul.f32.gmra.mxu0 %v2011
        %v2075 = vpop.f32.mrf.mxu0
        %v2076 = vadd.f32 0.0, %v2075
        %2077 = vmatmul.f32.gmra.mxu0 %v2014
        %v2078 = vpop.f32.mrf.mxu0
        %v2079 = vadd.f32 0.0, %v2078
        %2080 = vmatmul.f32.gmra.mxu0 %v2017
        %v2081 = vpop.f32.mrf.mxu0
        %v2082 = vadd.f32 0.0, %v2081
        %2083 = vmatmul.f32.gmra.mxu0 %v2020
        %v2084 = vpop.f32.mrf.mxu0
        %v2085 = vadd.f32 0.0, %v2084
        %2086 = vmatmul.f32.gmra.mxu0 %v2023
        %v2087 = vpop.f32.mrf.mxu0
        %v2088 = vadd.f32 0.0, %v2087
        %2089 = vmatmul.f32.gmra.mxu0 %v2026
        %v2090 = vpop.f32.mrf.mxu0
        %v2091 = vadd.f32 0.0, %v2090
        %2092 = vmatmul.f32.gmra.mxu0 %v2029
        %v2093 = vpop.f32.mrf.mxu0
        %v2094 = vadd.f32 0.0, %v2093
        %2095 = vmatmul.f32.gmra.mxu0 %v2032
        %v2096 = vpop.f32.mrf.mxu0
        %v2097 = vadd.f32 0.0, %v2096
        %2098 = vdwg.mxu0
        %v2099 = vadd.f32 %v1767, %v2052
        %v2100 = vadd.f32 %v1770, %v2055
        %v2101 = vadd.f32 %v1773, %v2058
        %v2102 = vadd.f32 %v1776, %v2061
        %v2103 = vadd.f32 %v1779, %v2064
        %v2104 = vadd.f32 %v1782, %v2067
        %v2105 = vadd.f32 %v1785, %v2070
        %v2106 = vadd.f32 %v1788, %v2073
        %v2107 = vadd.f32 %v1791, %v2076
        %v2108 = vadd.f32 %v1794, %v2079
        %v2109 = vadd.f32 %v1797, %v2082
        %v2110 = vadd.f32 %v1800, %v2085
        %v2111 = vadd.f32 %v1803, %v2088
        %v2112 = vadd.f32 %v1806, %v2091
        %v2113 = vadd.f32 %v1809, %v2094
        %v2114 = vadd.f32 %v1812, %v2097
        %v2115 = vld [vmem:[#allocation11] sm:$0x1]
        %v2117 = vperm.slane %v2115, 0
        %v2119 = vadd.f32 %v2099, %v2117
        %v2120 = vadd.f32 %v2100, %v2117
        %v2121 = vadd.f32 %v2101, %v2117
        %v2122 = vadd.f32 %v2102, %v2117
        %v2123 = vadd.f32 %v2103, %v2117
        %v2124 = vadd.f32 %v2104, %v2117
        %v2125 = vadd.f32 %v2105, %v2117
        %v2126 = vadd.f32 %v2106, %v2117
        %v2127 = vadd.f32 %v2107, %v2117
        %v2128 = vadd.f32 %v2108, %v2117
        %v2129 = vadd.f32 %v2109, %v2117
        %v2130 = vadd.f32 %v2110, %v2117
        %v2131 = vadd.f32 %v2111, %v2117
        %v2132 = vadd.f32 %v2112, %v2117
        %v2133 = vadd.f32 %v2113, %v2117
        %v2134 = vadd.f32 %v2114, %v2117
        %v2135 = vmax.f32 %v2119, 0.0
        %v2136 = vmax.f32 %v2120, 0.0
        %v2137 = vmax.f32 %v2121, 0.0
        %v2138 = vmax.f32 %v2122, 0.0
        %v2139 = vmax.f32 %v2123, 0.0
        %v2140 = vmax.f32 %v2124, 0.0
        %v2141 = vmax.f32 %v2125, 0.0
        %v2142 = vmax.f32 %v2126, 0.0
        %v2143 = vmax.f32 %v2127, 0.0
        %v2144 = vmax.f32 %v2128, 0.0
        %v2145 = vmax.f32 %v2129, 0.0
        %v2146 = vmax.f32 %v2130, 0.0
        %v2147 = vmax.f32 %v2131, 0.0
        %v2148 = vmax.f32 %v2132, 0.0
        %v2149 = vmax.f32 %v2133, 0.0
        %v2150 = vmax.f32 %v2134, 0.0
        %v2151 = vld [vmem:[#allocation12] sm:$0xff]
        %v2152 = vld [vmem:[#allocation12 + $0x8] sm:$0xff]
        %v2153 = vld [vmem:[#allocation12 + $0x10] sm:$0xff]
        %v2154 = vld [vmem:[#allocation12 + $0x18] sm:$0xff]
        %v2155 = vld [vmem:[#allocation12 + $0x20] sm:$0xff]
        %v2156 = vld [vmem:[#allocation12 + $0x28] sm:$0xff]
        %v2157 = vld [vmem:[#allocation12 + $0x30] sm:$0xff]
        %v2158 = vld [vmem:[#allocation12 + $0x38] sm:$0xff]
        %2159 = vmatpush.msra.mxu0 %v2150
        %2160 = vmatpush.msra.mxu0 %v2149
        %2161 = vmatpush.msra.mxu0 %v2148
        %2162 = vmatpush.msra.mxu0 %v2147
        %2163 = vmatpush.msra.mxu0 %v2146
        %2164 = vmatpush.msra.mxu0 %v2145
        %2165 = vmatpush.msra.mxu0 %v2144
        %2166 = vmatpush.msra.mxu0 %v2143
        %2167 = vmatpush.msra.mxu0 %v2142
        %2168 = vmatpush.msra.mxu0 %v2141
        %2169 = vmatpush.msra.mxu0 %v2140
        %2170 = vmatpush.msra.mxu0 %v2139
        %2171 = vmatpush.msra.mxu0 %v2138
        %2172 = vmatpush.msra.mxu0 %v2137
        %2173 = vmatpush.msra.mxu0 %v2136
        %2174 = vmatpush.msra.mxu0 %v2135
        %2175 = vmatmul.f32.gmra.mxu0 %v2151
        %v2176 = vpop.f32.mrf.mxu0
        %v2177 = vadd.f32 0.0, %v2176
        %2178 = vmatmul.f32.gmra.mxu0 %v2152
        %v2179 = vpop.f32.mrf.mxu0
        %v2180 = vadd.f32 0.0, %v2179
        %2181 = vmatmul.f32.gmra.mxu0 %v2153
        %v2182 = vpop.f32.mrf.mxu0
        %v2183 = vadd.f32 0.0, %v2182
        %2184 = vmatmul.f32.gmra.mxu0 %v2154
        %v2185 = vpop.f32.mrf.mxu0
        %v2186 = vadd.f32 0.0, %v2185
        %2187 = vmatmul.f32.gmra.mxu0 %v2155
        %v2188 = vpop.f32.mrf.mxu0
        %v2189 = vadd.f32 0.0, %v2188
        %2190 = vmatmul.f32.gmra.mxu0 %v2156
        %v2191 = vpop.f32.mrf.mxu0
        %v2192 = vadd.f32 0.0, %v2191
        %2193 = vmatmul.f32.gmra.mxu0 %v2157
        %v2194 = vpop.f32.mrf.mxu0
        %v2195 = vadd.f32 0.0, %v2194
        %2196 = vmatmul.f32.gmra.mxu0 %v2158
        %v2197 = vpop.f32.mrf.mxu0
        %v2198 = vadd.f32 0.0, %v2197
        %2199 = vdwg.mxu0
        %2200 = vst [vmem:[#allocation2] sm:$0xff] %v2177
        %2201 = vst [vmem:[#allocation2 + $0x8] sm:$0xff] %v2180
        %2202 = vst [vmem:[#allocation2 + $0x10] sm:$0xff] %v2183
        %2203 = vst [vmem:[#allocation2 + $0x18] sm:$0xff] %v2186
        %2204 = vst [vmem:[#allocation2 + $0x20] sm:$0xff] %v2189
        %2205 = vst [vmem:[#allocation2 + $0x28] sm:$0xff] %v2192
        %2206 = vst [vmem:[#allocation2 + $0x30] sm:$0xff] %v2195
        %2207 = vst [vmem:[#allocation2 + $0x38] sm:$0xff] %v2198
        %v2208 = vld [vmem:[#allocation2] sm:$0x3]
        %v2209 = vld [vmem:[%s465] sm:$0xff]
        %v2210 = vld [vmem:[%s465 + $0x8] sm:$0xff]
        %v2211 = vld [vmem:[%s465 + $0x10] sm:$0xff]
        %v2212 = vld [vmem:[%s465 + $0x18] sm:$0xff]
        %v2213 = vld [vmem:[%s465 + $0x20] sm:$0xff]
        %v2214 = vld [vmem:[%s465 + $0x28] sm:$0xff]
        %v2215 = vld [vmem:[%s465 + $0x30] sm:$0xff]
        %v2216 = vld [vmem:[%s465 + $0x38] sm:$0xff]
        %v2217 = vld [vmem:[%s465 + $0x40] sm:$0xff]
        %v2218 = vld [vmem:[%s465 + $0x48] sm:$0xff]
        %v2219 = vld [vmem:[%s465 + $0x50] sm:$0xff]
        %v2220 = vld [vmem:[%s465 + $0x58] sm:$0xff]
        %v2221 = vld [vmem:[%s465 + $0x60] sm:$0xff]
        %v2222 = vld [vmem:[%s465 + $0x68] sm:$0xff]
        %v2223 = vld [vmem:[%s465 + $0x70] sm:$0xff]
        %v2224 = vld [vmem:[%s465 + $0x78] sm:$0xff]
        %v2225 = vld [vmem:[%s465 + $0x80] sm:$0xff]
        %v2226 = vld [vmem:[%s465 + $0x88] sm:$0xff]
        %v2227 = vld [vmem:[%s465 + $0x90] sm:$0xff]
        %v2228 = vld [vmem:[%s465 + $0x98] sm:$0xff]
        %v2229 = vld [vmem:[%s465 + $0xa0] sm:$0xff]
        %v2230 = vld [vmem:[%s465 + $0xa8] sm:$0xff]
        %v2231 = vld [vmem:[%s465 + $0xb0] sm:$0xff]
        %v2232 = vld [vmem:[%s465 + $0xb8] sm:$0xff]
        %v2233 = vld [vmem:[%s465 + $0xc0] sm:$0xff]
        %v2234 = vld [vmem:[%s465 + $0xc8] sm:$0xff]
        %v2235 = vld [vmem:[%s465 + $0xd0] sm:$0xff]
        %v2236 = vld [vmem:[%s465 + $0xd8] sm:$0xff]
        %v2237 = vld [vmem:[%s465 + $0xe0] sm:$0xff]
        %v2238 = vld [vmem:[%s465 + $0xe8] sm:$0xff]
        %v2239 = vld [vmem:[%s465 + $0xf0] sm:$0xff]
        %v2240 = vld [vmem:[%s465 + $0xf8] sm:$0xff]
        %v2241 = vld [vmem:[%s465 + $0x100] sm:$0xff]
        %v2242 = vld [vmem:[%s465 + $0x108] sm:$0xff]
        %v2243 = vld [vmem:[%s465 + $0x110] sm:$0xff]
        %v2244 = vld [vmem:[%s465 + $0x118] sm:$0xff]
        %v2245 = vld [vmem:[%s465 + $0x120] sm:$0xff]
        %v2246 = vld [vmem:[%s465 + $0x128] sm:$0xff]
        %v2247 = vld [vmem:[%s465 + $0x130] sm:$0xff]
        %v2248 = vld [vmem:[%s465 + $0x138] sm:$0xff]
        %v2249 = vld [vmem:[%s465 + $0x140] sm:$0xff]
        %v2250 = vld [vmem:[%s465 + $0x148] sm:$0xff]
        %v2251 = vld [vmem:[%s465 + $0x150] sm:$0xff]
        %v2252 = vld [vmem:[%s465 + $0x158] sm:$0xff]
        %v2253 = vld [vmem:[%s465 + $0x160] sm:$0xff]
        %v2254 = vld [vmem:[%s465 + $0x168] sm:$0xff]
        %v2255 = vld [vmem:[%s465 + $0x170] sm:$0xff]
        %v2256 = vld [vmem:[%s465 + $0x178] sm:$0xff]
        %v2257 = vld [vmem:[%s465 + $0x180] sm:$0xff]
        %v2258 = vld [vmem:[%s465 + $0x188] sm:$0xff]
        %v2259 = vld [vmem:[%s465 + $0x190] sm:$0xff]
        %v2260 = vld [vmem:[%s465 + $0x198] sm:$0xff]
        %v2261 = vld [vmem:[%s465 + $0x1a0] sm:$0xff]
        %v2262 = vld [vmem:[%s465 + $0x1a8] sm:$0xff]
        %v2263 = vld [vmem:[%s465 + $0x1b0] sm:$0xff]
        %v2264 = vld [vmem:[%s465 + $0x1b8] sm:$0xff]
        %v2265 = vld [vmem:[%s465 + $0x1c0] sm:$0xff]
        %v2266 = vld [vmem:[%s465 + $0x1c8] sm:$0xff]
        %v2267 = vld [vmem:[%s465 + $0x1d0] sm:$0xff]
        %v2268 = vld [vmem:[%s465 + $0x1d8] sm:$0xff]
        %v2269 = vld [vmem:[%s465 + $0x1e0] sm:$0xff]
        %v2270 = vld [vmem:[%s465 + $0x1e8] sm:$0xff]
        %v2271 = vld [vmem:[%s465 + $0x1f0] sm:$0xff]
        %v2272 = vld [vmem:[%s465 + $0x1f8] sm:$0xff]
        %v2273 = vld [vmem:[#allocation2 + $0x2] sm:$0x3]
        %s2274 = scalar_lea.vmem %s465, 512 [#allocation14]
        %v2275 = vld [vmem:[%s2274] sm:$0xff]
        %v2276 = vld [vmem:[%s2274 + $0x8] sm:$0xff]
        %v2277 = vld [vmem:[%s2274 + $0x10] sm:$0xff]
        %v2278 = vld [vmem:[%s2274 + $0x18] sm:$0xff]
        %v2279 = vld [vmem:[%s2274 + $0x20] sm:$0xff]
        %v2280 = vld [vmem:[%s2274 + $0x28] sm:$0xff]
        %v2281 = vld [vmem:[%s2274 + $0x30] sm:$0xff]
        %v2282 = vld [vmem:[%s2274 + $0x38] sm:$0xff]
        %v2283 = vld [vmem:[%s2274 + $0x40] sm:$0xff]
        %v2284 = vld [vmem:[%s2274 + $0x48] sm:$0xff]
        %v2285 = vld [vmem:[%s2274 + $0x50] sm:$0xff]
        %v2286 = vld [vmem:[%s2274 + $0x58] sm:$0xff]
        %v2287 = vld [vmem:[%s2274 + $0x60] sm:$0xff]
        %v2288 = vld [vmem:[%s2274 + $0x68] sm:$0xff]
        %v2289 = vld [vmem:[%s2274 + $0x70] sm:$0xff]
        %v2290 = vld [vmem:[%s2274 + $0x78] sm:$0xff]
        %v2291 = vld [vmem:[%s2274 + $0x80] sm:$0xff]
        %v2292 = vld [vmem:[%s2274 + $0x88] sm:$0xff]
        %v2293 = vld [vmem:[%s2274 + $0x90] sm:$0xff]
        %v2294 = vld [vmem:[%s2274 + $0x98] sm:$0xff]
        %v2295 = vld [vmem:[%s2274 + $0xa0] sm:$0xff]
        %v2296 = vld [vmem:[%s2274 + $0xa8] sm:$0xff]
        %v2297 = vld [vmem:[%s2274 + $0xb0] sm:$0xff]
        %v2298 = vld [vmem:[%s2274 + $0xb8] sm:$0xff]
        %v2299 = vld [vmem:[%s2274 + $0xc0] sm:$0xff]
        %v2300 = vld [vmem:[%s2274 + $0xc8] sm:$0xff]
        %v2301 = vld [vmem:[%s2274 + $0xd0] sm:$0xff]
        %v2302 = vld [vmem:[%s2274 + $0xd8] sm:$0xff]
        %v2303 = vld [vmem:[%s2274 + $0xe0] sm:$0xff]
        %v2304 = vld [vmem:[%s2274 + $0xe8] sm:$0xff]
        %v2305 = vld [vmem:[%s2274 + $0xf0] sm:$0xff]
        %v2306 = vld [vmem:[%s2274 + $0xf8] sm:$0xff]
        %v2307 = vld [vmem:[%s2274 + $0x100] sm:$0xff]
        %v2308 = vld [vmem:[%s2274 + $0x108] sm:$0xff]
        %v2309 = vld [vmem:[%s2274 + $0x110] sm:$0xff]
        %v2310 = vld [vmem:[%s2274 + $0x118] sm:$0xff]
        %v2311 = vld [vmem:[%s2274 + $0x120] sm:$0xff]
        %v2312 = vld [vmem:[%s2274 + $0x128] sm:$0xff]
        %v2313 = vld [vmem:[%s2274 + $0x130] sm:$0xff]
        %v2314 = vld [vmem:[%s2274 + $0x138] sm:$0xff]
        %v2315 = vld [vmem:[%s2274 + $0x140] sm:$0xff]
        %v2316 = vld [vmem:[%s2274 + $0x148] sm:$0xff]
        %v2317 = vld [vmem:[%s2274 + $0x150] sm:$0xff]
        %v2318 = vld [vmem:[%s2274 + $0x158] sm:$0xff]
        %v2319 = vld [vmem:[%s2274 + $0x160] sm:$0xff]
        %v2320 = vld [vmem:[%s2274 + $0x168] sm:$0xff]
        %v2321 = vld [vmem:[%s2274 + $0x170] sm:$0xff]
        %v2322 = vld [vmem:[%s2274 + $0x178] sm:$0xff]
        %v2323 = vld [vmem:[%s2274 + $0x180] sm:$0xff]
        %v2324 = vld [vmem:[%s2274 + $0x188] sm:$0xff]
        %v2325 = vld [vmem:[%s2274 + $0x190] sm:$0xff]
        %v2326 = vld [vmem:[%s2274 + $0x198] sm:$0xff]
        %v2327 = vld [vmem:[%s2274 + $0x1a0] sm:$0xff]
        %v2328 = vld [vmem:[%s2274 + $0x1a8] sm:$0xff]
        %v2329 = vld [vmem:[%s2274 + $0x1b0] sm:$0xff]
        %v2330 = vld [vmem:[%s2274 + $0x1b8] sm:$0xff]
        %v2331 = vld [vmem:[%s2274 + $0x1c0] sm:$0xff]
        %v2332 = vld [vmem:[%s2274 + $0x1c8] sm:$0xff]
        %v2333 = vld [vmem:[%s2274 + $0x1d0] sm:$0xff]
        %v2334 = vld [vmem:[%s2274 + $0x1d8] sm:$0xff]
        %v2335 = vld [vmem:[%s2274 + $0x1e0] sm:$0xff]
        %v2336 = vld [vmem:[%s2274 + $0x1e8] sm:$0xff]
        %v2337 = vld [vmem:[%s2274 + $0x1f0] sm:$0xff]
        %v2338 = vld [vmem:[%s2274 + $0x1f8] sm:$0xff]
        %2339 = vmatpush.msra.mxu0 %v2335
        %2340 = vmatpush.msra.mxu0 %v2331
        %2341 = vmatpush.msra.mxu0 %v2327
        %2342 = vmatpush.msra.mxu0 %v2323
        %2343 = vmatpush.msra.mxu0 %v2319
        %2344 = vmatpush.msra.mxu0 %v2315
        %2345 = vmatpush.msra.mxu0 %v2311
        %2346 = vmatpush.msra.mxu0 %v2307
        %2347 = vmatpush.msra.mxu0 %v2303
        %2348 = vmatpush.msra.mxu0 %v2299
        %2349 = vmatpush.msra.mxu0 %v2295
        %2350 = vmatpush.msra.mxu0 %v2291
        %2351 = vmatpush.msra.mxu0 %v2287
        %2352 = vmatpush.msra.mxu0 %v2283
        %2353 = vmatpush.msra.mxu0 %v2279
        %2354 = vmatpush.msra.mxu0 %v2275
        %2355 = vmatmul.f32.gmra.mxu0 %v2273
        %v2356 = vpop.f32.mrf.mxu0
        %v2357 = vadd.f32 0.0, %v2356
        %2358 = vdwg.mxu0
        %2359 = vmatpush.msra.mxu0 %v2336
        %2360 = vmatpush.msra.mxu0 %v2332
        %2361 = vmatpush.msra.mxu0 %v2328
        %2362 = vmatpush.msra.mxu0 %v2324
        %2363 = vmatpush.msra.mxu0 %v2320
        %2364 = vmatpush.msra.mxu0 %v2316
        %2365 = vmatpush.msra.mxu0 %v2312
        %2366 = vmatpush.msra.mxu0 %v2308
        %2367 = vmatpush.msra.mxu0 %v2304
        %2368 = vmatpush.msra.mxu0 %v2300
        %2369 = vmatpush.msra.mxu0 %v2296
        %2370 = vmatpush.msra.mxu0 %v2292
        %2371 = vmatpush.msra.mxu0 %v2288
        %2372 = vmatpush.msra.mxu0 %v2284
        %2373 = vmatpush.msra.mxu0 %v2280
        %2374 = vmatpush.msra.mxu0 %v2276
        %2375 = vmatmul.f32.gmra.mxu0 %v2273
        %v2376 = vpop.f32.mrf.mxu0
        %v2377 = vadd.f32 0.0, %v2376
        %2378 = vdwg.mxu0
        %2379 = vmatpush.msra.mxu0 %v2337
        %2380 = vmatpush.msra.mxu0 %v2333
        %2381 = vmatpush.msra.mxu0 %v2329
        %2382 = vmatpush.msra.mxu0 %v2325
        %2383 = vmatpush.msra.mxu0 %v2321
        %2384 = vmatpush.msra.mxu0 %v2317
        %2385 = vmatpush.msra.mxu0 %v2313
        %2386 = vmatpush.msra.mxu0 %v2309
        %2387 = vmatpush.msra.mxu0 %v2305
        %2388 = vmatpush.msra.mxu0 %v2301
        %2389 = vmatpush.msra.mxu0 %v2297
        %2390 = vmatpush.msra.mxu0 %v2293
        %2391 = vmatpush.msra.mxu0 %v2289
        %2392 = vmatpush.msra.mxu0 %v2285
        %2393 = vmatpush.msra.mxu0 %v2281
        %2394 = vmatpush.msra.mxu0 %v2277
        %2395 = vmatmul.f32.gmra.mxu0 %v2273
        %v2396 = vpop.f32.mrf.mxu0
        %v2397 = vadd.f32 0.0, %v2396
        %2398 = vdwg.mxu0
        %2399 = vmatpush.msra.mxu0 %v2338
        %2400 = vmatpush.msra.mxu0 %v2334
        %2401 = vmatpush.msra.mxu0 %v2330
        %2402 = vmatpush.msra.mxu0 %v2326
        %2403 = vmatpush.msra.mxu0 %v2322
        %2404 = vmatpush.msra.mxu0 %v2318
        %2405 = vmatpush.msra.mxu0 %v2314
        %2406 = vmatpush.msra.mxu0 %v2310
        %2407 = vmatpush.msra.mxu0 %v2306
        %2408 = vmatpush.msra.mxu0 %v2302
        %2409 = vmatpush.msra.mxu0 %v2298
        %2410 = vmatpush.msra.mxu0 %v2294
        %2411 = vmatpush.msra.mxu0 %v2290
        %2412 = vmatpush.msra.mxu0 %v2286
        %2413 = vmatpush.msra.mxu0 %v2282
        %2414 = vmatpush.msra.mxu0 %v2278
        %2415 = vmatmul.f32.gmra.mxu0 %v2273
        %v2416 = vpop.f32.mrf.mxu0
        %v2417 = vadd.f32 0.0, %v2416
        %2418 = vdwg.mxu0
        %2419 = vmatpush.msra.mxu0 %v2269
        %2420 = vmatpush.msra.mxu0 %v2265
        %2421 = vmatpush.msra.mxu0 %v2261
        %2422 = vmatpush.msra.mxu0 %v2257
        %2423 = vmatpush.msra.mxu0 %v2253
        %2424 = vmatpush.msra.mxu0 %v2249
        %2425 = vmatpush.msra.mxu0 %v2245
        %2426 = vmatpush.msra.mxu0 %v2241
        %2427 = vmatpush.msra.mxu0 %v2237
        %2428 = vmatpush.msra.mxu0 %v2233
        %2429 = vmatpush.msra.mxu0 %v2229
        %2430 = vmatpush.msra.mxu0 %v2225
        %2431 = vmatpush.msra.mxu0 %v2221
        %2432 = vmatpush.msra.mxu0 %v2217
        %2433 = vmatpush.msra.mxu0 %v2213
        %2434 = vmatpush.msra.mxu0 %v2209
        %2435 = vmatmul.f32.gmra.mxu0 %v2208
        %v2436 = vpop.f32.mrf.mxu0
        %v2437 = vadd.f32 %v2357, %v2436
        %2438 = vdwg.mxu0
        %2439 = vmatpush.msra.mxu0 %v2270
        %2440 = vmatpush.msra.mxu0 %v2266
        %2441 = vmatpush.msra.mxu0 %v2262
        %2442 = vmatpush.msra.mxu0 %v2258
        %2443 = vmatpush.msra.mxu0 %v2254
        %2444 = vmatpush.msra.mxu0 %v2250
        %2445 = vmatpush.msra.mxu0 %v2246
        %2446 = vmatpush.msra.mxu0 %v2242
        %2447 = vmatpush.msra.mxu0 %v2238
        %2448 = vmatpush.msra.mxu0 %v2234
        %2449 = vmatpush.msra.mxu0 %v2230
        %2450 = vmatpush.msra.mxu0 %v2226
        %2451 = vmatpush.msra.mxu0 %v2222
        %2452 = vmatpush.msra.mxu0 %v2218
        %2453 = vmatpush.msra.mxu0 %v2214
        %2454 = vmatpush.msra.mxu0 %v2210
        %2455 = vmatmul.f32.gmra.mxu0 %v2208
        %v2456 = vpop.f32.mrf.mxu0
        %v2457 = vadd.f32 %v2377, %v2456
        %2458 = vdwg.mxu0
        %2459 = vmatpush.msra.mxu0 %v2271
        %2460 = vmatpush.msra.mxu0 %v2267
        %2461 = vmatpush.msra.mxu0 %v2263
        %2462 = vmatpush.msra.mxu0 %v2259
        %2463 = vmatpush.msra.mxu0 %v2255
        %2464 = vmatpush.msra.mxu0 %v2251
        %2465 = vmatpush.msra.mxu0 %v2247
        %2466 = vmatpush.msra.mxu0 %v2243
        %2467 = vmatpush.msra.mxu0 %v2239
        %2468 = vmatpush.msra.mxu0 %v2235
        %2469 = vmatpush.msra.mxu0 %v2231
        %2470 = vmatpush.msra.mxu0 %v2227
        %2471 = vmatpush.msra.mxu0 %v2223
        %2472 = vmatpush.msra.mxu0 %v2219
        %2473 = vmatpush.msra.mxu0 %v2215
        %2474 = vmatpush.msra.mxu0 %v2211
        %2475 = vmatmul.f32.gmra.mxu0 %v2208
        %v2476 = vpop.f32.mrf.mxu0
        %v2477 = vadd.f32 %v2397, %v2476
        %2478 = vdwg.mxu0
        %2479 = vmatpush.msra.mxu0 %v2272
        %2480 = vmatpush.msra.mxu0 %v2268
        %2481 = vmatpush.msra.mxu0 %v2264
        %2482 = vmatpush.msra.mxu0 %v2260
        %2483 = vmatpush.msra.mxu0 %v2256
        %2484 = vmatpush.msra.mxu0 %v2252
        %2485 = vmatpush.msra.mxu0 %v2248
        %2486 = vmatpush.msra.mxu0 %v2244
        %2487 = vmatpush.msra.mxu0 %v2240
        %2488 = vmatpush.msra.mxu0 %v2236
        %2489 = vmatpush.msra.mxu0 %v2232
        %2490 = vmatpush.msra.mxu0 %v2228
        %2491 = vmatpush.msra.mxu0 %v2224
        %2492 = vmatpush.msra.mxu0 %v2220
        %2493 = vmatpush.msra.mxu0 %v2216
        %2494 = vmatpush.msra.mxu0 %v2212
        %2495 = vmatmul.f32.gmra.mxu0 %v2208
        %v2496 = vpop.f32.mrf.mxu0
        %v2497 = vadd.f32 %v2417, %v2496
        %2498 = vdwg.mxu0
        %v2499 = vld [vmem:[#allocation2 + $0x4] sm:$0x3]
        %s2500 = scalar_lea.vmem %s465, 1024 [#allocation14]
        %v2501 = vld [vmem:[%s2500] sm:$0xff]
        %v2502 = vld [vmem:[%s2500 + $0x8] sm:$0xff]
        %v2503 = vld [vmem:[%s2500 + $0x10] sm:$0xff]
        %v2504 = vld [vmem:[%s2500 + $0x18] sm:$0xff]
        %v2505 = vld [vmem:[%s2500 + $0x20] sm:$0xff]
        %v2506 = vld [vmem:[%s2500 + $0x28] sm:$0xff]
        %v2507 = vld [vmem:[%s2500 + $0x30] sm:$0xff]
        %v2508 = vld [vmem:[%s2500 + $0x38] sm:$0xff]
        %v2509 = vld [vmem:[%s2500 + $0x40] sm:$0xff]
        %v2510 = vld [vmem:[%s2500 + $0x48] sm:$0xff]
        %v2511 = vld [vmem:[%s2500 + $0x50] sm:$0xff]
        %v2512 = vld [vmem:[%s2500 + $0x58] sm:$0xff]
        %v2513 = vld [vmem:[%s2500 + $0x60] sm:$0xff]
        %v2514 = vld [vmem:[%s2500 + $0x68] sm:$0xff]
        %v2515 = vld [vmem:[%s2500 + $0x70] sm:$0xff]
        %v2516 = vld [vmem:[%s2500 + $0x78] sm:$0xff]
        %v2517 = vld [vmem:[%s2500 + $0x80] sm:$0xff]
        %v2518 = vld [vmem:[%s2500 + $0x88] sm:$0xff]
        %v2519 = vld [vmem:[%s2500 + $0x90] sm:$0xff]
        %v2520 = vld [vmem:[%s2500 + $0x98] sm:$0xff]
        %v2521 = vld [vmem:[%s2500 + $0xa0] sm:$0xff]
        %v2522 = vld [vmem:[%s2500 + $0xa8] sm:$0xff]
        %v2523 = vld [vmem:[%s2500 + $0xb0] sm:$0xff]
        %v2524 = vld [vmem:[%s2500 + $0xb8] sm:$0xff]
        %v2525 = vld [vmem:[%s2500 + $0xc0] sm:$0xff]
        %v2526 = vld [vmem:[%s2500 + $0xc8] sm:$0xff]
        %v2527 = vld [vmem:[%s2500 + $0xd0] sm:$0xff]
        %v2528 = vld [vmem:[%s2500 + $0xd8] sm:$0xff]
        %v2529 = vld [vmem:[%s2500 + $0xe0] sm:$0xff]
        %v2530 = vld [vmem:[%s2500 + $0xe8] sm:$0xff]
        %v2531 = vld [vmem:[%s2500 + $0xf0] sm:$0xff]
        %v2532 = vld [vmem:[%s2500 + $0xf8] sm:$0xff]
        %v2533 = vld [vmem:[%s2500 + $0x100] sm:$0xff]
        %v2534 = vld [vmem:[%s2500 + $0x108] sm:$0xff]
        %v2535 = vld [vmem:[%s2500 + $0x110] sm:$0xff]
        %v2536 = vld [vmem:[%s2500 + $0x118] sm:$0xff]
        %v2537 = vld [vmem:[%s2500 + $0x120] sm:$0xff]
        %v2538 = vld [vmem:[%s2500 + $0x128] sm:$0xff]
        %v2539 = vld [vmem:[%s2500 + $0x130] sm:$0xff]
        %v2540 = vld [vmem:[%s2500 + $0x138] sm:$0xff]
        %v2541 = vld [vmem:[%s2500 + $0x140] sm:$0xff]
        %v2542 = vld [vmem:[%s2500 + $0x148] sm:$0xff]
        %v2543 = vld [vmem:[%s2500 + $0x150] sm:$0xff]
        %v2544 = vld [vmem:[%s2500 + $0x158] sm:$0xff]
        %v2545 = vld [vmem:[%s2500 + $0x160] sm:$0xff]
        %v2546 = vld [vmem:[%s2500 + $0x168] sm:$0xff]
        %v2547 = vld [vmem:[%s2500 + $0x170] sm:$0xff]
        %v2548 = vld [vmem:[%s2500 + $0x178] sm:$0xff]
        %v2549 = vld [vmem:[%s2500 + $0x180] sm:$0xff]
        %v2550 = vld [vmem:[%s2500 + $0x188] sm:$0xff]
        %v2551 = vld [vmem:[%s2500 + $0x190] sm:$0xff]
        %v2552 = vld [vmem:[%s2500 + $0x198] sm:$0xff]
        %v2553 = vld [vmem:[%s2500 + $0x1a0] sm:$0xff]
        %v2554 = vld [vmem:[%s2500 + $0x1a8] sm:$0xff]
        %v2555 = vld [vmem:[%s2500 + $0x1b0] sm:$0xff]
        %v2556 = vld [vmem:[%s2500 + $0x1b8] sm:$0xff]
        %v2557 = vld [vmem:[%s2500 + $0x1c0] sm:$0xff]
        %v2558 = vld [vmem:[%s2500 + $0x1c8] sm:$0xff]
        %v2559 = vld [vmem:[%s2500 + $0x1d0] sm:$0xff]
        %v2560 = vld [vmem:[%s2500 + $0x1d8] sm:$0xff]
        %v2561 = vld [vmem:[%s2500 + $0x1e0] sm:$0xff]
        %v2562 = vld [vmem:[%s2500 + $0x1e8] sm:$0xff]
        %v2563 = vld [vmem:[%s2500 + $0x1f0] sm:$0xff]
        %v2564 = vld [vmem:[%s2500 + $0x1f8] sm:$0xff]
        %2565 = vmatpush.msra.mxu0 %v2561
        %2566 = vmatpush.msra.mxu0 %v2557
        %2567 = vmatpush.msra.mxu0 %v2553
        %2568 = vmatpush.msra.mxu0 %v2549
        %2569 = vmatpush.msra.mxu0 %v2545
        %2570 = vmatpush.msra.mxu0 %v2541
        %2571 = vmatpush.msra.mxu0 %v2537
        %2572 = vmatpush.msra.mxu0 %v2533
        %2573 = vmatpush.msra.mxu0 %v2529
        %2574 = vmatpush.msra.mxu0 %v2525
        %2575 = vmatpush.msra.mxu0 %v2521
        %2576 = vmatpush.msra.mxu0 %v2517
        %2577 = vmatpush.msra.mxu0 %v2513
        %2578 = vmatpush.msra.mxu0 %v2509
        %2579 = vmatpush.msra.mxu0 %v2505
        %2580 = vmatpush.msra.mxu0 %v2501
        %2581 = vmatmul.f32.gmra.mxu0 %v2499
        %v2582 = vpop.f32.mrf.mxu0
        %v2583 = vadd.f32 0.0, %v2582
        %2584 = vdwg.mxu0
        %2585 = vmatpush.msra.mxu0 %v2562
        %2586 = vmatpush.msra.mxu0 %v2558
        %2587 = vmatpush.msra.mxu0 %v2554
        %2588 = vmatpush.msra.mxu0 %v2550
        %2589 = vmatpush.msra.mxu0 %v2546
        %2590 = vmatpush.msra.mxu0 %v2542
        %2591 = vmatpush.msra.mxu0 %v2538
        %2592 = vmatpush.msra.mxu0 %v2534
        %2593 = vmatpush.msra.mxu0 %v2530
        %2594 = vmatpush.msra.mxu0 %v2526
        %2595 = vmatpush.msra.mxu0 %v2522
        %2596 = vmatpush.msra.mxu0 %v2518
        %2597 = vmatpush.msra.mxu0 %v2514
        %2598 = vmatpush.msra.mxu0 %v2510
        %2599 = vmatpush.msra.mxu0 %v2506
        %2600 = vmatpush.msra.mxu0 %v2502
        %2601 = vmatmul.f32.gmra.mxu0 %v2499
        %v2602 = vpop.f32.mrf.mxu0
        %v2603 = vadd.f32 0.0, %v2602
        %2604 = vdwg.mxu0
        %2605 = vmatpush.msra.mxu0 %v2563
        %2606 = vmatpush.msra.mxu0 %v2559
        %2607 = vmatpush.msra.mxu0 %v2555
        %2608 = vmatpush.msra.mxu0 %v2551
        %2609 = vmatpush.msra.mxu0 %v2547
        %2610 = vmatpush.msra.mxu0 %v2543
        %2611 = vmatpush.msra.mxu0 %v2539
        %2612 = vmatpush.msra.mxu0 %v2535
        %2613 = vmatpush.msra.mxu0 %v2531
        %2614 = vmatpush.msra.mxu0 %v2527
        %2615 = vmatpush.msra.mxu0 %v2523
        %2616 = vmatpush.msra.mxu0 %v2519
        %2617 = vmatpush.msra.mxu0 %v2515
        %2618 = vmatpush.msra.mxu0 %v2511
        %2619 = vmatpush.msra.mxu0 %v2507
        %2620 = vmatpush.msra.mxu0 %v2503
        %2621 = vmatmul.f32.gmra.mxu0 %v2499
        %v2622 = vpop.f32.mrf.mxu0
        %v2623 = vadd.f32 0.0, %v2622
        %2624 = vdwg.mxu0
        %2625 = vmatpush.msra.mxu0 %v2564
        %2626 = vmatpush.msra.mxu0 %v2560
        %2627 = vmatpush.msra.mxu0 %v2556
        %2628 = vmatpush.msra.mxu0 %v2552
        %2629 = vmatpush.msra.mxu0 %v2548
        %2630 = vmatpush.msra.mxu0 %v2544
        %2631 = vmatpush.msra.mxu0 %v2540
        %2632 = vmatpush.msra.mxu0 %v2536
        %2633 = vmatpush.msra.mxu0 %v2532
        %2634 = vmatpush.msra.mxu0 %v2528
        %2635 = vmatpush.msra.mxu0 %v2524
        %2636 = vmatpush.msra.mxu0 %v2520
        %2637 = vmatpush.msra.mxu0 %v2516
        %2638 = vmatpush.msra.mxu0 %v2512
        %2639 = vmatpush.msra.mxu0 %v2508
        %2640 = vmatpush.msra.mxu0 %v2504
        %2641 = vmatmul.f32.gmra.mxu0 %v2499
        %v2642 = vpop.f32.mrf.mxu0
        %v2643 = vadd.f32 0.0, %v2642
        %2644 = vdwg.mxu0
        %v2645 = vadd.f32 %v2437, %v2583
        %v2646 = vadd.f32 %v2457, %v2603
        %v2647 = vadd.f32 %v2477, %v2623
        %v2648 = vadd.f32 %v2497, %v2643
        %v2649 = vld [vmem:[#allocation2 + $0x6] sm:$0x3]
        %s2650 = scalar_lea.vmem %s465, 1536 [#allocation14]
        %v2651 = vld [vmem:[%s2650] sm:$0xff]
        %v2652 = vld [vmem:[%s2650 + $0x8] sm:$0xff]
        %v2653 = vld [vmem:[%s2650 + $0x10] sm:$0xff]
        %v2654 = vld [vmem:[%s2650 + $0x18] sm:$0xff]
        %v2655 = vld [vmem:[%s2650 + $0x20] sm:$0xff]
        %v2656 = vld [vmem:[%s2650 + $0x28] sm:$0xff]
        %v2657 = vld [vmem:[%s2650 + $0x30] sm:$0xff]
        %v2658 = vld [vmem:[%s2650 + $0x38] sm:$0xff]
        %v2659 = vld [vmem:[%s2650 + $0x40] sm:$0xff]
        %v2660 = vld [vmem:[%s2650 + $0x48] sm:$0xff]
        %v2661 = vld [vmem:[%s2650 + $0x50] sm:$0xff]
        %v2662 = vld [vmem:[%s2650 + $0x58] sm:$0xff]
        %v2663 = vld [vmem:[%s2650 + $0x60] sm:$0xff]
        %v2664 = vld [vmem:[%s2650 + $0x68] sm:$0xff]
        %v2665 = vld [vmem:[%s2650 + $0x70] sm:$0xff]
        %v2666 = vld [vmem:[%s2650 + $0x78] sm:$0xff]
        %v2667 = vld [vmem:[%s2650 + $0x80] sm:$0xff]
        %v2668 = vld [vmem:[%s2650 + $0x88] sm:$0xff]
        %v2669 = vld [vmem:[%s2650 + $0x90] sm:$0xff]
        %v2670 = vld [vmem:[%s2650 + $0x98] sm:$0xff]
        %v2671 = vld [vmem:[%s2650 + $0xa0] sm:$0xff]
        %v2672 = vld [vmem:[%s2650 + $0xa8] sm:$0xff]
        %v2673 = vld [vmem:[%s2650 + $0xb0] sm:$0xff]
        %v2674 = vld [vmem:[%s2650 + $0xb8] sm:$0xff]
        %v2675 = vld [vmem:[%s2650 + $0xc0] sm:$0xff]
        %v2676 = vld [vmem:[%s2650 + $0xc8] sm:$0xff]
        %v2677 = vld [vmem:[%s2650 + $0xd0] sm:$0xff]
        %v2678 = vld [vmem:[%s2650 + $0xd8] sm:$0xff]
        %v2679 = vld [vmem:[%s2650 + $0xe0] sm:$0xff]
        %v2680 = vld [vmem:[%s2650 + $0xe8] sm:$0xff]
        %v2681 = vld [vmem:[%s2650 + $0xf0] sm:$0xff]
        %v2682 = vld [vmem:[%s2650 + $0xf8] sm:$0xff]
        %v2683 = vld [vmem:[%s2650 + $0x100] sm:$0xff]
        %v2684 = vld [vmem:[%s2650 + $0x108] sm:$0xff]
        %v2685 = vld [vmem:[%s2650 + $0x110] sm:$0xff]
        %v2686 = vld [vmem:[%s2650 + $0x118] sm:$0xff]
        %v2687 = vld [vmem:[%s2650 + $0x120] sm:$0xff]
        %v2688 = vld [vmem:[%s2650 + $0x128] sm:$0xff]
        %v2689 = vld [vmem:[%s2650 + $0x130] sm:$0xff]
        %v2690 = vld [vmem:[%s2650 + $0x138] sm:$0xff]
        %v2691 = vld [vmem:[%s2650 + $0x140] sm:$0xff]
        %v2692 = vld [vmem:[%s2650 + $0x148] sm:$0xff]
        %v2693 = vld [vmem:[%s2650 + $0x150] sm:$0xff]
        %v2694 = vld [vmem:[%s2650 + $0x158] sm:$0xff]
        %v2695 = vld [vmem:[%s2650 + $0x160] sm:$0xff]
        %v2696 = vld [vmem:[%s2650 + $0x168] sm:$0xff]
        %v2697 = vld [vmem:[%s2650 + $0x170] sm:$0xff]
        %v2698 = vld [vmem:[%s2650 + $0x178] sm:$0xff]
        %v2699 = vld [vmem:[%s2650 + $0x180] sm:$0xff]
        %v2700 = vld [vmem:[%s2650 + $0x188] sm:$0xff]
        %v2701 = vld [vmem:[%s2650 + $0x190] sm:$0xff]
        %v2702 = vld [vmem:[%s2650 + $0x198] sm:$0xff]
        %v2703 = vld [vmem:[%s2650 + $0x1a0] sm:$0xff]
        %v2704 = vld [vmem:[%s2650 + $0x1a8] sm:$0xff]
        %v2705 = vld [vmem:[%s2650 + $0x1b0] sm:$0xff]
        %v2706 = vld [vmem:[%s2650 + $0x1b8] sm:$0xff]
        %v2707 = vld [vmem:[%s2650 + $0x1c0] sm:$0xff]
        %v2708 = vld [vmem:[%s2650 + $0x1c8] sm:$0xff]
        %v2709 = vld [vmem:[%s2650 + $0x1d0] sm:$0xff]
        %v2710 = vld [vmem:[%s2650 + $0x1d8] sm:$0xff]
        %v2711 = vld [vmem:[%s2650 + $0x1e0] sm:$0xff]
        %v2712 = vld [vmem:[%s2650 + $0x1e8] sm:$0xff]
        %v2713 = vld [vmem:[%s2650 + $0x1f0] sm:$0xff]
        %v2714 = vld [vmem:[%s2650 + $0x1f8] sm:$0xff]
        %2715 = vmatpush.msra.mxu0 %v2711
        %2716 = vmatpush.msra.mxu0 %v2707
        %2717 = vmatpush.msra.mxu0 %v2703
        %2718 = vmatpush.msra.mxu0 %v2699
        %2719 = vmatpush.msra.mxu0 %v2695
        %2720 = vmatpush.msra.mxu0 %v2691
        %2721 = vmatpush.msra.mxu0 %v2687
        %2722 = vmatpush.msra.mxu0 %v2683
        %2723 = vmatpush.msra.mxu0 %v2679
        %2724 = vmatpush.msra.mxu0 %v2675
        %2725 = vmatpush.msra.mxu0 %v2671
        %2726 = vmatpush.msra.mxu0 %v2667
        %2727 = vmatpush.msra.mxu0 %v2663
        %2728 = vmatpush.msra.mxu0 %v2659
        %2729 = vmatpush.msra.mxu0 %v2655
        %2730 = vmatpush.msra.mxu0 %v2651
        %2731 = vmatmul.f32.gmra.mxu0 %v2649
        %v2732 = vpop.f32.mrf.mxu0
        %v2733 = vadd.f32 0.0, %v2732
        %2734 = vdwg.mxu0
        %2735 = vmatpush.msra.mxu0 %v2712
        %2736 = vmatpush.msra.mxu0 %v2708
        %2737 = vmatpush.msra.mxu0 %v2704
        %2738 = vmatpush.msra.mxu0 %v2700
        %2739 = vmatpush.msra.mxu0 %v2696
        %2740 = vmatpush.msra.mxu0 %v2692
        %2741 = vmatpush.msra.mxu0 %v2688
        %2742 = vmatpush.msra.mxu0 %v2684
        %2743 = vmatpush.msra.mxu0 %v2680
        %2744 = vmatpush.msra.mxu0 %v2676
        %2745 = vmatpush.msra.mxu0 %v2672
        %2746 = vmatpush.msra.mxu0 %v2668
        %2747 = vmatpush.msra.mxu0 %v2664
        %2748 = vmatpush.msra.mxu0 %v2660
        %2749 = vmatpush.msra.mxu0 %v2656
        %2750 = vmatpush.msra.mxu0 %v2652
        %2751 = vmatmul.f32.gmra.mxu0 %v2649
        %v2752 = vpop.f32.mrf.mxu0
        %v2753 = vadd.f32 0.0, %v2752
        %2754 = vdwg.mxu0
        %2755 = vmatpush.msra.mxu0 %v2713
        %2756 = vmatpush.msra.mxu0 %v2709
        %2757 = vmatpush.msra.mxu0 %v2705
        %2758 = vmatpush.msra.mxu0 %v2701
        %2759 = vmatpush.msra.mxu0 %v2697
        %2760 = vmatpush.msra.mxu0 %v2693
        %2761 = vmatpush.msra.mxu0 %v2689
        %2762 = vmatpush.msra.mxu0 %v2685
        %2763 = vmatpush.msra.mxu0 %v2681
        %2764 = vmatpush.msra.mxu0 %v2677
        %2765 = vmatpush.msra.mxu0 %v2673
        %2766 = vmatpush.msra.mxu0 %v2669
        %2767 = vmatpush.msra.mxu0 %v2665
        %2768 = vmatpush.msra.mxu0 %v2661
        %2769 = vmatpush.msra.mxu0 %v2657
        %2770 = vmatpush.msra.mxu0 %v2653
        %2771 = vmatmul.f32.gmra.mxu0 %v2649
        %v2772 = vpop.f32.mrf.mxu0
        %v2773 = vadd.f32 0.0, %v2772
        %2774 = vdwg.mxu0
        %2775 = vmatpush.msra.mxu0 %v2714
        %2776 = vmatpush.msra.mxu0 %v2710
        %2777 = vmatpush.msra.mxu0 %v2706
        %2778 = vmatpush.msra.mxu0 %v2702
        %2779 = vmatpush.msra.mxu0 %v2698
        %2780 = vmatpush.msra.mxu0 %v2694
        %2781 = vmatpush.msra.mxu0 %v2690
        %2782 = vmatpush.msra.mxu0 %v2686
        %2783 = vmatpush.msra.mxu0 %v2682
        %2784 = vmatpush.msra.mxu0 %v2678
        %2785 = vmatpush.msra.mxu0 %v2674
        %2786 = vmatpush.msra.mxu0 %v2670
        %2787 = vmatpush.msra.mxu0 %v2666
        %2788 = vmatpush.msra.mxu0 %v2662
        %2789 = vmatpush.msra.mxu0 %v2658
        %2790 = vmatpush.msra.mxu0 %v2654
        %2791 = vmatmul.f32.gmra.mxu0 %v2649
        %v2792 = vpop.f32.mrf.mxu0
        %v2793 = vadd.f32 0.0, %v2792
        %2794 = vdwg.mxu0
        %v2795 = vadd.f32 %v2645, %v2733
        %v2796 = vadd.f32 %v2646, %v2753
        %v2797 = vadd.f32 %v2647, %v2773
        %v2798 = vadd.f32 %v2648, %v2793
        %v2799 = vld [vmem:[#allocation2 + $0x8] sm:$0x3]
        %s2800 = scalar_lea.vmem %s465, 2048 [#allocation14]
        %v2801 = vld [vmem:[%s2800] sm:$0xff]
        %v2802 = vld [vmem:[%s2800 + $0x8] sm:$0xff]
        %v2803 = vld [vmem:[%s2800 + $0x10] sm:$0xff]
        %v2804 = vld [vmem:[%s2800 + $0x18] sm:$0xff]
        %v2805 = vld [vmem:[%s2800 + $0x20] sm:$0xff]
        %v2806 = vld [vmem:[%s2800 + $0x28] sm:$0xff]
        %v2807 = vld [vmem:[%s2800 + $0x30] sm:$0xff]
        %v2808 = vld [vmem:[%s2800 + $0x38] sm:$0xff]
        %v2809 = vld [vmem:[%s2800 + $0x40] sm:$0xff]
        %v2810 = vld [vmem:[%s2800 + $0x48] sm:$0xff]
        %v2811 = vld [vmem:[%s2800 + $0x50] sm:$0xff]
        %v2812 = vld [vmem:[%s2800 + $0x58] sm:$0xff]
        %v2813 = vld [vmem:[%s2800 + $0x60] sm:$0xff]
        %v2814 = vld [vmem:[%s2800 + $0x68] sm:$0xff]
        %v2815 = vld [vmem:[%s2800 + $0x70] sm:$0xff]
        %v2816 = vld [vmem:[%s2800 + $0x78] sm:$0xff]
        %v2817 = vld [vmem:[%s2800 + $0x80] sm:$0xff]
        %v2818 = vld [vmem:[%s2800 + $0x88] sm:$0xff]
        %v2819 = vld [vmem:[%s2800 + $0x90] sm:$0xff]
        %v2820 = vld [vmem:[%s2800 + $0x98] sm:$0xff]
        %v2821 = vld [vmem:[%s2800 + $0xa0] sm:$0xff]
        %v2822 = vld [vmem:[%s2800 + $0xa8] sm:$0xff]
        %v2823 = vld [vmem:[%s2800 + $0xb0] sm:$0xff]
        %v2824 = vld [vmem:[%s2800 + $0xb8] sm:$0xff]
        %v2825 = vld [vmem:[%s2800 + $0xc0] sm:$0xff]
        %v2826 = vld [vmem:[%s2800 + $0xc8] sm:$0xff]
        %v2827 = vld [vmem:[%s2800 + $0xd0] sm:$0xff]
        %v2828 = vld [vmem:[%s2800 + $0xd8] sm:$0xff]
        %v2829 = vld [vmem:[%s2800 + $0xe0] sm:$0xff]
        %v2830 = vld [vmem:[%s2800 + $0xe8] sm:$0xff]
        %v2831 = vld [vmem:[%s2800 + $0xf0] sm:$0xff]
        %v2832 = vld [vmem:[%s2800 + $0xf8] sm:$0xff]
        %v2833 = vld [vmem:[%s2800 + $0x100] sm:$0xff]
        %v2834 = vld [vmem:[%s2800 + $0x108] sm:$0xff]
        %v2835 = vld [vmem:[%s2800 + $0x110] sm:$0xff]
        %v2836 = vld [vmem:[%s2800 + $0x118] sm:$0xff]
        %v2837 = vld [vmem:[%s2800 + $0x120] sm:$0xff]
        %v2838 = vld [vmem:[%s2800 + $0x128] sm:$0xff]
        %v2839 = vld [vmem:[%s2800 + $0x130] sm:$0xff]
        %v2840 = vld [vmem:[%s2800 + $0x138] sm:$0xff]
        %v2841 = vld [vmem:[%s2800 + $0x140] sm:$0xff]
        %v2842 = vld [vmem:[%s2800 + $0x148] sm:$0xff]
        %v2843 = vld [vmem:[%s2800 + $0x150] sm:$0xff]
        %v2844 = vld [vmem:[%s2800 + $0x158] sm:$0xff]
        %v2845 = vld [vmem:[%s2800 + $0x160] sm:$0xff]
        %v2846 = vld [vmem:[%s2800 + $0x168] sm:$0xff]
        %v2847 = vld [vmem:[%s2800 + $0x170] sm:$0xff]
        %v2848 = vld [vmem:[%s2800 + $0x178] sm:$0xff]
        %v2849 = vld [vmem:[%s2800 + $0x180] sm:$0xff]
        %v2850 = vld [vmem:[%s2800 + $0x188] sm:$0xff]
        %v2851 = vld [vmem:[%s2800 + $0x190] sm:$0xff]
        %v2852 = vld [vmem:[%s2800 + $0x198] sm:$0xff]
        %v2853 = vld [vmem:[%s2800 + $0x1a0] sm:$0xff]
        %v2854 = vld [vmem:[%s2800 + $0x1a8] sm:$0xff]
        %v2855 = vld [vmem:[%s2800 + $0x1b0] sm:$0xff]
        %v2856 = vld [vmem:[%s2800 + $0x1b8] sm:$0xff]
        %v2857 = vld [vmem:[%s2800 + $0x1c0] sm:$0xff]
        %v2858 = vld [vmem:[%s2800 + $0x1c8] sm:$0xff]
        %v2859 = vld [vmem:[%s2800 + $0x1d0] sm:$0xff]
        %v2860 = vld [vmem:[%s2800 + $0x1d8] sm:$0xff]
        %v2861 = vld [vmem:[%s2800 + $0x1e0] sm:$0xff]
        %v2862 = vld [vmem:[%s2800 + $0x1e8] sm:$0xff]
        %v2863 = vld [vmem:[%s2800 + $0x1f0] sm:$0xff]
        %v2864 = vld [vmem:[%s2800 + $0x1f8] sm:$0xff]
        %2865 = vmatpush.msra.mxu0 %v2861
        %2866 = vmatpush.msra.mxu0 %v2857
        %2867 = vmatpush.msra.mxu0 %v2853
        %2868 = vmatpush.msra.mxu0 %v2849
        %2869 = vmatpush.msra.mxu0 %v2845
        %2870 = vmatpush.msra.mxu0 %v2841
        %2871 = vmatpush.msra.mxu0 %v2837
        %2872 = vmatpush.msra.mxu0 %v2833
        %2873 = vmatpush.msra.mxu0 %v2829
        %2874 = vmatpush.msra.mxu0 %v2825
        %2875 = vmatpush.msra.mxu0 %v2821
        %2876 = vmatpush.msra.mxu0 %v2817
        %2877 = vmatpush.msra.mxu0 %v2813
        %2878 = vmatpush.msra.mxu0 %v2809
        %2879 = vmatpush.msra.mxu0 %v2805
        %2880 = vmatpush.msra.mxu0 %v2801
        %2881 = vmatmul.f32.gmra.mxu0 %v2799
        %v2882 = vpop.f32.mrf.mxu0
        %v2883 = vadd.f32 0.0, %v2882
        %2884 = vdwg.mxu0
        %2885 = vmatpush.msra.mxu0 %v2862
        %2886 = vmatpush.msra.mxu0 %v2858
        %2887 = vmatpush.msra.mxu0 %v2854
        %2888 = vmatpush.msra.mxu0 %v2850
        %2889 = vmatpush.msra.mxu0 %v2846
        %2890 = vmatpush.msra.mxu0 %v2842
        %2891 = vmatpush.msra.mxu0 %v2838
        %2892 = vmatpush.msra.mxu0 %v2834
        %2893 = vmatpush.msra.mxu0 %v2830
        %2894 = vmatpush.msra.mxu0 %v2826
        %2895 = vmatpush.msra.mxu0 %v2822
        %2896 = vmatpush.msra.mxu0 %v2818
        %2897 = vmatpush.msra.mxu0 %v2814
        %2898 = vmatpush.msra.mxu0 %v2810
        %2899 = vmatpush.msra.mxu0 %v2806
        %2900 = vmatpush.msra.mxu0 %v2802
        %2901 = vmatmul.f32.gmra.mxu0 %v2799
        %v2902 = vpop.f32.mrf.mxu0
        %v2903 = vadd.f32 0.0, %v2902
        %2904 = vdwg.mxu0
        %2905 = vmatpush.msra.mxu0 %v2863
        %2906 = vmatpush.msra.mxu0 %v2859
        %2907 = vmatpush.msra.mxu0 %v2855
        %2908 = vmatpush.msra.mxu0 %v2851
        %2909 = vmatpush.msra.mxu0 %v2847
        %2910 = vmatpush.msra.mxu0 %v2843
        %2911 = vmatpush.msra.mxu0 %v2839
        %2912 = vmatpush.msra.mxu0 %v2835
        %2913 = vmatpush.msra.mxu0 %v2831
        %2914 = vmatpush.msra.mxu0 %v2827
        %2915 = vmatpush.msra.mxu0 %v2823
        %2916 = vmatpush.msra.mxu0 %v2819
        %2917 = vmatpush.msra.mxu0 %v2815
        %2918 = vmatpush.msra.mxu0 %v2811
        %2919 = vmatpush.msra.mxu0 %v2807
        %2920 = vmatpush.msra.mxu0 %v2803
        %2921 = vmatmul.f32.gmra.mxu0 %v2799
        %v2922 = vpop.f32.mrf.mxu0
        %v2923 = vadd.f32 0.0, %v2922
        %2924 = vdwg.mxu0
        %2925 = vmatpush.msra.mxu0 %v2864
        %2926 = vmatpush.msra.mxu0 %v2860
        %2927 = vmatpush.msra.mxu0 %v2856
        %2928 = vmatpush.msra.mxu0 %v2852
        %2929 = vmatpush.msra.mxu0 %v2848
        %2930 = vmatpush.msra.mxu0 %v2844
        %2931 = vmatpush.msra.mxu0 %v2840
        %2932 = vmatpush.msra.mxu0 %v2836
        %2933 = vmatpush.msra.mxu0 %v2832
        %2934 = vmatpush.msra.mxu0 %v2828
        %2935 = vmatpush.msra.mxu0 %v2824
        %2936 = vmatpush.msra.mxu0 %v2820
        %2937 = vmatpush.msra.mxu0 %v2816
        %2938 = vmatpush.msra.mxu0 %v2812
        %2939 = vmatpush.msra.mxu0 %v2808
        %2940 = vmatpush.msra.mxu0 %v2804
        %2941 = vmatmul.f32.gmra.mxu0 %v2799
        %v2942 = vpop.f32.mrf.mxu0
        %v2943 = vadd.f32 0.0, %v2942
        %2944 = vdwg.mxu0
        %v2945 = vadd.f32 %v2795, %v2883
        %v2946 = vadd.f32 %v2796, %v2903
        %v2947 = vadd.f32 %v2797, %v2923
        %v2948 = vadd.f32 %v2798, %v2943
        %v2949 = vld [vmem:[#allocation2 + $0xa] sm:$0x3]
        %s2950 = scalar_lea.vmem %s465, 2560 [#allocation14]
        %v2951 = vld [vmem:[%s2950] sm:$0xff]
        %v2952 = vld [vmem:[%s2950 + $0x8] sm:$0xff]
        %v2953 = vld [vmem:[%s2950 + $0x10] sm:$0xff]
        %v2954 = vld [vmem:[%s2950 + $0x18] sm:$0xff]
        %v2955 = vld [vmem:[%s2950 + $0x20] sm:$0xff]
        %v2956 = vld [vmem:[%s2950 + $0x28] sm:$0xff]
        %v2957 = vld [vmem:[%s2950 + $0x30] sm:$0xff]
        %v2958 = vld [vmem:[%s2950 + $0x38] sm:$0xff]
        %v2959 = vld [vmem:[%s2950 + $0x40] sm:$0xff]
        %v2960 = vld [vmem:[%s2950 + $0x48] sm:$0xff]
        %v2961 = vld [vmem:[%s2950 + $0x50] sm:$0xff]
        %v2962 = vld [vmem:[%s2950 + $0x58] sm:$0xff]
        %v2963 = vld [vmem:[%s2950 + $0x60] sm:$0xff]
        %v2964 = vld [vmem:[%s2950 + $0x68] sm:$0xff]
        %v2965 = vld [vmem:[%s2950 + $0x70] sm:$0xff]
        %v2966 = vld [vmem:[%s2950 + $0x78] sm:$0xff]
        %v2967 = vld [vmem:[%s2950 + $0x80] sm:$0xff]
        %v2968 = vld [vmem:[%s2950 + $0x88] sm:$0xff]
        %v2969 = vld [vmem:[%s2950 + $0x90] sm:$0xff]
        %v2970 = vld [vmem:[%s2950 + $0x98] sm:$0xff]
        %v2971 = vld [vmem:[%s2950 + $0xa0] sm:$0xff]
        %v2972 = vld [vmem:[%s2950 + $0xa8] sm:$0xff]
        %v2973 = vld [vmem:[%s2950 + $0xb0] sm:$0xff]
        %v2974 = vld [vmem:[%s2950 + $0xb8] sm:$0xff]
        %v2975 = vld [vmem:[%s2950 + $0xc0] sm:$0xff]
        %v2976 = vld [vmem:[%s2950 + $0xc8] sm:$0xff]
        %v2977 = vld [vmem:[%s2950 + $0xd0] sm:$0xff]
        %v2978 = vld [vmem:[%s2950 + $0xd8] sm:$0xff]
        %v2979 = vld [vmem:[%s2950 + $0xe0] sm:$0xff]
        %v2980 = vld [vmem:[%s2950 + $0xe8] sm:$0xff]
        %v2981 = vld [vmem:[%s2950 + $0xf0] sm:$0xff]
        %v2982 = vld [vmem:[%s2950 + $0xf8] sm:$0xff]
        %v2983 = vld [vmem:[%s2950 + $0x100] sm:$0xff]
        %v2984 = vld [vmem:[%s2950 + $0x108] sm:$0xff]
        %v2985 = vld [vmem:[%s2950 + $0x110] sm:$0xff]
        %v2986 = vld [vmem:[%s2950 + $0x118] sm:$0xff]
        %v2987 = vld [vmem:[%s2950 + $0x120] sm:$0xff]
        %v2988 = vld [vmem:[%s2950 + $0x128] sm:$0xff]
        %v2989 = vld [vmem:[%s2950 + $0x130] sm:$0xff]
        %v2990 = vld [vmem:[%s2950 + $0x138] sm:$0xff]
        %v2991 = vld [vmem:[%s2950 + $0x140] sm:$0xff]
        %v2992 = vld [vmem:[%s2950 + $0x148] sm:$0xff]
        %v2993 = vld [vmem:[%s2950 + $0x150] sm:$0xff]
        %v2994 = vld [vmem:[%s2950 + $0x158] sm:$0xff]
        %v2995 = vld [vmem:[%s2950 + $0x160] sm:$0xff]
        %v2996 = vld [vmem:[%s2950 + $0x168] sm:$0xff]
        %v2997 = vld [vmem:[%s2950 + $0x170] sm:$0xff]
        %v2998 = vld [vmem:[%s2950 + $0x178] sm:$0xff]
        %v2999 = vld [vmem:[%s2950 + $0x180] sm:$0xff]
        %v3000 = vld [vmem:[%s2950 + $0x188] sm:$0xff]
        %v3001 = vld [vmem:[%s2950 + $0x190] sm:$0xff]
        %v3002 = vld [vmem:[%s2950 + $0x198] sm:$0xff]
        %v3003 = vld [vmem:[%s2950 + $0x1a0] sm:$0xff]
        %v3004 = vld [vmem:[%s2950 + $0x1a8] sm:$0xff]
        %v3005 = vld [vmem:[%s2950 + $0x1b0] sm:$0xff]
        %v3006 = vld [vmem:[%s2950 + $0x1b8] sm:$0xff]
        %v3007 = vld [vmem:[%s2950 + $0x1c0] sm:$0xff]
        %v3008 = vld [vmem:[%s2950 + $0x1c8] sm:$0xff]
        %v3009 = vld [vmem:[%s2950 + $0x1d0] sm:$0xff]
        %v3010 = vld [vmem:[%s2950 + $0x1d8] sm:$0xff]
        %v3011 = vld [vmem:[%s2950 + $0x1e0] sm:$0xff]
        %v3012 = vld [vmem:[%s2950 + $0x1e8] sm:$0xff]
        %v3013 = vld [vmem:[%s2950 + $0x1f0] sm:$0xff]
        %v3014 = vld [vmem:[%s2950 + $0x1f8] sm:$0xff]
        %3015 = vmatpush.msra.mxu0 %v3011
        %3016 = vmatpush.msra.mxu0 %v3007
        %3017 = vmatpush.msra.mxu0 %v3003
        %3018 = vmatpush.msra.mxu0 %v2999
        %3019 = vmatpush.msra.mxu0 %v2995
        %3020 = vmatpush.msra.mxu0 %v2991
        %3021 = vmatpush.msra.mxu0 %v2987
        %3022 = vmatpush.msra.mxu0 %v2983
        %3023 = vmatpush.msra.mxu0 %v2979
        %3024 = vmatpush.msra.mxu0 %v2975
        %3025 = vmatpush.msra.mxu0 %v2971
        %3026 = vmatpush.msra.mxu0 %v2967
        %3027 = vmatpush.msra.mxu0 %v2963
        %3028 = vmatpush.msra.mxu0 %v2959
        %3029 = vmatpush.msra.mxu0 %v2955
        %3030 = vmatpush.msra.mxu0 %v2951
        %3031 = vmatmul.f32.gmra.mxu0 %v2949
        %v3032 = vpop.f32.mrf.mxu0
        %v3033 = vadd.f32 0.0, %v3032
        %3034 = vdwg.mxu0
        %3035 = vmatpush.msra.mxu0 %v3012
        %3036 = vmatpush.msra.mxu0 %v3008
        %3037 = vmatpush.msra.mxu0 %v3004
        %3038 = vmatpush.msra.mxu0 %v3000
        %3039 = vmatpush.msra.mxu0 %v2996
        %3040 = vmatpush.msra.mxu0 %v2992
        %3041 = vmatpush.msra.mxu0 %v2988
        %3042 = vmatpush.msra.mxu0 %v2984
        %3043 = vmatpush.msra.mxu0 %v2980
        %3044 = vmatpush.msra.mxu0 %v2976
        %3045 = vmatpush.msra.mxu0 %v2972
        %3046 = vmatpush.msra.mxu0 %v2968
        %3047 = vmatpush.msra.mxu0 %v2964
        %3048 = vmatpush.msra.mxu0 %v2960
        %3049 = vmatpush.msra.mxu0 %v2956
        %3050 = vmatpush.msra.mxu0 %v2952
        %3051 = vmatmul.f32.gmra.mxu0 %v2949
        %v3052 = vpop.f32.mrf.mxu0
        %v3053 = vadd.f32 0.0, %v3052
        %3054 = vdwg.mxu0
        %3055 = vmatpush.msra.mxu0 %v3013
        %3056 = vmatpush.msra.mxu0 %v3009
        %3057 = vmatpush.msra.mxu0 %v3005
        %3058 = vmatpush.msra.mxu0 %v3001
        %3059 = vmatpush.msra.mxu0 %v2997
        %3060 = vmatpush.msra.mxu0 %v2993
        %3061 = vmatpush.msra.mxu0 %v2989
        %3062 = vmatpush.msra.mxu0 %v2985
        %3063 = vmatpush.msra.mxu0 %v2981
        %3064 = vmatpush.msra.mxu0 %v2977
        %3065 = vmatpush.msra.mxu0 %v2973
        %3066 = vmatpush.msra.mxu0 %v2969
        %3067 = vmatpush.msra.mxu0 %v2965
        %3068 = vmatpush.msra.mxu0 %v2961
        %3069 = vmatpush.msra.mxu0 %v2957
        %3070 = vmatpush.msra.mxu0 %v2953
        %3071 = vmatmul.f32.gmra.mxu0 %v2949
        %v3072 = vpop.f32.mrf.mxu0
        %v3073 = vadd.f32 0.0, %v3072
        %3074 = vdwg.mxu0
        %3075 = vmatpush.msra.mxu0 %v3014
        %3076 = vmatpush.msra.mxu0 %v3010
        %3077 = vmatpush.msra.mxu0 %v3006
        %3078 = vmatpush.msra.mxu0 %v3002
        %3079 = vmatpush.msra.mxu0 %v2998
        %3080 = vmatpush.msra.mxu0 %v2994
        %3081 = vmatpush.msra.mxu0 %v2990
        %3082 = vmatpush.msra.mxu0 %v2986
        %3083 = vmatpush.msra.mxu0 %v2982
        %3084 = vmatpush.msra.mxu0 %v2978
        %3085 = vmatpush.msra.mxu0 %v2974
        %3086 = vmatpush.msra.mxu0 %v2970
        %3087 = vmatpush.msra.mxu0 %v2966
        %3088 = vmatpush.msra.mxu0 %v2962
        %3089 = vmatpush.msra.mxu0 %v2958
        %3090 = vmatpush.msra.mxu0 %v2954
        %3091 = vmatmul.f32.gmra.mxu0 %v2949
        %v3092 = vpop.f32.mrf.mxu0
        %v3093 = vadd.f32 0.0, %v3092
        %3094 = vdwg.mxu0
        %v3095 = vadd.f32 %v2945, %v3033
        %v3096 = vadd.f32 %v2946, %v3053
        %v3097 = vadd.f32 %v2947, %v3073
        %v3098 = vadd.f32 %v2948, %v3093
        %v3099 = vld [vmem:[#allocation2 + $0xc] sm:$0x3]
        %s3100 = scalar_lea.vmem %s465, 3072 [#allocation14]
        %v3101 = vld [vmem:[%s3100] sm:$0xff]
        %v3102 = vld [vmem:[%s3100 + $0x8] sm:$0xff]
        %v3103 = vld [vmem:[%s3100 + $0x10] sm:$0xff]
        %v3104 = vld [vmem:[%s3100 + $0x18] sm:$0xff]
        %v3105 = vld [vmem:[%s3100 + $0x20] sm:$0xff]
        %v3106 = vld [vmem:[%s3100 + $0x28] sm:$0xff]
        %v3107 = vld [vmem:[%s3100 + $0x30] sm:$0xff]
        %v3108 = vld [vmem:[%s3100 + $0x38] sm:$0xff]
        %v3109 = vld [vmem:[%s3100 + $0x40] sm:$0xff]
        %v3110 = vld [vmem:[%s3100 + $0x48] sm:$0xff]
        %v3111 = vld [vmem:[%s3100 + $0x50] sm:$0xff]
        %v3112 = vld [vmem:[%s3100 + $0x58] sm:$0xff]
        %v3113 = vld [vmem:[%s3100 + $0x60] sm:$0xff]
        %v3114 = vld [vmem:[%s3100 + $0x68] sm:$0xff]
        %v3115 = vld [vmem:[%s3100 + $0x70] sm:$0xff]
        %v3116 = vld [vmem:[%s3100 + $0x78] sm:$0xff]
        %v3117 = vld [vmem:[%s3100 + $0x80] sm:$0xff]
        %v3118 = vld [vmem:[%s3100 + $0x88] sm:$0xff]
        %v3119 = vld [vmem:[%s3100 + $0x90] sm:$0xff]
        %v3120 = vld [vmem:[%s3100 + $0x98] sm:$0xff]
        %v3121 = vld [vmem:[%s3100 + $0xa0] sm:$0xff]
        %v3122 = vld [vmem:[%s3100 + $0xa8] sm:$0xff]
        %v3123 = vld [vmem:[%s3100 + $0xb0] sm:$0xff]
        %v3124 = vld [vmem:[%s3100 + $0xb8] sm:$0xff]
        %v3125 = vld [vmem:[%s3100 + $0xc0] sm:$0xff]
        %v3126 = vld [vmem:[%s3100 + $0xc8] sm:$0xff]
        %v3127 = vld [vmem:[%s3100 + $0xd0] sm:$0xff]
        %v3128 = vld [vmem:[%s3100 + $0xd8] sm:$0xff]
        %v3129 = vld [vmem:[%s3100 + $0xe0] sm:$0xff]
        %v3130 = vld [vmem:[%s3100 + $0xe8] sm:$0xff]
        %v3131 = vld [vmem:[%s3100 + $0xf0] sm:$0xff]
        %v3132 = vld [vmem:[%s3100 + $0xf8] sm:$0xff]
        %v3133 = vld [vmem:[%s3100 + $0x100] sm:$0xff]
        %v3134 = vld [vmem:[%s3100 + $0x108] sm:$0xff]
        %v3135 = vld [vmem:[%s3100 + $0x110] sm:$0xff]
        %v3136 = vld [vmem:[%s3100 + $0x118] sm:$0xff]
        %v3137 = vld [vmem:[%s3100 + $0x120] sm:$0xff]
        %v3138 = vld [vmem:[%s3100 + $0x128] sm:$0xff]
        %v3139 = vld [vmem:[%s3100 + $0x130] sm:$0xff]
        %v3140 = vld [vmem:[%s3100 + $0x138] sm:$0xff]
        %v3141 = vld [vmem:[%s3100 + $0x140] sm:$0xff]
        %v3142 = vld [vmem:[%s3100 + $0x148] sm:$0xff]
        %v3143 = vld [vmem:[%s3100 + $0x150] sm:$0xff]
        %v3144 = vld [vmem:[%s3100 + $0x158] sm:$0xff]
        %v3145 = vld [vmem:[%s3100 + $0x160] sm:$0xff]
        %v3146 = vld [vmem:[%s3100 + $0x168] sm:$0xff]
        %v3147 = vld [vmem:[%s3100 + $0x170] sm:$0xff]
        %v3148 = vld [vmem:[%s3100 + $0x178] sm:$0xff]
        %v3149 = vld [vmem:[%s3100 + $0x180] sm:$0xff]
        %v3150 = vld [vmem:[%s3100 + $0x188] sm:$0xff]
        %v3151 = vld [vmem:[%s3100 + $0x190] sm:$0xff]
        %v3152 = vld [vmem:[%s3100 + $0x198] sm:$0xff]
        %v3153 = vld [vmem:[%s3100 + $0x1a0] sm:$0xff]
        %v3154 = vld [vmem:[%s3100 + $0x1a8] sm:$0xff]
        %v3155 = vld [vmem:[%s3100 + $0x1b0] sm:$0xff]
        %v3156 = vld [vmem:[%s3100 + $0x1b8] sm:$0xff]
        %v3157 = vld [vmem:[%s3100 + $0x1c0] sm:$0xff]
        %v3158 = vld [vmem:[%s3100 + $0x1c8] sm:$0xff]
        %v3159 = vld [vmem:[%s3100 + $0x1d0] sm:$0xff]
        %v3160 = vld [vmem:[%s3100 + $0x1d8] sm:$0xff]
        %v3161 = vld [vmem:[%s3100 + $0x1e0] sm:$0xff]
        %v3162 = vld [vmem:[%s3100 + $0x1e8] sm:$0xff]
        %v3163 = vld [vmem:[%s3100 + $0x1f0] sm:$0xff]
        %v3164 = vld [vmem:[%s3100 + $0x1f8] sm:$0xff]
        %3165 = vmatpush.msra.mxu0 %v3161
        %3166 = vmatpush.msra.mxu0 %v3157
        %3167 = vmatpush.msra.mxu0 %v3153
        %3168 = vmatpush.msra.mxu0 %v3149
        %3169 = vmatpush.msra.mxu0 %v3145
        %3170 = vmatpush.msra.mxu0 %v3141
        %3171 = vmatpush.msra.mxu0 %v3137
        %3172 = vmatpush.msra.mxu0 %v3133
        %3173 = vmatpush.msra.mxu0 %v3129
        %3174 = vmatpush.msra.mxu0 %v3125
        %3175 = vmatpush.msra.mxu0 %v3121
        %3176 = vmatpush.msra.mxu0 %v3117
        %3177 = vmatpush.msra.mxu0 %v3113
        %3178 = vmatpush.msra.mxu0 %v3109
        %3179 = vmatpush.msra.mxu0 %v3105
        %3180 = vmatpush.msra.mxu0 %v3101
        %3181 = vmatmul.f32.gmra.mxu0 %v3099
        %v3182 = vpop.f32.mrf.mxu0
        %v3183 = vadd.f32 0.0, %v3182
        %3184 = vdwg.mxu0
        %3185 = vmatpush.msra.mxu0 %v3162
        %3186 = vmatpush.msra.mxu0 %v3158
        %3187 = vmatpush.msra.mxu0 %v3154
        %3188 = vmatpush.msra.mxu0 %v3150
        %3189 = vmatpush.msra.mxu0 %v3146
        %3190 = vmatpush.msra.mxu0 %v3142
        %3191 = vmatpush.msra.mxu0 %v3138
        %3192 = vmatpush.msra.mxu0 %v3134
        %3193 = vmatpush.msra.mxu0 %v3130
        %3194 = vmatpush.msra.mxu0 %v3126
        %3195 = vmatpush.msra.mxu0 %v3122
        %3196 = vmatpush.msra.mxu0 %v3118
        %3197 = vmatpush.msra.mxu0 %v3114
        %3198 = vmatpush.msra.mxu0 %v3110
        %3199 = vmatpush.msra.mxu0 %v3106
        %3200 = vmatpush.msra.mxu0 %v3102
        %3201 = vmatmul.f32.gmra.mxu0 %v3099
        %v3202 = vpop.f32.mrf.mxu0
        %v3203 = vadd.f32 0.0, %v3202
        %3204 = vdwg.mxu0
        %3205 = vmatpush.msra.mxu0 %v3163
        %3206 = vmatpush.msra.mxu0 %v3159
        %3207 = vmatpush.msra.mxu0 %v3155
        %3208 = vmatpush.msra.mxu0 %v3151
        %3209 = vmatpush.msra.mxu0 %v3147
        %3210 = vmatpush.msra.mxu0 %v3143
        %3211 = vmatpush.msra.mxu0 %v3139
        %3212 = vmatpush.msra.mxu0 %v3135
        %3213 = vmatpush.msra.mxu0 %v3131
        %3214 = vmatpush.msra.mxu0 %v3127
        %3215 = vmatpush.msra.mxu0 %v3123
        %3216 = vmatpush.msra.mxu0 %v3119
        %3217 = vmatpush.msra.mxu0 %v3115
        %3218 = vmatpush.msra.mxu0 %v3111
        %3219 = vmatpush.msra.mxu0 %v3107
        %3220 = vmatpush.msra.mxu0 %v3103
        %3221 = vmatmul.f32.gmra.mxu0 %v3099
        %v3222 = vpop.f32.mrf.mxu0
        %v3223 = vadd.f32 0.0, %v3222
        %3224 = vdwg.mxu0
        %3225 = vmatpush.msra.mxu0 %v3164
        %3226 = vmatpush.msra.mxu0 %v3160
        %3227 = vmatpush.msra.mxu0 %v3156
        %3228 = vmatpush.msra.mxu0 %v3152
        %3229 = vmatpush.msra.mxu0 %v3148
        %3230 = vmatpush.msra.mxu0 %v3144
        %3231 = vmatpush.msra.mxu0 %v3140
        %3232 = vmatpush.msra.mxu0 %v3136
        %3233 = vmatpush.msra.mxu0 %v3132
        %3234 = vmatpush.msra.mxu0 %v3128
        %3235 = vmatpush.msra.mxu0 %v3124
        %3236 = vmatpush.msra.mxu0 %v3120
        %3237 = vmatpush.msra.mxu0 %v3116
        %3238 = vmatpush.msra.mxu0 %v3112
        %3239 = vmatpush.msra.mxu0 %v3108
        %3240 = vmatpush.msra.mxu0 %v3104
        %3241 = vmatmul.f32.gmra.mxu0 %v3099
        %v3242 = vpop.f32.mrf.mxu0
        %v3243 = vadd.f32 0.0, %v3242
        %3244 = vdwg.mxu0
        %v3245 = vadd.f32 %v3095, %v3183
        %v3246 = vadd.f32 %v3096, %v3203
        %v3247 = vadd.f32 %v3097, %v3223
        %v3248 = vadd.f32 %v3098, %v3243
        %v3249 = vld [vmem:[#allocation2 + $0xe] sm:$0x3]
        %s3250 = scalar_lea.vmem %s465, 3584 [#allocation14]
        %v3251 = vld [vmem:[%s3250] sm:$0xff]
        %v3252 = vld [vmem:[%s3250 + $0x8] sm:$0xff]
        %v3253 = vld [vmem:[%s3250 + $0x10] sm:$0xff]
        %v3254 = vld [vmem:[%s3250 + $0x18] sm:$0xff]
        %v3255 = vld [vmem:[%s3250 + $0x20] sm:$0xff]
        %v3256 = vld [vmem:[%s3250 + $0x28] sm:$0xff]
        %v3257 = vld [vmem:[%s3250 + $0x30] sm:$0xff]
        %v3258 = vld [vmem:[%s3250 + $0x38] sm:$0xff]
        %v3259 = vld [vmem:[%s3250 + $0x40] sm:$0xff]
        %v3260 = vld [vmem:[%s3250 + $0x48] sm:$0xff]
        %v3261 = vld [vmem:[%s3250 + $0x50] sm:$0xff]
        %v3262 = vld [vmem:[%s3250 + $0x58] sm:$0xff]
        %v3263 = vld [vmem:[%s3250 + $0x60] sm:$0xff]
        %v3264 = vld [vmem:[%s3250 + $0x68] sm:$0xff]
        %v3265 = vld [vmem:[%s3250 + $0x70] sm:$0xff]
        %v3266 = vld [vmem:[%s3250 + $0x78] sm:$0xff]
        %v3267 = vld [vmem:[%s3250 + $0x80] sm:$0xff]
        %v3268 = vld [vmem:[%s3250 + $0x88] sm:$0xff]
        %v3269 = vld [vmem:[%s3250 + $0x90] sm:$0xff]
        %v3270 = vld [vmem:[%s3250 + $0x98] sm:$0xff]
        %v3271 = vld [vmem:[%s3250 + $0xa0] sm:$0xff]
        %v3272 = vld [vmem:[%s3250 + $0xa8] sm:$0xff]
        %v3273 = vld [vmem:[%s3250 + $0xb0] sm:$0xff]
        %v3274 = vld [vmem:[%s3250 + $0xb8] sm:$0xff]
        %v3275 = vld [vmem:[%s3250 + $0xc0] sm:$0xff]
        %v3276 = vld [vmem:[%s3250 + $0xc8] sm:$0xff]
        %v3277 = vld [vmem:[%s3250 + $0xd0] sm:$0xff]
        %v3278 = vld [vmem:[%s3250 + $0xd8] sm:$0xff]
        %v3279 = vld [vmem:[%s3250 + $0xe0] sm:$0xff]
        %v3280 = vld [vmem:[%s3250 + $0xe8] sm:$0xff]
        %v3281 = vld [vmem:[%s3250 + $0xf0] sm:$0xff]
        %v3282 = vld [vmem:[%s3250 + $0xf8] sm:$0xff]
        %v3283 = vld [vmem:[%s3250 + $0x100] sm:$0xff]
        %v3284 = vld [vmem:[%s3250 + $0x108] sm:$0xff]
        %v3285 = vld [vmem:[%s3250 + $0x110] sm:$0xff]
        %v3286 = vld [vmem:[%s3250 + $0x118] sm:$0xff]
        %v3287 = vld [vmem:[%s3250 + $0x120] sm:$0xff]
        %v3288 = vld [vmem:[%s3250 + $0x128] sm:$0xff]
        %v3289 = vld [vmem:[%s3250 + $0x130] sm:$0xff]
        %v3290 = vld [vmem:[%s3250 + $0x138] sm:$0xff]
        %v3291 = vld [vmem:[%s3250 + $0x140] sm:$0xff]
        %v3292 = vld [vmem:[%s3250 + $0x148] sm:$0xff]
        %v3293 = vld [vmem:[%s3250 + $0x150] sm:$0xff]
        %v3294 = vld [vmem:[%s3250 + $0x158] sm:$0xff]
        %v3295 = vld [vmem:[%s3250 + $0x160] sm:$0xff]
        %v3296 = vld [vmem:[%s3250 + $0x168] sm:$0xff]
        %v3297 = vld [vmem:[%s3250 + $0x170] sm:$0xff]
        %v3298 = vld [vmem:[%s3250 + $0x178] sm:$0xff]
        %v3299 = vld [vmem:[%s3250 + $0x180] sm:$0xff]
        %v3300 = vld [vmem:[%s3250 + $0x188] sm:$0xff]
        %v3301 = vld [vmem:[%s3250 + $0x190] sm:$0xff]
        %v3302 = vld [vmem:[%s3250 + $0x198] sm:$0xff]
        %v3303 = vld [vmem:[%s3250 + $0x1a0] sm:$0xff]
        %v3304 = vld [vmem:[%s3250 + $0x1a8] sm:$0xff]
        %v3305 = vld [vmem:[%s3250 + $0x1b0] sm:$0xff]
        %v3306 = vld [vmem:[%s3250 + $0x1b8] sm:$0xff]
        %v3307 = vld [vmem:[%s3250 + $0x1c0] sm:$0xff]
        %v3308 = vld [vmem:[%s3250 + $0x1c8] sm:$0xff]
        %v3309 = vld [vmem:[%s3250 + $0x1d0] sm:$0xff]
        %v3310 = vld [vmem:[%s3250 + $0x1d8] sm:$0xff]
        %v3311 = vld [vmem:[%s3250 + $0x1e0] sm:$0xff]
        %v3312 = vld [vmem:[%s3250 + $0x1e8] sm:$0xff]
        %v3313 = vld [vmem:[%s3250 + $0x1f0] sm:$0xff]
        %v3314 = vld [vmem:[%s3250 + $0x1f8] sm:$0xff]
        %3315 = vmatpush.msra.mxu0 %v3311
        %3316 = vmatpush.msra.mxu0 %v3307
        %3317 = vmatpush.msra.mxu0 %v3303
        %3318 = vmatpush.msra.mxu0 %v3299
        %3319 = vmatpush.msra.mxu0 %v3295
        %3320 = vmatpush.msra.mxu0 %v3291
        %3321 = vmatpush.msra.mxu0 %v3287
        %3322 = vmatpush.msra.mxu0 %v3283
        %3323 = vmatpush.msra.mxu0 %v3279
        %3324 = vmatpush.msra.mxu0 %v3275
        %3325 = vmatpush.msra.mxu0 %v3271
        %3326 = vmatpush.msra.mxu0 %v3267
        %3327 = vmatpush.msra.mxu0 %v3263
        %3328 = vmatpush.msra.mxu0 %v3259
        %3329 = vmatpush.msra.mxu0 %v3255
        %3330 = vmatpush.msra.mxu0 %v3251
        %3331 = vmatmul.f32.gmra.mxu0 %v3249
        %v3332 = vpop.f32.mrf.mxu0
        %v3333 = vadd.f32 0.0, %v3332
        %3334 = vdwg.mxu0
        %3335 = vmatpush.msra.mxu0 %v3312
        %3336 = vmatpush.msra.mxu0 %v3308
        %3337 = vmatpush.msra.mxu0 %v3304
        %3338 = vmatpush.msra.mxu0 %v3300
        %3339 = vmatpush.msra.mxu0 %v3296
        %3340 = vmatpush.msra.mxu0 %v3292
        %3341 = vmatpush.msra.mxu0 %v3288
        %3342 = vmatpush.msra.mxu0 %v3284
        %3343 = vmatpush.msra.mxu0 %v3280
        %3344 = vmatpush.msra.mxu0 %v3276
        %3345 = vmatpush.msra.mxu0 %v3272
        %3346 = vmatpush.msra.mxu0 %v3268
        %3347 = vmatpush.msra.mxu0 %v3264
        %3348 = vmatpush.msra.mxu0 %v3260
        %3349 = vmatpush.msra.mxu0 %v3256
        %3350 = vmatpush.msra.mxu0 %v3252
        %3351 = vmatmul.f32.gmra.mxu0 %v3249
        %v3352 = vpop.f32.mrf.mxu0
        %v3353 = vadd.f32 0.0, %v3352
        %3354 = vdwg.mxu0
        %3355 = vmatpush.msra.mxu0 %v3313
        %3356 = vmatpush.msra.mxu0 %v3309
        %3357 = vmatpush.msra.mxu0 %v3305
        %3358 = vmatpush.msra.mxu0 %v3301
        %3359 = vmatpush.msra.mxu0 %v3297
        %3360 = vmatpush.msra.mxu0 %v3293
        %3361 = vmatpush.msra.mxu0 %v3289
        %3362 = vmatpush.msra.mxu0 %v3285
        %3363 = vmatpush.msra.mxu0 %v3281
        %3364 = vmatpush.msra.mxu0 %v3277
        %3365 = vmatpush.msra.mxu0 %v3273
        %3366 = vmatpush.msra.mxu0 %v3269
        %3367 = vmatpush.msra.mxu0 %v3265
        %3368 = vmatpush.msra.mxu0 %v3261
        %3369 = vmatpush.msra.mxu0 %v3257
        %3370 = vmatpush.msra.mxu0 %v3253
        %3371 = vmatmul.f32.gmra.mxu0 %v3249
        %v3372 = vpop.f32.mrf.mxu0
        %v3373 = vadd.f32 0.0, %v3372
        %3374 = vdwg.mxu0
        %3375 = vmatpush.msra.mxu0 %v3314
        %3376 = vmatpush.msra.mxu0 %v3310
        %3377 = vmatpush.msra.mxu0 %v3306
        %3378 = vmatpush.msra.mxu0 %v3302
        %3379 = vmatpush.msra.mxu0 %v3298
        %3380 = vmatpush.msra.mxu0 %v3294
        %3381 = vmatpush.msra.mxu0 %v3290
        %3382 = vmatpush.msra.mxu0 %v3286
        %3383 = vmatpush.msra.mxu0 %v3282
        %3384 = vmatpush.msra.mxu0 %v3278
        %3385 = vmatpush.msra.mxu0 %v3274
        %3386 = vmatpush.msra.mxu0 %v3270
        %3387 = vmatpush.msra.mxu0 %v3266
        %3388 = vmatpush.msra.mxu0 %v3262
        %3389 = vmatpush.msra.mxu0 %v3258
        %3390 = vmatpush.msra.mxu0 %v3254
        %3391 = vmatmul.f32.gmra.mxu0 %v3249
        %v3392 = vpop.f32.mrf.mxu0
        %v3393 = vadd.f32 0.0, %v3392
        %3394 = vdwg.mxu0
        %v3395 = vadd.f32 %v3245, %v3333
        %v3396 = vadd.f32 %v3246, %v3353
        %v3397 = vadd.f32 %v3247, %v3373
        %v3398 = vadd.f32 %v3248, %v3393
        %v3399 = vld [vmem:[#allocation2 + $0x10] sm:$0x3]
        %s3400 = scalar_lea.vmem %s465, 4096 [#allocation14]
        %v3401 = vld [vmem:[%s3400] sm:$0xff]
        %v3402 = vld [vmem:[%s3400 + $0x8] sm:$0xff]
        %v3403 = vld [vmem:[%s3400 + $0x10] sm:$0xff]
        %v3404 = vld [vmem:[%s3400 + $0x18] sm:$0xff]
        %v3405 = vld [vmem:[%s3400 + $0x20] sm:$0xff]
        %v3406 = vld [vmem:[%s3400 + $0x28] sm:$0xff]
        %v3407 = vld [vmem:[%s3400 + $0x30] sm:$0xff]
        %v3408 = vld [vmem:[%s3400 + $0x38] sm:$0xff]
        %v3409 = vld [vmem:[%s3400 + $0x40] sm:$0xff]
        %v3410 = vld [vmem:[%s3400 + $0x48] sm:$0xff]
        %v3411 = vld [vmem:[%s3400 + $0x50] sm:$0xff]
        %v3412 = vld [vmem:[%s3400 + $0x58] sm:$0xff]
        %v3413 = vld [vmem:[%s3400 + $0x60] sm:$0xff]
        %v3414 = vld [vmem:[%s3400 + $0x68] sm:$0xff]
        %v3415 = vld [vmem:[%s3400 + $0x70] sm:$0xff]
        %v3416 = vld [vmem:[%s3400 + $0x78] sm:$0xff]
        %v3417 = vld [vmem:[%s3400 + $0x80] sm:$0xff]
        %v3418 = vld [vmem:[%s3400 + $0x88] sm:$0xff]
        %v3419 = vld [vmem:[%s3400 + $0x90] sm:$0xff]
        %v3420 = vld [vmem:[%s3400 + $0x98] sm:$0xff]
        %v3421 = vld [vmem:[%s3400 + $0xa0] sm:$0xff]
        %v3422 = vld [vmem:[%s3400 + $0xa8] sm:$0xff]
        %v3423 = vld [vmem:[%s3400 + $0xb0] sm:$0xff]
        %v3424 = vld [vmem:[%s3400 + $0xb8] sm:$0xff]
        %v3425 = vld [vmem:[%s3400 + $0xc0] sm:$0xff]
        %v3426 = vld [vmem:[%s3400 + $0xc8] sm:$0xff]
        %v3427 = vld [vmem:[%s3400 + $0xd0] sm:$0xff]
        %v3428 = vld [vmem:[%s3400 + $0xd8] sm:$0xff]
        %v3429 = vld [vmem:[%s3400 + $0xe0] sm:$0xff]
        %v3430 = vld [vmem:[%s3400 + $0xe8] sm:$0xff]
        %v3431 = vld [vmem:[%s3400 + $0xf0] sm:$0xff]
        %v3432 = vld [vmem:[%s3400 + $0xf8] sm:$0xff]
        %v3433 = vld [vmem:[%s3400 + $0x100] sm:$0xff]
        %v3434 = vld [vmem:[%s3400 + $0x108] sm:$0xff]
        %v3435 = vld [vmem:[%s3400 + $0x110] sm:$0xff]
        %v3436 = vld [vmem:[%s3400 + $0x118] sm:$0xff]
        %v3437 = vld [vmem:[%s3400 + $0x120] sm:$0xff]
        %v3438 = vld [vmem:[%s3400 + $0x128] sm:$0xff]
        %v3439 = vld [vmem:[%s3400 + $0x130] sm:$0xff]
        %v3440 = vld [vmem:[%s3400 + $0x138] sm:$0xff]
        %v3441 = vld [vmem:[%s3400 + $0x140] sm:$0xff]
        %v3442 = vld [vmem:[%s3400 + $0x148] sm:$0xff]
        %v3443 = vld [vmem:[%s3400 + $0x150] sm:$0xff]
        %v3444 = vld [vmem:[%s3400 + $0x158] sm:$0xff]
        %v3445 = vld [vmem:[%s3400 + $0x160] sm:$0xff]
        %v3446 = vld [vmem:[%s3400 + $0x168] sm:$0xff]
        %v3447 = vld [vmem:[%s3400 + $0x170] sm:$0xff]
        %v3448 = vld [vmem:[%s3400 + $0x178] sm:$0xff]
        %v3449 = vld [vmem:[%s3400 + $0x180] sm:$0xff]
        %v3450 = vld [vmem:[%s3400 + $0x188] sm:$0xff]
        %v3451 = vld [vmem:[%s3400 + $0x190] sm:$0xff]
        %v3452 = vld [vmem:[%s3400 + $0x198] sm:$0xff]
        %v3453 = vld [vmem:[%s3400 + $0x1a0] sm:$0xff]
        %v3454 = vld [vmem:[%s3400 + $0x1a8] sm:$0xff]
        %v3455 = vld [vmem:[%s3400 + $0x1b0] sm:$0xff]
        %v3456 = vld [vmem:[%s3400 + $0x1b8] sm:$0xff]
        %v3457 = vld [vmem:[%s3400 + $0x1c0] sm:$0xff]
        %v3458 = vld [vmem:[%s3400 + $0x1c8] sm:$0xff]
        %v3459 = vld [vmem:[%s3400 + $0x1d0] sm:$0xff]
        %v3460 = vld [vmem:[%s3400 + $0x1d8] sm:$0xff]
        %v3461 = vld [vmem:[%s3400 + $0x1e0] sm:$0xff]
        %v3462 = vld [vmem:[%s3400 + $0x1e8] sm:$0xff]
        %v3463 = vld [vmem:[%s3400 + $0x1f0] sm:$0xff]
        %v3464 = vld [vmem:[%s3400 + $0x1f8] sm:$0xff]
        %3465 = vmatpush.msra.mxu0 %v3461
        %3466 = vmatpush.msra.mxu0 %v3457
        %3467 = vmatpush.msra.mxu0 %v3453
        %3468 = vmatpush.msra.mxu0 %v3449
        %3469 = vmatpush.msra.mxu0 %v3445
        %3470 = vmatpush.msra.mxu0 %v3441
        %3471 = vmatpush.msra.mxu0 %v3437
        %3472 = vmatpush.msra.mxu0 %v3433
        %3473 = vmatpush.msra.mxu0 %v3429
        %3474 = vmatpush.msra.mxu0 %v3425
        %3475 = vmatpush.msra.mxu0 %v3421
        %3476 = vmatpush.msra.mxu0 %v3417
        %3477 = vmatpush.msra.mxu0 %v3413
        %3478 = vmatpush.msra.mxu0 %v3409
        %3479 = vmatpush.msra.mxu0 %v3405
        %3480 = vmatpush.msra.mxu0 %v3401
        %3481 = vmatmul.f32.gmra.mxu0 %v3399
        %v3482 = vpop.f32.mrf.mxu0
        %v3483 = vadd.f32 0.0, %v3482
        %3484 = vdwg.mxu0
        %3485 = vmatpush.msra.mxu0 %v3462
        %3486 = vmatpush.msra.mxu0 %v3458
        %3487 = vmatpush.msra.mxu0 %v3454
        %3488 = vmatpush.msra.mxu0 %v3450
        %3489 = vmatpush.msra.mxu0 %v3446
        %3490 = vmatpush.msra.mxu0 %v3442
        %3491 = vmatpush.msra.mxu0 %v3438
        %3492 = vmatpush.msra.mxu0 %v3434
        %3493 = vmatpush.msra.mxu0 %v3430
        %3494 = vmatpush.msra.mxu0 %v3426
        %3495 = vmatpush.msra.mxu0 %v3422
        %3496 = vmatpush.msra.mxu0 %v3418
        %3497 = vmatpush.msra.mxu0 %v3414
        %3498 = vmatpush.msra.mxu0 %v3410
        %3499 = vmatpush.msra.mxu0 %v3406
        %3500 = vmatpush.msra.mxu0 %v3402
        %3501 = vmatmul.f32.gmra.mxu0 %v3399
        %v3502 = vpop.f32.mrf.mxu0
        %v3503 = vadd.f32 0.0, %v3502
        %3504 = vdwg.mxu0
        %3505 = vmatpush.msra.mxu0 %v3463
        %3506 = vmatpush.msra.mxu0 %v3459
        %3507 = vmatpush.msra.mxu0 %v3455
        %3508 = vmatpush.msra.mxu0 %v3451
        %3509 = vmatpush.msra.mxu0 %v3447
        %3510 = vmatpush.msra.mxu0 %v3443
        %3511 = vmatpush.msra.mxu0 %v3439
        %3512 = vmatpush.msra.mxu0 %v3435
        %3513 = vmatpush.msra.mxu0 %v3431
        %3514 = vmatpush.msra.mxu0 %v3427
        %3515 = vmatpush.msra.mxu0 %v3423
        %3516 = vmatpush.msra.mxu0 %v3419
        %3517 = vmatpush.msra.mxu0 %v3415
        %3518 = vmatpush.msra.mxu0 %v3411
        %3519 = vmatpush.msra.mxu0 %v3407
        %3520 = vmatpush.msra.mxu0 %v3403
        %3521 = vmatmul.f32.gmra.mxu0 %v3399
        %v3522 = vpop.f32.mrf.mxu0
        %v3523 = vadd.f32 0.0, %v3522
        %3524 = vdwg.mxu0
        %3525 = vmatpush.msra.mxu0 %v3464
        %3526 = vmatpush.msra.mxu0 %v3460
        %3527 = vmatpush.msra.mxu0 %v3456
        %3528 = vmatpush.msra.mxu0 %v3452
        %3529 = vmatpush.msra.mxu0 %v3448
        %3530 = vmatpush.msra.mxu0 %v3444
        %3531 = vmatpush.msra.mxu0 %v3440
        %3532 = vmatpush.msra.mxu0 %v3436
        %3533 = vmatpush.msra.mxu0 %v3432
        %3534 = vmatpush.msra.mxu0 %v3428
        %3535 = vmatpush.msra.mxu0 %v3424
        %3536 = vmatpush.msra.mxu0 %v3420
        %3537 = vmatpush.msra.mxu0 %v3416
        %3538 = vmatpush.msra.mxu0 %v3412
        %3539 = vmatpush.msra.mxu0 %v3408
        %3540 = vmatpush.msra.mxu0 %v3404
        %3541 = vmatmul.f32.gmra.mxu0 %v3399
        %v3542 = vpop.f32.mrf.mxu0
        %v3543 = vadd.f32 0.0, %v3542
        %3544 = vdwg.mxu0
        %v3545 = vadd.f32 %v3395, %v3483
        %v3546 = vadd.f32 %v3396, %v3503
        %v3547 = vadd.f32 %v3397, %v3523
        %v3548 = vadd.f32 %v3398, %v3543
        %v3549 = vld [vmem:[#allocation2 + $0x12] sm:$0x3]
        %s3550 = scalar_lea.vmem %s465, 4608 [#allocation14]
        %v3551 = vld [vmem:[%s3550] sm:$0xff]
        %v3552 = vld [vmem:[%s3550 + $0x8] sm:$0xff]
        %v3553 = vld [vmem:[%s3550 + $0x10] sm:$0xff]
        %v3554 = vld [vmem:[%s3550 + $0x18] sm:$0xff]
        %v3555 = vld [vmem:[%s3550 + $0x20] sm:$0xff]
        %v3556 = vld [vmem:[%s3550 + $0x28] sm:$0xff]
        %v3557 = vld [vmem:[%s3550 + $0x30] sm:$0xff]
        %v3558 = vld [vmem:[%s3550 + $0x38] sm:$0xff]
        %v3559 = vld [vmem:[%s3550 + $0x40] sm:$0xff]
        %v3560 = vld [vmem:[%s3550 + $0x48] sm:$0xff]
        %v3561 = vld [vmem:[%s3550 + $0x50] sm:$0xff]
        %v3562 = vld [vmem:[%s3550 + $0x58] sm:$0xff]
        %v3563 = vld [vmem:[%s3550 + $0x60] sm:$0xff]
        %v3564 = vld [vmem:[%s3550 + $0x68] sm:$0xff]
        %v3565 = vld [vmem:[%s3550 + $0x70] sm:$0xff]
        %v3566 = vld [vmem:[%s3550 + $0x78] sm:$0xff]
        %v3567 = vld [vmem:[%s3550 + $0x80] sm:$0xff]
        %v3568 = vld [vmem:[%s3550 + $0x88] sm:$0xff]
        %v3569 = vld [vmem:[%s3550 + $0x90] sm:$0xff]
        %v3570 = vld [vmem:[%s3550 + $0x98] sm:$0xff]
        %v3571 = vld [vmem:[%s3550 + $0xa0] sm:$0xff]
        %v3572 = vld [vmem:[%s3550 + $0xa8] sm:$0xff]
        %v3573 = vld [vmem:[%s3550 + $0xb0] sm:$0xff]
        %v3574 = vld [vmem:[%s3550 + $0xb8] sm:$0xff]
        %v3575 = vld [vmem:[%s3550 + $0xc0] sm:$0xff]
        %v3576 = vld [vmem:[%s3550 + $0xc8] sm:$0xff]
        %v3577 = vld [vmem:[%s3550 + $0xd0] sm:$0xff]
        %v3578 = vld [vmem:[%s3550 + $0xd8] sm:$0xff]
        %v3579 = vld [vmem:[%s3550 + $0xe0] sm:$0xff]
        %v3580 = vld [vmem:[%s3550 + $0xe8] sm:$0xff]
        %v3581 = vld [vmem:[%s3550 + $0xf0] sm:$0xff]
        %v3582 = vld [vmem:[%s3550 + $0xf8] sm:$0xff]
        %v3583 = vld [vmem:[%s3550 + $0x100] sm:$0xff]
        %v3584 = vld [vmem:[%s3550 + $0x108] sm:$0xff]
        %v3585 = vld [vmem:[%s3550 + $0x110] sm:$0xff]
        %v3586 = vld [vmem:[%s3550 + $0x118] sm:$0xff]
        %v3587 = vld [vmem:[%s3550 + $0x120] sm:$0xff]
        %v3588 = vld [vmem:[%s3550 + $0x128] sm:$0xff]
        %v3589 = vld [vmem:[%s3550 + $0x130] sm:$0xff]
        %v3590 = vld [vmem:[%s3550 + $0x138] sm:$0xff]
        %v3591 = vld [vmem:[%s3550 + $0x140] sm:$0xff]
        %v3592 = vld [vmem:[%s3550 + $0x148] sm:$0xff]
        %v3593 = vld [vmem:[%s3550 + $0x150] sm:$0xff]
        %v3594 = vld [vmem:[%s3550 + $0x158] sm:$0xff]
        %v3595 = vld [vmem:[%s3550 + $0x160] sm:$0xff]
        %v3596 = vld [vmem:[%s3550 + $0x168] sm:$0xff]
        %v3597 = vld [vmem:[%s3550 + $0x170] sm:$0xff]
        %v3598 = vld [vmem:[%s3550 + $0x178] sm:$0xff]
        %v3599 = vld [vmem:[%s3550 + $0x180] sm:$0xff]
        %v3600 = vld [vmem:[%s3550 + $0x188] sm:$0xff]
        %v3601 = vld [vmem:[%s3550 + $0x190] sm:$0xff]
        %v3602 = vld [vmem:[%s3550 + $0x198] sm:$0xff]
        %v3603 = vld [vmem:[%s3550 + $0x1a0] sm:$0xff]
        %v3604 = vld [vmem:[%s3550 + $0x1a8] sm:$0xff]
        %v3605 = vld [vmem:[%s3550 + $0x1b0] sm:$0xff]
        %v3606 = vld [vmem:[%s3550 + $0x1b8] sm:$0xff]
        %v3607 = vld [vmem:[%s3550 + $0x1c0] sm:$0xff]
        %v3608 = vld [vmem:[%s3550 + $0x1c8] sm:$0xff]
        %v3609 = vld [vmem:[%s3550 + $0x1d0] sm:$0xff]
        %v3610 = vld [vmem:[%s3550 + $0x1d8] sm:$0xff]
        %v3611 = vld [vmem:[%s3550 + $0x1e0] sm:$0xff]
        %v3612 = vld [vmem:[%s3550 + $0x1e8] sm:$0xff]
        %v3613 = vld [vmem:[%s3550 + $0x1f0] sm:$0xff]
        %v3614 = vld [vmem:[%s3550 + $0x1f8] sm:$0xff]
        %3615 = vmatpush.msra.mxu0 %v3611
        %3616 = vmatpush.msra.mxu0 %v3607
        %3617 = vmatpush.msra.mxu0 %v3603
        %3618 = vmatpush.msra.mxu0 %v3599
        %3619 = vmatpush.msra.mxu0 %v3595
        %3620 = vmatpush.msra.mxu0 %v3591
        %3621 = vmatpush.msra.mxu0 %v3587
        %3622 = vmatpush.msra.mxu0 %v3583
        %3623 = vmatpush.msra.mxu0 %v3579
        %3624 = vmatpush.msra.mxu0 %v3575
        %3625 = vmatpush.msra.mxu0 %v3571
        %3626 = vmatpush.msra.mxu0 %v3567
        %3627 = vmatpush.msra.mxu0 %v3563
        %3628 = vmatpush.msra.mxu0 %v3559
        %3629 = vmatpush.msra.mxu0 %v3555
        %3630 = vmatpush.msra.mxu0 %v3551
        %3631 = vmatmul.f32.gmra.mxu0 %v3549
        %v3632 = vpop.f32.mrf.mxu0
        %v3633 = vadd.f32 0.0, %v3632
        %3634 = vdwg.mxu0
        %3635 = vmatpush.msra.mxu0 %v3612
        %3636 = vmatpush.msra.mxu0 %v3608
        %3637 = vmatpush.msra.mxu0 %v3604
        %3638 = vmatpush.msra.mxu0 %v3600
        %3639 = vmatpush.msra.mxu0 %v3596
        %3640 = vmatpush.msra.mxu0 %v3592
        %3641 = vmatpush.msra.mxu0 %v3588
        %3642 = vmatpush.msra.mxu0 %v3584
        %3643 = vmatpush.msra.mxu0 %v3580
        %3644 = vmatpush.msra.mxu0 %v3576
        %3645 = vmatpush.msra.mxu0 %v3572
        %3646 = vmatpush.msra.mxu0 %v3568
        %3647 = vmatpush.msra.mxu0 %v3564
        %3648 = vmatpush.msra.mxu0 %v3560
        %3649 = vmatpush.msra.mxu0 %v3556
        %3650 = vmatpush.msra.mxu0 %v3552
        %3651 = vmatmul.f32.gmra.mxu0 %v3549
        %v3652 = vpop.f32.mrf.mxu0
        %v3653 = vadd.f32 0.0, %v3652
        %3654 = vdwg.mxu0
        %3655 = vmatpush.msra.mxu0 %v3613
        %3656 = vmatpush.msra.mxu0 %v3609
        %3657 = vmatpush.msra.mxu0 %v3605
        %3658 = vmatpush.msra.mxu0 %v3601
        %3659 = vmatpush.msra.mxu0 %v3597
        %3660 = vmatpush.msra.mxu0 %v3593
        %3661 = vmatpush.msra.mxu0 %v3589
        %3662 = vmatpush.msra.mxu0 %v3585
        %3663 = vmatpush.msra.mxu0 %v3581
        %3664 = vmatpush.msra.mxu0 %v3577
        %3665 = vmatpush.msra.mxu0 %v3573
        %3666 = vmatpush.msra.mxu0 %v3569
        %3667 = vmatpush.msra.mxu0 %v3565
        %3668 = vmatpush.msra.mxu0 %v3561
        %3669 = vmatpush.msra.mxu0 %v3557
        %3670 = vmatpush.msra.mxu0 %v3553
        %3671 = vmatmul.f32.gmra.mxu0 %v3549
        %v3672 = vpop.f32.mrf.mxu0
        %v3673 = vadd.f32 0.0, %v3672
        %3674 = vdwg.mxu0
        %3675 = vmatpush.msra.mxu0 %v3614
        %3676 = vmatpush.msra.mxu0 %v3610
        %3677 = vmatpush.msra.mxu0 %v3606
        %3678 = vmatpush.msra.mxu0 %v3602
        %3679 = vmatpush.msra.mxu0 %v3598
        %3680 = vmatpush.msra.mxu0 %v3594
        %3681 = vmatpush.msra.mxu0 %v3590
        %3682 = vmatpush.msra.mxu0 %v3586
        %3683 = vmatpush.msra.mxu0 %v3582
        %3684 = vmatpush.msra.mxu0 %v3578
        %3685 = vmatpush.msra.mxu0 %v3574
        %3686 = vmatpush.msra.mxu0 %v3570
        %3687 = vmatpush.msra.mxu0 %v3566
        %3688 = vmatpush.msra.mxu0 %v3562
        %3689 = vmatpush.msra.mxu0 %v3558
        %3690 = vmatpush.msra.mxu0 %v3554
        %3691 = vmatmul.f32.gmra.mxu0 %v3549
        %v3692 = vpop.f32.mrf.mxu0
        %v3693 = vadd.f32 0.0, %v3692
        %3694 = vdwg.mxu0
        %v3695 = vadd.f32 %v3545, %v3633
        %v3696 = vadd.f32 %v3546, %v3653
        %v3697 = vadd.f32 %v3547, %v3673
        %v3698 = vadd.f32 %v3548, %v3693
        %v3699 = vld [vmem:[#allocation2 + $0x14] sm:$0x3]
        %s3700 = scalar_lea.vmem %s465, 5120 [#allocation14]
        %v3701 = vld [vmem:[%s3700] sm:$0xff]
        %v3702 = vld [vmem:[%s3700 + $0x8] sm:$0xff]
        %v3703 = vld [vmem:[%s3700 + $0x10] sm:$0xff]
        %v3704 = vld [vmem:[%s3700 + $0x18] sm:$0xff]
        %v3705 = vld [vmem:[%s3700 + $0x20] sm:$0xff]
        %v3706 = vld [vmem:[%s3700 + $0x28] sm:$0xff]
        %v3707 = vld [vmem:[%s3700 + $0x30] sm:$0xff]
        %v3708 = vld [vmem:[%s3700 + $0x38] sm:$0xff]
        %v3709 = vld [vmem:[%s3700 + $0x40] sm:$0xff]
        %v3710 = vld [vmem:[%s3700 + $0x48] sm:$0xff]
        %v3711 = vld [vmem:[%s3700 + $0x50] sm:$0xff]
        %v3712 = vld [vmem:[%s3700 + $0x58] sm:$0xff]
        %v3713 = vld [vmem:[%s3700 + $0x60] sm:$0xff]
        %v3714 = vld [vmem:[%s3700 + $0x68] sm:$0xff]
        %v3715 = vld [vmem:[%s3700 + $0x70] sm:$0xff]
        %v3716 = vld [vmem:[%s3700 + $0x78] sm:$0xff]
        %v3717 = vld [vmem:[%s3700 + $0x80] sm:$0xff]
        %v3718 = vld [vmem:[%s3700 + $0x88] sm:$0xff]
        %v3719 = vld [vmem:[%s3700 + $0x90] sm:$0xff]
        %v3720 = vld [vmem:[%s3700 + $0x98] sm:$0xff]
        %v3721 = vld [vmem:[%s3700 + $0xa0] sm:$0xff]
        %v3722 = vld [vmem:[%s3700 + $0xa8] sm:$0xff]
        %v3723 = vld [vmem:[%s3700 + $0xb0] sm:$0xff]
        %v3724 = vld [vmem:[%s3700 + $0xb8] sm:$0xff]
        %v3725 = vld [vmem:[%s3700 + $0xc0] sm:$0xff]
        %v3726 = vld [vmem:[%s3700 + $0xc8] sm:$0xff]
        %v3727 = vld [vmem:[%s3700 + $0xd0] sm:$0xff]
        %v3728 = vld [vmem:[%s3700 + $0xd8] sm:$0xff]
        %v3729 = vld [vmem:[%s3700 + $0xe0] sm:$0xff]
        %v3730 = vld [vmem:[%s3700 + $0xe8] sm:$0xff]
        %v3731 = vld [vmem:[%s3700 + $0xf0] sm:$0xff]
        %v3732 = vld [vmem:[%s3700 + $0xf8] sm:$0xff]
        %v3733 = vld [vmem:[%s3700 + $0x100] sm:$0xff]
        %v3734 = vld [vmem:[%s3700 + $0x108] sm:$0xff]
        %v3735 = vld [vmem:[%s3700 + $0x110] sm:$0xff]
        %v3736 = vld [vmem:[%s3700 + $0x118] sm:$0xff]
        %v3737 = vld [vmem:[%s3700 + $0x120] sm:$0xff]
        %v3738 = vld [vmem:[%s3700 + $0x128] sm:$0xff]
        %v3739 = vld [vmem:[%s3700 + $0x130] sm:$0xff]
        %v3740 = vld [vmem:[%s3700 + $0x138] sm:$0xff]
        %v3741 = vld [vmem:[%s3700 + $0x140] sm:$0xff]
        %v3742 = vld [vmem:[%s3700 + $0x148] sm:$0xff]
        %v3743 = vld [vmem:[%s3700 + $0x150] sm:$0xff]
        %v3744 = vld [vmem:[%s3700 + $0x158] sm:$0xff]
        %v3745 = vld [vmem:[%s3700 + $0x160] sm:$0xff]
        %v3746 = vld [vmem:[%s3700 + $0x168] sm:$0xff]
        %v3747 = vld [vmem:[%s3700 + $0x170] sm:$0xff]
        %v3748 = vld [vmem:[%s3700 + $0x178] sm:$0xff]
        %v3749 = vld [vmem:[%s3700 + $0x180] sm:$0xff]
        %v3750 = vld [vmem:[%s3700 + $0x188] sm:$0xff]
        %v3751 = vld [vmem:[%s3700 + $0x190] sm:$0xff]
        %v3752 = vld [vmem:[%s3700 + $0x198] sm:$0xff]
        %v3753 = vld [vmem:[%s3700 + $0x1a0] sm:$0xff]
        %v3754 = vld [vmem:[%s3700 + $0x1a8] sm:$0xff]
        %v3755 = vld [vmem:[%s3700 + $0x1b0] sm:$0xff]
        %v3756 = vld [vmem:[%s3700 + $0x1b8] sm:$0xff]
        %v3757 = vld [vmem:[%s3700 + $0x1c0] sm:$0xff]
        %v3758 = vld [vmem:[%s3700 + $0x1c8] sm:$0xff]
        %v3759 = vld [vmem:[%s3700 + $0x1d0] sm:$0xff]
        %v3760 = vld [vmem:[%s3700 + $0x1d8] sm:$0xff]
        %v3761 = vld [vmem:[%s3700 + $0x1e0] sm:$0xff]
        %v3762 = vld [vmem:[%s3700 + $0x1e8] sm:$0xff]
        %v3763 = vld [vmem:[%s3700 + $0x1f0] sm:$0xff]
        %v3764 = vld [vmem:[%s3700 + $0x1f8] sm:$0xff]
        %3765 = vmatpush.msra.mxu0 %v3761
        %3766 = vmatpush.msra.mxu0 %v3757
        %3767 = vmatpush.msra.mxu0 %v3753
        %3768 = vmatpush.msra.mxu0 %v3749
        %3769 = vmatpush.msra.mxu0 %v3745
        %3770 = vmatpush.msra.mxu0 %v3741
        %3771 = vmatpush.msra.mxu0 %v3737
        %3772 = vmatpush.msra.mxu0 %v3733
        %3773 = vmatpush.msra.mxu0 %v3729
        %3774 = vmatpush.msra.mxu0 %v3725
        %3775 = vmatpush.msra.mxu0 %v3721
        %3776 = vmatpush.msra.mxu0 %v3717
        %3777 = vmatpush.msra.mxu0 %v3713
        %3778 = vmatpush.msra.mxu0 %v3709
        %3779 = vmatpush.msra.mxu0 %v3705
        %3780 = vmatpush.msra.mxu0 %v3701
        %3781 = vmatmul.f32.gmra.mxu0 %v3699
        %v3782 = vpop.f32.mrf.mxu0
        %v3783 = vadd.f32 0.0, %v3782
        %3784 = vdwg.mxu0
        %3785 = vmatpush.msra.mxu0 %v3762
        %3786 = vmatpush.msra.mxu0 %v3758
        %3787 = vmatpush.msra.mxu0 %v3754
        %3788 = vmatpush.msra.mxu0 %v3750
        %3789 = vmatpush.msra.mxu0 %v3746
        %3790 = vmatpush.msra.mxu0 %v3742
        %3791 = vmatpush.msra.mxu0 %v3738
        %3792 = vmatpush.msra.mxu0 %v3734
        %3793 = vmatpush.msra.mxu0 %v3730
        %3794 = vmatpush.msra.mxu0 %v3726
        %3795 = vmatpush.msra.mxu0 %v3722
        %3796 = vmatpush.msra.mxu0 %v3718
        %3797 = vmatpush.msra.mxu0 %v3714
        %3798 = vmatpush.msra.mxu0 %v3710
        %3799 = vmatpush.msra.mxu0 %v3706
        %3800 = vmatpush.msra.mxu0 %v3702
        %3801 = vmatmul.f32.gmra.mxu0 %v3699
        %v3802 = vpop.f32.mrf.mxu0
        %v3803 = vadd.f32 0.0, %v3802
        %3804 = vdwg.mxu0
        %3805 = vmatpush.msra.mxu0 %v3763
        %3806 = vmatpush.msra.mxu0 %v3759
        %3807 = vmatpush.msra.mxu0 %v3755
        %3808 = vmatpush.msra.mxu0 %v3751
        %3809 = vmatpush.msra.mxu0 %v3747
        %3810 = vmatpush.msra.mxu0 %v3743
        %3811 = vmatpush.msra.mxu0 %v3739
        %3812 = vmatpush.msra.mxu0 %v3735
        %3813 = vmatpush.msra.mxu0 %v3731
        %3814 = vmatpush.msra.mxu0 %v3727
        %3815 = vmatpush.msra.mxu0 %v3723
        %3816 = vmatpush.msra.mxu0 %v3719
        %3817 = vmatpush.msra.mxu0 %v3715
        %3818 = vmatpush.msra.mxu0 %v3711
        %3819 = vmatpush.msra.mxu0 %v3707
        %3820 = vmatpush.msra.mxu0 %v3703
        %3821 = vmatmul.f32.gmra.mxu0 %v3699
        %v3822 = vpop.f32.mrf.mxu0
        %v3823 = vadd.f32 0.0, %v3822
        %3824 = vdwg.mxu0
        %3825 = vmatpush.msra.mxu0 %v3764
        %3826 = vmatpush.msra.mxu0 %v3760
        %3827 = vmatpush.msra.mxu0 %v3756
        %3828 = vmatpush.msra.mxu0 %v3752
        %3829 = vmatpush.msra.mxu0 %v3748
        %3830 = vmatpush.msra.mxu0 %v3744
        %3831 = vmatpush.msra.mxu0 %v3740
        %3832 = vmatpush.msra.mxu0 %v3736
        %3833 = vmatpush.msra.mxu0 %v3732
        %3834 = vmatpush.msra.mxu0 %v3728
        %3835 = vmatpush.msra.mxu0 %v3724
        %3836 = vmatpush.msra.mxu0 %v3720
        %3837 = vmatpush.msra.mxu0 %v3716
        %3838 = vmatpush.msra.mxu0 %v3712
        %3839 = vmatpush.msra.mxu0 %v3708
        %3840 = vmatpush.msra.mxu0 %v3704
        %3841 = vmatmul.f32.gmra.mxu0 %v3699
        %v3842 = vpop.f32.mrf.mxu0
        %v3843 = vadd.f32 0.0, %v3842
        %3844 = vdwg.mxu0
        %v3845 = vadd.f32 %v3695, %v3783
        %v3846 = vadd.f32 %v3696, %v3803
        %v3847 = vadd.f32 %v3697, %v3823
        %v3848 = vadd.f32 %v3698, %v3843
        %v3849 = vld [vmem:[#allocation2 + $0x16] sm:$0x3]
        %s3850 = scalar_lea.vmem %s465, 5632 [#allocation14]
        %v3851 = vld [vmem:[%s3850] sm:$0xff]
        %v3852 = vld [vmem:[%s3850 + $0x8] sm:$0xff]
        %v3853 = vld [vmem:[%s3850 + $0x10] sm:$0xff]
        %v3854 = vld [vmem:[%s3850 + $0x18] sm:$0xff]
        %v3855 = vld [vmem:[%s3850 + $0x20] sm:$0xff]
        %v3856 = vld [vmem:[%s3850 + $0x28] sm:$0xff]
        %v3857 = vld [vmem:[%s3850 + $0x30] sm:$0xff]
        %v3858 = vld [vmem:[%s3850 + $0x38] sm:$0xff]
        %v3859 = vld [vmem:[%s3850 + $0x40] sm:$0xff]
        %v3860 = vld [vmem:[%s3850 + $0x48] sm:$0xff]
        %v3861 = vld [vmem:[%s3850 + $0x50] sm:$0xff]
        %v3862 = vld [vmem:[%s3850 + $0x58] sm:$0xff]
        %v3863 = vld [vmem:[%s3850 + $0x60] sm:$0xff]
        %v3864 = vld [vmem:[%s3850 + $0x68] sm:$0xff]
        %v3865 = vld [vmem:[%s3850 + $0x70] sm:$0xff]
        %v3866 = vld [vmem:[%s3850 + $0x78] sm:$0xff]
        %v3867 = vld [vmem:[%s3850 + $0x80] sm:$0xff]
        %v3868 = vld [vmem:[%s3850 + $0x88] sm:$0xff]
        %v3869 = vld [vmem:[%s3850 + $0x90] sm:$0xff]
        %v3870 = vld [vmem:[%s3850 + $0x98] sm:$0xff]
        %v3871 = vld [vmem:[%s3850 + $0xa0] sm:$0xff]
        %v3872 = vld [vmem:[%s3850 + $0xa8] sm:$0xff]
        %v3873 = vld [vmem:[%s3850 + $0xb0] sm:$0xff]
        %v3874 = vld [vmem:[%s3850 + $0xb8] sm:$0xff]
        %v3875 = vld [vmem:[%s3850 + $0xc0] sm:$0xff]
        %v3876 = vld [vmem:[%s3850 + $0xc8] sm:$0xff]
        %v3877 = vld [vmem:[%s3850 + $0xd0] sm:$0xff]
        %v3878 = vld [vmem:[%s3850 + $0xd8] sm:$0xff]
        %v3879 = vld [vmem:[%s3850 + $0xe0] sm:$0xff]
        %v3880 = vld [vmem:[%s3850 + $0xe8] sm:$0xff]
        %v3881 = vld [vmem:[%s3850 + $0xf0] sm:$0xff]
        %v3882 = vld [vmem:[%s3850 + $0xf8] sm:$0xff]
        %v3883 = vld [vmem:[%s3850 + $0x100] sm:$0xff]
        %v3884 = vld [vmem:[%s3850 + $0x108] sm:$0xff]
        %v3885 = vld [vmem:[%s3850 + $0x110] sm:$0xff]
        %v3886 = vld [vmem:[%s3850 + $0x118] sm:$0xff]
        %v3887 = vld [vmem:[%s3850 + $0x120] sm:$0xff]
        %v3888 = vld [vmem:[%s3850 + $0x128] sm:$0xff]
        %v3889 = vld [vmem:[%s3850 + $0x130] sm:$0xff]
        %v3890 = vld [vmem:[%s3850 + $0x138] sm:$0xff]
        %v3891 = vld [vmem:[%s3850 + $0x140] sm:$0xff]
        %v3892 = vld [vmem:[%s3850 + $0x148] sm:$0xff]
        %v3893 = vld [vmem:[%s3850 + $0x150] sm:$0xff]
        %v3894 = vld [vmem:[%s3850 + $0x158] sm:$0xff]
        %v3895 = vld [vmem:[%s3850 + $0x160] sm:$0xff]
        %v3896 = vld [vmem:[%s3850 + $0x168] sm:$0xff]
        %v3897 = vld [vmem:[%s3850 + $0x170] sm:$0xff]
        %v3898 = vld [vmem:[%s3850 + $0x178] sm:$0xff]
        %v3899 = vld [vmem:[%s3850 + $0x180] sm:$0xff]
        %v3900 = vld [vmem:[%s3850 + $0x188] sm:$0xff]
        %v3901 = vld [vmem:[%s3850 + $0x190] sm:$0xff]
        %v3902 = vld [vmem:[%s3850 + $0x198] sm:$0xff]
        %v3903 = vld [vmem:[%s3850 + $0x1a0] sm:$0xff]
        %v3904 = vld [vmem:[%s3850 + $0x1a8] sm:$0xff]
        %v3905 = vld [vmem:[%s3850 + $0x1b0] sm:$0xff]
        %v3906 = vld [vmem:[%s3850 + $0x1b8] sm:$0xff]
        %v3907 = vld [vmem:[%s3850 + $0x1c0] sm:$0xff]
        %v3908 = vld [vmem:[%s3850 + $0x1c8] sm:$0xff]
        %v3909 = vld [vmem:[%s3850 + $0x1d0] sm:$0xff]
        %v3910 = vld [vmem:[%s3850 + $0x1d8] sm:$0xff]
        %v3911 = vld [vmem:[%s3850 + $0x1e0] sm:$0xff]
        %v3912 = vld [vmem:[%s3850 + $0x1e8] sm:$0xff]
        %v3913 = vld [vmem:[%s3850 + $0x1f0] sm:$0xff]
        %v3914 = vld [vmem:[%s3850 + $0x1f8] sm:$0xff]
        %3915 = vmatpush.msra.mxu0 %v3911
        %3916 = vmatpush.msra.mxu0 %v3907
        %3917 = vmatpush.msra.mxu0 %v3903
        %3918 = vmatpush.msra.mxu0 %v3899
        %3919 = vmatpush.msra.mxu0 %v3895
        %3920 = vmatpush.msra.mxu0 %v3891
        %3921 = vmatpush.msra.mxu0 %v3887
        %3922 = vmatpush.msra.mxu0 %v3883
        %3923 = vmatpush.msra.mxu0 %v3879
        %3924 = vmatpush.msra.mxu0 %v3875
        %3925 = vmatpush.msra.mxu0 %v3871
        %3926 = vmatpush.msra.mxu0 %v3867
        %3927 = vmatpush.msra.mxu0 %v3863
        %3928 = vmatpush.msra.mxu0 %v3859
        %3929 = vmatpush.msra.mxu0 %v3855
        %3930 = vmatpush.msra.mxu0 %v3851
        %3931 = vmatmul.f32.gmra.mxu0 %v3849
        %v3932 = vpop.f32.mrf.mxu0
        %v3933 = vadd.f32 0.0, %v3932
        %3934 = vdwg.mxu0
        %3935 = vmatpush.msra.mxu0 %v3912
        %3936 = vmatpush.msra.mxu0 %v3908
        %3937 = vmatpush.msra.mxu0 %v3904
        %3938 = vmatpush.msra.mxu0 %v3900
        %3939 = vmatpush.msra.mxu0 %v3896
        %3940 = vmatpush.msra.mxu0 %v3892
        %3941 = vmatpush.msra.mxu0 %v3888
        %3942 = vmatpush.msra.mxu0 %v3884
        %3943 = vmatpush.msra.mxu0 %v3880
        %3944 = vmatpush.msra.mxu0 %v3876
        %3945 = vmatpush.msra.mxu0 %v3872
        %3946 = vmatpush.msra.mxu0 %v3868
        %3947 = vmatpush.msra.mxu0 %v3864
        %3948 = vmatpush.msra.mxu0 %v3860
        %3949 = vmatpush.msra.mxu0 %v3856
        %3950 = vmatpush.msra.mxu0 %v3852
        %3951 = vmatmul.f32.gmra.mxu0 %v3849
        %v3952 = vpop.f32.mrf.mxu0
        %v3953 = vadd.f32 0.0, %v3952
        %3954 = vdwg.mxu0
        %3955 = vmatpush.msra.mxu0 %v3913
        %3956 = vmatpush.msra.mxu0 %v3909
        %3957 = vmatpush.msra.mxu0 %v3905
        %3958 = vmatpush.msra.mxu0 %v3901
        %3959 = vmatpush.msra.mxu0 %v3897
        %3960 = vmatpush.msra.mxu0 %v3893
        %3961 = vmatpush.msra.mxu0 %v3889
        %3962 = vmatpush.msra.mxu0 %v3885
        %3963 = vmatpush.msra.mxu0 %v3881
        %3964 = vmatpush.msra.mxu0 %v3877
        %3965 = vmatpush.msra.mxu0 %v3873
        %3966 = vmatpush.msra.mxu0 %v3869
        %3967 = vmatpush.msra.mxu0 %v3865
        %3968 = vmatpush.msra.mxu0 %v3861
        %3969 = vmatpush.msra.mxu0 %v3857
        %3970 = vmatpush.msra.mxu0 %v3853
        %3971 = vmatmul.f32.gmra.mxu0 %v3849
        %v3972 = vpop.f32.mrf.mxu0
        %v3973 = vadd.f32 0.0, %v3972
        %3974 = vdwg.mxu0
        %3975 = vmatpush.msra.mxu0 %v3914
        %3976 = vmatpush.msra.mxu0 %v3910
        %3977 = vmatpush.msra.mxu0 %v3906
        %3978 = vmatpush.msra.mxu0 %v3902
        %3979 = vmatpush.msra.mxu0 %v3898
        %3980 = vmatpush.msra.mxu0 %v3894
        %3981 = vmatpush.msra.mxu0 %v3890
        %3982 = vmatpush.msra.mxu0 %v3886
        %3983 = vmatpush.msra.mxu0 %v3882
        %3984 = vmatpush.msra.mxu0 %v3878
        %3985 = vmatpush.msra.mxu0 %v3874
        %3986 = vmatpush.msra.mxu0 %v3870
        %3987 = vmatpush.msra.mxu0 %v3866
        %3988 = vmatpush.msra.mxu0 %v3862
        %3989 = vmatpush.msra.mxu0 %v3858
        %3990 = vmatpush.msra.mxu0 %v3854
        %3991 = vmatmul.f32.gmra.mxu0 %v3849
        %v3992 = vpop.f32.mrf.mxu0
        %v3993 = vadd.f32 0.0, %v3992
        %3994 = vdwg.mxu0
        %v3995 = vadd.f32 %v3845, %v3933
        %v3996 = vadd.f32 %v3846, %v3953
        %v3997 = vadd.f32 %v3847, %v3973
        %v3998 = vadd.f32 %v3848, %v3993
        %v3999 = vld [vmem:[#allocation2 + $0x18] sm:$0x3]
        %s4000 = scalar_lea.vmem %s465, 6144 [#allocation14]
        %v4001 = vld [vmem:[%s4000] sm:$0xff]
        %v4002 = vld [vmem:[%s4000 + $0x8] sm:$0xff]
        %v4003 = vld [vmem:[%s4000 + $0x10] sm:$0xff]
        %v4004 = vld [vmem:[%s4000 + $0x18] sm:$0xff]
        %v4005 = vld [vmem:[%s4000 + $0x20] sm:$0xff]
        %v4006 = vld [vmem:[%s4000 + $0x28] sm:$0xff]
        %v4007 = vld [vmem:[%s4000 + $0x30] sm:$0xff]
        %v4008 = vld [vmem:[%s4000 + $0x38] sm:$0xff]
        %v4009 = vld [vmem:[%s4000 + $0x40] sm:$0xff]
        %v4010 = vld [vmem:[%s4000 + $0x48] sm:$0xff]
        %v4011 = vld [vmem:[%s4000 + $0x50] sm:$0xff]
        %v4012 = vld [vmem:[%s4000 + $0x58] sm:$0xff]
        %v4013 = vld [vmem:[%s4000 + $0x60] sm:$0xff]
        %v4014 = vld [vmem:[%s4000 + $0x68] sm:$0xff]
        %v4015 = vld [vmem:[%s4000 + $0x70] sm:$0xff]
        %v4016 = vld [vmem:[%s4000 + $0x78] sm:$0xff]
        %v4017 = vld [vmem:[%s4000 + $0x80] sm:$0xff]
        %v4018 = vld [vmem:[%s4000 + $0x88] sm:$0xff]
        %v4019 = vld [vmem:[%s4000 + $0x90] sm:$0xff]
        %v4020 = vld [vmem:[%s4000 + $0x98] sm:$0xff]
        %v4021 = vld [vmem:[%s4000 + $0xa0] sm:$0xff]
        %v4022 = vld [vmem:[%s4000 + $0xa8] sm:$0xff]
        %v4023 = vld [vmem:[%s4000 + $0xb0] sm:$0xff]
        %v4024 = vld [vmem:[%s4000 + $0xb8] sm:$0xff]
        %v4025 = vld [vmem:[%s4000 + $0xc0] sm:$0xff]
        %v4026 = vld [vmem:[%s4000 + $0xc8] sm:$0xff]
        %v4027 = vld [vmem:[%s4000 + $0xd0] sm:$0xff]
        %v4028 = vld [vmem:[%s4000 + $0xd8] sm:$0xff]
        %v4029 = vld [vmem:[%s4000 + $0xe0] sm:$0xff]
        %v4030 = vld [vmem:[%s4000 + $0xe8] sm:$0xff]
        %v4031 = vld [vmem:[%s4000 + $0xf0] sm:$0xff]
        %v4032 = vld [vmem:[%s4000 + $0xf8] sm:$0xff]
        %v4033 = vld [vmem:[%s4000 + $0x100] sm:$0xff]
        %v4034 = vld [vmem:[%s4000 + $0x108] sm:$0xff]
        %v4035 = vld [vmem:[%s4000 + $0x110] sm:$0xff]
        %v4036 = vld [vmem:[%s4000 + $0x118] sm:$0xff]
        %v4037 = vld [vmem:[%s4000 + $0x120] sm:$0xff]
        %v4038 = vld [vmem:[%s4000 + $0x128] sm:$0xff]
        %v4039 = vld [vmem:[%s4000 + $0x130] sm:$0xff]
        %v4040 = vld [vmem:[%s4000 + $0x138] sm:$0xff]
        %v4041 = vld [vmem:[%s4000 + $0x140] sm:$0xff]
        %v4042 = vld [vmem:[%s4000 + $0x148] sm:$0xff]
        %v4043 = vld [vmem:[%s4000 + $0x150] sm:$0xff]
        %v4044 = vld [vmem:[%s4000 + $0x158] sm:$0xff]
        %v4045 = vld [vmem:[%s4000 + $0x160] sm:$0xff]
        %v4046 = vld [vmem:[%s4000 + $0x168] sm:$0xff]
        %v4047 = vld [vmem:[%s4000 + $0x170] sm:$0xff]
        %v4048 = vld [vmem:[%s4000 + $0x178] sm:$0xff]
        %v4049 = vld [vmem:[%s4000 + $0x180] sm:$0xff]
        %v4050 = vld [vmem:[%s4000 + $0x188] sm:$0xff]
        %v4051 = vld [vmem:[%s4000 + $0x190] sm:$0xff]
        %v4052 = vld [vmem:[%s4000 + $0x198] sm:$0xff]
        %v4053 = vld [vmem:[%s4000 + $0x1a0] sm:$0xff]
        %v4054 = vld [vmem:[%s4000 + $0x1a8] sm:$0xff]
        %v4055 = vld [vmem:[%s4000 + $0x1b0] sm:$0xff]
        %v4056 = vld [vmem:[%s4000 + $0x1b8] sm:$0xff]
        %v4057 = vld [vmem:[%s4000 + $0x1c0] sm:$0xff]
        %v4058 = vld [vmem:[%s4000 + $0x1c8] sm:$0xff]
        %v4059 = vld [vmem:[%s4000 + $0x1d0] sm:$0xff]
        %v4060 = vld [vmem:[%s4000 + $0x1d8] sm:$0xff]
        %v4061 = vld [vmem:[%s4000 + $0x1e0] sm:$0xff]
        %v4062 = vld [vmem:[%s4000 + $0x1e8] sm:$0xff]
        %v4063 = vld [vmem:[%s4000 + $0x1f0] sm:$0xff]
        %v4064 = vld [vmem:[%s4000 + $0x1f8] sm:$0xff]
        %4065 = vmatpush.msra.mxu0 %v4061
        %4066 = vmatpush.msra.mxu0 %v4057
        %4067 = vmatpush.msra.mxu0 %v4053
        %4068 = vmatpush.msra.mxu0 %v4049
        %4069 = vmatpush.msra.mxu0 %v4045
        %4070 = vmatpush.msra.mxu0 %v4041
        %4071 = vmatpush.msra.mxu0 %v4037
        %4072 = vmatpush.msra.mxu0 %v4033
        %4073 = vmatpush.msra.mxu0 %v4029
        %4074 = vmatpush.msra.mxu0 %v4025
        %4075 = vmatpush.msra.mxu0 %v4021
        %4076 = vmatpush.msra.mxu0 %v4017
        %4077 = vmatpush.msra.mxu0 %v4013
        %4078 = vmatpush.msra.mxu0 %v4009
        %4079 = vmatpush.msra.mxu0 %v4005
        %4080 = vmatpush.msra.mxu0 %v4001
        %4081 = vmatmul.f32.gmra.mxu0 %v3999
        %v4082 = vpop.f32.mrf.mxu0
        %v4083 = vadd.f32 0.0, %v4082
        %4084 = vdwg.mxu0
        %4085 = vmatpush.msra.mxu0 %v4062
        %4086 = vmatpush.msra.mxu0 %v4058
        %4087 = vmatpush.msra.mxu0 %v4054
        %4088 = vmatpush.msra.mxu0 %v4050
        %4089 = vmatpush.msra.mxu0 %v4046
        %4090 = vmatpush.msra.mxu0 %v4042
        %4091 = vmatpush.msra.mxu0 %v4038
        %4092 = vmatpush.msra.mxu0 %v4034
        %4093 = vmatpush.msra.mxu0 %v4030
        %4094 = vmatpush.msra.mxu0 %v4026
        %4095 = vmatpush.msra.mxu0 %v4022
        %4096 = vmatpush.msra.mxu0 %v4018
        %4097 = vmatpush.msra.mxu0 %v4014
        %4098 = vmatpush.msra.mxu0 %v4010
        %4099 = vmatpush.msra.mxu0 %v4006
        %4100 = vmatpush.msra.mxu0 %v4002
        %4101 = vmatmul.f32.gmra.mxu0 %v3999
        %v4102 = vpop.f32.mrf.mxu0
        %v4103 = vadd.f32 0.0, %v4102
        %4104 = vdwg.mxu0
        %4105 = vmatpush.msra.mxu0 %v4063
        %4106 = vmatpush.msra.mxu0 %v4059
        %4107 = vmatpush.msra.mxu0 %v4055
        %4108 = vmatpush.msra.mxu0 %v4051
        %4109 = vmatpush.msra.mxu0 %v4047
        %4110 = vmatpush.msra.mxu0 %v4043
        %4111 = vmatpush.msra.mxu0 %v4039
        %4112 = vmatpush.msra.mxu0 %v4035
        %4113 = vmatpush.msra.mxu0 %v4031
        %4114 = vmatpush.msra.mxu0 %v4027
        %4115 = vmatpush.msra.mxu0 %v4023
        %4116 = vmatpush.msra.mxu0 %v4019
        %4117 = vmatpush.msra.mxu0 %v4015
        %4118 = vmatpush.msra.mxu0 %v4011
        %4119 = vmatpush.msra.mxu0 %v4007
        %4120 = vmatpush.msra.mxu0 %v4003
        %4121 = vmatmul.f32.gmra.mxu0 %v3999
        %v4122 = vpop.f32.mrf.mxu0
        %v4123 = vadd.f32 0.0, %v4122
        %4124 = vdwg.mxu0
        %4125 = vmatpush.msra.mxu0 %v4064
        %4126 = vmatpush.msra.mxu0 %v4060
        %4127 = vmatpush.msra.mxu0 %v4056
        %4128 = vmatpush.msra.mxu0 %v4052
        %4129 = vmatpush.msra.mxu0 %v4048
        %4130 = vmatpush.msra.mxu0 %v4044
        %4131 = vmatpush.msra.mxu0 %v4040
        %4132 = vmatpush.msra.mxu0 %v4036
        %4133 = vmatpush.msra.mxu0 %v4032
        %4134 = vmatpush.msra.mxu0 %v4028
        %4135 = vmatpush.msra.mxu0 %v4024
        %4136 = vmatpush.msra.mxu0 %v4020
        %4137 = vmatpush.msra.mxu0 %v4016
        %4138 = vmatpush.msra.mxu0 %v4012
        %4139 = vmatpush.msra.mxu0 %v4008
        %4140 = vmatpush.msra.mxu0 %v4004
        %4141 = vmatmul.f32.gmra.mxu0 %v3999
        %v4142 = vpop.f32.mrf.mxu0
        %v4143 = vadd.f32 0.0, %v4142
        %4144 = vdwg.mxu0
        %v4145 = vadd.f32 %v3995, %v4083
        %v4146 = vadd.f32 %v3996, %v4103
        %v4147 = vadd.f32 %v3997, %v4123
        %v4148 = vadd.f32 %v3998, %v4143
        %v4149 = vld [vmem:[#allocation2 + $0x1a] sm:$0x3]
        %s4150 = scalar_lea.vmem %s465, 6656 [#allocation14]
        %v4151 = vld [vmem:[%s4150] sm:$0xff]
        %v4152 = vld [vmem:[%s4150 + $0x8] sm:$0xff]
        %v4153 = vld [vmem:[%s4150 + $0x10] sm:$0xff]
        %v4154 = vld [vmem:[%s4150 + $0x18] sm:$0xff]
        %v4155 = vld [vmem:[%s4150 + $0x20] sm:$0xff]
        %v4156 = vld [vmem:[%s4150 + $0x28] sm:$0xff]
        %v4157 = vld [vmem:[%s4150 + $0x30] sm:$0xff]
        %v4158 = vld [vmem:[%s4150 + $0x38] sm:$0xff]
        %v4159 = vld [vmem:[%s4150 + $0x40] sm:$0xff]
        %v4160 = vld [vmem:[%s4150 + $0x48] sm:$0xff]
        %v4161 = vld [vmem:[%s4150 + $0x50] sm:$0xff]
        %v4162 = vld [vmem:[%s4150 + $0x58] sm:$0xff]
        %v4163 = vld [vmem:[%s4150 + $0x60] sm:$0xff]
        %v4164 = vld [vmem:[%s4150 + $0x68] sm:$0xff]
        %v4165 = vld [vmem:[%s4150 + $0x70] sm:$0xff]
        %v4166 = vld [vmem:[%s4150 + $0x78] sm:$0xff]
        %v4167 = vld [vmem:[%s4150 + $0x80] sm:$0xff]
        %v4168 = vld [vmem:[%s4150 + $0x88] sm:$0xff]
        %v4169 = vld [vmem:[%s4150 + $0x90] sm:$0xff]
        %v4170 = vld [vmem:[%s4150 + $0x98] sm:$0xff]
        %v4171 = vld [vmem:[%s4150 + $0xa0] sm:$0xff]
        %v4172 = vld [vmem:[%s4150 + $0xa8] sm:$0xff]
        %v4173 = vld [vmem:[%s4150 + $0xb0] sm:$0xff]
        %v4174 = vld [vmem:[%s4150 + $0xb8] sm:$0xff]
        %v4175 = vld [vmem:[%s4150 + $0xc0] sm:$0xff]
        %v4176 = vld [vmem:[%s4150 + $0xc8] sm:$0xff]
        %v4177 = vld [vmem:[%s4150 + $0xd0] sm:$0xff]
        %v4178 = vld [vmem:[%s4150 + $0xd8] sm:$0xff]
        %v4179 = vld [vmem:[%s4150 + $0xe0] sm:$0xff]
        %v4180 = vld [vmem:[%s4150 + $0xe8] sm:$0xff]
        %v4181 = vld [vmem:[%s4150 + $0xf0] sm:$0xff]
        %v4182 = vld [vmem:[%s4150 + $0xf8] sm:$0xff]
        %v4183 = vld [vmem:[%s4150 + $0x100] sm:$0xff]
        %v4184 = vld [vmem:[%s4150 + $0x108] sm:$0xff]
        %v4185 = vld [vmem:[%s4150 + $0x110] sm:$0xff]
        %v4186 = vld [vmem:[%s4150 + $0x118] sm:$0xff]
        %v4187 = vld [vmem:[%s4150 + $0x120] sm:$0xff]
        %v4188 = vld [vmem:[%s4150 + $0x128] sm:$0xff]
        %v4189 = vld [vmem:[%s4150 + $0x130] sm:$0xff]
        %v4190 = vld [vmem:[%s4150 + $0x138] sm:$0xff]
        %v4191 = vld [vmem:[%s4150 + $0x140] sm:$0xff]
        %v4192 = vld [vmem:[%s4150 + $0x148] sm:$0xff]
        %v4193 = vld [vmem:[%s4150 + $0x150] sm:$0xff]
        %v4194 = vld [vmem:[%s4150 + $0x158] sm:$0xff]
        %v4195 = vld [vmem:[%s4150 + $0x160] sm:$0xff]
        %v4196 = vld [vmem:[%s4150 + $0x168] sm:$0xff]
        %v4197 = vld [vmem:[%s4150 + $0x170] sm:$0xff]
        %v4198 = vld [vmem:[%s4150 + $0x178] sm:$0xff]
        %v4199 = vld [vmem:[%s4150 + $0x180] sm:$0xff]
        %v4200 = vld [vmem:[%s4150 + $0x188] sm:$0xff]
        %v4201 = vld [vmem:[%s4150 + $0x190] sm:$0xff]
        %v4202 = vld [vmem:[%s4150 + $0x198] sm:$0xff]
        %v4203 = vld [vmem:[%s4150 + $0x1a0] sm:$0xff]
        %v4204 = vld [vmem:[%s4150 + $0x1a8] sm:$0xff]
        %v4205 = vld [vmem:[%s4150 + $0x1b0] sm:$0xff]
        %v4206 = vld [vmem:[%s4150 + $0x1b8] sm:$0xff]
        %v4207 = vld [vmem:[%s4150 + $0x1c0] sm:$0xff]
        %v4208 = vld [vmem:[%s4150 + $0x1c8] sm:$0xff]
        %v4209 = vld [vmem:[%s4150 + $0x1d0] sm:$0xff]
        %v4210 = vld [vmem:[%s4150 + $0x1d8] sm:$0xff]
        %v4211 = vld [vmem:[%s4150 + $0x1e0] sm:$0xff]
        %v4212 = vld [vmem:[%s4150 + $0x1e8] sm:$0xff]
        %v4213 = vld [vmem:[%s4150 + $0x1f0] sm:$0xff]
        %v4214 = vld [vmem:[%s4150 + $0x1f8] sm:$0xff]
        %4215 = vmatpush.msra.mxu0 %v4211
        %4216 = vmatpush.msra.mxu0 %v4207
        %4217 = vmatpush.msra.mxu0 %v4203
        %4218 = vmatpush.msra.mxu0 %v4199
        %4219 = vmatpush.msra.mxu0 %v4195
        %4220 = vmatpush.msra.mxu0 %v4191
        %4221 = vmatpush.msra.mxu0 %v4187
        %4222 = vmatpush.msra.mxu0 %v4183
        %4223 = vmatpush.msra.mxu0 %v4179
        %4224 = vmatpush.msra.mxu0 %v4175
        %4225 = vmatpush.msra.mxu0 %v4171
        %4226 = vmatpush.msra.mxu0 %v4167
        %4227 = vmatpush.msra.mxu0 %v4163
        %4228 = vmatpush.msra.mxu0 %v4159
        %4229 = vmatpush.msra.mxu0 %v4155
        %4230 = vmatpush.msra.mxu0 %v4151
        %4231 = vmatmul.f32.gmra.mxu0 %v4149
        %v4232 = vpop.f32.mrf.mxu0
        %v4233 = vadd.f32 0.0, %v4232
        %4234 = vdwg.mxu0
        %4235 = vmatpush.msra.mxu0 %v4212
        %4236 = vmatpush.msra.mxu0 %v4208
        %4237 = vmatpush.msra.mxu0 %v4204
        %4238 = vmatpush.msra.mxu0 %v4200
        %4239 = vmatpush.msra.mxu0 %v4196
        %4240 = vmatpush.msra.mxu0 %v4192
        %4241 = vmatpush.msra.mxu0 %v4188
        %4242 = vmatpush.msra.mxu0 %v4184
        %4243 = vmatpush.msra.mxu0 %v4180
        %4244 = vmatpush.msra.mxu0 %v4176
        %4245 = vmatpush.msra.mxu0 %v4172
        %4246 = vmatpush.msra.mxu0 %v4168
        %4247 = vmatpush.msra.mxu0 %v4164
        %4248 = vmatpush.msra.mxu0 %v4160
        %4249 = vmatpush.msra.mxu0 %v4156
        %4250 = vmatpush.msra.mxu0 %v4152
        %4251 = vmatmul.f32.gmra.mxu0 %v4149
        %v4252 = vpop.f32.mrf.mxu0
        %v4253 = vadd.f32 0.0, %v4252
        %4254 = vdwg.mxu0
        %4255 = vmatpush.msra.mxu0 %v4213
        %4256 = vmatpush.msra.mxu0 %v4209
        %4257 = vmatpush.msra.mxu0 %v4205
        %4258 = vmatpush.msra.mxu0 %v4201
        %4259 = vmatpush.msra.mxu0 %v4197
        %4260 = vmatpush.msra.mxu0 %v4193
        %4261 = vmatpush.msra.mxu0 %v4189
        %4262 = vmatpush.msra.mxu0 %v4185
        %4263 = vmatpush.msra.mxu0 %v4181
        %4264 = vmatpush.msra.mxu0 %v4177
        %4265 = vmatpush.msra.mxu0 %v4173
        %4266 = vmatpush.msra.mxu0 %v4169
        %4267 = vmatpush.msra.mxu0 %v4165
        %4268 = vmatpush.msra.mxu0 %v4161
        %4269 = vmatpush.msra.mxu0 %v4157
        %4270 = vmatpush.msra.mxu0 %v4153
        %4271 = vmatmul.f32.gmra.mxu0 %v4149
        %v4272 = vpop.f32.mrf.mxu0
        %v4273 = vadd.f32 0.0, %v4272
        %4274 = vdwg.mxu0
        %4275 = vmatpush.msra.mxu0 %v4214
        %4276 = vmatpush.msra.mxu0 %v4210
        %4277 = vmatpush.msra.mxu0 %v4206
        %4278 = vmatpush.msra.mxu0 %v4202
        %4279 = vmatpush.msra.mxu0 %v4198
        %4280 = vmatpush.msra.mxu0 %v4194
        %4281 = vmatpush.msra.mxu0 %v4190
        %4282 = vmatpush.msra.mxu0 %v4186
        %4283 = vmatpush.msra.mxu0 %v4182
        %4284 = vmatpush.msra.mxu0 %v4178
        %4285 = vmatpush.msra.mxu0 %v4174
        %4286 = vmatpush.msra.mxu0 %v4170
        %4287 = vmatpush.msra.mxu0 %v4166
        %4288 = vmatpush.msra.mxu0 %v4162
        %4289 = vmatpush.msra.mxu0 %v4158
        %4290 = vmatpush.msra.mxu0 %v4154
        %4291 = vmatmul.f32.gmra.mxu0 %v4149
        %v4292 = vpop.f32.mrf.mxu0
        %v4293 = vadd.f32 0.0, %v4292
        %4294 = vdwg.mxu0
        %v4295 = vadd.f32 %v4145, %v4233
        %v4296 = vadd.f32 %v4146, %v4253
        %v4297 = vadd.f32 %v4147, %v4273
        %v4298 = vadd.f32 %v4148, %v4293
        %v4299 = vld [vmem:[#allocation2 + $0x1c] sm:$0x3]
        %s4300 = scalar_lea.vmem %s465, 7168 [#allocation14]
        %v4301 = vld [vmem:[%s4300] sm:$0xff]
        %v4302 = vld [vmem:[%s4300 + $0x8] sm:$0xff]
        %v4303 = vld [vmem:[%s4300 + $0x10] sm:$0xff]
        %v4304 = vld [vmem:[%s4300 + $0x18] sm:$0xff]
        %v4305 = vld [vmem:[%s4300 + $0x20] sm:$0xff]
        %v4306 = vld [vmem:[%s4300 + $0x28] sm:$0xff]
        %v4307 = vld [vmem:[%s4300 + $0x30] sm:$0xff]
        %v4308 = vld [vmem:[%s4300 + $0x38] sm:$0xff]
        %v4309 = vld [vmem:[%s4300 + $0x40] sm:$0xff]
        %v4310 = vld [vmem:[%s4300 + $0x48] sm:$0xff]
        %v4311 = vld [vmem:[%s4300 + $0x50] sm:$0xff]
        %v4312 = vld [vmem:[%s4300 + $0x58] sm:$0xff]
        %v4313 = vld [vmem:[%s4300 + $0x60] sm:$0xff]
        %v4314 = vld [vmem:[%s4300 + $0x68] sm:$0xff]
        %v4315 = vld [vmem:[%s4300 + $0x70] sm:$0xff]
        %v4316 = vld [vmem:[%s4300 + $0x78] sm:$0xff]
        %v4317 = vld [vmem:[%s4300 + $0x80] sm:$0xff]
        %v4318 = vld [vmem:[%s4300 + $0x88] sm:$0xff]
        %v4319 = vld [vmem:[%s4300 + $0x90] sm:$0xff]
        %v4320 = vld [vmem:[%s4300 + $0x98] sm:$0xff]
        %v4321 = vld [vmem:[%s4300 + $0xa0] sm:$0xff]
        %v4322 = vld [vmem:[%s4300 + $0xa8] sm:$0xff]
        %v4323 = vld [vmem:[%s4300 + $0xb0] sm:$0xff]
        %v4324 = vld [vmem:[%s4300 + $0xb8] sm:$0xff]
        %v4325 = vld [vmem:[%s4300 + $0xc0] sm:$0xff]
        %v4326 = vld [vmem:[%s4300 + $0xc8] sm:$0xff]
        %v4327 = vld [vmem:[%s4300 + $0xd0] sm:$0xff]
        %v4328 = vld [vmem:[%s4300 + $0xd8] sm:$0xff]
        %v4329 = vld [vmem:[%s4300 + $0xe0] sm:$0xff]
        %v4330 = vld [vmem:[%s4300 + $0xe8] sm:$0xff]
        %v4331 = vld [vmem:[%s4300 + $0xf0] sm:$0xff]
        %v4332 = vld [vmem:[%s4300 + $0xf8] sm:$0xff]
        %v4333 = vld [vmem:[%s4300 + $0x100] sm:$0xff]
        %v4334 = vld [vmem:[%s4300 + $0x108] sm:$0xff]
        %v4335 = vld [vmem:[%s4300 + $0x110] sm:$0xff]
        %v4336 = vld [vmem:[%s4300 + $0x118] sm:$0xff]
        %v4337 = vld [vmem:[%s4300 + $0x120] sm:$0xff]
        %v4338 = vld [vmem:[%s4300 + $0x128] sm:$0xff]
        %v4339 = vld [vmem:[%s4300 + $0x130] sm:$0xff]
        %v4340 = vld [vmem:[%s4300 + $0x138] sm:$0xff]
        %v4341 = vld [vmem:[%s4300 + $0x140] sm:$0xff]
        %v4342 = vld [vmem:[%s4300 + $0x148] sm:$0xff]
        %v4343 = vld [vmem:[%s4300 + $0x150] sm:$0xff]
        %v4344 = vld [vmem:[%s4300 + $0x158] sm:$0xff]
        %v4345 = vld [vmem:[%s4300 + $0x160] sm:$0xff]
        %v4346 = vld [vmem:[%s4300 + $0x168] sm:$0xff]
        %v4347 = vld [vmem:[%s4300 + $0x170] sm:$0xff]
        %v4348 = vld [vmem:[%s4300 + $0x178] sm:$0xff]
        %v4349 = vld [vmem:[%s4300 + $0x180] sm:$0xff]
        %v4350 = vld [vmem:[%s4300 + $0x188] sm:$0xff]
        %v4351 = vld [vmem:[%s4300 + $0x190] sm:$0xff]
        %v4352 = vld [vmem:[%s4300 + $0x198] sm:$0xff]
        %v4353 = vld [vmem:[%s4300 + $0x1a0] sm:$0xff]
        %v4354 = vld [vmem:[%s4300 + $0x1a8] sm:$0xff]
        %v4355 = vld [vmem:[%s4300 + $0x1b0] sm:$0xff]
        %v4356 = vld [vmem:[%s4300 + $0x1b8] sm:$0xff]
        %v4357 = vld [vmem:[%s4300 + $0x1c0] sm:$0xff]
        %v4358 = vld [vmem:[%s4300 + $0x1c8] sm:$0xff]
        %v4359 = vld [vmem:[%s4300 + $0x1d0] sm:$0xff]
        %v4360 = vld [vmem:[%s4300 + $0x1d8] sm:$0xff]
        %v4361 = vld [vmem:[%s4300 + $0x1e0] sm:$0xff]
        %v4362 = vld [vmem:[%s4300 + $0x1e8] sm:$0xff]
        %v4363 = vld [vmem:[%s4300 + $0x1f0] sm:$0xff]
        %v4364 = vld [vmem:[%s4300 + $0x1f8] sm:$0xff]
        %4365 = vmatpush.msra.mxu0 %v4361
        %4366 = vmatpush.msra.mxu0 %v4357
        %4367 = vmatpush.msra.mxu0 %v4353
        %4368 = vmatpush.msra.mxu0 %v4349
        %4369 = vmatpush.msra.mxu0 %v4345
        %4370 = vmatpush.msra.mxu0 %v4341
        %4371 = vmatpush.msra.mxu0 %v4337
        %4372 = vmatpush.msra.mxu0 %v4333
        %4373 = vmatpush.msra.mxu0 %v4329
        %4374 = vmatpush.msra.mxu0 %v4325
        %4375 = vmatpush.msra.mxu0 %v4321
        %4376 = vmatpush.msra.mxu0 %v4317
        %4377 = vmatpush.msra.mxu0 %v4313
        %4378 = vmatpush.msra.mxu0 %v4309
        %4379 = vmatpush.msra.mxu0 %v4305
        %4380 = vmatpush.msra.mxu0 %v4301
        %4381 = vmatmul.f32.gmra.mxu0 %v4299
        %v4382 = vpop.f32.mrf.mxu0
        %v4383 = vadd.f32 0.0, %v4382
        %4384 = vdwg.mxu0
        %4385 = vmatpush.msra.mxu0 %v4362
        %4386 = vmatpush.msra.mxu0 %v4358
        %4387 = vmatpush.msra.mxu0 %v4354
        %4388 = vmatpush.msra.mxu0 %v4350
        %4389 = vmatpush.msra.mxu0 %v4346
        %4390 = vmatpush.msra.mxu0 %v4342
        %4391 = vmatpush.msra.mxu0 %v4338
        %4392 = vmatpush.msra.mxu0 %v4334
        %4393 = vmatpush.msra.mxu0 %v4330
        %4394 = vmatpush.msra.mxu0 %v4326
        %4395 = vmatpush.msra.mxu0 %v4322
        %4396 = vmatpush.msra.mxu0 %v4318
        %4397 = vmatpush.msra.mxu0 %v4314
        %4398 = vmatpush.msra.mxu0 %v4310
        %4399 = vmatpush.msra.mxu0 %v4306
        %4400 = vmatpush.msra.mxu0 %v4302
        %4401 = vmatmul.f32.gmra.mxu0 %v4299
        %v4402 = vpop.f32.mrf.mxu0
        %v4403 = vadd.f32 0.0, %v4402
        %4404 = vdwg.mxu0
        %4405 = vmatpush.msra.mxu0 %v4363
        %4406 = vmatpush.msra.mxu0 %v4359
        %4407 = vmatpush.msra.mxu0 %v4355
        %4408 = vmatpush.msra.mxu0 %v4351
        %4409 = vmatpush.msra.mxu0 %v4347
        %4410 = vmatpush.msra.mxu0 %v4343
        %4411 = vmatpush.msra.mxu0 %v4339
        %4412 = vmatpush.msra.mxu0 %v4335
        %4413 = vmatpush.msra.mxu0 %v4331
        %4414 = vmatpush.msra.mxu0 %v4327
        %4415 = vmatpush.msra.mxu0 %v4323
        %4416 = vmatpush.msra.mxu0 %v4319
        %4417 = vmatpush.msra.mxu0 %v4315
        %4418 = vmatpush.msra.mxu0 %v4311
        %4419 = vmatpush.msra.mxu0 %v4307
        %4420 = vmatpush.msra.mxu0 %v4303
        %4421 = vmatmul.f32.gmra.mxu0 %v4299
        %v4422 = vpop.f32.mrf.mxu0
        %v4423 = vadd.f32 0.0, %v4422
        %4424 = vdwg.mxu0
        %4425 = vmatpush.msra.mxu0 %v4364
        %4426 = vmatpush.msra.mxu0 %v4360
        %4427 = vmatpush.msra.mxu0 %v4356
        %4428 = vmatpush.msra.mxu0 %v4352
        %4429 = vmatpush.msra.mxu0 %v4348
        %4430 = vmatpush.msra.mxu0 %v4344
        %4431 = vmatpush.msra.mxu0 %v4340
        %4432 = vmatpush.msra.mxu0 %v4336
        %4433 = vmatpush.msra.mxu0 %v4332
        %4434 = vmatpush.msra.mxu0 %v4328
        %4435 = vmatpush.msra.mxu0 %v4324
        %4436 = vmatpush.msra.mxu0 %v4320
        %4437 = vmatpush.msra.mxu0 %v4316
        %4438 = vmatpush.msra.mxu0 %v4312
        %4439 = vmatpush.msra.mxu0 %v4308
        %4440 = vmatpush.msra.mxu0 %v4304
        %4441 = vmatmul.f32.gmra.mxu0 %v4299
        %v4442 = vpop.f32.mrf.mxu0
        %v4443 = vadd.f32 0.0, %v4442
        %4444 = vdwg.mxu0
        %v4445 = vadd.f32 %v4295, %v4383
        %v4446 = vadd.f32 %v4296, %v4403
        %v4447 = vadd.f32 %v4297, %v4423
        %v4448 = vadd.f32 %v4298, %v4443
        %v4449 = vld [vmem:[#allocation2 + $0x1e] sm:$0x3]
        %s4450 = scalar_lea.vmem %s465, 7680 [#allocation14]
        %v4451 = vld [vmem:[%s4450] sm:$0xff]
        %v4452 = vld [vmem:[%s4450 + $0x8] sm:$0xff]
        %v4453 = vld [vmem:[%s4450 + $0x10] sm:$0xff]
        %v4454 = vld [vmem:[%s4450 + $0x18] sm:$0xff]
        %v4455 = vld [vmem:[%s4450 + $0x20] sm:$0xff]
        %v4456 = vld [vmem:[%s4450 + $0x28] sm:$0xff]
        %v4457 = vld [vmem:[%s4450 + $0x30] sm:$0xff]
        %v4458 = vld [vmem:[%s4450 + $0x38] sm:$0xff]
        %v4459 = vld [vmem:[%s4450 + $0x40] sm:$0xff]
        %v4460 = vld [vmem:[%s4450 + $0x48] sm:$0xff]
        %v4461 = vld [vmem:[%s4450 + $0x50] sm:$0xff]
        %v4462 = vld [vmem:[%s4450 + $0x58] sm:$0xff]
        %v4463 = vld [vmem:[%s4450 + $0x60] sm:$0xff]
        %v4464 = vld [vmem:[%s4450 + $0x68] sm:$0xff]
        %v4465 = vld [vmem:[%s4450 + $0x70] sm:$0xff]
        %v4466 = vld [vmem:[%s4450 + $0x78] sm:$0xff]
        %v4467 = vld [vmem:[%s4450 + $0x80] sm:$0xff]
        %v4468 = vld [vmem:[%s4450 + $0x88] sm:$0xff]
        %v4469 = vld [vmem:[%s4450 + $0x90] sm:$0xff]
        %v4470 = vld [vmem:[%s4450 + $0x98] sm:$0xff]
        %v4471 = vld [vmem:[%s4450 + $0xa0] sm:$0xff]
        %v4472 = vld [vmem:[%s4450 + $0xa8] sm:$0xff]
        %v4473 = vld [vmem:[%s4450 + $0xb0] sm:$0xff]
        %v4474 = vld [vmem:[%s4450 + $0xb8] sm:$0xff]
        %v4475 = vld [vmem:[%s4450 + $0xc0] sm:$0xff]
        %v4476 = vld [vmem:[%s4450 + $0xc8] sm:$0xff]
        %v4477 = vld [vmem:[%s4450 + $0xd0] sm:$0xff]
        %v4478 = vld [vmem:[%s4450 + $0xd8] sm:$0xff]
        %v4479 = vld [vmem:[%s4450 + $0xe0] sm:$0xff]
        %v4480 = vld [vmem:[%s4450 + $0xe8] sm:$0xff]
        %v4481 = vld [vmem:[%s4450 + $0xf0] sm:$0xff]
        %v4482 = vld [vmem:[%s4450 + $0xf8] sm:$0xff]
        %v4483 = vld [vmem:[%s4450 + $0x100] sm:$0xff]
        %v4484 = vld [vmem:[%s4450 + $0x108] sm:$0xff]
        %v4485 = vld [vmem:[%s4450 + $0x110] sm:$0xff]
        %v4486 = vld [vmem:[%s4450 + $0x118] sm:$0xff]
        %v4487 = vld [vmem:[%s4450 + $0x120] sm:$0xff]
        %v4488 = vld [vmem:[%s4450 + $0x128] sm:$0xff]
        %v4489 = vld [vmem:[%s4450 + $0x130] sm:$0xff]
        %v4490 = vld [vmem:[%s4450 + $0x138] sm:$0xff]
        %v4491 = vld [vmem:[%s4450 + $0x140] sm:$0xff]
        %v4492 = vld [vmem:[%s4450 + $0x148] sm:$0xff]
        %v4493 = vld [vmem:[%s4450 + $0x150] sm:$0xff]
        %v4494 = vld [vmem:[%s4450 + $0x158] sm:$0xff]
        %v4495 = vld [vmem:[%s4450 + $0x160] sm:$0xff]
        %v4496 = vld [vmem:[%s4450 + $0x168] sm:$0xff]
        %v4497 = vld [vmem:[%s4450 + $0x170] sm:$0xff]
        %v4498 = vld [vmem:[%s4450 + $0x178] sm:$0xff]
        %v4499 = vld [vmem:[%s4450 + $0x180] sm:$0xff]
        %v4500 = vld [vmem:[%s4450 + $0x188] sm:$0xff]
        %v4501 = vld [vmem:[%s4450 + $0x190] sm:$0xff]
        %v4502 = vld [vmem:[%s4450 + $0x198] sm:$0xff]
        %v4503 = vld [vmem:[%s4450 + $0x1a0] sm:$0xff]
        %v4504 = vld [vmem:[%s4450 + $0x1a8] sm:$0xff]
        %v4505 = vld [vmem:[%s4450 + $0x1b0] sm:$0xff]
        %v4506 = vld [vmem:[%s4450 + $0x1b8] sm:$0xff]
        %v4507 = vld [vmem:[%s4450 + $0x1c0] sm:$0xff]
        %v4508 = vld [vmem:[%s4450 + $0x1c8] sm:$0xff]
        %v4509 = vld [vmem:[%s4450 + $0x1d0] sm:$0xff]
        %v4510 = vld [vmem:[%s4450 + $0x1d8] sm:$0xff]
        %v4511 = vld [vmem:[%s4450 + $0x1e0] sm:$0xff]
        %v4512 = vld [vmem:[%s4450 + $0x1e8] sm:$0xff]
        %v4513 = vld [vmem:[%s4450 + $0x1f0] sm:$0xff]
        %v4514 = vld [vmem:[%s4450 + $0x1f8] sm:$0xff]
        %4515 = vmatpush.msra.mxu0 %v4511
        %4516 = vmatpush.msra.mxu0 %v4507
        %4517 = vmatpush.msra.mxu0 %v4503
        %4518 = vmatpush.msra.mxu0 %v4499
        %4519 = vmatpush.msra.mxu0 %v4495
        %4520 = vmatpush.msra.mxu0 %v4491
        %4521 = vmatpush.msra.mxu0 %v4487
        %4522 = vmatpush.msra.mxu0 %v4483
        %4523 = vmatpush.msra.mxu0 %v4479
        %4524 = vmatpush.msra.mxu0 %v4475
        %4525 = vmatpush.msra.mxu0 %v4471
        %4526 = vmatpush.msra.mxu0 %v4467
        %4527 = vmatpush.msra.mxu0 %v4463
        %4528 = vmatpush.msra.mxu0 %v4459
        %4529 = vmatpush.msra.mxu0 %v4455
        %4530 = vmatpush.msra.mxu0 %v4451
        %4531 = vmatmul.f32.gmra.mxu0 %v4449
        %v4532 = vpop.f32.mrf.mxu0
        %v4533 = vadd.f32 0.0, %v4532
        %4534 = vdwg.mxu0
        %4535 = vmatpush.msra.mxu0 %v4512
        %4536 = vmatpush.msra.mxu0 %v4508
        %4537 = vmatpush.msra.mxu0 %v4504
        %4538 = vmatpush.msra.mxu0 %v4500
        %4539 = vmatpush.msra.mxu0 %v4496
        %4540 = vmatpush.msra.mxu0 %v4492
        %4541 = vmatpush.msra.mxu0 %v4488
        %4542 = vmatpush.msra.mxu0 %v4484
        %4543 = vmatpush.msra.mxu0 %v4480
        %4544 = vmatpush.msra.mxu0 %v4476
        %4545 = vmatpush.msra.mxu0 %v4472
        %4546 = vmatpush.msra.mxu0 %v4468
        %4547 = vmatpush.msra.mxu0 %v4464
        %4548 = vmatpush.msra.mxu0 %v4460
        %4549 = vmatpush.msra.mxu0 %v4456
        %4550 = vmatpush.msra.mxu0 %v4452
        %4551 = vmatmul.f32.gmra.mxu0 %v4449
        %v4552 = vpop.f32.mrf.mxu0
        %v4553 = vadd.f32 0.0, %v4552
        %4554 = vdwg.mxu0
        %4555 = vmatpush.msra.mxu0 %v4513
        %4556 = vmatpush.msra.mxu0 %v4509
        %4557 = vmatpush.msra.mxu0 %v4505
        %4558 = vmatpush.msra.mxu0 %v4501
        %4559 = vmatpush.msra.mxu0 %v4497
        %4560 = vmatpush.msra.mxu0 %v4493
        %4561 = vmatpush.msra.mxu0 %v4489
        %4562 = vmatpush.msra.mxu0 %v4485
        %4563 = vmatpush.msra.mxu0 %v4481
        %4564 = vmatpush.msra.mxu0 %v4477
        %4565 = vmatpush.msra.mxu0 %v4473
        %4566 = vmatpush.msra.mxu0 %v4469
        %4567 = vmatpush.msra.mxu0 %v4465
        %4568 = vmatpush.msra.mxu0 %v4461
        %4569 = vmatpush.msra.mxu0 %v4457
        %4570 = vmatpush.msra.mxu0 %v4453
        %4571 = vmatmul.f32.gmra.mxu0 %v4449
        %v4572 = vpop.f32.mrf.mxu0
        %v4573 = vadd.f32 0.0, %v4572
        %4574 = vdwg.mxu0
        %4575 = vmatpush.msra.mxu0 %v4514
        %4576 = vmatpush.msra.mxu0 %v4510
        %4577 = vmatpush.msra.mxu0 %v4506
        %4578 = vmatpush.msra.mxu0 %v4502
        %4579 = vmatpush.msra.mxu0 %v4498
        %4580 = vmatpush.msra.mxu0 %v4494
        %4581 = vmatpush.msra.mxu0 %v4490
        %4582 = vmatpush.msra.mxu0 %v4486
        %4583 = vmatpush.msra.mxu0 %v4482
        %4584 = vmatpush.msra.mxu0 %v4478
        %4585 = vmatpush.msra.mxu0 %v4474
        %4586 = vmatpush.msra.mxu0 %v4470
        %4587 = vmatpush.msra.mxu0 %v4466
        %4588 = vmatpush.msra.mxu0 %v4462
        %4589 = vmatpush.msra.mxu0 %v4458
        %4590 = vmatpush.msra.mxu0 %v4454
        %4591 = vmatmul.f32.gmra.mxu0 %v4449
        %v4592 = vpop.f32.mrf.mxu0
        %v4593 = vadd.f32 0.0, %v4592
        %4594 = vdwg.mxu0
        %v4595 = vadd.f32 %v4445, %v4533
        %v4596 = vadd.f32 %v4446, %v4553
        %v4597 = vadd.f32 %v4447, %v4573
        %v4598 = vadd.f32 %v4448, %v4593
        %v4599 = vld [vmem:[#allocation2 + $0x20] sm:$0x3]
        %s4600 = scalar_lea.vmem %s465, 8192 [#allocation14]
        %v4601 = vld [vmem:[%s4600] sm:$0xff]
        %v4602 = vld [vmem:[%s4600 + $0x8] sm:$0xff]
        %v4603 = vld [vmem:[%s4600 + $0x10] sm:$0xff]
        %v4604 = vld [vmem:[%s4600 + $0x18] sm:$0xff]
        %v4605 = vld [vmem:[%s4600 + $0x20] sm:$0xff]
        %v4606 = vld [vmem:[%s4600 + $0x28] sm:$0xff]
        %v4607 = vld [vmem:[%s4600 + $0x30] sm:$0xff]
        %v4608 = vld [vmem:[%s4600 + $0x38] sm:$0xff]
        %v4609 = vld [vmem:[%s4600 + $0x40] sm:$0xff]
        %v4610 = vld [vmem:[%s4600 + $0x48] sm:$0xff]
        %v4611 = vld [vmem:[%s4600 + $0x50] sm:$0xff]
        %v4612 = vld [vmem:[%s4600 + $0x58] sm:$0xff]
        %v4613 = vld [vmem:[%s4600 + $0x60] sm:$0xff]
        %v4614 = vld [vmem:[%s4600 + $0x68] sm:$0xff]
        %v4615 = vld [vmem:[%s4600 + $0x70] sm:$0xff]
        %v4616 = vld [vmem:[%s4600 + $0x78] sm:$0xff]
        %v4617 = vld [vmem:[%s4600 + $0x80] sm:$0xff]
        %v4618 = vld [vmem:[%s4600 + $0x88] sm:$0xff]
        %v4619 = vld [vmem:[%s4600 + $0x90] sm:$0xff]
        %v4620 = vld [vmem:[%s4600 + $0x98] sm:$0xff]
        %v4621 = vld [vmem:[%s4600 + $0xa0] sm:$0xff]
        %v4622 = vld [vmem:[%s4600 + $0xa8] sm:$0xff]
        %v4623 = vld [vmem:[%s4600 + $0xb0] sm:$0xff]
        %v4624 = vld [vmem:[%s4600 + $0xb8] sm:$0xff]
        %v4625 = vld [vmem:[%s4600 + $0xc0] sm:$0xff]
        %v4626 = vld [vmem:[%s4600 + $0xc8] sm:$0xff]
        %v4627 = vld [vmem:[%s4600 + $0xd0] sm:$0xff]
        %v4628 = vld [vmem:[%s4600 + $0xd8] sm:$0xff]
        %v4629 = vld [vmem:[%s4600 + $0xe0] sm:$0xff]
        %v4630 = vld [vmem:[%s4600 + $0xe8] sm:$0xff]
        %v4631 = vld [vmem:[%s4600 + $0xf0] sm:$0xff]
        %v4632 = vld [vmem:[%s4600 + $0xf8] sm:$0xff]
        %v4633 = vld [vmem:[%s4600 + $0x100] sm:$0xff]
        %v4634 = vld [vmem:[%s4600 + $0x108] sm:$0xff]
        %v4635 = vld [vmem:[%s4600 + $0x110] sm:$0xff]
        %v4636 = vld [vmem:[%s4600 + $0x118] sm:$0xff]
        %v4637 = vld [vmem:[%s4600 + $0x120] sm:$0xff]
        %v4638 = vld [vmem:[%s4600 + $0x128] sm:$0xff]
        %v4639 = vld [vmem:[%s4600 + $0x130] sm:$0xff]
        %v4640 = vld [vmem:[%s4600 + $0x138] sm:$0xff]
        %v4641 = vld [vmem:[%s4600 + $0x140] sm:$0xff]
        %v4642 = vld [vmem:[%s4600 + $0x148] sm:$0xff]
        %v4643 = vld [vmem:[%s4600 + $0x150] sm:$0xff]
        %v4644 = vld [vmem:[%s4600 + $0x158] sm:$0xff]
        %v4645 = vld [vmem:[%s4600 + $0x160] sm:$0xff]
        %v4646 = vld [vmem:[%s4600 + $0x168] sm:$0xff]
        %v4647 = vld [vmem:[%s4600 + $0x170] sm:$0xff]
        %v4648 = vld [vmem:[%s4600 + $0x178] sm:$0xff]
        %v4649 = vld [vmem:[%s4600 + $0x180] sm:$0xff]
        %v4650 = vld [vmem:[%s4600 + $0x188] sm:$0xff]
        %v4651 = vld [vmem:[%s4600 + $0x190] sm:$0xff]
        %v4652 = vld [vmem:[%s4600 + $0x198] sm:$0xff]
        %v4653 = vld [vmem:[%s4600 + $0x1a0] sm:$0xff]
        %v4654 = vld [vmem:[%s4600 + $0x1a8] sm:$0xff]
        %v4655 = vld [vmem:[%s4600 + $0x1b0] sm:$0xff]
        %v4656 = vld [vmem:[%s4600 + $0x1b8] sm:$0xff]
        %v4657 = vld [vmem:[%s4600 + $0x1c0] sm:$0xff]
        %v4658 = vld [vmem:[%s4600 + $0x1c8] sm:$0xff]
        %v4659 = vld [vmem:[%s4600 + $0x1d0] sm:$0xff]
        %v4660 = vld [vmem:[%s4600 + $0x1d8] sm:$0xff]
        %v4661 = vld [vmem:[%s4600 + $0x1e0] sm:$0xff]
        %v4662 = vld [vmem:[%s4600 + $0x1e8] sm:$0xff]
        %v4663 = vld [vmem:[%s4600 + $0x1f0] sm:$0xff]
        %v4664 = vld [vmem:[%s4600 + $0x1f8] sm:$0xff]
        %4665 = vmatpush.msra.mxu0 %v4661
        %4666 = vmatpush.msra.mxu0 %v4657
        %4667 = vmatpush.msra.mxu0 %v4653
        %4668 = vmatpush.msra.mxu0 %v4649
        %4669 = vmatpush.msra.mxu0 %v4645
        %4670 = vmatpush.msra.mxu0 %v4641
        %4671 = vmatpush.msra.mxu0 %v4637
        %4672 = vmatpush.msra.mxu0 %v4633
        %4673 = vmatpush.msra.mxu0 %v4629
        %4674 = vmatpush.msra.mxu0 %v4625
        %4675 = vmatpush.msra.mxu0 %v4621
        %4676 = vmatpush.msra.mxu0 %v4617
        %4677 = vmatpush.msra.mxu0 %v4613
        %4678 = vmatpush.msra.mxu0 %v4609
        %4679 = vmatpush.msra.mxu0 %v4605
        %4680 = vmatpush.msra.mxu0 %v4601
        %4681 = vmatmul.f32.gmra.mxu0 %v4599
        %v4682 = vpop.f32.mrf.mxu0
        %v4683 = vadd.f32 0.0, %v4682
        %4684 = vdwg.mxu0
        %4685 = vmatpush.msra.mxu0 %v4662
        %4686 = vmatpush.msra.mxu0 %v4658
        %4687 = vmatpush.msra.mxu0 %v4654
        %4688 = vmatpush.msra.mxu0 %v4650
        %4689 = vmatpush.msra.mxu0 %v4646
        %4690 = vmatpush.msra.mxu0 %v4642
        %4691 = vmatpush.msra.mxu0 %v4638
        %4692 = vmatpush.msra.mxu0 %v4634
        %4693 = vmatpush.msra.mxu0 %v4630
        %4694 = vmatpush.msra.mxu0 %v4626
        %4695 = vmatpush.msra.mxu0 %v4622
        %4696 = vmatpush.msra.mxu0 %v4618
        %4697 = vmatpush.msra.mxu0 %v4614
        %4698 = vmatpush.msra.mxu0 %v4610
        %4699 = vmatpush.msra.mxu0 %v4606
        %4700 = vmatpush.msra.mxu0 %v4602
        %4701 = vmatmul.f32.gmra.mxu0 %v4599
        %v4702 = vpop.f32.mrf.mxu0
        %v4703 = vadd.f32 0.0, %v4702
        %4704 = vdwg.mxu0
        %4705 = vmatpush.msra.mxu0 %v4663
        %4706 = vmatpush.msra.mxu0 %v4659
        %4707 = vmatpush.msra.mxu0 %v4655
        %4708 = vmatpush.msra.mxu0 %v4651
        %4709 = vmatpush.msra.mxu0 %v4647
        %4710 = vmatpush.msra.mxu0 %v4643
        %4711 = vmatpush.msra.mxu0 %v4639
        %4712 = vmatpush.msra.mxu0 %v4635
        %4713 = vmatpush.msra.mxu0 %v4631
        %4714 = vmatpush.msra.mxu0 %v4627
        %4715 = vmatpush.msra.mxu0 %v4623
        %4716 = vmatpush.msra.mxu0 %v4619
        %4717 = vmatpush.msra.mxu0 %v4615
        %4718 = vmatpush.msra.mxu0 %v4611
        %4719 = vmatpush.msra.mxu0 %v4607
        %4720 = vmatpush.msra.mxu0 %v4603
        %4721 = vmatmul.f32.gmra.mxu0 %v4599
        %v4722 = vpop.f32.mrf.mxu0
        %v4723 = vadd.f32 0.0, %v4722
        %4724 = vdwg.mxu0
        %4725 = vmatpush.msra.mxu0 %v4664
        %4726 = vmatpush.msra.mxu0 %v4660
        %4727 = vmatpush.msra.mxu0 %v4656
        %4728 = vmatpush.msra.mxu0 %v4652
        %4729 = vmatpush.msra.mxu0 %v4648
        %4730 = vmatpush.msra.mxu0 %v4644
        %4731 = vmatpush.msra.mxu0 %v4640
        %4732 = vmatpush.msra.mxu0 %v4636
        %4733 = vmatpush.msra.mxu0 %v4632
        %4734 = vmatpush.msra.mxu0 %v4628
        %4735 = vmatpush.msra.mxu0 %v4624
        %4736 = vmatpush.msra.mxu0 %v4620
        %4737 = vmatpush.msra.mxu0 %v4616
        %4738 = vmatpush.msra.mxu0 %v4612
        %4739 = vmatpush.msra.mxu0 %v4608
        %4740 = vmatpush.msra.mxu0 %v4604
        %4741 = vmatmul.f32.gmra.mxu0 %v4599
        %v4742 = vpop.f32.mrf.mxu0
        %v4743 = vadd.f32 0.0, %v4742
        %4744 = vdwg.mxu0
        %v4745 = vadd.f32 %v4595, %v4683
        %v4746 = vadd.f32 %v4596, %v4703
        %v4747 = vadd.f32 %v4597, %v4723
        %v4748 = vadd.f32 %v4598, %v4743
        %v4749 = vld [vmem:[#allocation2 + $0x22] sm:$0x3]
        %s4750 = scalar_lea.vmem %s465, 8704 [#allocation14]
        %v4751 = vld [vmem:[%s4750] sm:$0xff]
        %v4752 = vld [vmem:[%s4750 + $0x8] sm:$0xff]
        %v4753 = vld [vmem:[%s4750 + $0x10] sm:$0xff]
        %v4754 = vld [vmem:[%s4750 + $0x18] sm:$0xff]
        %v4755 = vld [vmem:[%s4750 + $0x20] sm:$0xff]
        %v4756 = vld [vmem:[%s4750 + $0x28] sm:$0xff]
        %v4757 = vld [vmem:[%s4750 + $0x30] sm:$0xff]
        %v4758 = vld [vmem:[%s4750 + $0x38] sm:$0xff]
        %v4759 = vld [vmem:[%s4750 + $0x40] sm:$0xff]
        %v4760 = vld [vmem:[%s4750 + $0x48] sm:$0xff]
        %v4761 = vld [vmem:[%s4750 + $0x50] sm:$0xff]
        %v4762 = vld [vmem:[%s4750 + $0x58] sm:$0xff]
        %v4763 = vld [vmem:[%s4750 + $0x60] sm:$0xff]
        %v4764 = vld [vmem:[%s4750 + $0x68] sm:$0xff]
        %v4765 = vld [vmem:[%s4750 + $0x70] sm:$0xff]
        %v4766 = vld [vmem:[%s4750 + $0x78] sm:$0xff]
        %v4767 = vld [vmem:[%s4750 + $0x80] sm:$0xff]
        %v4768 = vld [vmem:[%s4750 + $0x88] sm:$0xff]
        %v4769 = vld [vmem:[%s4750 + $0x90] sm:$0xff]
        %v4770 = vld [vmem:[%s4750 + $0x98] sm:$0xff]
        %v4771 = vld [vmem:[%s4750 + $0xa0] sm:$0xff]
        %v4772 = vld [vmem:[%s4750 + $0xa8] sm:$0xff]
        %v4773 = vld [vmem:[%s4750 + $0xb0] sm:$0xff]
        %v4774 = vld [vmem:[%s4750 + $0xb8] sm:$0xff]
        %v4775 = vld [vmem:[%s4750 + $0xc0] sm:$0xff]
        %v4776 = vld [vmem:[%s4750 + $0xc8] sm:$0xff]
        %v4777 = vld [vmem:[%s4750 + $0xd0] sm:$0xff]
        %v4778 = vld [vmem:[%s4750 + $0xd8] sm:$0xff]
        %v4779 = vld [vmem:[%s4750 + $0xe0] sm:$0xff]
        %v4780 = vld [vmem:[%s4750 + $0xe8] sm:$0xff]
        %v4781 = vld [vmem:[%s4750 + $0xf0] sm:$0xff]
        %v4782 = vld [vmem:[%s4750 + $0xf8] sm:$0xff]
        %v4783 = vld [vmem:[%s4750 + $0x100] sm:$0xff]
        %v4784 = vld [vmem:[%s4750 + $0x108] sm:$0xff]
        %v4785 = vld [vmem:[%s4750 + $0x110] sm:$0xff]
        %v4786 = vld [vmem:[%s4750 + $0x118] sm:$0xff]
        %v4787 = vld [vmem:[%s4750 + $0x120] sm:$0xff]
        %v4788 = vld [vmem:[%s4750 + $0x128] sm:$0xff]
        %v4789 = vld [vmem:[%s4750 + $0x130] sm:$0xff]
        %v4790 = vld [vmem:[%s4750 + $0x138] sm:$0xff]
        %v4791 = vld [vmem:[%s4750 + $0x140] sm:$0xff]
        %v4792 = vld [vmem:[%s4750 + $0x148] sm:$0xff]
        %v4793 = vld [vmem:[%s4750 + $0x150] sm:$0xff]
        %v4794 = vld [vmem:[%s4750 + $0x158] sm:$0xff]
        %v4795 = vld [vmem:[%s4750 + $0x160] sm:$0xff]
        %v4796 = vld [vmem:[%s4750 + $0x168] sm:$0xff]
        %v4797 = vld [vmem:[%s4750 + $0x170] sm:$0xff]
        %v4798 = vld [vmem:[%s4750 + $0x178] sm:$0xff]
        %v4799 = vld [vmem:[%s4750 + $0x180] sm:$0xff]
        %v4800 = vld [vmem:[%s4750 + $0x188] sm:$0xff]
        %v4801 = vld [vmem:[%s4750 + $0x190] sm:$0xff]
        %v4802 = vld [vmem:[%s4750 + $0x198] sm:$0xff]
        %v4803 = vld [vmem:[%s4750 + $0x1a0] sm:$0xff]
        %v4804 = vld [vmem:[%s4750 + $0x1a8] sm:$0xff]
        %v4805 = vld [vmem:[%s4750 + $0x1b0] sm:$0xff]
        %v4806 = vld [vmem:[%s4750 + $0x1b8] sm:$0xff]
        %v4807 = vld [vmem:[%s4750 + $0x1c0] sm:$0xff]
        %v4808 = vld [vmem:[%s4750 + $0x1c8] sm:$0xff]
        %v4809 = vld [vmem:[%s4750 + $0x1d0] sm:$0xff]
        %v4810 = vld [vmem:[%s4750 + $0x1d8] sm:$0xff]
        %v4811 = vld [vmem:[%s4750 + $0x1e0] sm:$0xff]
        %v4812 = vld [vmem:[%s4750 + $0x1e8] sm:$0xff]
        %v4813 = vld [vmem:[%s4750 + $0x1f0] sm:$0xff]
        %v4814 = vld [vmem:[%s4750 + $0x1f8] sm:$0xff]
        %4815 = vmatpush.msra.mxu0 %v4811
        %4816 = vmatpush.msra.mxu0 %v4807
        %4817 = vmatpush.msra.mxu0 %v4803
        %4818 = vmatpush.msra.mxu0 %v4799
        %4819 = vmatpush.msra.mxu0 %v4795
        %4820 = vmatpush.msra.mxu0 %v4791
        %4821 = vmatpush.msra.mxu0 %v4787
        %4822 = vmatpush.msra.mxu0 %v4783
        %4823 = vmatpush.msra.mxu0 %v4779
        %4824 = vmatpush.msra.mxu0 %v4775
        %4825 = vmatpush.msra.mxu0 %v4771
        %4826 = vmatpush.msra.mxu0 %v4767
        %4827 = vmatpush.msra.mxu0 %v4763
        %4828 = vmatpush.msra.mxu0 %v4759
        %4829 = vmatpush.msra.mxu0 %v4755
        %4830 = vmatpush.msra.mxu0 %v4751
        %4831 = vmatmul.f32.gmra.mxu0 %v4749
        %v4832 = vpop.f32.mrf.mxu0
        %v4833 = vadd.f32 0.0, %v4832
        %4834 = vdwg.mxu0
        %4835 = vmatpush.msra.mxu0 %v4812
        %4836 = vmatpush.msra.mxu0 %v4808
        %4837 = vmatpush.msra.mxu0 %v4804
        %4838 = vmatpush.msra.mxu0 %v4800
        %4839 = vmatpush.msra.mxu0 %v4796
        %4840 = vmatpush.msra.mxu0 %v4792
        %4841 = vmatpush.msra.mxu0 %v4788
        %4842 = vmatpush.msra.mxu0 %v4784
        %4843 = vmatpush.msra.mxu0 %v4780
        %4844 = vmatpush.msra.mxu0 %v4776
        %4845 = vmatpush.msra.mxu0 %v4772
        %4846 = vmatpush.msra.mxu0 %v4768
        %4847 = vmatpush.msra.mxu0 %v4764
        %4848 = vmatpush.msra.mxu0 %v4760
        %4849 = vmatpush.msra.mxu0 %v4756
        %4850 = vmatpush.msra.mxu0 %v4752
        %4851 = vmatmul.f32.gmra.mxu0 %v4749
        %v4852 = vpop.f32.mrf.mxu0
        %v4853 = vadd.f32 0.0, %v4852
        %4854 = vdwg.mxu0
        %4855 = vmatpush.msra.mxu0 %v4813
        %4856 = vmatpush.msra.mxu0 %v4809
        %4857 = vmatpush.msra.mxu0 %v4805
        %4858 = vmatpush.msra.mxu0 %v4801
        %4859 = vmatpush.msra.mxu0 %v4797
        %4860 = vmatpush.msra.mxu0 %v4793
        %4861 = vmatpush.msra.mxu0 %v4789
        %4862 = vmatpush.msra.mxu0 %v4785
        %4863 = vmatpush.msra.mxu0 %v4781
        %4864 = vmatpush.msra.mxu0 %v4777
        %4865 = vmatpush.msra.mxu0 %v4773
        %4866 = vmatpush.msra.mxu0 %v4769
        %4867 = vmatpush.msra.mxu0 %v4765
        %4868 = vmatpush.msra.mxu0 %v4761
        %4869 = vmatpush.msra.mxu0 %v4757
        %4870 = vmatpush.msra.mxu0 %v4753
        %4871 = vmatmul.f32.gmra.mxu0 %v4749
        %v4872 = vpop.f32.mrf.mxu0
        %v4873 = vadd.f32 0.0, %v4872
        %4874 = vdwg.mxu0
        %4875 = vmatpush.msra.mxu0 %v4814
        %4876 = vmatpush.msra.mxu0 %v4810
        %4877 = vmatpush.msra.mxu0 %v4806
        %4878 = vmatpush.msra.mxu0 %v4802
        %4879 = vmatpush.msra.mxu0 %v4798
        %4880 = vmatpush.msra.mxu0 %v4794
        %4881 = vmatpush.msra.mxu0 %v4790
        %4882 = vmatpush.msra.mxu0 %v4786
        %4883 = vmatpush.msra.mxu0 %v4782
        %4884 = vmatpush.msra.mxu0 %v4778
        %4885 = vmatpush.msra.mxu0 %v4774
        %4886 = vmatpush.msra.mxu0 %v4770
        %4887 = vmatpush.msra.mxu0 %v4766
        %4888 = vmatpush.msra.mxu0 %v4762
        %4889 = vmatpush.msra.mxu0 %v4758
        %4890 = vmatpush.msra.mxu0 %v4754
        %4891 = vmatmul.f32.gmra.mxu0 %v4749
        %v4892 = vpop.f32.mrf.mxu0
        %v4893 = vadd.f32 0.0, %v4892
        %4894 = vdwg.mxu0
        %v4895 = vadd.f32 %v4745, %v4833
        %v4896 = vadd.f32 %v4746, %v4853
        %v4897 = vadd.f32 %v4747, %v4873
        %v4898 = vadd.f32 %v4748, %v4893
        %v4899 = vld [vmem:[#allocation2 + $0x24] sm:$0x3]
        %s4900 = scalar_lea.vmem %s465, 9216 [#allocation14]
        %v4901 = vld [vmem:[%s4900] sm:$0xff]
        %v4902 = vld [vmem:[%s4900 + $0x8] sm:$0xff]
        %v4903 = vld [vmem:[%s4900 + $0x10] sm:$0xff]
        %v4904 = vld [vmem:[%s4900 + $0x18] sm:$0xff]
        %v4905 = vld [vmem:[%s4900 + $0x20] sm:$0xff]
        %v4906 = vld [vmem:[%s4900 + $0x28] sm:$0xff]
        %v4907 = vld [vmem:[%s4900 + $0x30] sm:$0xff]
        %v4908 = vld [vmem:[%s4900 + $0x38] sm:$0xff]
        %v4909 = vld [vmem:[%s4900 + $0x40] sm:$0xff]
        %v4910 = vld [vmem:[%s4900 + $0x48] sm:$0xff]
        %v4911 = vld [vmem:[%s4900 + $0x50] sm:$0xff]
        %v4912 = vld [vmem:[%s4900 + $0x58] sm:$0xff]
        %v4913 = vld [vmem:[%s4900 + $0x60] sm:$0xff]
        %v4914 = vld [vmem:[%s4900 + $0x68] sm:$0xff]
        %v4915 = vld [vmem:[%s4900 + $0x70] sm:$0xff]
        %v4916 = vld [vmem:[%s4900 + $0x78] sm:$0xff]
        %v4917 = vld [vmem:[%s4900 + $0x80] sm:$0xff]
        %v4918 = vld [vmem:[%s4900 + $0x88] sm:$0xff]
        %v4919 = vld [vmem:[%s4900 + $0x90] sm:$0xff]
        %v4920 = vld [vmem:[%s4900 + $0x98] sm:$0xff]
        %v4921 = vld [vmem:[%s4900 + $0xa0] sm:$0xff]
        %v4922 = vld [vmem:[%s4900 + $0xa8] sm:$0xff]
        %v4923 = vld [vmem:[%s4900 + $0xb0] sm:$0xff]
        %v4924 = vld [vmem:[%s4900 + $0xb8] sm:$0xff]
        %v4925 = vld [vmem:[%s4900 + $0xc0] sm:$0xff]
        %v4926 = vld [vmem:[%s4900 + $0xc8] sm:$0xff]
        %v4927 = vld [vmem:[%s4900 + $0xd0] sm:$0xff]
        %v4928 = vld [vmem:[%s4900 + $0xd8] sm:$0xff]
        %v4929 = vld [vmem:[%s4900 + $0xe0] sm:$0xff]
        %v4930 = vld [vmem:[%s4900 + $0xe8] sm:$0xff]
        %v4931 = vld [vmem:[%s4900 + $0xf0] sm:$0xff]
        %v4932 = vld [vmem:[%s4900 + $0xf8] sm:$0xff]
        %v4933 = vld [vmem:[%s4900 + $0x100] sm:$0xff]
        %v4934 = vld [vmem:[%s4900 + $0x108] sm:$0xff]
        %v4935 = vld [vmem:[%s4900 + $0x110] sm:$0xff]
        %v4936 = vld [vmem:[%s4900 + $0x118] sm:$0xff]
        %v4937 = vld [vmem:[%s4900 + $0x120] sm:$0xff]
        %v4938 = vld [vmem:[%s4900 + $0x128] sm:$0xff]
        %v4939 = vld [vmem:[%s4900 + $0x130] sm:$0xff]
        %v4940 = vld [vmem:[%s4900 + $0x138] sm:$0xff]
        %v4941 = vld [vmem:[%s4900 + $0x140] sm:$0xff]
        %v4942 = vld [vmem:[%s4900 + $0x148] sm:$0xff]
        %v4943 = vld [vmem:[%s4900 + $0x150] sm:$0xff]
        %v4944 = vld [vmem:[%s4900 + $0x158] sm:$0xff]
        %v4945 = vld [vmem:[%s4900 + $0x160] sm:$0xff]
        %v4946 = vld [vmem:[%s4900 + $0x168] sm:$0xff]
        %v4947 = vld [vmem:[%s4900 + $0x170] sm:$0xff]
        %v4948 = vld [vmem:[%s4900 + $0x178] sm:$0xff]
        %v4949 = vld [vmem:[%s4900 + $0x180] sm:$0xff]
        %v4950 = vld [vmem:[%s4900 + $0x188] sm:$0xff]
        %v4951 = vld [vmem:[%s4900 + $0x190] sm:$0xff]
        %v4952 = vld [vmem:[%s4900 + $0x198] sm:$0xff]
        %v4953 = vld [vmem:[%s4900 + $0x1a0] sm:$0xff]
        %v4954 = vld [vmem:[%s4900 + $0x1a8] sm:$0xff]
        %v4955 = vld [vmem:[%s4900 + $0x1b0] sm:$0xff]
        %v4956 = vld [vmem:[%s4900 + $0x1b8] sm:$0xff]
        %v4957 = vld [vmem:[%s4900 + $0x1c0] sm:$0xff]
        %v4958 = vld [vmem:[%s4900 + $0x1c8] sm:$0xff]
        %v4959 = vld [vmem:[%s4900 + $0x1d0] sm:$0xff]
        %v4960 = vld [vmem:[%s4900 + $0x1d8] sm:$0xff]
        %v4961 = vld [vmem:[%s4900 + $0x1e0] sm:$0xff]
        %v4962 = vld [vmem:[%s4900 + $0x1e8] sm:$0xff]
        %v4963 = vld [vmem:[%s4900 + $0x1f0] sm:$0xff]
        %v4964 = vld [vmem:[%s4900 + $0x1f8] sm:$0xff]
        %4965 = vmatpush.msra.mxu0 %v4961
        %4966 = vmatpush.msra.mxu0 %v4957
        %4967 = vmatpush.msra.mxu0 %v4953
        %4968 = vmatpush.msra.mxu0 %v4949
        %4969 = vmatpush.msra.mxu0 %v4945
        %4970 = vmatpush.msra.mxu0 %v4941
        %4971 = vmatpush.msra.mxu0 %v4937
        %4972 = vmatpush.msra.mxu0 %v4933
        %4973 = vmatpush.msra.mxu0 %v4929
        %4974 = vmatpush.msra.mxu0 %v4925
        %4975 = vmatpush.msra.mxu0 %v4921
        %4976 = vmatpush.msra.mxu0 %v4917
        %4977 = vmatpush.msra.mxu0 %v4913
        %4978 = vmatpush.msra.mxu0 %v4909
        %4979 = vmatpush.msra.mxu0 %v4905
        %4980 = vmatpush.msra.mxu0 %v4901
        %4981 = vmatmul.f32.gmra.mxu0 %v4899
        %v4982 = vpop.f32.mrf.mxu0
        %v4983 = vadd.f32 0.0, %v4982
        %4984 = vdwg.mxu0
        %4985 = vmatpush.msra.mxu0 %v4962
        %4986 = vmatpush.msra.mxu0 %v4958
        %4987 = vmatpush.msra.mxu0 %v4954
        %4988 = vmatpush.msra.mxu0 %v4950
        %4989 = vmatpush.msra.mxu0 %v4946
        %4990 = vmatpush.msra.mxu0 %v4942
        %4991 = vmatpush.msra.mxu0 %v4938
        %4992 = vmatpush.msra.mxu0 %v4934
        %4993 = vmatpush.msra.mxu0 %v4930
        %4994 = vmatpush.msra.mxu0 %v4926
        %4995 = vmatpush.msra.mxu0 %v4922
        %4996 = vmatpush.msra.mxu0 %v4918
        %4997 = vmatpush.msra.mxu0 %v4914
        %4998 = vmatpush.msra.mxu0 %v4910
        %4999 = vmatpush.msra.mxu0 %v4906
        %5000 = vmatpush.msra.mxu0 %v4902
        %5001 = vmatmul.f32.gmra.mxu0 %v4899
        %v5002 = vpop.f32.mrf.mxu0
        %v5003 = vadd.f32 0.0, %v5002
        %5004 = vdwg.mxu0
        %5005 = vmatpush.msra.mxu0 %v4963
        %5006 = vmatpush.msra.mxu0 %v4959
        %5007 = vmatpush.msra.mxu0 %v4955
        %5008 = vmatpush.msra.mxu0 %v4951
        %5009 = vmatpush.msra.mxu0 %v4947
        %5010 = vmatpush.msra.mxu0 %v4943
        %5011 = vmatpush.msra.mxu0 %v4939
        %5012 = vmatpush.msra.mxu0 %v4935
        %5013 = vmatpush.msra.mxu0 %v4931
        %5014 = vmatpush.msra.mxu0 %v4927
        %5015 = vmatpush.msra.mxu0 %v4923
        %5016 = vmatpush.msra.mxu0 %v4919
        %5017 = vmatpush.msra.mxu0 %v4915
        %5018 = vmatpush.msra.mxu0 %v4911
        %5019 = vmatpush.msra.mxu0 %v4907
        %5020 = vmatpush.msra.mxu0 %v4903
        %5021 = vmatmul.f32.gmra.mxu0 %v4899
        %v5022 = vpop.f32.mrf.mxu0
        %v5023 = vadd.f32 0.0, %v5022
        %5024 = vdwg.mxu0
        %5025 = vmatpush.msra.mxu0 %v4964
        %5026 = vmatpush.msra.mxu0 %v4960
        %5027 = vmatpush.msra.mxu0 %v4956
        %5028 = vmatpush.msra.mxu0 %v4952
        %5029 = vmatpush.msra.mxu0 %v4948
        %5030 = vmatpush.msra.mxu0 %v4944
        %5031 = vmatpush.msra.mxu0 %v4940
        %5032 = vmatpush.msra.mxu0 %v4936
        %5033 = vmatpush.msra.mxu0 %v4932
        %5034 = vmatpush.msra.mxu0 %v4928
        %5035 = vmatpush.msra.mxu0 %v4924
        %5036 = vmatpush.msra.mxu0 %v4920
        %5037 = vmatpush.msra.mxu0 %v4916
        %5038 = vmatpush.msra.mxu0 %v4912
        %5039 = vmatpush.msra.mxu0 %v4908
        %5040 = vmatpush.msra.mxu0 %v4904
        %5041 = vmatmul.f32.gmra.mxu0 %v4899
        %v5042 = vpop.f32.mrf.mxu0
        %v5043 = vadd.f32 0.0, %v5042
        %5044 = vdwg.mxu0
        %v5045 = vadd.f32 %v4895, %v4983
        %v5046 = vadd.f32 %v4896, %v5003
        %v5047 = vadd.f32 %v4897, %v5023
        %v5048 = vadd.f32 %v4898, %v5043
        %v5049 = vld [vmem:[#allocation2 + $0x26] sm:$0x3]
        %s5050 = scalar_lea.vmem %s465, 9728 [#allocation14]
        %v5051 = vld [vmem:[%s5050] sm:$0xff]
        %v5052 = vld [vmem:[%s5050 + $0x8] sm:$0xff]
        %v5053 = vld [vmem:[%s5050 + $0x10] sm:$0xff]
        %v5054 = vld [vmem:[%s5050 + $0x18] sm:$0xff]
        %v5055 = vld [vmem:[%s5050 + $0x20] sm:$0xff]
        %v5056 = vld [vmem:[%s5050 + $0x28] sm:$0xff]
        %v5057 = vld [vmem:[%s5050 + $0x30] sm:$0xff]
        %v5058 = vld [vmem:[%s5050 + $0x38] sm:$0xff]
        %v5059 = vld [vmem:[%s5050 + $0x40] sm:$0xff]
        %v5060 = vld [vmem:[%s5050 + $0x48] sm:$0xff]
        %v5061 = vld [vmem:[%s5050 + $0x50] sm:$0xff]
        %v5062 = vld [vmem:[%s5050 + $0x58] sm:$0xff]
        %v5063 = vld [vmem:[%s5050 + $0x60] sm:$0xff]
        %v5064 = vld [vmem:[%s5050 + $0x68] sm:$0xff]
        %v5065 = vld [vmem:[%s5050 + $0x70] sm:$0xff]
        %v5066 = vld [vmem:[%s5050 + $0x78] sm:$0xff]
        %v5067 = vld [vmem:[%s5050 + $0x80] sm:$0xff]
        %v5068 = vld [vmem:[%s5050 + $0x88] sm:$0xff]
        %v5069 = vld [vmem:[%s5050 + $0x90] sm:$0xff]
        %v5070 = vld [vmem:[%s5050 + $0x98] sm:$0xff]
        %v5071 = vld [vmem:[%s5050 + $0xa0] sm:$0xff]
        %v5072 = vld [vmem:[%s5050 + $0xa8] sm:$0xff]
        %v5073 = vld [vmem:[%s5050 + $0xb0] sm:$0xff]
        %v5074 = vld [vmem:[%s5050 + $0xb8] sm:$0xff]
        %v5075 = vld [vmem:[%s5050 + $0xc0] sm:$0xff]
        %v5076 = vld [vmem:[%s5050 + $0xc8] sm:$0xff]
        %v5077 = vld [vmem:[%s5050 + $0xd0] sm:$0xff]
        %v5078 = vld [vmem:[%s5050 + $0xd8] sm:$0xff]
        %v5079 = vld [vmem:[%s5050 + $0xe0] sm:$0xff]
        %v5080 = vld [vmem:[%s5050 + $0xe8] sm:$0xff]
        %v5081 = vld [vmem:[%s5050 + $0xf0] sm:$0xff]
        %v5082 = vld [vmem:[%s5050 + $0xf8] sm:$0xff]
        %v5083 = vld [vmem:[%s5050 + $0x100] sm:$0xff]
        %v5084 = vld [vmem:[%s5050 + $0x108] sm:$0xff]
        %v5085 = vld [vmem:[%s5050 + $0x110] sm:$0xff]
        %v5086 = vld [vmem:[%s5050 + $0x118] sm:$0xff]
        %v5087 = vld [vmem:[%s5050 + $0x120] sm:$0xff]
        %v5088 = vld [vmem:[%s5050 + $0x128] sm:$0xff]
        %v5089 = vld [vmem:[%s5050 + $0x130] sm:$0xff]
        %v5090 = vld [vmem:[%s5050 + $0x138] sm:$0xff]
        %v5091 = vld [vmem:[%s5050 + $0x140] sm:$0xff]
        %v5092 = vld [vmem:[%s5050 + $0x148] sm:$0xff]
        %v5093 = vld [vmem:[%s5050 + $0x150] sm:$0xff]
        %v5094 = vld [vmem:[%s5050 + $0x158] sm:$0xff]
        %v5095 = vld [vmem:[%s5050 + $0x160] sm:$0xff]
        %v5096 = vld [vmem:[%s5050 + $0x168] sm:$0xff]
        %v5097 = vld [vmem:[%s5050 + $0x170] sm:$0xff]
        %v5098 = vld [vmem:[%s5050 + $0x178] sm:$0xff]
        %v5099 = vld [vmem:[%s5050 + $0x180] sm:$0xff]
        %v5100 = vld [vmem:[%s5050 + $0x188] sm:$0xff]
        %v5101 = vld [vmem:[%s5050 + $0x190] sm:$0xff]
        %v5102 = vld [vmem:[%s5050 + $0x198] sm:$0xff]
        %v5103 = vld [vmem:[%s5050 + $0x1a0] sm:$0xff]
        %v5104 = vld [vmem:[%s5050 + $0x1a8] sm:$0xff]
        %v5105 = vld [vmem:[%s5050 + $0x1b0] sm:$0xff]
        %v5106 = vld [vmem:[%s5050 + $0x1b8] sm:$0xff]
        %v5107 = vld [vmem:[%s5050 + $0x1c0] sm:$0xff]
        %v5108 = vld [vmem:[%s5050 + $0x1c8] sm:$0xff]
        %v5109 = vld [vmem:[%s5050 + $0x1d0] sm:$0xff]
        %v5110 = vld [vmem:[%s5050 + $0x1d8] sm:$0xff]
        %v5111 = vld [vmem:[%s5050 + $0x1e0] sm:$0xff]
        %v5112 = vld [vmem:[%s5050 + $0x1e8] sm:$0xff]
        %v5113 = vld [vmem:[%s5050 + $0x1f0] sm:$0xff]
        %v5114 = vld [vmem:[%s5050 + $0x1f8] sm:$0xff]
        %5115 = vmatpush.msra.mxu0 %v5111
        %5116 = vmatpush.msra.mxu0 %v5107
        %5117 = vmatpush.msra.mxu0 %v5103
        %5118 = vmatpush.msra.mxu0 %v5099
        %5119 = vmatpush.msra.mxu0 %v5095
        %5120 = vmatpush.msra.mxu0 %v5091
        %5121 = vmatpush.msra.mxu0 %v5087
        %5122 = vmatpush.msra.mxu0 %v5083
        %5123 = vmatpush.msra.mxu0 %v5079
        %5124 = vmatpush.msra.mxu0 %v5075
        %5125 = vmatpush.msra.mxu0 %v5071
        %5126 = vmatpush.msra.mxu0 %v5067
        %5127 = vmatpush.msra.mxu0 %v5063
        %5128 = vmatpush.msra.mxu0 %v5059
        %5129 = vmatpush.msra.mxu0 %v5055
        %5130 = vmatpush.msra.mxu0 %v5051
        %5131 = vmatmul.f32.gmra.mxu0 %v5049
        %v5132 = vpop.f32.mrf.mxu0
        %v5133 = vadd.f32 0.0, %v5132
        %5134 = vdwg.mxu0
        %5135 = vmatpush.msra.mxu0 %v5112
        %5136 = vmatpush.msra.mxu0 %v5108
        %5137 = vmatpush.msra.mxu0 %v5104
        %5138 = vmatpush.msra.mxu0 %v5100
        %5139 = vmatpush.msra.mxu0 %v5096
        %5140 = vmatpush.msra.mxu0 %v5092
        %5141 = vmatpush.msra.mxu0 %v5088
        %5142 = vmatpush.msra.mxu0 %v5084
        %5143 = vmatpush.msra.mxu0 %v5080
        %5144 = vmatpush.msra.mxu0 %v5076
        %5145 = vmatpush.msra.mxu0 %v5072
        %5146 = vmatpush.msra.mxu0 %v5068
        %5147 = vmatpush.msra.mxu0 %v5064
        %5148 = vmatpush.msra.mxu0 %v5060
        %5149 = vmatpush.msra.mxu0 %v5056
        %5150 = vmatpush.msra.mxu0 %v5052
        %5151 = vmatmul.f32.gmra.mxu0 %v5049
        %v5152 = vpop.f32.mrf.mxu0
        %v5153 = vadd.f32 0.0, %v5152
        %5154 = vdwg.mxu0
        %5155 = vmatpush.msra.mxu0 %v5113
        %5156 = vmatpush.msra.mxu0 %v5109
        %5157 = vmatpush.msra.mxu0 %v5105
        %5158 = vmatpush.msra.mxu0 %v5101
        %5159 = vmatpush.msra.mxu0 %v5097
        %5160 = vmatpush.msra.mxu0 %v5093
        %5161 = vmatpush.msra.mxu0 %v5089
        %5162 = vmatpush.msra.mxu0 %v5085
        %5163 = vmatpush.msra.mxu0 %v5081
        %5164 = vmatpush.msra.mxu0 %v5077
        %5165 = vmatpush.msra.mxu0 %v5073
        %5166 = vmatpush.msra.mxu0 %v5069
        %5167 = vmatpush.msra.mxu0 %v5065
        %5168 = vmatpush.msra.mxu0 %v5061
        %5169 = vmatpush.msra.mxu0 %v5057
        %5170 = vmatpush.msra.mxu0 %v5053
        %5171 = vmatmul.f32.gmra.mxu0 %v5049
        %v5172 = vpop.f32.mrf.mxu0
        %v5173 = vadd.f32 0.0, %v5172
        %5174 = vdwg.mxu0
        %5175 = vmatpush.msra.mxu0 %v5114
        %5176 = vmatpush.msra.mxu0 %v5110
        %5177 = vmatpush.msra.mxu0 %v5106
        %5178 = vmatpush.msra.mxu0 %v5102
        %5179 = vmatpush.msra.mxu0 %v5098
        %5180 = vmatpush.msra.mxu0 %v5094
        %5181 = vmatpush.msra.mxu0 %v5090
        %5182 = vmatpush.msra.mxu0 %v5086
        %5183 = vmatpush.msra.mxu0 %v5082
        %5184 = vmatpush.msra.mxu0 %v5078
        %5185 = vmatpush.msra.mxu0 %v5074
        %5186 = vmatpush.msra.mxu0 %v5070
        %5187 = vmatpush.msra.mxu0 %v5066
        %5188 = vmatpush.msra.mxu0 %v5062
        %5189 = vmatpush.msra.mxu0 %v5058
        %5190 = vmatpush.msra.mxu0 %v5054
        %5191 = vmatmul.f32.gmra.mxu0 %v5049
        %v5192 = vpop.f32.mrf.mxu0
        %v5193 = vadd.f32 0.0, %v5192
        %5194 = vdwg.mxu0
        %v5195 = vadd.f32 %v5045, %v5133
        %v5196 = vadd.f32 %v5046, %v5153
        %v5197 = vadd.f32 %v5047, %v5173
        %v5198 = vadd.f32 %v5048, %v5193
        %v5199 = vld [vmem:[#allocation2 + $0x28] sm:$0x3]
        %s5200 = scalar_lea.vmem %s465, 10240 [#allocation14]
        %v5201 = vld [vmem:[%s5200] sm:$0xff]
        %v5202 = vld [vmem:[%s5200 + $0x8] sm:$0xff]
        %v5203 = vld [vmem:[%s5200 + $0x10] sm:$0xff]
        %v5204 = vld [vmem:[%s5200 + $0x18] sm:$0xff]
        %v5205 = vld [vmem:[%s5200 + $0x20] sm:$0xff]
        %v5206 = vld [vmem:[%s5200 + $0x28] sm:$0xff]
        %v5207 = vld [vmem:[%s5200 + $0x30] sm:$0xff]
        %v5208 = vld [vmem:[%s5200 + $0x38] sm:$0xff]
        %v5209 = vld [vmem:[%s5200 + $0x40] sm:$0xff]
        %v5210 = vld [vmem:[%s5200 + $0x48] sm:$0xff]
        %v5211 = vld [vmem:[%s5200 + $0x50] sm:$0xff]
        %v5212 = vld [vmem:[%s5200 + $0x58] sm:$0xff]
        %v5213 = vld [vmem:[%s5200 + $0x60] sm:$0xff]
        %v5214 = vld [vmem:[%s5200 + $0x68] sm:$0xff]
        %v5215 = vld [vmem:[%s5200 + $0x70] sm:$0xff]
        %v5216 = vld [vmem:[%s5200 + $0x78] sm:$0xff]
        %v5217 = vld [vmem:[%s5200 + $0x80] sm:$0xff]
        %v5218 = vld [vmem:[%s5200 + $0x88] sm:$0xff]
        %v5219 = vld [vmem:[%s5200 + $0x90] sm:$0xff]
        %v5220 = vld [vmem:[%s5200 + $0x98] sm:$0xff]
        %v5221 = vld [vmem:[%s5200 + $0xa0] sm:$0xff]
        %v5222 = vld [vmem:[%s5200 + $0xa8] sm:$0xff]
        %v5223 = vld [vmem:[%s5200 + $0xb0] sm:$0xff]
        %v5224 = vld [vmem:[%s5200 + $0xb8] sm:$0xff]
        %v5225 = vld [vmem:[%s5200 + $0xc0] sm:$0xff]
        %v5226 = vld [vmem:[%s5200 + $0xc8] sm:$0xff]
        %v5227 = vld [vmem:[%s5200 + $0xd0] sm:$0xff]
        %v5228 = vld [vmem:[%s5200 + $0xd8] sm:$0xff]
        %v5229 = vld [vmem:[%s5200 + $0xe0] sm:$0xff]
        %v5230 = vld [vmem:[%s5200 + $0xe8] sm:$0xff]
        %v5231 = vld [vmem:[%s5200 + $0xf0] sm:$0xff]
        %v5232 = vld [vmem:[%s5200 + $0xf8] sm:$0xff]
        %v5233 = vld [vmem:[%s5200 + $0x100] sm:$0xff]
        %v5234 = vld [vmem:[%s5200 + $0x108] sm:$0xff]
        %v5235 = vld [vmem:[%s5200 + $0x110] sm:$0xff]
        %v5236 = vld [vmem:[%s5200 + $0x118] sm:$0xff]
        %v5237 = vld [vmem:[%s5200 + $0x120] sm:$0xff]
        %v5238 = vld [vmem:[%s5200 + $0x128] sm:$0xff]
        %v5239 = vld [vmem:[%s5200 + $0x130] sm:$0xff]
        %v5240 = vld [vmem:[%s5200 + $0x138] sm:$0xff]
        %v5241 = vld [vmem:[%s5200 + $0x140] sm:$0xff]
        %v5242 = vld [vmem:[%s5200 + $0x148] sm:$0xff]
        %v5243 = vld [vmem:[%s5200 + $0x150] sm:$0xff]
        %v5244 = vld [vmem:[%s5200 + $0x158] sm:$0xff]
        %v5245 = vld [vmem:[%s5200 + $0x160] sm:$0xff]
        %v5246 = vld [vmem:[%s5200 + $0x168] sm:$0xff]
        %v5247 = vld [vmem:[%s5200 + $0x170] sm:$0xff]
        %v5248 = vld [vmem:[%s5200 + $0x178] sm:$0xff]
        %v5249 = vld [vmem:[%s5200 + $0x180] sm:$0xff]
        %v5250 = vld [vmem:[%s5200 + $0x188] sm:$0xff]
        %v5251 = vld [vmem:[%s5200 + $0x190] sm:$0xff]
        %v5252 = vld [vmem:[%s5200 + $0x198] sm:$0xff]
        %v5253 = vld [vmem:[%s5200 + $0x1a0] sm:$0xff]
        %v5254 = vld [vmem:[%s5200 + $0x1a8] sm:$0xff]
        %v5255 = vld [vmem:[%s5200 + $0x1b0] sm:$0xff]
        %v5256 = vld [vmem:[%s5200 + $0x1b8] sm:$0xff]
        %v5257 = vld [vmem:[%s5200 + $0x1c0] sm:$0xff]
        %v5258 = vld [vmem:[%s5200 + $0x1c8] sm:$0xff]
        %v5259 = vld [vmem:[%s5200 + $0x1d0] sm:$0xff]
        %v5260 = vld [vmem:[%s5200 + $0x1d8] sm:$0xff]
        %v5261 = vld [vmem:[%s5200 + $0x1e0] sm:$0xff]
        %v5262 = vld [vmem:[%s5200 + $0x1e8] sm:$0xff]
        %v5263 = vld [vmem:[%s5200 + $0x1f0] sm:$0xff]
        %v5264 = vld [vmem:[%s5200 + $0x1f8] sm:$0xff]
        %5265 = vmatpush.msra.mxu0 %v5261
        %5266 = vmatpush.msra.mxu0 %v5257
        %5267 = vmatpush.msra.mxu0 %v5253
        %5268 = vmatpush.msra.mxu0 %v5249
        %5269 = vmatpush.msra.mxu0 %v5245
        %5270 = vmatpush.msra.mxu0 %v5241
        %5271 = vmatpush.msra.mxu0 %v5237
        %5272 = vmatpush.msra.mxu0 %v5233
        %5273 = vmatpush.msra.mxu0 %v5229
        %5274 = vmatpush.msra.mxu0 %v5225
        %5275 = vmatpush.msra.mxu0 %v5221
        %5276 = vmatpush.msra.mxu0 %v5217
        %5277 = vmatpush.msra.mxu0 %v5213
        %5278 = vmatpush.msra.mxu0 %v5209
        %5279 = vmatpush.msra.mxu0 %v5205
        %5280 = vmatpush.msra.mxu0 %v5201
        %5281 = vmatmul.f32.gmra.mxu0 %v5199
        %v5282 = vpop.f32.mrf.mxu0
        %v5283 = vadd.f32 0.0, %v5282
        %5284 = vdwg.mxu0
        %5285 = vmatpush.msra.mxu0 %v5262
        %5286 = vmatpush.msra.mxu0 %v5258
        %5287 = vmatpush.msra.mxu0 %v5254
        %5288 = vmatpush.msra.mxu0 %v5250
        %5289 = vmatpush.msra.mxu0 %v5246
        %5290 = vmatpush.msra.mxu0 %v5242
        %5291 = vmatpush.msra.mxu0 %v5238
        %5292 = vmatpush.msra.mxu0 %v5234
        %5293 = vmatpush.msra.mxu0 %v5230
        %5294 = vmatpush.msra.mxu0 %v5226
        %5295 = vmatpush.msra.mxu0 %v5222
        %5296 = vmatpush.msra.mxu0 %v5218
        %5297 = vmatpush.msra.mxu0 %v5214
        %5298 = vmatpush.msra.mxu0 %v5210
        %5299 = vmatpush.msra.mxu0 %v5206
        %5300 = vmatpush.msra.mxu0 %v5202
        %5301 = vmatmul.f32.gmra.mxu0 %v5199
        %v5302 = vpop.f32.mrf.mxu0
        %v5303 = vadd.f32 0.0, %v5302
        %5304 = vdwg.mxu0
        %5305 = vmatpush.msra.mxu0 %v5263
        %5306 = vmatpush.msra.mxu0 %v5259
        %5307 = vmatpush.msra.mxu0 %v5255
        %5308 = vmatpush.msra.mxu0 %v5251
        %5309 = vmatpush.msra.mxu0 %v5247
        %5310 = vmatpush.msra.mxu0 %v5243
        %5311 = vmatpush.msra.mxu0 %v5239
        %5312 = vmatpush.msra.mxu0 %v5235
        %5313 = vmatpush.msra.mxu0 %v5231
        %5314 = vmatpush.msra.mxu0 %v5227
        %5315 = vmatpush.msra.mxu0 %v5223
        %5316 = vmatpush.msra.mxu0 %v5219
        %5317 = vmatpush.msra.mxu0 %v5215
        %5318 = vmatpush.msra.mxu0 %v5211
        %5319 = vmatpush.msra.mxu0 %v5207
        %5320 = vmatpush.msra.mxu0 %v5203
        %5321 = vmatmul.f32.gmra.mxu0 %v5199
        %v5322 = vpop.f32.mrf.mxu0
        %v5323 = vadd.f32 0.0, %v5322
        %5324 = vdwg.mxu0
        %5325 = vmatpush.msra.mxu0 %v5264
        %5326 = vmatpush.msra.mxu0 %v5260
        %5327 = vmatpush.msra.mxu0 %v5256
        %5328 = vmatpush.msra.mxu0 %v5252
        %5329 = vmatpush.msra.mxu0 %v5248
        %5330 = vmatpush.msra.mxu0 %v5244
        %5331 = vmatpush.msra.mxu0 %v5240
        %5332 = vmatpush.msra.mxu0 %v5236
        %5333 = vmatpush.msra.mxu0 %v5232
        %5334 = vmatpush.msra.mxu0 %v5228
        %5335 = vmatpush.msra.mxu0 %v5224
        %5336 = vmatpush.msra.mxu0 %v5220
        %5337 = vmatpush.msra.mxu0 %v5216
        %5338 = vmatpush.msra.mxu0 %v5212
        %5339 = vmatpush.msra.mxu0 %v5208
        %5340 = vmatpush.msra.mxu0 %v5204
        %5341 = vmatmul.f32.gmra.mxu0 %v5199
        %v5342 = vpop.f32.mrf.mxu0
        %v5343 = vadd.f32 0.0, %v5342
        %5344 = vdwg.mxu0
        %v5345 = vadd.f32 %v5195, %v5283
        %v5346 = vadd.f32 %v5196, %v5303
        %v5347 = vadd.f32 %v5197, %v5323
        %v5348 = vadd.f32 %v5198, %v5343
        %v5349 = vld [vmem:[#allocation2 + $0x2a] sm:$0x3]
        %s5350 = scalar_lea.vmem %s465, 10752 [#allocation14]
        %v5351 = vld [vmem:[%s5350] sm:$0xff]
        %v5352 = vld [vmem:[%s5350 + $0x8] sm:$0xff]
        %v5353 = vld [vmem:[%s5350 + $0x10] sm:$0xff]
        %v5354 = vld [vmem:[%s5350 + $0x18] sm:$0xff]
        %v5355 = vld [vmem:[%s5350 + $0x20] sm:$0xff]
        %v5356 = vld [vmem:[%s5350 + $0x28] sm:$0xff]
        %v5357 = vld [vmem:[%s5350 + $0x30] sm:$0xff]
        %v5358 = vld [vmem:[%s5350 + $0x38] sm:$0xff]
        %v5359 = vld [vmem:[%s5350 + $0x40] sm:$0xff]
        %v5360 = vld [vmem:[%s5350 + $0x48] sm:$0xff]
        %v5361 = vld [vmem:[%s5350 + $0x50] sm:$0xff]
        %v5362 = vld [vmem:[%s5350 + $0x58] sm:$0xff]
        %v5363 = vld [vmem:[%s5350 + $0x60] sm:$0xff]
        %v5364 = vld [vmem:[%s5350 + $0x68] sm:$0xff]
        %v5365 = vld [vmem:[%s5350 + $0x70] sm:$0xff]
        %v5366 = vld [vmem:[%s5350 + $0x78] sm:$0xff]
        %v5367 = vld [vmem:[%s5350 + $0x80] sm:$0xff]
        %v5368 = vld [vmem:[%s5350 + $0x88] sm:$0xff]
        %v5369 = vld [vmem:[%s5350 + $0x90] sm:$0xff]
        %v5370 = vld [vmem:[%s5350 + $0x98] sm:$0xff]
        %v5371 = vld [vmem:[%s5350 + $0xa0] sm:$0xff]
        %v5372 = vld [vmem:[%s5350 + $0xa8] sm:$0xff]
        %v5373 = vld [vmem:[%s5350 + $0xb0] sm:$0xff]
        %v5374 = vld [vmem:[%s5350 + $0xb8] sm:$0xff]
        %v5375 = vld [vmem:[%s5350 + $0xc0] sm:$0xff]
        %v5376 = vld [vmem:[%s5350 + $0xc8] sm:$0xff]
        %v5377 = vld [vmem:[%s5350 + $0xd0] sm:$0xff]
        %v5378 = vld [vmem:[%s5350 + $0xd8] sm:$0xff]
        %v5379 = vld [vmem:[%s5350 + $0xe0] sm:$0xff]
        %v5380 = vld [vmem:[%s5350 + $0xe8] sm:$0xff]
        %v5381 = vld [vmem:[%s5350 + $0xf0] sm:$0xff]
        %v5382 = vld [vmem:[%s5350 + $0xf8] sm:$0xff]
        %v5383 = vld [vmem:[%s5350 + $0x100] sm:$0xff]
        %v5384 = vld [vmem:[%s5350 + $0x108] sm:$0xff]
        %v5385 = vld [vmem:[%s5350 + $0x110] sm:$0xff]
        %v5386 = vld [vmem:[%s5350 + $0x118] sm:$0xff]
        %v5387 = vld [vmem:[%s5350 + $0x120] sm:$0xff]
        %v5388 = vld [vmem:[%s5350 + $0x128] sm:$0xff]
        %v5389 = vld [vmem:[%s5350 + $0x130] sm:$0xff]
        %v5390 = vld [vmem:[%s5350 + $0x138] sm:$0xff]
        %v5391 = vld [vmem:[%s5350 + $0x140] sm:$0xff]
        %v5392 = vld [vmem:[%s5350 + $0x148] sm:$0xff]
        %v5393 = vld [vmem:[%s5350 + $0x150] sm:$0xff]
        %v5394 = vld [vmem:[%s5350 + $0x158] sm:$0xff]
        %v5395 = vld [vmem:[%s5350 + $0x160] sm:$0xff]
        %v5396 = vld [vmem:[%s5350 + $0x168] sm:$0xff]
        %v5397 = vld [vmem:[%s5350 + $0x170] sm:$0xff]
        %v5398 = vld [vmem:[%s5350 + $0x178] sm:$0xff]
        %v5399 = vld [vmem:[%s5350 + $0x180] sm:$0xff]
        %v5400 = vld [vmem:[%s5350 + $0x188] sm:$0xff]
        %v5401 = vld [vmem:[%s5350 + $0x190] sm:$0xff]
        %v5402 = vld [vmem:[%s5350 + $0x198] sm:$0xff]
        %v5403 = vld [vmem:[%s5350 + $0x1a0] sm:$0xff]
        %v5404 = vld [vmem:[%s5350 + $0x1a8] sm:$0xff]
        %v5405 = vld [vmem:[%s5350 + $0x1b0] sm:$0xff]
        %v5406 = vld [vmem:[%s5350 + $0x1b8] sm:$0xff]
        %v5407 = vld [vmem:[%s5350 + $0x1c0] sm:$0xff]
        %v5408 = vld [vmem:[%s5350 + $0x1c8] sm:$0xff]
        %v5409 = vld [vmem:[%s5350 + $0x1d0] sm:$0xff]
        %v5410 = vld [vmem:[%s5350 + $0x1d8] sm:$0xff]
        %v5411 = vld [vmem:[%s5350 + $0x1e0] sm:$0xff]
        %v5412 = vld [vmem:[%s5350 + $0x1e8] sm:$0xff]
        %v5413 = vld [vmem:[%s5350 + $0x1f0] sm:$0xff]
        %v5414 = vld [vmem:[%s5350 + $0x1f8] sm:$0xff]
        %5415 = vmatpush.msra.mxu0 %v5411
        %5416 = vmatpush.msra.mxu0 %v5407
        %5417 = vmatpush.msra.mxu0 %v5403
        %5418 = vmatpush.msra.mxu0 %v5399
        %5419 = vmatpush.msra.mxu0 %v5395
        %5420 = vmatpush.msra.mxu0 %v5391
        %5421 = vmatpush.msra.mxu0 %v5387
        %5422 = vmatpush.msra.mxu0 %v5383
        %5423 = vmatpush.msra.mxu0 %v5379
        %5424 = vmatpush.msra.mxu0 %v5375
        %5425 = vmatpush.msra.mxu0 %v5371
        %5426 = vmatpush.msra.mxu0 %v5367
        %5427 = vmatpush.msra.mxu0 %v5363
        %5428 = vmatpush.msra.mxu0 %v5359
        %5429 = vmatpush.msra.mxu0 %v5355
        %5430 = vmatpush.msra.mxu0 %v5351
        %5431 = vmatmul.f32.gmra.mxu0 %v5349
        %v5432 = vpop.f32.mrf.mxu0
        %v5433 = vadd.f32 0.0, %v5432
        %5434 = vdwg.mxu0
        %5435 = vmatpush.msra.mxu0 %v5412
        %5436 = vmatpush.msra.mxu0 %v5408
        %5437 = vmatpush.msra.mxu0 %v5404
        %5438 = vmatpush.msra.mxu0 %v5400
        %5439 = vmatpush.msra.mxu0 %v5396
        %5440 = vmatpush.msra.mxu0 %v5392
        %5441 = vmatpush.msra.mxu0 %v5388
        %5442 = vmatpush.msra.mxu0 %v5384
        %5443 = vmatpush.msra.mxu0 %v5380
        %5444 = vmatpush.msra.mxu0 %v5376
        %5445 = vmatpush.msra.mxu0 %v5372
        %5446 = vmatpush.msra.mxu0 %v5368
        %5447 = vmatpush.msra.mxu0 %v5364
        %5448 = vmatpush.msra.mxu0 %v5360
        %5449 = vmatpush.msra.mxu0 %v5356
        %5450 = vmatpush.msra.mxu0 %v5352
        %5451 = vmatmul.f32.gmra.mxu0 %v5349
        %v5452 = vpop.f32.mrf.mxu0
        %v5453 = vadd.f32 0.0, %v5452
        %5454 = vdwg.mxu0
        %5455 = vmatpush.msra.mxu0 %v5413
        %5456 = vmatpush.msra.mxu0 %v5409
        %5457 = vmatpush.msra.mxu0 %v5405
        %5458 = vmatpush.msra.mxu0 %v5401
        %5459 = vmatpush.msra.mxu0 %v5397
        %5460 = vmatpush.msra.mxu0 %v5393
        %5461 = vmatpush.msra.mxu0 %v5389
        %5462 = vmatpush.msra.mxu0 %v5385
        %5463 = vmatpush.msra.mxu0 %v5381
        %5464 = vmatpush.msra.mxu0 %v5377
        %5465 = vmatpush.msra.mxu0 %v5373
        %5466 = vmatpush.msra.mxu0 %v5369
        %5467 = vmatpush.msra.mxu0 %v5365
        %5468 = vmatpush.msra.mxu0 %v5361
        %5469 = vmatpush.msra.mxu0 %v5357
        %5470 = vmatpush.msra.mxu0 %v5353
        %5471 = vmatmul.f32.gmra.mxu0 %v5349
        %v5472 = vpop.f32.mrf.mxu0
        %v5473 = vadd.f32 0.0, %v5472
        %5474 = vdwg.mxu0
        %5475 = vmatpush.msra.mxu0 %v5414
        %5476 = vmatpush.msra.mxu0 %v5410
        %5477 = vmatpush.msra.mxu0 %v5406
        %5478 = vmatpush.msra.mxu0 %v5402
        %5479 = vmatpush.msra.mxu0 %v5398
        %5480 = vmatpush.msra.mxu0 %v5394
        %5481 = vmatpush.msra.mxu0 %v5390
        %5482 = vmatpush.msra.mxu0 %v5386
        %5483 = vmatpush.msra.mxu0 %v5382
        %5484 = vmatpush.msra.mxu0 %v5378
        %5485 = vmatpush.msra.mxu0 %v5374
        %5486 = vmatpush.msra.mxu0 %v5370
        %5487 = vmatpush.msra.mxu0 %v5366
        %5488 = vmatpush.msra.mxu0 %v5362
        %5489 = vmatpush.msra.mxu0 %v5358
        %5490 = vmatpush.msra.mxu0 %v5354
        %5491 = vmatmul.f32.gmra.mxu0 %v5349
        %v5492 = vpop.f32.mrf.mxu0
        %v5493 = vadd.f32 0.0, %v5492
        %5494 = vdwg.mxu0
        %v5495 = vadd.f32 %v5345, %v5433
        %v5496 = vadd.f32 %v5346, %v5453
        %v5497 = vadd.f32 %v5347, %v5473
        %v5498 = vadd.f32 %v5348, %v5493
        %v5499 = vld [vmem:[#allocation2 + $0x2c] sm:$0x3]
        %s5500 = scalar_lea.vmem %s465, 11264 [#allocation14]
        %v5501 = vld [vmem:[%s5500] sm:$0xff]
        %v5502 = vld [vmem:[%s5500 + $0x8] sm:$0xff]
        %v5503 = vld [vmem:[%s5500 + $0x10] sm:$0xff]
        %v5504 = vld [vmem:[%s5500 + $0x18] sm:$0xff]
        %v5505 = vld [vmem:[%s5500 + $0x20] sm:$0xff]
        %v5506 = vld [vmem:[%s5500 + $0x28] sm:$0xff]
        %v5507 = vld [vmem:[%s5500 + $0x30] sm:$0xff]
        %v5508 = vld [vmem:[%s5500 + $0x38] sm:$0xff]
        %v5509 = vld [vmem:[%s5500 + $0x40] sm:$0xff]
        %v5510 = vld [vmem:[%s5500 + $0x48] sm:$0xff]
        %v5511 = vld [vmem:[%s5500 + $0x50] sm:$0xff]
        %v5512 = vld [vmem:[%s5500 + $0x58] sm:$0xff]
        %v5513 = vld [vmem:[%s5500 + $0x60] sm:$0xff]
        %v5514 = vld [vmem:[%s5500 + $0x68] sm:$0xff]
        %v5515 = vld [vmem:[%s5500 + $0x70] sm:$0xff]
        %v5516 = vld [vmem:[%s5500 + $0x78] sm:$0xff]
        %v5517 = vld [vmem:[%s5500 + $0x80] sm:$0xff]
        %v5518 = vld [vmem:[%s5500 + $0x88] sm:$0xff]
        %v5519 = vld [vmem:[%s5500 + $0x90] sm:$0xff]
        %v5520 = vld [vmem:[%s5500 + $0x98] sm:$0xff]
        %v5521 = vld [vmem:[%s5500 + $0xa0] sm:$0xff]
        %v5522 = vld [vmem:[%s5500 + $0xa8] sm:$0xff]
        %v5523 = vld [vmem:[%s5500 + $0xb0] sm:$0xff]
        %v5524 = vld [vmem:[%s5500 + $0xb8] sm:$0xff]
        %v5525 = vld [vmem:[%s5500 + $0xc0] sm:$0xff]
        %v5526 = vld [vmem:[%s5500 + $0xc8] sm:$0xff]
        %v5527 = vld [vmem:[%s5500 + $0xd0] sm:$0xff]
        %v5528 = vld [vmem:[%s5500 + $0xd8] sm:$0xff]
        %v5529 = vld [vmem:[%s5500 + $0xe0] sm:$0xff]
        %v5530 = vld [vmem:[%s5500 + $0xe8] sm:$0xff]
        %v5531 = vld [vmem:[%s5500 + $0xf0] sm:$0xff]
        %v5532 = vld [vmem:[%s5500 + $0xf8] sm:$0xff]
        %v5533 = vld [vmem:[%s5500 + $0x100] sm:$0xff]
        %v5534 = vld [vmem:[%s5500 + $0x108] sm:$0xff]
        %v5535 = vld [vmem:[%s5500 + $0x110] sm:$0xff]
        %v5536 = vld [vmem:[%s5500 + $0x118] sm:$0xff]
        %v5537 = vld [vmem:[%s5500 + $0x120] sm:$0xff]
        %v5538 = vld [vmem:[%s5500 + $0x128] sm:$0xff]
        %v5539 = vld [vmem:[%s5500 + $0x130] sm:$0xff]
        %v5540 = vld [vmem:[%s5500 + $0x138] sm:$0xff]
        %v5541 = vld [vmem:[%s5500 + $0x140] sm:$0xff]
        %v5542 = vld [vmem:[%s5500 + $0x148] sm:$0xff]
        %v5543 = vld [vmem:[%s5500 + $0x150] sm:$0xff]
        %v5544 = vld [vmem:[%s5500 + $0x158] sm:$0xff]
        %v5545 = vld [vmem:[%s5500 + $0x160] sm:$0xff]
        %v5546 = vld [vmem:[%s5500 + $0x168] sm:$0xff]
        %v5547 = vld [vmem:[%s5500 + $0x170] sm:$0xff]
        %v5548 = vld [vmem:[%s5500 + $0x178] sm:$0xff]
        %v5549 = vld [vmem:[%s5500 + $0x180] sm:$0xff]
        %v5550 = vld [vmem:[%s5500 + $0x188] sm:$0xff]
        %v5551 = vld [vmem:[%s5500 + $0x190] sm:$0xff]
        %v5552 = vld [vmem:[%s5500 + $0x198] sm:$0xff]
        %v5553 = vld [vmem:[%s5500 + $0x1a0] sm:$0xff]
        %v5554 = vld [vmem:[%s5500 + $0x1a8] sm:$0xff]
        %v5555 = vld [vmem:[%s5500 + $0x1b0] sm:$0xff]
        %v5556 = vld [vmem:[%s5500 + $0x1b8] sm:$0xff]
        %v5557 = vld [vmem:[%s5500 + $0x1c0] sm:$0xff]
        %v5558 = vld [vmem:[%s5500 + $0x1c8] sm:$0xff]
        %v5559 = vld [vmem:[%s5500 + $0x1d0] sm:$0xff]
        %v5560 = vld [vmem:[%s5500 + $0x1d8] sm:$0xff]
        %v5561 = vld [vmem:[%s5500 + $0x1e0] sm:$0xff]
        %v5562 = vld [vmem:[%s5500 + $0x1e8] sm:$0xff]
        %v5563 = vld [vmem:[%s5500 + $0x1f0] sm:$0xff]
        %v5564 = vld [vmem:[%s5500 + $0x1f8] sm:$0xff]
        %5565 = vmatpush.msra.mxu0 %v5561
        %5566 = vmatpush.msra.mxu0 %v5557
        %5567 = vmatpush.msra.mxu0 %v5553
        %5568 = vmatpush.msra.mxu0 %v5549
        %5569 = vmatpush.msra.mxu0 %v5545
        %5570 = vmatpush.msra.mxu0 %v5541
        %5571 = vmatpush.msra.mxu0 %v5537
        %5572 = vmatpush.msra.mxu0 %v5533
        %5573 = vmatpush.msra.mxu0 %v5529
        %5574 = vmatpush.msra.mxu0 %v5525
        %5575 = vmatpush.msra.mxu0 %v5521
        %5576 = vmatpush.msra.mxu0 %v5517
        %5577 = vmatpush.msra.mxu0 %v5513
        %5578 = vmatpush.msra.mxu0 %v5509
        %5579 = vmatpush.msra.mxu0 %v5505
        %5580 = vmatpush.msra.mxu0 %v5501
        %5581 = vmatmul.f32.gmra.mxu0 %v5499
        %v5582 = vpop.f32.mrf.mxu0
        %v5583 = vadd.f32 0.0, %v5582
        %5584 = vdwg.mxu0
        %5585 = vmatpush.msra.mxu0 %v5562
        %5586 = vmatpush.msra.mxu0 %v5558
        %5587 = vmatpush.msra.mxu0 %v5554
        %5588 = vmatpush.msra.mxu0 %v5550
        %5589 = vmatpush.msra.mxu0 %v5546
        %5590 = vmatpush.msra.mxu0 %v5542
        %5591 = vmatpush.msra.mxu0 %v5538
        %5592 = vmatpush.msra.mxu0 %v5534
        %5593 = vmatpush.msra.mxu0 %v5530
        %5594 = vmatpush.msra.mxu0 %v5526
        %5595 = vmatpush.msra.mxu0 %v5522
        %5596 = vmatpush.msra.mxu0 %v5518
        %5597 = vmatpush.msra.mxu0 %v5514
        %5598 = vmatpush.msra.mxu0 %v5510
        %5599 = vmatpush.msra.mxu0 %v5506
        %5600 = vmatpush.msra.mxu0 %v5502
        %5601 = vmatmul.f32.gmra.mxu0 %v5499
        %v5602 = vpop.f32.mrf.mxu0
        %v5603 = vadd.f32 0.0, %v5602
        %5604 = vdwg.mxu0
        %5605 = vmatpush.msra.mxu0 %v5563
        %5606 = vmatpush.msra.mxu0 %v5559
        %5607 = vmatpush.msra.mxu0 %v5555
        %5608 = vmatpush.msra.mxu0 %v5551
        %5609 = vmatpush.msra.mxu0 %v5547
        %5610 = vmatpush.msra.mxu0 %v5543
        %5611 = vmatpush.msra.mxu0 %v5539
        %5612 = vmatpush.msra.mxu0 %v5535
        %5613 = vmatpush.msra.mxu0 %v5531
        %5614 = vmatpush.msra.mxu0 %v5527
        %5615 = vmatpush.msra.mxu0 %v5523
        %5616 = vmatpush.msra.mxu0 %v5519
        %5617 = vmatpush.msra.mxu0 %v5515
        %5618 = vmatpush.msra.mxu0 %v5511
        %5619 = vmatpush.msra.mxu0 %v5507
        %5620 = vmatpush.msra.mxu0 %v5503
        %5621 = vmatmul.f32.gmra.mxu0 %v5499
        %v5622 = vpop.f32.mrf.mxu0
        %v5623 = vadd.f32 0.0, %v5622
        %5624 = vdwg.mxu0
        %5625 = vmatpush.msra.mxu0 %v5564
        %5626 = vmatpush.msra.mxu0 %v5560
        %5627 = vmatpush.msra.mxu0 %v5556
        %5628 = vmatpush.msra.mxu0 %v5552
        %5629 = vmatpush.msra.mxu0 %v5548
        %5630 = vmatpush.msra.mxu0 %v5544
        %5631 = vmatpush.msra.mxu0 %v5540
        %5632 = vmatpush.msra.mxu0 %v5536
        %5633 = vmatpush.msra.mxu0 %v5532
        %5634 = vmatpush.msra.mxu0 %v5528
        %5635 = vmatpush.msra.mxu0 %v5524
        %5636 = vmatpush.msra.mxu0 %v5520
        %5637 = vmatpush.msra.mxu0 %v5516
        %5638 = vmatpush.msra.mxu0 %v5512
        %5639 = vmatpush.msra.mxu0 %v5508
        %5640 = vmatpush.msra.mxu0 %v5504
        %5641 = vmatmul.f32.gmra.mxu0 %v5499
        %v5642 = vpop.f32.mrf.mxu0
        %v5643 = vadd.f32 0.0, %v5642
        %5644 = vdwg.mxu0
        %v5645 = vadd.f32 %v5495, %v5583
        %v5646 = vadd.f32 %v5496, %v5603
        %v5647 = vadd.f32 %v5497, %v5623
        %v5648 = vadd.f32 %v5498, %v5643
        %v5649 = vld [vmem:[#allocation2 + $0x2e] sm:$0x3]
        %s5650 = scalar_lea.vmem %s465, 11776 [#allocation14]
        %v5651 = vld [vmem:[%s5650] sm:$0xff]
        %v5652 = vld [vmem:[%s5650 + $0x8] sm:$0xff]
        %v5653 = vld [vmem:[%s5650 + $0x10] sm:$0xff]
        %v5654 = vld [vmem:[%s5650 + $0x18] sm:$0xff]
        %v5655 = vld [vmem:[%s5650 + $0x20] sm:$0xff]
        %v5656 = vld [vmem:[%s5650 + $0x28] sm:$0xff]
        %v5657 = vld [vmem:[%s5650 + $0x30] sm:$0xff]
        %v5658 = vld [vmem:[%s5650 + $0x38] sm:$0xff]
        %v5659 = vld [vmem:[%s5650 + $0x40] sm:$0xff]
        %v5660 = vld [vmem:[%s5650 + $0x48] sm:$0xff]
        %v5661 = vld [vmem:[%s5650 + $0x50] sm:$0xff]
        %v5662 = vld [vmem:[%s5650 + $0x58] sm:$0xff]
        %v5663 = vld [vmem:[%s5650 + $0x60] sm:$0xff]
        %v5664 = vld [vmem:[%s5650 + $0x68] sm:$0xff]
        %v5665 = vld [vmem:[%s5650 + $0x70] sm:$0xff]
        %v5666 = vld [vmem:[%s5650 + $0x78] sm:$0xff]
        %v5667 = vld [vmem:[%s5650 + $0x80] sm:$0xff]
        %v5668 = vld [vmem:[%s5650 + $0x88] sm:$0xff]
        %v5669 = vld [vmem:[%s5650 + $0x90] sm:$0xff]
        %v5670 = vld [vmem:[%s5650 + $0x98] sm:$0xff]
        %v5671 = vld [vmem:[%s5650 + $0xa0] sm:$0xff]
        %v5672 = vld [vmem:[%s5650 + $0xa8] sm:$0xff]
        %v5673 = vld [vmem:[%s5650 + $0xb0] sm:$0xff]
        %v5674 = vld [vmem:[%s5650 + $0xb8] sm:$0xff]
        %v5675 = vld [vmem:[%s5650 + $0xc0] sm:$0xff]
        %v5676 = vld [vmem:[%s5650 + $0xc8] sm:$0xff]
        %v5677 = vld [vmem:[%s5650 + $0xd0] sm:$0xff]
        %v5678 = vld [vmem:[%s5650 + $0xd8] sm:$0xff]
        %v5679 = vld [vmem:[%s5650 + $0xe0] sm:$0xff]
        %v5680 = vld [vmem:[%s5650 + $0xe8] sm:$0xff]
        %v5681 = vld [vmem:[%s5650 + $0xf0] sm:$0xff]
        %v5682 = vld [vmem:[%s5650 + $0xf8] sm:$0xff]
        %v5683 = vld [vmem:[%s5650 + $0x100] sm:$0xff]
        %v5684 = vld [vmem:[%s5650 + $0x108] sm:$0xff]
        %v5685 = vld [vmem:[%s5650 + $0x110] sm:$0xff]
        %v5686 = vld [vmem:[%s5650 + $0x118] sm:$0xff]
        %v5687 = vld [vmem:[%s5650 + $0x120] sm:$0xff]
        %v5688 = vld [vmem:[%s5650 + $0x128] sm:$0xff]
        %v5689 = vld [vmem:[%s5650 + $0x130] sm:$0xff]
        %v5690 = vld [vmem:[%s5650 + $0x138] sm:$0xff]
        %v5691 = vld [vmem:[%s5650 + $0x140] sm:$0xff]
        %v5692 = vld [vmem:[%s5650 + $0x148] sm:$0xff]
        %v5693 = vld [vmem:[%s5650 + $0x150] sm:$0xff]
        %v5694 = vld [vmem:[%s5650 + $0x158] sm:$0xff]
        %v5695 = vld [vmem:[%s5650 + $0x160] sm:$0xff]
        %v5696 = vld [vmem:[%s5650 + $0x168] sm:$0xff]
        %v5697 = vld [vmem:[%s5650 + $0x170] sm:$0xff]
        %v5698 = vld [vmem:[%s5650 + $0x178] sm:$0xff]
        %v5699 = vld [vmem:[%s5650 + $0x180] sm:$0xff]
        %v5700 = vld [vmem:[%s5650 + $0x188] sm:$0xff]
        %v5701 = vld [vmem:[%s5650 + $0x190] sm:$0xff]
        %v5702 = vld [vmem:[%s5650 + $0x198] sm:$0xff]
        %v5703 = vld [vmem:[%s5650 + $0x1a0] sm:$0xff]
        %v5704 = vld [vmem:[%s5650 + $0x1a8] sm:$0xff]
        %v5705 = vld [vmem:[%s5650 + $0x1b0] sm:$0xff]
        %v5706 = vld [vmem:[%s5650 + $0x1b8] sm:$0xff]
        %v5707 = vld [vmem:[%s5650 + $0x1c0] sm:$0xff]
        %v5708 = vld [vmem:[%s5650 + $0x1c8] sm:$0xff]
        %v5709 = vld [vmem:[%s5650 + $0x1d0] sm:$0xff]
        %v5710 = vld [vmem:[%s5650 + $0x1d8] sm:$0xff]
        %v5711 = vld [vmem:[%s5650 + $0x1e0] sm:$0xff]
        %v5712 = vld [vmem:[%s5650 + $0x1e8] sm:$0xff]
        %v5713 = vld [vmem:[%s5650 + $0x1f0] sm:$0xff]
        %v5714 = vld [vmem:[%s5650 + $0x1f8] sm:$0xff]
        %5715 = vmatpush.msra.mxu0 %v5711
        %5716 = vmatpush.msra.mxu0 %v5707
        %5717 = vmatpush.msra.mxu0 %v5703
        %5718 = vmatpush.msra.mxu0 %v5699
        %5719 = vmatpush.msra.mxu0 %v5695
        %5720 = vmatpush.msra.mxu0 %v5691
        %5721 = vmatpush.msra.mxu0 %v5687
        %5722 = vmatpush.msra.mxu0 %v5683
        %5723 = vmatpush.msra.mxu0 %v5679
        %5724 = vmatpush.msra.mxu0 %v5675
        %5725 = vmatpush.msra.mxu0 %v5671
        %5726 = vmatpush.msra.mxu0 %v5667
        %5727 = vmatpush.msra.mxu0 %v5663
        %5728 = vmatpush.msra.mxu0 %v5659
        %5729 = vmatpush.msra.mxu0 %v5655
        %5730 = vmatpush.msra.mxu0 %v5651
        %5731 = vmatmul.f32.gmra.mxu0 %v5649
        %v5732 = vpop.f32.mrf.mxu0
        %v5733 = vadd.f32 0.0, %v5732
        %5734 = vdwg.mxu0
        %5735 = vmatpush.msra.mxu0 %v5712
        %5736 = vmatpush.msra.mxu0 %v5708
        %5737 = vmatpush.msra.mxu0 %v5704
        %5738 = vmatpush.msra.mxu0 %v5700
        %5739 = vmatpush.msra.mxu0 %v5696
        %5740 = vmatpush.msra.mxu0 %v5692
        %5741 = vmatpush.msra.mxu0 %v5688
        %5742 = vmatpush.msra.mxu0 %v5684
        %5743 = vmatpush.msra.mxu0 %v5680
        %5744 = vmatpush.msra.mxu0 %v5676
        %5745 = vmatpush.msra.mxu0 %v5672
        %5746 = vmatpush.msra.mxu0 %v5668
        %5747 = vmatpush.msra.mxu0 %v5664
        %5748 = vmatpush.msra.mxu0 %v5660
        %5749 = vmatpush.msra.mxu0 %v5656
        %5750 = vmatpush.msra.mxu0 %v5652
        %5751 = vmatmul.f32.gmra.mxu0 %v5649
        %v5752 = vpop.f32.mrf.mxu0
        %v5753 = vadd.f32 0.0, %v5752
        %5754 = vdwg.mxu0
        %5755 = vmatpush.msra.mxu0 %v5713
        %5756 = vmatpush.msra.mxu0 %v5709
        %5757 = vmatpush.msra.mxu0 %v5705
        %5758 = vmatpush.msra.mxu0 %v5701
        %5759 = vmatpush.msra.mxu0 %v5697
        %5760 = vmatpush.msra.mxu0 %v5693
        %5761 = vmatpush.msra.mxu0 %v5689
        %5762 = vmatpush.msra.mxu0 %v5685
        %5763 = vmatpush.msra.mxu0 %v5681
        %5764 = vmatpush.msra.mxu0 %v5677
        %5765 = vmatpush.msra.mxu0 %v5673
        %5766 = vmatpush.msra.mxu0 %v5669
        %5767 = vmatpush.msra.mxu0 %v5665
        %5768 = vmatpush.msra.mxu0 %v5661
        %5769 = vmatpush.msra.mxu0 %v5657
        %5770 = vmatpush.msra.mxu0 %v5653
        %5771 = vmatmul.f32.gmra.mxu0 %v5649
        %v5772 = vpop.f32.mrf.mxu0
        %v5773 = vadd.f32 0.0, %v5772
        %5774 = vdwg.mxu0
        %5775 = vmatpush.msra.mxu0 %v5714
        %5776 = vmatpush.msra.mxu0 %v5710
        %5777 = vmatpush.msra.mxu0 %v5706
        %5778 = vmatpush.msra.mxu0 %v5702
        %5779 = vmatpush.msra.mxu0 %v5698
        %5780 = vmatpush.msra.mxu0 %v5694
        %5781 = vmatpush.msra.mxu0 %v5690
        %5782 = vmatpush.msra.mxu0 %v5686
        %5783 = vmatpush.msra.mxu0 %v5682
        %5784 = vmatpush.msra.mxu0 %v5678
        %5785 = vmatpush.msra.mxu0 %v5674
        %5786 = vmatpush.msra.mxu0 %v5670
        %5787 = vmatpush.msra.mxu0 %v5666
        %5788 = vmatpush.msra.mxu0 %v5662
        %5789 = vmatpush.msra.mxu0 %v5658
        %5790 = vmatpush.msra.mxu0 %v5654
        %5791 = vmatmul.f32.gmra.mxu0 %v5649
        %v5792 = vpop.f32.mrf.mxu0
        %v5793 = vadd.f32 0.0, %v5792
        %5794 = vdwg.mxu0
        %v5795 = vadd.f32 %v5645, %v5733
        %v5796 = vadd.f32 %v5646, %v5753
        %v5797 = vadd.f32 %v5647, %v5773
        %v5798 = vadd.f32 %v5648, %v5793
        %v5799 = vld [vmem:[#allocation2 + $0x30] sm:$0x3]
        %s5800 = scalar_lea.vmem %s465, 12288 [#allocation14]
        %v5801 = vld [vmem:[%s5800] sm:$0xff]
        %v5802 = vld [vmem:[%s5800 + $0x8] sm:$0xff]
        %v5803 = vld [vmem:[%s5800 + $0x10] sm:$0xff]
        %v5804 = vld [vmem:[%s5800 + $0x18] sm:$0xff]
        %v5805 = vld [vmem:[%s5800 + $0x20] sm:$0xff]
        %v5806 = vld [vmem:[%s5800 + $0x28] sm:$0xff]
        %v5807 = vld [vmem:[%s5800 + $0x30] sm:$0xff]
        %v5808 = vld [vmem:[%s5800 + $0x38] sm:$0xff]
        %v5809 = vld [vmem:[%s5800 + $0x40] sm:$0xff]
        %v5810 = vld [vmem:[%s5800 + $0x48] sm:$0xff]
        %v5811 = vld [vmem:[%s5800 + $0x50] sm:$0xff]
        %v5812 = vld [vmem:[%s5800 + $0x58] sm:$0xff]
        %v5813 = vld [vmem:[%s5800 + $0x60] sm:$0xff]
        %v5814 = vld [vmem:[%s5800 + $0x68] sm:$0xff]
        %v5815 = vld [vmem:[%s5800 + $0x70] sm:$0xff]
        %v5816 = vld [vmem:[%s5800 + $0x78] sm:$0xff]
        %v5817 = vld [vmem:[%s5800 + $0x80] sm:$0xff]
        %v5818 = vld [vmem:[%s5800 + $0x88] sm:$0xff]
        %v5819 = vld [vmem:[%s5800 + $0x90] sm:$0xff]
        %v5820 = vld [vmem:[%s5800 + $0x98] sm:$0xff]
        %v5821 = vld [vmem:[%s5800 + $0xa0] sm:$0xff]
        %v5822 = vld [vmem:[%s5800 + $0xa8] sm:$0xff]
        %v5823 = vld [vmem:[%s5800 + $0xb0] sm:$0xff]
        %v5824 = vld [vmem:[%s5800 + $0xb8] sm:$0xff]
        %v5825 = vld [vmem:[%s5800 + $0xc0] sm:$0xff]
        %v5826 = vld [vmem:[%s5800 + $0xc8] sm:$0xff]
        %v5827 = vld [vmem:[%s5800 + $0xd0] sm:$0xff]
        %v5828 = vld [vmem:[%s5800 + $0xd8] sm:$0xff]
        %v5829 = vld [vmem:[%s5800 + $0xe0] sm:$0xff]
        %v5830 = vld [vmem:[%s5800 + $0xe8] sm:$0xff]
        %v5831 = vld [vmem:[%s5800 + $0xf0] sm:$0xff]
        %v5832 = vld [vmem:[%s5800 + $0xf8] sm:$0xff]
        %v5833 = vld [vmem:[%s5800 + $0x100] sm:$0xff]
        %v5834 = vld [vmem:[%s5800 + $0x108] sm:$0xff]
        %v5835 = vld [vmem:[%s5800 + $0x110] sm:$0xff]
        %v5836 = vld [vmem:[%s5800 + $0x118] sm:$0xff]
        %v5837 = vld [vmem:[%s5800 + $0x120] sm:$0xff]
        %v5838 = vld [vmem:[%s5800 + $0x128] sm:$0xff]
        %v5839 = vld [vmem:[%s5800 + $0x130] sm:$0xff]
        %v5840 = vld [vmem:[%s5800 + $0x138] sm:$0xff]
        %v5841 = vld [vmem:[%s5800 + $0x140] sm:$0xff]
        %v5842 = vld [vmem:[%s5800 + $0x148] sm:$0xff]
        %v5843 = vld [vmem:[%s5800 + $0x150] sm:$0xff]
        %v5844 = vld [vmem:[%s5800 + $0x158] sm:$0xff]
        %v5845 = vld [vmem:[%s5800 + $0x160] sm:$0xff]
        %v5846 = vld [vmem:[%s5800 + $0x168] sm:$0xff]
        %v5847 = vld [vmem:[%s5800 + $0x170] sm:$0xff]
        %v5848 = vld [vmem:[%s5800 + $0x178] sm:$0xff]
        %v5849 = vld [vmem:[%s5800 + $0x180] sm:$0xff]
        %v5850 = vld [vmem:[%s5800 + $0x188] sm:$0xff]
        %v5851 = vld [vmem:[%s5800 + $0x190] sm:$0xff]
        %v5852 = vld [vmem:[%s5800 + $0x198] sm:$0xff]
        %v5853 = vld [vmem:[%s5800 + $0x1a0] sm:$0xff]
        %v5854 = vld [vmem:[%s5800 + $0x1a8] sm:$0xff]
        %v5855 = vld [vmem:[%s5800 + $0x1b0] sm:$0xff]
        %v5856 = vld [vmem:[%s5800 + $0x1b8] sm:$0xff]
        %v5857 = vld [vmem:[%s5800 + $0x1c0] sm:$0xff]
        %v5858 = vld [vmem:[%s5800 + $0x1c8] sm:$0xff]
        %v5859 = vld [vmem:[%s5800 + $0x1d0] sm:$0xff]
        %v5860 = vld [vmem:[%s5800 + $0x1d8] sm:$0xff]
        %v5861 = vld [vmem:[%s5800 + $0x1e0] sm:$0xff]
        %v5862 = vld [vmem:[%s5800 + $0x1e8] sm:$0xff]
        %v5863 = vld [vmem:[%s5800 + $0x1f0] sm:$0xff]
        %v5864 = vld [vmem:[%s5800 + $0x1f8] sm:$0xff]
        %5865 = vmatpush.msra.mxu0 %v5861
        %5866 = vmatpush.msra.mxu0 %v5857
        %5867 = vmatpush.msra.mxu0 %v5853
        %5868 = vmatpush.msra.mxu0 %v5849
        %5869 = vmatpush.msra.mxu0 %v5845
        %5870 = vmatpush.msra.mxu0 %v5841
        %5871 = vmatpush.msra.mxu0 %v5837
        %5872 = vmatpush.msra.mxu0 %v5833
        %5873 = vmatpush.msra.mxu0 %v5829
        %5874 = vmatpush.msra.mxu0 %v5825
        %5875 = vmatpush.msra.mxu0 %v5821
        %5876 = vmatpush.msra.mxu0 %v5817
        %5877 = vmatpush.msra.mxu0 %v5813
        %5878 = vmatpush.msra.mxu0 %v5809
        %5879 = vmatpush.msra.mxu0 %v5805
        %5880 = vmatpush.msra.mxu0 %v5801
        %5881 = vmatmul.f32.gmra.mxu0 %v5799
        %v5882 = vpop.f32.mrf.mxu0
        %v5883 = vadd.f32 0.0, %v5882
        %5884 = vdwg.mxu0
        %5885 = vmatpush.msra.mxu0 %v5862
        %5886 = vmatpush.msra.mxu0 %v5858
        %5887 = vmatpush.msra.mxu0 %v5854
        %5888 = vmatpush.msra.mxu0 %v5850
        %5889 = vmatpush.msra.mxu0 %v5846
        %5890 = vmatpush.msra.mxu0 %v5842
        %5891 = vmatpush.msra.mxu0 %v5838
        %5892 = vmatpush.msra.mxu0 %v5834
        %5893 = vmatpush.msra.mxu0 %v5830
        %5894 = vmatpush.msra.mxu0 %v5826
        %5895 = vmatpush.msra.mxu0 %v5822
        %5896 = vmatpush.msra.mxu0 %v5818
        %5897 = vmatpush.msra.mxu0 %v5814
        %5898 = vmatpush.msra.mxu0 %v5810
        %5899 = vmatpush.msra.mxu0 %v5806
        %5900 = vmatpush.msra.mxu0 %v5802
        %5901 = vmatmul.f32.gmra.mxu0 %v5799
        %v5902 = vpop.f32.mrf.mxu0
        %v5903 = vadd.f32 0.0, %v5902
        %5904 = vdwg.mxu0
        %5905 = vmatpush.msra.mxu0 %v5863
        %5906 = vmatpush.msra.mxu0 %v5859
        %5907 = vmatpush.msra.mxu0 %v5855
        %5908 = vmatpush.msra.mxu0 %v5851
        %5909 = vmatpush.msra.mxu0 %v5847
        %5910 = vmatpush.msra.mxu0 %v5843
        %5911 = vmatpush.msra.mxu0 %v5839
        %5912 = vmatpush.msra.mxu0 %v5835
        %5913 = vmatpush.msra.mxu0 %v5831
        %5914 = vmatpush.msra.mxu0 %v5827
        %5915 = vmatpush.msra.mxu0 %v5823
        %5916 = vmatpush.msra.mxu0 %v5819
        %5917 = vmatpush.msra.mxu0 %v5815
        %5918 = vmatpush.msra.mxu0 %v5811
        %5919 = vmatpush.msra.mxu0 %v5807
        %5920 = vmatpush.msra.mxu0 %v5803
        %5921 = vmatmul.f32.gmra.mxu0 %v5799
        %v5922 = vpop.f32.mrf.mxu0
        %v5923 = vadd.f32 0.0, %v5922
        %5924 = vdwg.mxu0
        %5925 = vmatpush.msra.mxu0 %v5864
        %5926 = vmatpush.msra.mxu0 %v5860
        %5927 = vmatpush.msra.mxu0 %v5856
        %5928 = vmatpush.msra.mxu0 %v5852
        %5929 = vmatpush.msra.mxu0 %v5848
        %5930 = vmatpush.msra.mxu0 %v5844
        %5931 = vmatpush.msra.mxu0 %v5840
        %5932 = vmatpush.msra.mxu0 %v5836
        %5933 = vmatpush.msra.mxu0 %v5832
        %5934 = vmatpush.msra.mxu0 %v5828
        %5935 = vmatpush.msra.mxu0 %v5824
        %5936 = vmatpush.msra.mxu0 %v5820
        %5937 = vmatpush.msra.mxu0 %v5816
        %5938 = vmatpush.msra.mxu0 %v5812
        %5939 = vmatpush.msra.mxu0 %v5808
        %5940 = vmatpush.msra.mxu0 %v5804
        %5941 = vmatmul.f32.gmra.mxu0 %v5799
        %v5942 = vpop.f32.mrf.mxu0
        %v5943 = vadd.f32 0.0, %v5942
        %5944 = vdwg.mxu0
        %v5945 = vadd.f32 %v5795, %v5883
        %v5946 = vadd.f32 %v5796, %v5903
        %v5947 = vadd.f32 %v5797, %v5923
        %v5948 = vadd.f32 %v5798, %v5943
        %v5949 = vld [vmem:[#allocation2 + $0x32] sm:$0x3]
        %s5950 = scalar_lea.vmem %s465, 12800 [#allocation14]
        %v5951 = vld [vmem:[%s5950] sm:$0xff]
        %v5952 = vld [vmem:[%s5950 + $0x8] sm:$0xff]
        %v5953 = vld [vmem:[%s5950 + $0x10] sm:$0xff]
        %v5954 = vld [vmem:[%s5950 + $0x18] sm:$0xff]
        %v5955 = vld [vmem:[%s5950 + $0x20] sm:$0xff]
        %v5956 = vld [vmem:[%s5950 + $0x28] sm:$0xff]
        %v5957 = vld [vmem:[%s5950 + $0x30] sm:$0xff]
        %v5958 = vld [vmem:[%s5950 + $0x38] sm:$0xff]
        %v5959 = vld [vmem:[%s5950 + $0x40] sm:$0xff]
        %v5960 = vld [vmem:[%s5950 + $0x48] sm:$0xff]
        %v5961 = vld [vmem:[%s5950 + $0x50] sm:$0xff]
        %v5962 = vld [vmem:[%s5950 + $0x58] sm:$0xff]
        %v5963 = vld [vmem:[%s5950 + $0x60] sm:$0xff]
        %v5964 = vld [vmem:[%s5950 + $0x68] sm:$0xff]
        %v5965 = vld [vmem:[%s5950 + $0x70] sm:$0xff]
        %v5966 = vld [vmem:[%s5950 + $0x78] sm:$0xff]
        %v5967 = vld [vmem:[%s5950 + $0x80] sm:$0xff]
        %v5968 = vld [vmem:[%s5950 + $0x88] sm:$0xff]
        %v5969 = vld [vmem:[%s5950 + $0x90] sm:$0xff]
        %v5970 = vld [vmem:[%s5950 + $0x98] sm:$0xff]
        %v5971 = vld [vmem:[%s5950 + $0xa0] sm:$0xff]
        %v5972 = vld [vmem:[%s5950 + $0xa8] sm:$0xff]
        %v5973 = vld [vmem:[%s5950 + $0xb0] sm:$0xff]
        %v5974 = vld [vmem:[%s5950 + $0xb8] sm:$0xff]
        %v5975 = vld [vmem:[%s5950 + $0xc0] sm:$0xff]
        %v5976 = vld [vmem:[%s5950 + $0xc8] sm:$0xff]
        %v5977 = vld [vmem:[%s5950 + $0xd0] sm:$0xff]
        %v5978 = vld [vmem:[%s5950 + $0xd8] sm:$0xff]
        %v5979 = vld [vmem:[%s5950 + $0xe0] sm:$0xff]
        %v5980 = vld [vmem:[%s5950 + $0xe8] sm:$0xff]
        %v5981 = vld [vmem:[%s5950 + $0xf0] sm:$0xff]
        %v5982 = vld [vmem:[%s5950 + $0xf8] sm:$0xff]
        %v5983 = vld [vmem:[%s5950 + $0x100] sm:$0xff]
        %v5984 = vld [vmem:[%s5950 + $0x108] sm:$0xff]
        %v5985 = vld [vmem:[%s5950 + $0x110] sm:$0xff]
        %v5986 = vld [vmem:[%s5950 + $0x118] sm:$0xff]
        %v5987 = vld [vmem:[%s5950 + $0x120] sm:$0xff]
        %v5988 = vld [vmem:[%s5950 + $0x128] sm:$0xff]
        %v5989 = vld [vmem:[%s5950 + $0x130] sm:$0xff]
        %v5990 = vld [vmem:[%s5950 + $0x138] sm:$0xff]
        %v5991 = vld [vmem:[%s5950 + $0x140] sm:$0xff]
        %v5992 = vld [vmem:[%s5950 + $0x148] sm:$0xff]
        %v5993 = vld [vmem:[%s5950 + $0x150] sm:$0xff]
        %v5994 = vld [vmem:[%s5950 + $0x158] sm:$0xff]
        %v5995 = vld [vmem:[%s5950 + $0x160] sm:$0xff]
        %v5996 = vld [vmem:[%s5950 + $0x168] sm:$0xff]
        %v5997 = vld [vmem:[%s5950 + $0x170] sm:$0xff]
        %v5998 = vld [vmem:[%s5950 + $0x178] sm:$0xff]
        %v5999 = vld [vmem:[%s5950 + $0x180] sm:$0xff]
        %v6000 = vld [vmem:[%s5950 + $0x188] sm:$0xff]
        %v6001 = vld [vmem:[%s5950 + $0x190] sm:$0xff]
        %v6002 = vld [vmem:[%s5950 + $0x198] sm:$0xff]
        %v6003 = vld [vmem:[%s5950 + $0x1a0] sm:$0xff]
        %v6004 = vld [vmem:[%s5950 + $0x1a8] sm:$0xff]
        %v6005 = vld [vmem:[%s5950 + $0x1b0] sm:$0xff]
        %v6006 = vld [vmem:[%s5950 + $0x1b8] sm:$0xff]
        %v6007 = vld [vmem:[%s5950 + $0x1c0] sm:$0xff]
        %v6008 = vld [vmem:[%s5950 + $0x1c8] sm:$0xff]
        %v6009 = vld [vmem:[%s5950 + $0x1d0] sm:$0xff]
        %v6010 = vld [vmem:[%s5950 + $0x1d8] sm:$0xff]
        %v6011 = vld [vmem:[%s5950 + $0x1e0] sm:$0xff]
        %v6012 = vld [vmem:[%s5950 + $0x1e8] sm:$0xff]
        %v6013 = vld [vmem:[%s5950 + $0x1f0] sm:$0xff]
        %v6014 = vld [vmem:[%s5950 + $0x1f8] sm:$0xff]
        %6015 = vmatpush.msra.mxu0 %v6011
        %6016 = vmatpush.msra.mxu0 %v6007
        %6017 = vmatpush.msra.mxu0 %v6003
        %6018 = vmatpush.msra.mxu0 %v5999
        %6019 = vmatpush.msra.mxu0 %v5995
        %6020 = vmatpush.msra.mxu0 %v5991
        %6021 = vmatpush.msra.mxu0 %v5987
        %6022 = vmatpush.msra.mxu0 %v5983
        %6023 = vmatpush.msra.mxu0 %v5979
        %6024 = vmatpush.msra.mxu0 %v5975
        %6025 = vmatpush.msra.mxu0 %v5971
        %6026 = vmatpush.msra.mxu0 %v5967
        %6027 = vmatpush.msra.mxu0 %v5963
        %6028 = vmatpush.msra.mxu0 %v5959
        %6029 = vmatpush.msra.mxu0 %v5955
        %6030 = vmatpush.msra.mxu0 %v5951
        %6031 = vmatmul.f32.gmra.mxu0 %v5949
        %v6032 = vpop.f32.mrf.mxu0
        %v6033 = vadd.f32 0.0, %v6032
        %6034 = vdwg.mxu0
        %6035 = vmatpush.msra.mxu0 %v6012
        %6036 = vmatpush.msra.mxu0 %v6008
        %6037 = vmatpush.msra.mxu0 %v6004
        %6038 = vmatpush.msra.mxu0 %v6000
        %6039 = vmatpush.msra.mxu0 %v5996
        %6040 = vmatpush.msra.mxu0 %v5992
        %6041 = vmatpush.msra.mxu0 %v5988
        %6042 = vmatpush.msra.mxu0 %v5984
        %6043 = vmatpush.msra.mxu0 %v5980
        %6044 = vmatpush.msra.mxu0 %v5976
        %6045 = vmatpush.msra.mxu0 %v5972
        %6046 = vmatpush.msra.mxu0 %v5968
        %6047 = vmatpush.msra.mxu0 %v5964
        %6048 = vmatpush.msra.mxu0 %v5960
        %6049 = vmatpush.msra.mxu0 %v5956
        %6050 = vmatpush.msra.mxu0 %v5952
        %6051 = vmatmul.f32.gmra.mxu0 %v5949
        %v6052 = vpop.f32.mrf.mxu0
        %v6053 = vadd.f32 0.0, %v6052
        %6054 = vdwg.mxu0
        %6055 = vmatpush.msra.mxu0 %v6013
        %6056 = vmatpush.msra.mxu0 %v6009
        %6057 = vmatpush.msra.mxu0 %v6005
        %6058 = vmatpush.msra.mxu0 %v6001
        %6059 = vmatpush.msra.mxu0 %v5997
        %6060 = vmatpush.msra.mxu0 %v5993
        %6061 = vmatpush.msra.mxu0 %v5989
        %6062 = vmatpush.msra.mxu0 %v5985
        %6063 = vmatpush.msra.mxu0 %v5981
        %6064 = vmatpush.msra.mxu0 %v5977
        %6065 = vmatpush.msra.mxu0 %v5973
        %6066 = vmatpush.msra.mxu0 %v5969
        %6067 = vmatpush.msra.mxu0 %v5965
        %6068 = vmatpush.msra.mxu0 %v5961
        %6069 = vmatpush.msra.mxu0 %v5957
        %6070 = vmatpush.msra.mxu0 %v5953
        %6071 = vmatmul.f32.gmra.mxu0 %v5949
        %v6072 = vpop.f32.mrf.mxu0
        %v6073 = vadd.f32 0.0, %v6072
        %6074 = vdwg.mxu0
        %6075 = vmatpush.msra.mxu0 %v6014
        %6076 = vmatpush.msra.mxu0 %v6010
        %6077 = vmatpush.msra.mxu0 %v6006
        %6078 = vmatpush.msra.mxu0 %v6002
        %6079 = vmatpush.msra.mxu0 %v5998
        %6080 = vmatpush.msra.mxu0 %v5994
        %6081 = vmatpush.msra.mxu0 %v5990
        %6082 = vmatpush.msra.mxu0 %v5986
        %6083 = vmatpush.msra.mxu0 %v5982
        %6084 = vmatpush.msra.mxu0 %v5978
        %6085 = vmatpush.msra.mxu0 %v5974
        %6086 = vmatpush.msra.mxu0 %v5970
        %6087 = vmatpush.msra.mxu0 %v5966
        %6088 = vmatpush.msra.mxu0 %v5962
        %6089 = vmatpush.msra.mxu0 %v5958
        %6090 = vmatpush.msra.mxu0 %v5954
        %6091 = vmatmul.f32.gmra.mxu0 %v5949
        %v6092 = vpop.f32.mrf.mxu0
        %v6093 = vadd.f32 0.0, %v6092
        %6094 = vdwg.mxu0
        %v6095 = vadd.f32 %v5945, %v6033
        %v6096 = vadd.f32 %v5946, %v6053
        %v6097 = vadd.f32 %v5947, %v6073
        %v6098 = vadd.f32 %v5948, %v6093
        %v6099 = vld [vmem:[#allocation2 + $0x34] sm:$0x3]
        %s6100 = scalar_lea.vmem %s465, 13312 [#allocation14]
        %v6101 = vld [vmem:[%s6100] sm:$0xff]
        %v6102 = vld [vmem:[%s6100 + $0x8] sm:$0xff]
        %v6103 = vld [vmem:[%s6100 + $0x10] sm:$0xff]
        %v6104 = vld [vmem:[%s6100 + $0x18] sm:$0xff]
        %v6105 = vld [vmem:[%s6100 + $0x20] sm:$0xff]
        %v6106 = vld [vmem:[%s6100 + $0x28] sm:$0xff]
        %v6107 = vld [vmem:[%s6100 + $0x30] sm:$0xff]
        %v6108 = vld [vmem:[%s6100 + $0x38] sm:$0xff]
        %v6109 = vld [vmem:[%s6100 + $0x40] sm:$0xff]
        %v6110 = vld [vmem:[%s6100 + $0x48] sm:$0xff]
        %v6111 = vld [vmem:[%s6100 + $0x50] sm:$0xff]
        %v6112 = vld [vmem:[%s6100 + $0x58] sm:$0xff]
        %v6113 = vld [vmem:[%s6100 + $0x60] sm:$0xff]
        %v6114 = vld [vmem:[%s6100 + $0x68] sm:$0xff]
        %v6115 = vld [vmem:[%s6100 + $0x70] sm:$0xff]
        %v6116 = vld [vmem:[%s6100 + $0x78] sm:$0xff]
        %v6117 = vld [vmem:[%s6100 + $0x80] sm:$0xff]
        %v6118 = vld [vmem:[%s6100 + $0x88] sm:$0xff]
        %v6119 = vld [vmem:[%s6100 + $0x90] sm:$0xff]
        %v6120 = vld [vmem:[%s6100 + $0x98] sm:$0xff]
        %v6121 = vld [vmem:[%s6100 + $0xa0] sm:$0xff]
        %v6122 = vld [vmem:[%s6100 + $0xa8] sm:$0xff]
        %v6123 = vld [vmem:[%s6100 + $0xb0] sm:$0xff]
        %v6124 = vld [vmem:[%s6100 + $0xb8] sm:$0xff]
        %v6125 = vld [vmem:[%s6100 + $0xc0] sm:$0xff]
        %v6126 = vld [vmem:[%s6100 + $0xc8] sm:$0xff]
        %v6127 = vld [vmem:[%s6100 + $0xd0] sm:$0xff]
        %v6128 = vld [vmem:[%s6100 + $0xd8] sm:$0xff]
        %v6129 = vld [vmem:[%s6100 + $0xe0] sm:$0xff]
        %v6130 = vld [vmem:[%s6100 + $0xe8] sm:$0xff]
        %v6131 = vld [vmem:[%s6100 + $0xf0] sm:$0xff]
        %v6132 = vld [vmem:[%s6100 + $0xf8] sm:$0xff]
        %v6133 = vld [vmem:[%s6100 + $0x100] sm:$0xff]
        %v6134 = vld [vmem:[%s6100 + $0x108] sm:$0xff]
        %v6135 = vld [vmem:[%s6100 + $0x110] sm:$0xff]
        %v6136 = vld [vmem:[%s6100 + $0x118] sm:$0xff]
        %v6137 = vld [vmem:[%s6100 + $0x120] sm:$0xff]
        %v6138 = vld [vmem:[%s6100 + $0x128] sm:$0xff]
        %v6139 = vld [vmem:[%s6100 + $0x130] sm:$0xff]
        %v6140 = vld [vmem:[%s6100 + $0x138] sm:$0xff]
        %v6141 = vld [vmem:[%s6100 + $0x140] sm:$0xff]
        %v6142 = vld [vmem:[%s6100 + $0x148] sm:$0xff]
        %v6143 = vld [vmem:[%s6100 + $0x150] sm:$0xff]
        %v6144 = vld [vmem:[%s6100 + $0x158] sm:$0xff]
        %v6145 = vld [vmem:[%s6100 + $0x160] sm:$0xff]
        %v6146 = vld [vmem:[%s6100 + $0x168] sm:$0xff]
        %v6147 = vld [vmem:[%s6100 + $0x170] sm:$0xff]
        %v6148 = vld [vmem:[%s6100 + $0x178] sm:$0xff]
        %v6149 = vld [vmem:[%s6100 + $0x180] sm:$0xff]
        %v6150 = vld [vmem:[%s6100 + $0x188] sm:$0xff]
        %v6151 = vld [vmem:[%s6100 + $0x190] sm:$0xff]
        %v6152 = vld [vmem:[%s6100 + $0x198] sm:$0xff]
        %v6153 = vld [vmem:[%s6100 + $0x1a0] sm:$0xff]
        %v6154 = vld [vmem:[%s6100 + $0x1a8] sm:$0xff]
        %v6155 = vld [vmem:[%s6100 + $0x1b0] sm:$0xff]
        %v6156 = vld [vmem:[%s6100 + $0x1b8] sm:$0xff]
        %v6157 = vld [vmem:[%s6100 + $0x1c0] sm:$0xff]
        %v6158 = vld [vmem:[%s6100 + $0x1c8] sm:$0xff]
        %v6159 = vld [vmem:[%s6100 + $0x1d0] sm:$0xff]
        %v6160 = vld [vmem:[%s6100 + $0x1d8] sm:$0xff]
        %v6161 = vld [vmem:[%s6100 + $0x1e0] sm:$0xff]
        %v6162 = vld [vmem:[%s6100 + $0x1e8] sm:$0xff]
        %v6163 = vld [vmem:[%s6100 + $0x1f0] sm:$0xff]
        %v6164 = vld [vmem:[%s6100 + $0x1f8] sm:$0xff]
        %6165 = vmatpush.msra.mxu0 %v6161
        %6166 = vmatpush.msra.mxu0 %v6157
        %6167 = vmatpush.msra.mxu0 %v6153
        %6168 = vmatpush.msra.mxu0 %v6149
        %6169 = vmatpush.msra.mxu0 %v6145
        %6170 = vmatpush.msra.mxu0 %v6141
        %6171 = vmatpush.msra.mxu0 %v6137
        %6172 = vmatpush.msra.mxu0 %v6133
        %6173 = vmatpush.msra.mxu0 %v6129
        %6174 = vmatpush.msra.mxu0 %v6125
        %6175 = vmatpush.msra.mxu0 %v6121
        %6176 = vmatpush.msra.mxu0 %v6117
        %6177 = vmatpush.msra.mxu0 %v6113
        %6178 = vmatpush.msra.mxu0 %v6109
        %6179 = vmatpush.msra.mxu0 %v6105
        %6180 = vmatpush.msra.mxu0 %v6101
        %6181 = vmatmul.f32.gmra.mxu0 %v6099
        %v6182 = vpop.f32.mrf.mxu0
        %v6183 = vadd.f32 0.0, %v6182
        %6184 = vdwg.mxu0
        %6185 = vmatpush.msra.mxu0 %v6162
        %6186 = vmatpush.msra.mxu0 %v6158
        %6187 = vmatpush.msra.mxu0 %v6154
        %6188 = vmatpush.msra.mxu0 %v6150
        %6189 = vmatpush.msra.mxu0 %v6146
        %6190 = vmatpush.msra.mxu0 %v6142
        %6191 = vmatpush.msra.mxu0 %v6138
        %6192 = vmatpush.msra.mxu0 %v6134
        %6193 = vmatpush.msra.mxu0 %v6130
        %6194 = vmatpush.msra.mxu0 %v6126
        %6195 = vmatpush.msra.mxu0 %v6122
        %6196 = vmatpush.msra.mxu0 %v6118
        %6197 = vmatpush.msra.mxu0 %v6114
        %6198 = vmatpush.msra.mxu0 %v6110
        %6199 = vmatpush.msra.mxu0 %v6106
        %6200 = vmatpush.msra.mxu0 %v6102
        %6201 = vmatmul.f32.gmra.mxu0 %v6099
        %v6202 = vpop.f32.mrf.mxu0
        %v6203 = vadd.f32 0.0, %v6202
        %6204 = vdwg.mxu0
        %6205 = vmatpush.msra.mxu0 %v6163
        %6206 = vmatpush.msra.mxu0 %v6159
        %6207 = vmatpush.msra.mxu0 %v6155
        %6208 = vmatpush.msra.mxu0 %v6151
        %6209 = vmatpush.msra.mxu0 %v6147
        %6210 = vmatpush.msra.mxu0 %v6143
        %6211 = vmatpush.msra.mxu0 %v6139
        %6212 = vmatpush.msra.mxu0 %v6135
        %6213 = vmatpush.msra.mxu0 %v6131
        %6214 = vmatpush.msra.mxu0 %v6127
        %6215 = vmatpush.msra.mxu0 %v6123
        %6216 = vmatpush.msra.mxu0 %v6119
        %6217 = vmatpush.msra.mxu0 %v6115
        %6218 = vmatpush.msra.mxu0 %v6111
        %6219 = vmatpush.msra.mxu0 %v6107
        %6220 = vmatpush.msra.mxu0 %v6103
        %6221 = vmatmul.f32.gmra.mxu0 %v6099
        %v6222 = vpop.f32.mrf.mxu0
        %v6223 = vadd.f32 0.0, %v6222
        %6224 = vdwg.mxu0
        %6225 = vmatpush.msra.mxu0 %v6164
        %6226 = vmatpush.msra.mxu0 %v6160
        %6227 = vmatpush.msra.mxu0 %v6156
        %6228 = vmatpush.msra.mxu0 %v6152
        %6229 = vmatpush.msra.mxu0 %v6148
        %6230 = vmatpush.msra.mxu0 %v6144
        %6231 = vmatpush.msra.mxu0 %v6140
        %6232 = vmatpush.msra.mxu0 %v6136
        %6233 = vmatpush.msra.mxu0 %v6132
        %6234 = vmatpush.msra.mxu0 %v6128
        %6235 = vmatpush.msra.mxu0 %v6124
        %6236 = vmatpush.msra.mxu0 %v6120
        %6237 = vmatpush.msra.mxu0 %v6116
        %6238 = vmatpush.msra.mxu0 %v6112
        %6239 = vmatpush.msra.mxu0 %v6108
        %6240 = vmatpush.msra.mxu0 %v6104
        %6241 = vmatmul.f32.gmra.mxu0 %v6099
        %v6242 = vpop.f32.mrf.mxu0
        %v6243 = vadd.f32 0.0, %v6242
        %6244 = vdwg.mxu0
        %v6245 = vadd.f32 %v6095, %v6183
        %v6246 = vadd.f32 %v6096, %v6203
        %v6247 = vadd.f32 %v6097, %v6223
        %v6248 = vadd.f32 %v6098, %v6243
        %v6249 = vld [vmem:[#allocation2 + $0x36] sm:$0x3]
        %s6250 = scalar_lea.vmem %s465, 13824 [#allocation14]
        %v6251 = vld [vmem:[%s6250] sm:$0xff]
        %v6252 = vld [vmem:[%s6250 + $0x8] sm:$0xff]
        %v6253 = vld [vmem:[%s6250 + $0x10] sm:$0xff]
        %v6254 = vld [vmem:[%s6250 + $0x18] sm:$0xff]
        %v6255 = vld [vmem:[%s6250 + $0x20] sm:$0xff]
        %v6256 = vld [vmem:[%s6250 + $0x28] sm:$0xff]
        %v6257 = vld [vmem:[%s6250 + $0x30] sm:$0xff]
        %v6258 = vld [vmem:[%s6250 + $0x38] sm:$0xff]
        %v6259 = vld [vmem:[%s6250 + $0x40] sm:$0xff]
        %v6260 = vld [vmem:[%s6250 + $0x48] sm:$0xff]
        %v6261 = vld [vmem:[%s6250 + $0x50] sm:$0xff]
        %v6262 = vld [vmem:[%s6250 + $0x58] sm:$0xff]
        %v6263 = vld [vmem:[%s6250 + $0x60] sm:$0xff]
        %v6264 = vld [vmem:[%s6250 + $0x68] sm:$0xff]
        %v6265 = vld [vmem:[%s6250 + $0x70] sm:$0xff]
        %v6266 = vld [vmem:[%s6250 + $0x78] sm:$0xff]
        %v6267 = vld [vmem:[%s6250 + $0x80] sm:$0xff]
        %v6268 = vld [vmem:[%s6250 + $0x88] sm:$0xff]
        %v6269 = vld [vmem:[%s6250 + $0x90] sm:$0xff]
        %v6270 = vld [vmem:[%s6250 + $0x98] sm:$0xff]
        %v6271 = vld [vmem:[%s6250 + $0xa0] sm:$0xff]
        %v6272 = vld [vmem:[%s6250 + $0xa8] sm:$0xff]
        %v6273 = vld [vmem:[%s6250 + $0xb0] sm:$0xff]
        %v6274 = vld [vmem:[%s6250 + $0xb8] sm:$0xff]
        %v6275 = vld [vmem:[%s6250 + $0xc0] sm:$0xff]
        %v6276 = vld [vmem:[%s6250 + $0xc8] sm:$0xff]
        %v6277 = vld [vmem:[%s6250 + $0xd0] sm:$0xff]
        %v6278 = vld [vmem:[%s6250 + $0xd8] sm:$0xff]
        %v6279 = vld [vmem:[%s6250 + $0xe0] sm:$0xff]
        %v6280 = vld [vmem:[%s6250 + $0xe8] sm:$0xff]
        %v6281 = vld [vmem:[%s6250 + $0xf0] sm:$0xff]
        %v6282 = vld [vmem:[%s6250 + $0xf8] sm:$0xff]
        %v6283 = vld [vmem:[%s6250 + $0x100] sm:$0xff]
        %v6284 = vld [vmem:[%s6250 + $0x108] sm:$0xff]
        %v6285 = vld [vmem:[%s6250 + $0x110] sm:$0xff]
        %v6286 = vld [vmem:[%s6250 + $0x118] sm:$0xff]
        %v6287 = vld [vmem:[%s6250 + $0x120] sm:$0xff]
        %v6288 = vld [vmem:[%s6250 + $0x128] sm:$0xff]
        %v6289 = vld [vmem:[%s6250 + $0x130] sm:$0xff]
        %v6290 = vld [vmem:[%s6250 + $0x138] sm:$0xff]
        %v6291 = vld [vmem:[%s6250 + $0x140] sm:$0xff]
        %v6292 = vld [vmem:[%s6250 + $0x148] sm:$0xff]
        %v6293 = vld [vmem:[%s6250 + $0x150] sm:$0xff]
        %v6294 = vld [vmem:[%s6250 + $0x158] sm:$0xff]
        %v6295 = vld [vmem:[%s6250 + $0x160] sm:$0xff]
        %v6296 = vld [vmem:[%s6250 + $0x168] sm:$0xff]
        %v6297 = vld [vmem:[%s6250 + $0x170] sm:$0xff]
        %v6298 = vld [vmem:[%s6250 + $0x178] sm:$0xff]
        %v6299 = vld [vmem:[%s6250 + $0x180] sm:$0xff]
        %v6300 = vld [vmem:[%s6250 + $0x188] sm:$0xff]
        %v6301 = vld [vmem:[%s6250 + $0x190] sm:$0xff]
        %v6302 = vld [vmem:[%s6250 + $0x198] sm:$0xff]
        %v6303 = vld [vmem:[%s6250 + $0x1a0] sm:$0xff]
        %v6304 = vld [vmem:[%s6250 + $0x1a8] sm:$0xff]
        %v6305 = vld [vmem:[%s6250 + $0x1b0] sm:$0xff]
        %v6306 = vld [vmem:[%s6250 + $0x1b8] sm:$0xff]
        %v6307 = vld [vmem:[%s6250 + $0x1c0] sm:$0xff]
        %v6308 = vld [vmem:[%s6250 + $0x1c8] sm:$0xff]
        %v6309 = vld [vmem:[%s6250 + $0x1d0] sm:$0xff]
        %v6310 = vld [vmem:[%s6250 + $0x1d8] sm:$0xff]
        %v6311 = vld [vmem:[%s6250 + $0x1e0] sm:$0xff]
        %v6312 = vld [vmem:[%s6250 + $0x1e8] sm:$0xff]
        %v6313 = vld [vmem:[%s6250 + $0x1f0] sm:$0xff]
        %v6314 = vld [vmem:[%s6250 + $0x1f8] sm:$0xff]
        %6315 = vmatpush.msra.mxu0 %v6311
        %6316 = vmatpush.msra.mxu0 %v6307
        %6317 = vmatpush.msra.mxu0 %v6303
        %6318 = vmatpush.msra.mxu0 %v6299
        %6319 = vmatpush.msra.mxu0 %v6295
        %6320 = vmatpush.msra.mxu0 %v6291
        %6321 = vmatpush.msra.mxu0 %v6287
        %6322 = vmatpush.msra.mxu0 %v6283
        %6323 = vmatpush.msra.mxu0 %v6279
        %6324 = vmatpush.msra.mxu0 %v6275
        %6325 = vmatpush.msra.mxu0 %v6271
        %6326 = vmatpush.msra.mxu0 %v6267
        %6327 = vmatpush.msra.mxu0 %v6263
        %6328 = vmatpush.msra.mxu0 %v6259
        %6329 = vmatpush.msra.mxu0 %v6255
        %6330 = vmatpush.msra.mxu0 %v6251
        %6331 = vmatmul.f32.gmra.mxu0 %v6249
        %v6332 = vpop.f32.mrf.mxu0
        %v6333 = vadd.f32 0.0, %v6332
        %6334 = vdwg.mxu0
        %6335 = vmatpush.msra.mxu0 %v6312
        %6336 = vmatpush.msra.mxu0 %v6308
        %6337 = vmatpush.msra.mxu0 %v6304
        %6338 = vmatpush.msra.mxu0 %v6300
        %6339 = vmatpush.msra.mxu0 %v6296
        %6340 = vmatpush.msra.mxu0 %v6292
        %6341 = vmatpush.msra.mxu0 %v6288
        %6342 = vmatpush.msra.mxu0 %v6284
        %6343 = vmatpush.msra.mxu0 %v6280
        %6344 = vmatpush.msra.mxu0 %v6276
        %6345 = vmatpush.msra.mxu0 %v6272
        %6346 = vmatpush.msra.mxu0 %v6268
        %6347 = vmatpush.msra.mxu0 %v6264
        %6348 = vmatpush.msra.mxu0 %v6260
        %6349 = vmatpush.msra.mxu0 %v6256
        %6350 = vmatpush.msra.mxu0 %v6252
        %6351 = vmatmul.f32.gmra.mxu0 %v6249
        %v6352 = vpop.f32.mrf.mxu0
        %v6353 = vadd.f32 0.0, %v6352
        %6354 = vdwg.mxu0
        %6355 = vmatpush.msra.mxu0 %v6313
        %6356 = vmatpush.msra.mxu0 %v6309
        %6357 = vmatpush.msra.mxu0 %v6305
        %6358 = vmatpush.msra.mxu0 %v6301
        %6359 = vmatpush.msra.mxu0 %v6297
        %6360 = vmatpush.msra.mxu0 %v6293
        %6361 = vmatpush.msra.mxu0 %v6289
        %6362 = vmatpush.msra.mxu0 %v6285
        %6363 = vmatpush.msra.mxu0 %v6281
        %6364 = vmatpush.msra.mxu0 %v6277
        %6365 = vmatpush.msra.mxu0 %v6273
        %6366 = vmatpush.msra.mxu0 %v6269
        %6367 = vmatpush.msra.mxu0 %v6265
        %6368 = vmatpush.msra.mxu0 %v6261
        %6369 = vmatpush.msra.mxu0 %v6257
        %6370 = vmatpush.msra.mxu0 %v6253
        %6371 = vmatmul.f32.gmra.mxu0 %v6249
        %v6372 = vpop.f32.mrf.mxu0
        %v6373 = vadd.f32 0.0, %v6372
        %6374 = vdwg.mxu0
        %6375 = vmatpush.msra.mxu0 %v6314
        %6376 = vmatpush.msra.mxu0 %v6310
        %6377 = vmatpush.msra.mxu0 %v6306
        %6378 = vmatpush.msra.mxu0 %v6302
        %6379 = vmatpush.msra.mxu0 %v6298
        %6380 = vmatpush.msra.mxu0 %v6294
        %6381 = vmatpush.msra.mxu0 %v6290
        %6382 = vmatpush.msra.mxu0 %v6286
        %6383 = vmatpush.msra.mxu0 %v6282
        %6384 = vmatpush.msra.mxu0 %v6278
        %6385 = vmatpush.msra.mxu0 %v6274
        %6386 = vmatpush.msra.mxu0 %v6270
        %6387 = vmatpush.msra.mxu0 %v6266
        %6388 = vmatpush.msra.mxu0 %v6262
        %6389 = vmatpush.msra.mxu0 %v6258
        %6390 = vmatpush.msra.mxu0 %v6254
        %6391 = vmatmul.f32.gmra.mxu0 %v6249
        %v6392 = vpop.f32.mrf.mxu0
        %v6393 = vadd.f32 0.0, %v6392
        %6394 = vdwg.mxu0
        %v6395 = vadd.f32 %v6245, %v6333
        %v6396 = vadd.f32 %v6246, %v6353
        %v6397 = vadd.f32 %v6247, %v6373
        %v6398 = vadd.f32 %v6248, %v6393
        %v6399 = vld [vmem:[#allocation2 + $0x38] sm:$0x3]
        %s6400 = scalar_lea.vmem %s465, 14336 [#allocation14]
        %v6401 = vld [vmem:[%s6400] sm:$0xff]
        %v6402 = vld [vmem:[%s6400 + $0x8] sm:$0xff]
        %v6403 = vld [vmem:[%s6400 + $0x10] sm:$0xff]
        %v6404 = vld [vmem:[%s6400 + $0x18] sm:$0xff]
        %v6405 = vld [vmem:[%s6400 + $0x20] sm:$0xff]
        %v6406 = vld [vmem:[%s6400 + $0x28] sm:$0xff]
        %v6407 = vld [vmem:[%s6400 + $0x30] sm:$0xff]
        %v6408 = vld [vmem:[%s6400 + $0x38] sm:$0xff]
        %v6409 = vld [vmem:[%s6400 + $0x40] sm:$0xff]
        %v6410 = vld [vmem:[%s6400 + $0x48] sm:$0xff]
        %v6411 = vld [vmem:[%s6400 + $0x50] sm:$0xff]
        %v6412 = vld [vmem:[%s6400 + $0x58] sm:$0xff]
        %v6413 = vld [vmem:[%s6400 + $0x60] sm:$0xff]
        %v6414 = vld [vmem:[%s6400 + $0x68] sm:$0xff]
        %v6415 = vld [vmem:[%s6400 + $0x70] sm:$0xff]
        %v6416 = vld [vmem:[%s6400 + $0x78] sm:$0xff]
        %v6417 = vld [vmem:[%s6400 + $0x80] sm:$0xff]
        %v6418 = vld [vmem:[%s6400 + $0x88] sm:$0xff]
        %v6419 = vld [vmem:[%s6400 + $0x90] sm:$0xff]
        %v6420 = vld [vmem:[%s6400 + $0x98] sm:$0xff]
        %v6421 = vld [vmem:[%s6400 + $0xa0] sm:$0xff]
        %v6422 = vld [vmem:[%s6400 + $0xa8] sm:$0xff]
        %v6423 = vld [vmem:[%s6400 + $0xb0] sm:$0xff]
        %v6424 = vld [vmem:[%s6400 + $0xb8] sm:$0xff]
        %v6425 = vld [vmem:[%s6400 + $0xc0] sm:$0xff]
        %v6426 = vld [vmem:[%s6400 + $0xc8] sm:$0xff]
        %v6427 = vld [vmem:[%s6400 + $0xd0] sm:$0xff]
        %v6428 = vld [vmem:[%s6400 + $0xd8] sm:$0xff]
        %v6429 = vld [vmem:[%s6400 + $0xe0] sm:$0xff]
        %v6430 = vld [vmem:[%s6400 + $0xe8] sm:$0xff]
        %v6431 = vld [vmem:[%s6400 + $0xf0] sm:$0xff]
        %v6432 = vld [vmem:[%s6400 + $0xf8] sm:$0xff]
        %v6433 = vld [vmem:[%s6400 + $0x100] sm:$0xff]
        %v6434 = vld [vmem:[%s6400 + $0x108] sm:$0xff]
        %v6435 = vld [vmem:[%s6400 + $0x110] sm:$0xff]
        %v6436 = vld [vmem:[%s6400 + $0x118] sm:$0xff]
        %v6437 = vld [vmem:[%s6400 + $0x120] sm:$0xff]
        %v6438 = vld [vmem:[%s6400 + $0x128] sm:$0xff]
        %v6439 = vld [vmem:[%s6400 + $0x130] sm:$0xff]
        %v6440 = vld [vmem:[%s6400 + $0x138] sm:$0xff]
        %v6441 = vld [vmem:[%s6400 + $0x140] sm:$0xff]
        %v6442 = vld [vmem:[%s6400 + $0x148] sm:$0xff]
        %v6443 = vld [vmem:[%s6400 + $0x150] sm:$0xff]
        %v6444 = vld [vmem:[%s6400 + $0x158] sm:$0xff]
        %v6445 = vld [vmem:[%s6400 + $0x160] sm:$0xff]
        %v6446 = vld [vmem:[%s6400 + $0x168] sm:$0xff]
        %v6447 = vld [vmem:[%s6400 + $0x170] sm:$0xff]
        %v6448 = vld [vmem:[%s6400 + $0x178] sm:$0xff]
        %v6449 = vld [vmem:[%s6400 + $0x180] sm:$0xff]
        %v6450 = vld [vmem:[%s6400 + $0x188] sm:$0xff]
        %v6451 = vld [vmem:[%s6400 + $0x190] sm:$0xff]
        %v6452 = vld [vmem:[%s6400 + $0x198] sm:$0xff]
        %v6453 = vld [vmem:[%s6400 + $0x1a0] sm:$0xff]
        %v6454 = vld [vmem:[%s6400 + $0x1a8] sm:$0xff]
        %v6455 = vld [vmem:[%s6400 + $0x1b0] sm:$0xff]
        %v6456 = vld [vmem:[%s6400 + $0x1b8] sm:$0xff]
        %v6457 = vld [vmem:[%s6400 + $0x1c0] sm:$0xff]
        %v6458 = vld [vmem:[%s6400 + $0x1c8] sm:$0xff]
        %v6459 = vld [vmem:[%s6400 + $0x1d0] sm:$0xff]
        %v6460 = vld [vmem:[%s6400 + $0x1d8] sm:$0xff]
        %v6461 = vld [vmem:[%s6400 + $0x1e0] sm:$0xff]
        %v6462 = vld [vmem:[%s6400 + $0x1e8] sm:$0xff]
        %v6463 = vld [vmem:[%s6400 + $0x1f0] sm:$0xff]
        %v6464 = vld [vmem:[%s6400 + $0x1f8] sm:$0xff]
        %6465 = vmatpush.msra.mxu0 %v6461
        %6466 = vmatpush.msra.mxu0 %v6457
        %6467 = vmatpush.msra.mxu0 %v6453
        %6468 = vmatpush.msra.mxu0 %v6449
        %6469 = vmatpush.msra.mxu0 %v6445
        %6470 = vmatpush.msra.mxu0 %v6441
        %6471 = vmatpush.msra.mxu0 %v6437
        %6472 = vmatpush.msra.mxu0 %v6433
        %6473 = vmatpush.msra.mxu0 %v6429
        %6474 = vmatpush.msra.mxu0 %v6425
        %6475 = vmatpush.msra.mxu0 %v6421
        %6476 = vmatpush.msra.mxu0 %v6417
        %6477 = vmatpush.msra.mxu0 %v6413
        %6478 = vmatpush.msra.mxu0 %v6409
        %6479 = vmatpush.msra.mxu0 %v6405
        %6480 = vmatpush.msra.mxu0 %v6401
        %6481 = vmatmul.f32.gmra.mxu0 %v6399
        %v6482 = vpop.f32.mrf.mxu0
        %v6483 = vadd.f32 0.0, %v6482
        %6484 = vdwg.mxu0
        %6485 = vmatpush.msra.mxu0 %v6462
        %6486 = vmatpush.msra.mxu0 %v6458
        %6487 = vmatpush.msra.mxu0 %v6454
        %6488 = vmatpush.msra.mxu0 %v6450
        %6489 = vmatpush.msra.mxu0 %v6446
        %6490 = vmatpush.msra.mxu0 %v6442
        %6491 = vmatpush.msra.mxu0 %v6438
        %6492 = vmatpush.msra.mxu0 %v6434
        %6493 = vmatpush.msra.mxu0 %v6430
        %6494 = vmatpush.msra.mxu0 %v6426
        %6495 = vmatpush.msra.mxu0 %v6422
        %6496 = vmatpush.msra.mxu0 %v6418
        %6497 = vmatpush.msra.mxu0 %v6414
        %6498 = vmatpush.msra.mxu0 %v6410
        %6499 = vmatpush.msra.mxu0 %v6406
        %6500 = vmatpush.msra.mxu0 %v6402
        %6501 = vmatmul.f32.gmra.mxu0 %v6399
        %v6502 = vpop.f32.mrf.mxu0
        %v6503 = vadd.f32 0.0, %v6502
        %6504 = vdwg.mxu0
        %6505 = vmatpush.msra.mxu0 %v6463
        %6506 = vmatpush.msra.mxu0 %v6459
        %6507 = vmatpush.msra.mxu0 %v6455
        %6508 = vmatpush.msra.mxu0 %v6451
        %6509 = vmatpush.msra.mxu0 %v6447
        %6510 = vmatpush.msra.mxu0 %v6443
        %6511 = vmatpush.msra.mxu0 %v6439
        %6512 = vmatpush.msra.mxu0 %v6435
        %6513 = vmatpush.msra.mxu0 %v6431
        %6514 = vmatpush.msra.mxu0 %v6427
        %6515 = vmatpush.msra.mxu0 %v6423
        %6516 = vmatpush.msra.mxu0 %v6419
        %6517 = vmatpush.msra.mxu0 %v6415
        %6518 = vmatpush.msra.mxu0 %v6411
        %6519 = vmatpush.msra.mxu0 %v6407
        %6520 = vmatpush.msra.mxu0 %v6403
        %6521 = vmatmul.f32.gmra.mxu0 %v6399
        %v6522 = vpop.f32.mrf.mxu0
        %v6523 = vadd.f32 0.0, %v6522
        %6524 = vdwg.mxu0
        %6525 = vmatpush.msra.mxu0 %v6464
        %6526 = vmatpush.msra.mxu0 %v6460
        %6527 = vmatpush.msra.mxu0 %v6456
        %6528 = vmatpush.msra.mxu0 %v6452
        %6529 = vmatpush.msra.mxu0 %v6448
        %6530 = vmatpush.msra.mxu0 %v6444
        %6531 = vmatpush.msra.mxu0 %v6440
        %6532 = vmatpush.msra.mxu0 %v6436
        %6533 = vmatpush.msra.mxu0 %v6432
        %6534 = vmatpush.msra.mxu0 %v6428
        %6535 = vmatpush.msra.mxu0 %v6424
        %6536 = vmatpush.msra.mxu0 %v6420
        %6537 = vmatpush.msra.mxu0 %v6416
        %6538 = vmatpush.msra.mxu0 %v6412
        %6539 = vmatpush.msra.mxu0 %v6408
        %6540 = vmatpush.msra.mxu0 %v6404
        %6541 = vmatmul.f32.gmra.mxu0 %v6399
        %v6542 = vpop.f32.mrf.mxu0
        %v6543 = vadd.f32 0.0, %v6542
        %6544 = vdwg.mxu0
        %v6545 = vadd.f32 %v6395, %v6483
        %v6546 = vadd.f32 %v6396, %v6503
        %v6547 = vadd.f32 %v6397, %v6523
        %v6548 = vadd.f32 %v6398, %v6543
        %v6549 = vld [vmem:[#allocation2 + $0x3a] sm:$0x3]
        %s6550 = scalar_lea.vmem %s465, 14848 [#allocation14]
        %v6551 = vld [vmem:[%s6550] sm:$0xff]
        %v6552 = vld [vmem:[%s6550 + $0x8] sm:$0xff]
        %v6553 = vld [vmem:[%s6550 + $0x10] sm:$0xff]
        %v6554 = vld [vmem:[%s6550 + $0x18] sm:$0xff]
        %v6555 = vld [vmem:[%s6550 + $0x20] sm:$0xff]
        %v6556 = vld [vmem:[%s6550 + $0x28] sm:$0xff]
        %v6557 = vld [vmem:[%s6550 + $0x30] sm:$0xff]
        %v6558 = vld [vmem:[%s6550 + $0x38] sm:$0xff]
        %v6559 = vld [vmem:[%s6550 + $0x40] sm:$0xff]
        %v6560 = vld [vmem:[%s6550 + $0x48] sm:$0xff]
        %v6561 = vld [vmem:[%s6550 + $0x50] sm:$0xff]
        %v6562 = vld [vmem:[%s6550 + $0x58] sm:$0xff]
        %v6563 = vld [vmem:[%s6550 + $0x60] sm:$0xff]
        %v6564 = vld [vmem:[%s6550 + $0x68] sm:$0xff]
        %v6565 = vld [vmem:[%s6550 + $0x70] sm:$0xff]
        %v6566 = vld [vmem:[%s6550 + $0x78] sm:$0xff]
        %v6567 = vld [vmem:[%s6550 + $0x80] sm:$0xff]
        %v6568 = vld [vmem:[%s6550 + $0x88] sm:$0xff]
        %v6569 = vld [vmem:[%s6550 + $0x90] sm:$0xff]
        %v6570 = vld [vmem:[%s6550 + $0x98] sm:$0xff]
        %v6571 = vld [vmem:[%s6550 + $0xa0] sm:$0xff]
        %v6572 = vld [vmem:[%s6550 + $0xa8] sm:$0xff]
        %v6573 = vld [vmem:[%s6550 + $0xb0] sm:$0xff]
        %v6574 = vld [vmem:[%s6550 + $0xb8] sm:$0xff]
        %v6575 = vld [vmem:[%s6550 + $0xc0] sm:$0xff]
        %v6576 = vld [vmem:[%s6550 + $0xc8] sm:$0xff]
        %v6577 = vld [vmem:[%s6550 + $0xd0] sm:$0xff]
        %v6578 = vld [vmem:[%s6550 + $0xd8] sm:$0xff]
        %v6579 = vld [vmem:[%s6550 + $0xe0] sm:$0xff]
        %v6580 = vld [vmem:[%s6550 + $0xe8] sm:$0xff]
        %v6581 = vld [vmem:[%s6550 + $0xf0] sm:$0xff]
        %v6582 = vld [vmem:[%s6550 + $0xf8] sm:$0xff]
        %v6583 = vld [vmem:[%s6550 + $0x100] sm:$0xff]
        %v6584 = vld [vmem:[%s6550 + $0x108] sm:$0xff]
        %v6585 = vld [vmem:[%s6550 + $0x110] sm:$0xff]
        %v6586 = vld [vmem:[%s6550 + $0x118] sm:$0xff]
        %v6587 = vld [vmem:[%s6550 + $0x120] sm:$0xff]
        %v6588 = vld [vmem:[%s6550 + $0x128] sm:$0xff]
        %v6589 = vld [vmem:[%s6550 + $0x130] sm:$0xff]
        %v6590 = vld [vmem:[%s6550 + $0x138] sm:$0xff]
        %v6591 = vld [vmem:[%s6550 + $0x140] sm:$0xff]
        %v6592 = vld [vmem:[%s6550 + $0x148] sm:$0xff]
        %v6593 = vld [vmem:[%s6550 + $0x150] sm:$0xff]
        %v6594 = vld [vmem:[%s6550 + $0x158] sm:$0xff]
        %v6595 = vld [vmem:[%s6550 + $0x160] sm:$0xff]
        %v6596 = vld [vmem:[%s6550 + $0x168] sm:$0xff]
        %v6597 = vld [vmem:[%s6550 + $0x170] sm:$0xff]
        %v6598 = vld [vmem:[%s6550 + $0x178] sm:$0xff]
        %v6599 = vld [vmem:[%s6550 + $0x180] sm:$0xff]
        %v6600 = vld [vmem:[%s6550 + $0x188] sm:$0xff]
        %v6601 = vld [vmem:[%s6550 + $0x190] sm:$0xff]
        %v6602 = vld [vmem:[%s6550 + $0x198] sm:$0xff]
        %v6603 = vld [vmem:[%s6550 + $0x1a0] sm:$0xff]
        %v6604 = vld [vmem:[%s6550 + $0x1a8] sm:$0xff]
        %v6605 = vld [vmem:[%s6550 + $0x1b0] sm:$0xff]
        %v6606 = vld [vmem:[%s6550 + $0x1b8] sm:$0xff]
        %v6607 = vld [vmem:[%s6550 + $0x1c0] sm:$0xff]
        %v6608 = vld [vmem:[%s6550 + $0x1c8] sm:$0xff]
        %v6609 = vld [vmem:[%s6550 + $0x1d0] sm:$0xff]
        %v6610 = vld [vmem:[%s6550 + $0x1d8] sm:$0xff]
        %v6611 = vld [vmem:[%s6550 + $0x1e0] sm:$0xff]
        %v6612 = vld [vmem:[%s6550 + $0x1e8] sm:$0xff]
        %v6613 = vld [vmem:[%s6550 + $0x1f0] sm:$0xff]
        %v6614 = vld [vmem:[%s6550 + $0x1f8] sm:$0xff]
        %6615 = vmatpush.msra.mxu0 %v6611
        %6616 = vmatpush.msra.mxu0 %v6607
        %6617 = vmatpush.msra.mxu0 %v6603
        %6618 = vmatpush.msra.mxu0 %v6599
        %6619 = vmatpush.msra.mxu0 %v6595
        %6620 = vmatpush.msra.mxu0 %v6591
        %6621 = vmatpush.msra.mxu0 %v6587
        %6622 = vmatpush.msra.mxu0 %v6583
        %6623 = vmatpush.msra.mxu0 %v6579
        %6624 = vmatpush.msra.mxu0 %v6575
        %6625 = vmatpush.msra.mxu0 %v6571
        %6626 = vmatpush.msra.mxu0 %v6567
        %6627 = vmatpush.msra.mxu0 %v6563
        %6628 = vmatpush.msra.mxu0 %v6559
        %6629 = vmatpush.msra.mxu0 %v6555
        %6630 = vmatpush.msra.mxu0 %v6551
        %6631 = vmatmul.f32.gmra.mxu0 %v6549
        %v6632 = vpop.f32.mrf.mxu0
        %v6633 = vadd.f32 0.0, %v6632
        %6634 = vdwg.mxu0
        %6635 = vmatpush.msra.mxu0 %v6612
        %6636 = vmatpush.msra.mxu0 %v6608
        %6637 = vmatpush.msra.mxu0 %v6604
        %6638 = vmatpush.msra.mxu0 %v6600
        %6639 = vmatpush.msra.mxu0 %v6596
        %6640 = vmatpush.msra.mxu0 %v6592
        %6641 = vmatpush.msra.mxu0 %v6588
        %6642 = vmatpush.msra.mxu0 %v6584
        %6643 = vmatpush.msra.mxu0 %v6580
        %6644 = vmatpush.msra.mxu0 %v6576
        %6645 = vmatpush.msra.mxu0 %v6572
        %6646 = vmatpush.msra.mxu0 %v6568
        %6647 = vmatpush.msra.mxu0 %v6564
        %6648 = vmatpush.msra.mxu0 %v6560
        %6649 = vmatpush.msra.mxu0 %v6556
        %6650 = vmatpush.msra.mxu0 %v6552
        %6651 = vmatmul.f32.gmra.mxu0 %v6549
        %v6652 = vpop.f32.mrf.mxu0
        %v6653 = vadd.f32 0.0, %v6652
        %6654 = vdwg.mxu0
        %6655 = vmatpush.msra.mxu0 %v6613
        %6656 = vmatpush.msra.mxu0 %v6609
        %6657 = vmatpush.msra.mxu0 %v6605
        %6658 = vmatpush.msra.mxu0 %v6601
        %6659 = vmatpush.msra.mxu0 %v6597
        %6660 = vmatpush.msra.mxu0 %v6593
        %6661 = vmatpush.msra.mxu0 %v6589
        %6662 = vmatpush.msra.mxu0 %v6585
        %6663 = vmatpush.msra.mxu0 %v6581
        %6664 = vmatpush.msra.mxu0 %v6577
        %6665 = vmatpush.msra.mxu0 %v6573
        %6666 = vmatpush.msra.mxu0 %v6569
        %6667 = vmatpush.msra.mxu0 %v6565
        %6668 = vmatpush.msra.mxu0 %v6561
        %6669 = vmatpush.msra.mxu0 %v6557
        %6670 = vmatpush.msra.mxu0 %v6553
        %6671 = vmatmul.f32.gmra.mxu0 %v6549
        %v6672 = vpop.f32.mrf.mxu0
        %v6673 = vadd.f32 0.0, %v6672
        %6674 = vdwg.mxu0
        %6675 = vmatpush.msra.mxu0 %v6614
        %6676 = vmatpush.msra.mxu0 %v6610
        %6677 = vmatpush.msra.mxu0 %v6606
        %6678 = vmatpush.msra.mxu0 %v6602
        %6679 = vmatpush.msra.mxu0 %v6598
        %6680 = vmatpush.msra.mxu0 %v6594
        %6681 = vmatpush.msra.mxu0 %v6590
        %6682 = vmatpush.msra.mxu0 %v6586
        %6683 = vmatpush.msra.mxu0 %v6582
        %6684 = vmatpush.msra.mxu0 %v6578
        %6685 = vmatpush.msra.mxu0 %v6574
        %6686 = vmatpush.msra.mxu0 %v6570
        %6687 = vmatpush.msra.mxu0 %v6566
        %6688 = vmatpush.msra.mxu0 %v6562
        %6689 = vmatpush.msra.mxu0 %v6558
        %6690 = vmatpush.msra.mxu0 %v6554
        %6691 = vmatmul.f32.gmra.mxu0 %v6549
        %v6692 = vpop.f32.mrf.mxu0
        %v6693 = vadd.f32 0.0, %v6692
        %6694 = vdwg.mxu0
        %v6695 = vadd.f32 %v6545, %v6633
        %v6696 = vadd.f32 %v6546, %v6653
        %v6697 = vadd.f32 %v6547, %v6673
        %v6698 = vadd.f32 %v6548, %v6693
        %v6699 = vld [vmem:[#allocation2 + $0x3c] sm:$0x3]
        %s6700 = scalar_lea.vmem %s465, 15360 [#allocation14]
        %v6701 = vld [vmem:[%s6700] sm:$0xff]
        %v6702 = vld [vmem:[%s6700 + $0x8] sm:$0xff]
        %v6703 = vld [vmem:[%s6700 + $0x10] sm:$0xff]
        %v6704 = vld [vmem:[%s6700 + $0x18] sm:$0xff]
        %v6705 = vld [vmem:[%s6700 + $0x20] sm:$0xff]
        %v6706 = vld [vmem:[%s6700 + $0x28] sm:$0xff]
        %v6707 = vld [vmem:[%s6700 + $0x30] sm:$0xff]
        %v6708 = vld [vmem:[%s6700 + $0x38] sm:$0xff]
        %v6709 = vld [vmem:[%s6700 + $0x40] sm:$0xff]
        %v6710 = vld [vmem:[%s6700 + $0x48] sm:$0xff]
        %v6711 = vld [vmem:[%s6700 + $0x50] sm:$0xff]
        %v6712 = vld [vmem:[%s6700 + $0x58] sm:$0xff]
        %v6713 = vld [vmem:[%s6700 + $0x60] sm:$0xff]
        %v6714 = vld [vmem:[%s6700 + $0x68] sm:$0xff]
        %v6715 = vld [vmem:[%s6700 + $0x70] sm:$0xff]
        %v6716 = vld [vmem:[%s6700 + $0x78] sm:$0xff]
        %v6717 = vld [vmem:[%s6700 + $0x80] sm:$0xff]
        %v6718 = vld [vmem:[%s6700 + $0x88] sm:$0xff]
        %v6719 = vld [vmem:[%s6700 + $0x90] sm:$0xff]
        %v6720 = vld [vmem:[%s6700 + $0x98] sm:$0xff]
        %v6721 = vld [vmem:[%s6700 + $0xa0] sm:$0xff]
        %v6722 = vld [vmem:[%s6700 + $0xa8] sm:$0xff]
        %v6723 = vld [vmem:[%s6700 + $0xb0] sm:$0xff]
        %v6724 = vld [vmem:[%s6700 + $0xb8] sm:$0xff]
        %v6725 = vld [vmem:[%s6700 + $0xc0] sm:$0xff]
        %v6726 = vld [vmem:[%s6700 + $0xc8] sm:$0xff]
        %v6727 = vld [vmem:[%s6700 + $0xd0] sm:$0xff]
        %v6728 = vld [vmem:[%s6700 + $0xd8] sm:$0xff]
        %v6729 = vld [vmem:[%s6700 + $0xe0] sm:$0xff]
        %v6730 = vld [vmem:[%s6700 + $0xe8] sm:$0xff]
        %v6731 = vld [vmem:[%s6700 + $0xf0] sm:$0xff]
        %v6732 = vld [vmem:[%s6700 + $0xf8] sm:$0xff]
        %v6733 = vld [vmem:[%s6700 + $0x100] sm:$0xff]
        %v6734 = vld [vmem:[%s6700 + $0x108] sm:$0xff]
        %v6735 = vld [vmem:[%s6700 + $0x110] sm:$0xff]
        %v6736 = vld [vmem:[%s6700 + $0x118] sm:$0xff]
        %v6737 = vld [vmem:[%s6700 + $0x120] sm:$0xff]
        %v6738 = vld [vmem:[%s6700 + $0x128] sm:$0xff]
        %v6739 = vld [vmem:[%s6700 + $0x130] sm:$0xff]
        %v6740 = vld [vmem:[%s6700 + $0x138] sm:$0xff]
        %v6741 = vld [vmem:[%s6700 + $0x140] sm:$0xff]
        %v6742 = vld [vmem:[%s6700 + $0x148] sm:$0xff]
        %v6743 = vld [vmem:[%s6700 + $0x150] sm:$0xff]
        %v6744 = vld [vmem:[%s6700 + $0x158] sm:$0xff]
        %v6745 = vld [vmem:[%s6700 + $0x160] sm:$0xff]
        %v6746 = vld [vmem:[%s6700 + $0x168] sm:$0xff]
        %v6747 = vld [vmem:[%s6700 + $0x170] sm:$0xff]
        %v6748 = vld [vmem:[%s6700 + $0x178] sm:$0xff]
        %v6749 = vld [vmem:[%s6700 + $0x180] sm:$0xff]
        %v6750 = vld [vmem:[%s6700 + $0x188] sm:$0xff]
        %v6751 = vld [vmem:[%s6700 + $0x190] sm:$0xff]
        %v6752 = vld [vmem:[%s6700 + $0x198] sm:$0xff]
        %v6753 = vld [vmem:[%s6700 + $0x1a0] sm:$0xff]
        %v6754 = vld [vmem:[%s6700 + $0x1a8] sm:$0xff]
        %v6755 = vld [vmem:[%s6700 + $0x1b0] sm:$0xff]
        %v6756 = vld [vmem:[%s6700 + $0x1b8] sm:$0xff]
        %v6757 = vld [vmem:[%s6700 + $0x1c0] sm:$0xff]
        %v6758 = vld [vmem:[%s6700 + $0x1c8] sm:$0xff]
        %v6759 = vld [vmem:[%s6700 + $0x1d0] sm:$0xff]
        %v6760 = vld [vmem:[%s6700 + $0x1d8] sm:$0xff]
        %v6761 = vld [vmem:[%s6700 + $0x1e0] sm:$0xff]
        %v6762 = vld [vmem:[%s6700 + $0x1e8] sm:$0xff]
        %v6763 = vld [vmem:[%s6700 + $0x1f0] sm:$0xff]
        %v6764 = vld [vmem:[%s6700 + $0x1f8] sm:$0xff]
        %6765 = vmatpush.msra.mxu0 %v6761
        %6766 = vmatpush.msra.mxu0 %v6757
        %6767 = vmatpush.msra.mxu0 %v6753
        %6768 = vmatpush.msra.mxu0 %v6749
        %6769 = vmatpush.msra.mxu0 %v6745
        %6770 = vmatpush.msra.mxu0 %v6741
        %6771 = vmatpush.msra.mxu0 %v6737
        %6772 = vmatpush.msra.mxu0 %v6733
        %6773 = vmatpush.msra.mxu0 %v6729
        %6774 = vmatpush.msra.mxu0 %v6725
        %6775 = vmatpush.msra.mxu0 %v6721
        %6776 = vmatpush.msra.mxu0 %v6717
        %6777 = vmatpush.msra.mxu0 %v6713
        %6778 = vmatpush.msra.mxu0 %v6709
        %6779 = vmatpush.msra.mxu0 %v6705
        %6780 = vmatpush.msra.mxu0 %v6701
        %6781 = vmatmul.f32.gmra.mxu0 %v6699
        %v6782 = vpop.f32.mrf.mxu0
        %v6783 = vadd.f32 0.0, %v6782
        %6784 = vdwg.mxu0
        %6785 = vmatpush.msra.mxu0 %v6762
        %6786 = vmatpush.msra.mxu0 %v6758
        %6787 = vmatpush.msra.mxu0 %v6754
        %6788 = vmatpush.msra.mxu0 %v6750
        %6789 = vmatpush.msra.mxu0 %v6746
        %6790 = vmatpush.msra.mxu0 %v6742
        %6791 = vmatpush.msra.mxu0 %v6738
        %6792 = vmatpush.msra.mxu0 %v6734
        %6793 = vmatpush.msra.mxu0 %v6730
        %6794 = vmatpush.msra.mxu0 %v6726
        %6795 = vmatpush.msra.mxu0 %v6722
        %6796 = vmatpush.msra.mxu0 %v6718
        %6797 = vmatpush.msra.mxu0 %v6714
        %6798 = vmatpush.msra.mxu0 %v6710
        %6799 = vmatpush.msra.mxu0 %v6706
        %6800 = vmatpush.msra.mxu0 %v6702
        %6801 = vmatmul.f32.gmra.mxu0 %v6699
        %v6802 = vpop.f32.mrf.mxu0
        %v6803 = vadd.f32 0.0, %v6802
        %6804 = vdwg.mxu0
        %6805 = vmatpush.msra.mxu0 %v6763
        %6806 = vmatpush.msra.mxu0 %v6759
        %6807 = vmatpush.msra.mxu0 %v6755
        %6808 = vmatpush.msra.mxu0 %v6751
        %6809 = vmatpush.msra.mxu0 %v6747
        %6810 = vmatpush.msra.mxu0 %v6743
        %6811 = vmatpush.msra.mxu0 %v6739
        %6812 = vmatpush.msra.mxu0 %v6735
        %6813 = vmatpush.msra.mxu0 %v6731
        %6814 = vmatpush.msra.mxu0 %v6727
        %6815 = vmatpush.msra.mxu0 %v6723
        %6816 = vmatpush.msra.mxu0 %v6719
        %6817 = vmatpush.msra.mxu0 %v6715
        %6818 = vmatpush.msra.mxu0 %v6711
        %6819 = vmatpush.msra.mxu0 %v6707
        %6820 = vmatpush.msra.mxu0 %v6703
        %6821 = vmatmul.f32.gmra.mxu0 %v6699
        %v6822 = vpop.f32.mrf.mxu0
        %v6823 = vadd.f32 0.0, %v6822
        %6824 = vdwg.mxu0
        %6825 = vmatpush.msra.mxu0 %v6764
        %6826 = vmatpush.msra.mxu0 %v6760
        %6827 = vmatpush.msra.mxu0 %v6756
        %6828 = vmatpush.msra.mxu0 %v6752
        %6829 = vmatpush.msra.mxu0 %v6748
        %6830 = vmatpush.msra.mxu0 %v6744
        %6831 = vmatpush.msra.mxu0 %v6740
        %6832 = vmatpush.msra.mxu0 %v6736
        %6833 = vmatpush.msra.mxu0 %v6732
        %6834 = vmatpush.msra.mxu0 %v6728
        %6835 = vmatpush.msra.mxu0 %v6724
        %6836 = vmatpush.msra.mxu0 %v6720
        %6837 = vmatpush.msra.mxu0 %v6716
        %6838 = vmatpush.msra.mxu0 %v6712
        %6839 = vmatpush.msra.mxu0 %v6708
        %6840 = vmatpush.msra.mxu0 %v6704
        %6841 = vmatmul.f32.gmra.mxu0 %v6699
        %v6842 = vpop.f32.mrf.mxu0
        %v6843 = vadd.f32 0.0, %v6842
        %6844 = vdwg.mxu0
        %v6845 = vadd.f32 %v6695, %v6783
        %v6846 = vadd.f32 %v6696, %v6803
        %v6847 = vadd.f32 %v6697, %v6823
        %v6848 = vadd.f32 %v6698, %v6843
        %v6849 = vld [vmem:[#allocation2 + $0x3e] sm:$0x3]
        %s6850 = scalar_lea.vmem %s465, 15872 [#allocation14]
        %v6851 = vld [vmem:[%s6850] sm:$0xff]
        %v6852 = vld [vmem:[%s6850 + $0x8] sm:$0xff]
        %v6853 = vld [vmem:[%s6850 + $0x10] sm:$0xff]
        %v6854 = vld [vmem:[%s6850 + $0x18] sm:$0xff]
        %v6855 = vld [vmem:[%s6850 + $0x20] sm:$0xff]
        %v6856 = vld [vmem:[%s6850 + $0x28] sm:$0xff]
        %v6857 = vld [vmem:[%s6850 + $0x30] sm:$0xff]
        %v6858 = vld [vmem:[%s6850 + $0x38] sm:$0xff]
        %v6859 = vld [vmem:[%s6850 + $0x40] sm:$0xff]
        %v6860 = vld [vmem:[%s6850 + $0x48] sm:$0xff]
        %v6861 = vld [vmem:[%s6850 + $0x50] sm:$0xff]
        %v6862 = vld [vmem:[%s6850 + $0x58] sm:$0xff]
        %v6863 = vld [vmem:[%s6850 + $0x60] sm:$0xff]
        %v6864 = vld [vmem:[%s6850 + $0x68] sm:$0xff]
        %v6865 = vld [vmem:[%s6850 + $0x70] sm:$0xff]
        %v6866 = vld [vmem:[%s6850 + $0x78] sm:$0xff]
        %v6867 = vld [vmem:[%s6850 + $0x80] sm:$0xff]
        %v6868 = vld [vmem:[%s6850 + $0x88] sm:$0xff]
        %v6869 = vld [vmem:[%s6850 + $0x90] sm:$0xff]
        %v6870 = vld [vmem:[%s6850 + $0x98] sm:$0xff]
        %v6871 = vld [vmem:[%s6850 + $0xa0] sm:$0xff]
        %v6872 = vld [vmem:[%s6850 + $0xa8] sm:$0xff]
        %v6873 = vld [vmem:[%s6850 + $0xb0] sm:$0xff]
        %v6874 = vld [vmem:[%s6850 + $0xb8] sm:$0xff]
        %v6875 = vld [vmem:[%s6850 + $0xc0] sm:$0xff]
        %v6876 = vld [vmem:[%s6850 + $0xc8] sm:$0xff]
        %v6877 = vld [vmem:[%s6850 + $0xd0] sm:$0xff]
        %v6878 = vld [vmem:[%s6850 + $0xd8] sm:$0xff]
        %v6879 = vld [vmem:[%s6850 + $0xe0] sm:$0xff]
        %v6880 = vld [vmem:[%s6850 + $0xe8] sm:$0xff]
        %v6881 = vld [vmem:[%s6850 + $0xf0] sm:$0xff]
        %v6882 = vld [vmem:[%s6850 + $0xf8] sm:$0xff]
        %v6883 = vld [vmem:[%s6850 + $0x100] sm:$0xff]
        %v6884 = vld [vmem:[%s6850 + $0x108] sm:$0xff]
        %v6885 = vld [vmem:[%s6850 + $0x110] sm:$0xff]
        %v6886 = vld [vmem:[%s6850 + $0x118] sm:$0xff]
        %v6887 = vld [vmem:[%s6850 + $0x120] sm:$0xff]
        %v6888 = vld [vmem:[%s6850 + $0x128] sm:$0xff]
        %v6889 = vld [vmem:[%s6850 + $0x130] sm:$0xff]
        %v6890 = vld [vmem:[%s6850 + $0x138] sm:$0xff]
        %v6891 = vld [vmem:[%s6850 + $0x140] sm:$0xff]
        %v6892 = vld [vmem:[%s6850 + $0x148] sm:$0xff]
        %v6893 = vld [vmem:[%s6850 + $0x150] sm:$0xff]
        %v6894 = vld [vmem:[%s6850 + $0x158] sm:$0xff]
        %v6895 = vld [vmem:[%s6850 + $0x160] sm:$0xff]
        %v6896 = vld [vmem:[%s6850 + $0x168] sm:$0xff]
        %v6897 = vld [vmem:[%s6850 + $0x170] sm:$0xff]
        %v6898 = vld [vmem:[%s6850 + $0x178] sm:$0xff]
        %v6899 = vld [vmem:[%s6850 + $0x180] sm:$0xff]
        %v6900 = vld [vmem:[%s6850 + $0x188] sm:$0xff]
        %v6901 = vld [vmem:[%s6850 + $0x190] sm:$0xff]
        %v6902 = vld [vmem:[%s6850 + $0x198] sm:$0xff]
        %v6903 = vld [vmem:[%s6850 + $0x1a0] sm:$0xff]
        %v6904 = vld [vmem:[%s6850 + $0x1a8] sm:$0xff]
        %v6905 = vld [vmem:[%s6850 + $0x1b0] sm:$0xff]
        %v6906 = vld [vmem:[%s6850 + $0x1b8] sm:$0xff]
        %v6907 = vld [vmem:[%s6850 + $0x1c0] sm:$0xff]
        %v6908 = vld [vmem:[%s6850 + $0x1c8] sm:$0xff]
        %v6909 = vld [vmem:[%s6850 + $0x1d0] sm:$0xff]
        %v6910 = vld [vmem:[%s6850 + $0x1d8] sm:$0xff]
        %v6911 = vld [vmem:[%s6850 + $0x1e0] sm:$0xff]
        %v6912 = vld [vmem:[%s6850 + $0x1e8] sm:$0xff]
        %v6913 = vld [vmem:[%s6850 + $0x1f0] sm:$0xff]
        %v6914 = vld [vmem:[%s6850 + $0x1f8] sm:$0xff]
        %6915 = vmatpush.msra.mxu0 %v6911
        %6916 = vmatpush.msra.mxu0 %v6907
        %6917 = vmatpush.msra.mxu0 %v6903
        %6918 = vmatpush.msra.mxu0 %v6899
        %6919 = vmatpush.msra.mxu0 %v6895
        %6920 = vmatpush.msra.mxu0 %v6891
        %6921 = vmatpush.msra.mxu0 %v6887
        %6922 = vmatpush.msra.mxu0 %v6883
        %6923 = vmatpush.msra.mxu0 %v6879
        %6924 = vmatpush.msra.mxu0 %v6875
        %6925 = vmatpush.msra.mxu0 %v6871
        %6926 = vmatpush.msra.mxu0 %v6867
        %6927 = vmatpush.msra.mxu0 %v6863
        %6928 = vmatpush.msra.mxu0 %v6859
        %6929 = vmatpush.msra.mxu0 %v6855
        %6930 = vmatpush.msra.mxu0 %v6851
        %6931 = vmatmul.f32.gmra.mxu0 %v6849
        %v6932 = vpop.f32.mrf.mxu0
        %v6933 = vadd.f32 0.0, %v6932
        %6934 = vdwg.mxu0
        %6935 = vmatpush.msra.mxu0 %v6912
        %6936 = vmatpush.msra.mxu0 %v6908
        %6937 = vmatpush.msra.mxu0 %v6904
        %6938 = vmatpush.msra.mxu0 %v6900
        %6939 = vmatpush.msra.mxu0 %v6896
        %6940 = vmatpush.msra.mxu0 %v6892
        %6941 = vmatpush.msra.mxu0 %v6888
        %6942 = vmatpush.msra.mxu0 %v6884
        %6943 = vmatpush.msra.mxu0 %v6880
        %6944 = vmatpush.msra.mxu0 %v6876
        %6945 = vmatpush.msra.mxu0 %v6872
        %6946 = vmatpush.msra.mxu0 %v6868
        %6947 = vmatpush.msra.mxu0 %v6864
        %6948 = vmatpush.msra.mxu0 %v6860
        %6949 = vmatpush.msra.mxu0 %v6856
        %6950 = vmatpush.msra.mxu0 %v6852
        %6951 = vmatmul.f32.gmra.mxu0 %v6849
        %v6952 = vpop.f32.mrf.mxu0
        %v6953 = vadd.f32 0.0, %v6952
        %6954 = vdwg.mxu0
        %6955 = vmatpush.msra.mxu0 %v6913
        %6956 = vmatpush.msra.mxu0 %v6909
        %6957 = vmatpush.msra.mxu0 %v6905
        %6958 = vmatpush.msra.mxu0 %v6901
        %6959 = vmatpush.msra.mxu0 %v6897
        %6960 = vmatpush.msra.mxu0 %v6893
        %6961 = vmatpush.msra.mxu0 %v6889
        %6962 = vmatpush.msra.mxu0 %v6885
        %6963 = vmatpush.msra.mxu0 %v6881
        %6964 = vmatpush.msra.mxu0 %v6877
        %6965 = vmatpush.msra.mxu0 %v6873
        %6966 = vmatpush.msra.mxu0 %v6869
        %6967 = vmatpush.msra.mxu0 %v6865
        %6968 = vmatpush.msra.mxu0 %v6861
        %6969 = vmatpush.msra.mxu0 %v6857
        %6970 = vmatpush.msra.mxu0 %v6853
        %6971 = vmatmul.f32.gmra.mxu0 %v6849
        %v6972 = vpop.f32.mrf.mxu0
        %v6973 = vadd.f32 0.0, %v6972
        %6974 = vdwg.mxu0
        %6975 = vmatpush.msra.mxu0 %v6914
        %6976 = vmatpush.msra.mxu0 %v6910
        %6977 = vmatpush.msra.mxu0 %v6906
        %6978 = vmatpush.msra.mxu0 %v6902
        %6979 = vmatpush.msra.mxu0 %v6898
        %6980 = vmatpush.msra.mxu0 %v6894
        %6981 = vmatpush.msra.mxu0 %v6890
        %6982 = vmatpush.msra.mxu0 %v6886
        %6983 = vmatpush.msra.mxu0 %v6882
        %6984 = vmatpush.msra.mxu0 %v6878
        %6985 = vmatpush.msra.mxu0 %v6874
        %6986 = vmatpush.msra.mxu0 %v6870
        %6987 = vmatpush.msra.mxu0 %v6866
        %6988 = vmatpush.msra.mxu0 %v6862
        %6989 = vmatpush.msra.mxu0 %v6858
        %6990 = vmatpush.msra.mxu0 %v6854
        %6991 = vmatmul.f32.gmra.mxu0 %v6849
        %v6992 = vpop.f32.mrf.mxu0
        %v6993 = vadd.f32 0.0, %v6992
        %6994 = vdwg.mxu0
        %v6995 = vadd.f32 %v6845, %v6933
        %v6996 = vadd.f32 %v6846, %v6953
        %v6997 = vadd.f32 %v6847, %v6973
        %v6998 = vadd.f32 %v6848, %v6993
        %v6999 = vld [vmem:[%s475] sm:$0xf]
        %v7001 = vperm.slane %v6999, 0
        %v7002 = vperm.slane %v6999, 1
        %v7003 = vperm.slane %v6999, 2
        %v7004 = vperm.slane %v6999, 3
        %v7009 = vadd.f32 %v6995, %v7001
        %v7010 = vadd.f32 %v6996, %v7002
        %v7011 = vadd.f32 %v6997, %v7003
        %v7012 = vadd.f32 %v6998, %v7004
        %v7013 = vmax.f32 %v7009, 0.0
        %v7014 = vmax.f32 %v7010, 0.0
        %v7015 = vmax.f32 %v7011, 0.0
        %v7016 = vmax.f32 %v7012, 0.0
        %v7017 = vld [vmem:[%s529] sm:$0xff]
        %v7018 = vld [vmem:[%s529 + $0x8] sm:$0xff]
        %v7019 = vld [vmem:[%s529 + $0x10] sm:$0xff]
        %v7020 = vld [vmem:[%s529 + $0x18] sm:$0xff]
        %v7021 = vld [vmem:[%s529 + $0x20] sm:$0xff]
        %v7022 = vld [vmem:[%s529 + $0x28] sm:$0xff]
        %v7023 = vld [vmem:[%s529 + $0x30] sm:$0xff]
        %v7024 = vld [vmem:[%s529 + $0x38] sm:$0xff]
        %v7025 = vld [vmem:[%s529 + $0x40] sm:$0xff]
        %v7026 = vld [vmem:[%s529 + $0x48] sm:$0xff]
        %v7027 = vld [vmem:[%s529 + $0x50] sm:$0xff]
        %v7028 = vld [vmem:[%s529 + $0x58] sm:$0xff]
        %v7029 = vld [vmem:[%s529 + $0x60] sm:$0xff]
        %v7030 = vld [vmem:[%s529 + $0x68] sm:$0xff]
        %v7031 = vld [vmem:[%s529 + $0x70] sm:$0xff]
        %v7032 = vld [vmem:[%s529 + $0x78] sm:$0xff]
        %v7033 = vld [vmem:[%s529 + $0x80] sm:$0xff]
        %v7034 = vld [vmem:[%s529 + $0x88] sm:$0xff]
        %v7035 = vld [vmem:[%s529 + $0x90] sm:$0xff]
        %v7036 = vld [vmem:[%s529 + $0x98] sm:$0xff]
        %v7037 = vld [vmem:[%s529 + $0xa0] sm:$0xff]
        %v7038 = vld [vmem:[%s529 + $0xa8] sm:$0xff]
        %v7039 = vld [vmem:[%s529 + $0xb0] sm:$0xff]
        %v7040 = vld [vmem:[%s529 + $0xb8] sm:$0xff]
        %v7041 = vld [vmem:[%s529 + $0xc0] sm:$0xff]
        %v7042 = vld [vmem:[%s529 + $0xc8] sm:$0xff]
        %v7043 = vld [vmem:[%s529 + $0xd0] sm:$0xff]
        %v7044 = vld [vmem:[%s529 + $0xd8] sm:$0xff]
        %v7045 = vld [vmem:[%s529 + $0xe0] sm:$0xff]
        %v7046 = vld [vmem:[%s529 + $0xe8] sm:$0xff]
        %v7047 = vld [vmem:[%s529 + $0xf0] sm:$0xff]
        %v7048 = vld [vmem:[%s529 + $0xf8] sm:$0xff]
        %v7049 = vld [vmem:[%s529 + $0x100] sm:$0xff]
        %v7050 = vld [vmem:[%s529 + $0x108] sm:$0xff]
        %v7051 = vld [vmem:[%s529 + $0x110] sm:$0xff]
        %v7052 = vld [vmem:[%s529 + $0x118] sm:$0xff]
        %v7053 = vld [vmem:[%s529 + $0x120] sm:$0xff]
        %v7054 = vld [vmem:[%s529 + $0x128] sm:$0xff]
        %v7055 = vld [vmem:[%s529 + $0x130] sm:$0xff]
        %v7056 = vld [vmem:[%s529 + $0x138] sm:$0xff]
        %v7057 = vld [vmem:[%s529 + $0x140] sm:$0xff]
        %v7058 = vld [vmem:[%s529 + $0x148] sm:$0xff]
        %v7059 = vld [vmem:[%s529 + $0x150] sm:$0xff]
        %v7060 = vld [vmem:[%s529 + $0x158] sm:$0xff]
        %v7061 = vld [vmem:[%s529 + $0x160] sm:$0xff]
        %v7062 = vld [vmem:[%s529 + $0x168] sm:$0xff]
        %v7063 = vld [vmem:[%s529 + $0x170] sm:$0xff]
        %v7064 = vld [vmem:[%s529 + $0x178] sm:$0xff]
        %v7065 = vld [vmem:[%s529 + $0x180] sm:$0xff]
        %v7066 = vld [vmem:[%s529 + $0x188] sm:$0xff]
        %v7067 = vld [vmem:[%s529 + $0x190] sm:$0xff]
        %v7068 = vld [vmem:[%s529 + $0x198] sm:$0xff]
        %v7069 = vld [vmem:[%s529 + $0x1a0] sm:$0xff]
        %v7070 = vld [vmem:[%s529 + $0x1a8] sm:$0xff]
        %v7071 = vld [vmem:[%s529 + $0x1b0] sm:$0xff]
        %v7072 = vld [vmem:[%s529 + $0x1b8] sm:$0xff]
        %v7073 = vld [vmem:[%s529 + $0x1c0] sm:$0xff]
        %v7074 = vld [vmem:[%s529 + $0x1c8] sm:$0xff]
        %v7075 = vld [vmem:[%s529 + $0x1d0] sm:$0xff]
        %v7076 = vld [vmem:[%s529 + $0x1d8] sm:$0xff]
        %v7077 = vld [vmem:[%s529 + $0x1e0] sm:$0xff]
        %v7078 = vld [vmem:[%s529 + $0x1e8] sm:$0xff]
        %v7079 = vld [vmem:[%s529 + $0x1f0] sm:$0xff]
        %v7080 = vld [vmem:[%s529 + $0x1f8] sm:$0xff]
        %7081 = vmatpush.msra.mxu0 %v7032
        %7082 = vmatpush.msra.mxu0 %v7031
        %7083 = vmatpush.msra.mxu0 %v7030
        %7084 = vmatpush.msra.mxu0 %v7029
        %7085 = vmatpush.msra.mxu0 %v7028
        %7086 = vmatpush.msra.mxu0 %v7027
        %7087 = vmatpush.msra.mxu0 %v7026
        %7088 = vmatpush.msra.mxu0 %v7025
        %7089 = vmatpush.msra.mxu0 %v7024
        %7090 = vmatpush.msra.mxu0 %v7023
        %7091 = vmatpush.msra.mxu0 %v7022
        %7092 = vmatpush.msra.mxu0 %v7021
        %7093 = vmatpush.msra.mxu0 %v7020
        %7094 = vmatpush.msra.mxu0 %v7019
        %7095 = vmatpush.msra.mxu0 %v7018
        %7096 = vmatpush.msra.mxu0 %v7017
        %7097 = vmatmul.f32.gmra.mxu0 %v7013
        %v7098 = vpop.f32.mrf.mxu0
        %v7099 = vadd.f32 0.0, %v7098
        %7100 = vdwg.mxu0
        %7101 = vmatpush.msra.mxu0 %v7048
        %7102 = vmatpush.msra.mxu0 %v7047
        %7103 = vmatpush.msra.mxu0 %v7046
        %7104 = vmatpush.msra.mxu0 %v7045
        %7105 = vmatpush.msra.mxu0 %v7044
        %7106 = vmatpush.msra.mxu0 %v7043
        %7107 = vmatpush.msra.mxu0 %v7042
        %7108 = vmatpush.msra.mxu0 %v7041
        %7109 = vmatpush.msra.mxu0 %v7040
        %7110 = vmatpush.msra.mxu0 %v7039
        %7111 = vmatpush.msra.mxu0 %v7038
        %7112 = vmatpush.msra.mxu0 %v7037
        %7113 = vmatpush.msra.mxu0 %v7036
        %7114 = vmatpush.msra.mxu0 %v7035
        %7115 = vmatpush.msra.mxu0 %v7034
        %7116 = vmatpush.msra.mxu0 %v7033
        %7117 = vmatmul.f32.gmra.mxu0 %v7014
        %v7118 = vpop.f32.mrf.mxu0
        %v7119 = vadd.f32 %v7099, %v7118
        %7120 = vdwg.mxu0
        %7121 = vmatpush.msra.mxu0 %v7064
        %7122 = vmatpush.msra.mxu0 %v7063
        %7123 = vmatpush.msra.mxu0 %v7062
        %7124 = vmatpush.msra.mxu0 %v7061
        %7125 = vmatpush.msra.mxu0 %v7060
        %7126 = vmatpush.msra.mxu0 %v7059
        %7127 = vmatpush.msra.mxu0 %v7058
        %7128 = vmatpush.msra.mxu0 %v7057
        %7129 = vmatpush.msra.mxu0 %v7056
        %7130 = vmatpush.msra.mxu0 %v7055
        %7131 = vmatpush.msra.mxu0 %v7054
        %7132 = vmatpush.msra.mxu0 %v7053
        %7133 = vmatpush.msra.mxu0 %v7052
        %7134 = vmatpush.msra.mxu0 %v7051
        %7135 = vmatpush.msra.mxu0 %v7050
        %7136 = vmatpush.msra.mxu0 %v7049
        %7137 = vmatmul.f32.gmra.mxu0 %v7015
        %v7138 = vpop.f32.mrf.mxu0
        %v7139 = vadd.f32 %v7119, %v7138
        %7140 = vdwg.mxu0
        %7141 = vmatpush.msra.mxu0 %v7080
        %7142 = vmatpush.msra.mxu0 %v7079
        %7143 = vmatpush.msra.mxu0 %v7078
        %7144 = vmatpush.msra.mxu0 %v7077
        %7145 = vmatpush.msra.mxu0 %v7076
        %7146 = vmatpush.msra.mxu0 %v7075
        %7147 = vmatpush.msra.mxu0 %v7074
        %7148 = vmatpush.msra.mxu0 %v7073
        %7149 = vmatpush.msra.mxu0 %v7072
        %7150 = vmatpush.msra.mxu0 %v7071
        %7151 = vmatpush.msra.mxu0 %v7070
        %7152 = vmatpush.msra.mxu0 %v7069
        %7153 = vmatpush.msra.mxu0 %v7068
        %7154 = vmatpush.msra.mxu0 %v7067
        %7155 = vmatpush.msra.mxu0 %v7066
        %7156 = vmatpush.msra.mxu0 %v7065
        %7157 = vmatmul.f32.gmra.mxu0 %v7016
        %v7158 = vpop.f32.mrf.mxu0
        %v7159 = vadd.f32 %v7139, %v7158
        %7160 = vdwg.mxu0
        %vm7161 = vcmask 9216
        %7162 = vst.msk [vmem:[%s522] sm:$0x3] %vm7161, %v7159
        %s7163 = sand.u32 %s261, 1
        %s7164 = scalar_lea.sflag [#allocation5], %s7163
        %s7165 = sand.u32 %s261, 1
        %s7166 = smul.addr %s7165, 2
        %s7167 = scalar_lea.vmem [#allocation16], %s7166
        // Predicated region
        $region93: #{tpu_custom_call.1} parent=59 // pred_check
          %p7168 = pneg %p271
        $region94: #{tpu_custom_call.1} parent=59 // pred_check_branch
          %7170 = sbr.rel (%p7168) target = $region96
        $region95: #{tpu_custom_call.1} parent=59 // pred_region
          %7172 = vsyncadd %s7164, 0
          %s7173 = smul.addr %s28, 2
          %s7174 = scalar_lea.hbm %s10, %s7173
          %s7176 = sshll.u32 %s7167, 4
          %s7177 = int_to_ptr.vmem [resolvable:$true] %s7176
          %s7178 = sshll.u32 %s7174, 4
          %s7179 = int_to_ptr.hbm [resolvable:$true] %s7178
          %7181 = dma.vmem_to_hbm [thread:$0]  %s7177, 32, %s7179, %s7164
        $region96: #{tpu_custom_call.1} parent=59 // pred_fallthru
          _
      $region60: #{tpu_custom_call.1} parent=5 // pred_fallthru
        _
      %p7182 = scmp.le.s32.totalorder 2, %s23
      // Predicated region
      $region97: #{tpu_custom_call.1} parent=5 // pred_check
        %p7183 = pneg %p7182
      $region98: #{tpu_custom_call.1} parent=5 // pred_check_branch
        %7185 = sbr.rel (%p7183) target = $region100
      $region99: #{tpu_custom_call.1} parent=5 // pred_region
        %s7186 = ssub.s32 %s23, 2
        // Predicated region
        $region101: #{tpu_custom_call.1} parent=99 // pred_check
          %p7187 = pneg %p277
        $region102: #{tpu_custom_call.1} parent=99 // pred_check_branch
          %7189 = sbr.rel (%p7187) target = $region104
        $region103: #{tpu_custom_call.1} parent=99 // pred_region
          %s7190 = sand.u32 %s262, 1
          %s7191 = scalar_lea.sflag [#allocation5], %s7190
          %s7192 = sand.u32 %s262, 1
          %s7193 = smul.addr %s7192, 2
          %s7194 = scalar_lea.vmem [#allocation16], %s7193
          %7196 = dma.done %s7191, 32
        $region104: #{tpu_custom_call.1} parent=99 // pred_fallthru
          _
      $region100: #{tpu_custom_call.1} parent=5 // pred_fallthru
        _
    $region6: #{tpu_custom_call.1} parent=1 // loop_footer
      %s27 = sadd.s32 1, %s23
    $region7: #{tpu_custom_call.1} parent=1 // loop_footer_branch
      %22 = sbr.rel target = $region3
    $region8: #{tpu_custom_call.1} parent=1 // loop_exit
      _
    %7197 = vsyncpa [#allocation4], 1
    %s7198 = scalar_lea.sflag [#allocation4], 1
    %7199 = vsyncpa %s7198, 1
    %7200 = vsyncpa [#allocation7], 1
    %7201 = vsyncpa [#allocation10], 1
    %7202 = vsyncpa [#allocation13], 1
    %7203 = vsyncpa [#allocation5], 1
    %s7204 = scalar_lea.sflag [#allocation5], 1
    %7205 = vsyncpa %s7204, 1

</llo_original>
